<compile_context>
chip_gen: v7x
topology: tpu7x:2x2x1
jax: 0.10.0
libtpu: 0.0.40
codegen_flags: <defaults>
</compile_context>

<pallas_src>
import functools

import numpy as np
import jax
import jax.numpy as jnp
from jax import lax
from jax.experimental import pallas as pl
from jax.experimental.pallas import tpu as pltpu


# ---------------------- fixed LeNet geometry (3x32x32 input) ----------------
_CIN, _H, _W = 3, 32, 32
_C1, _C2 = 6, 16
_K = 5
_PH1, _PW1 = 14, 14         # pool1 output
_PH2, _PW2 = 5, 5           # pool2 output

_S1 = _H * _W               # 1024 : per-sample flat size, stage 1 (row stride 32)
_RS1 = _W                   # 32
_S2 = 256                   # per-sample flat size, stage 2 (16x16 grid)
_RS2 = 16
_F2 = 64                    # per-channel padded pooled features (8x8 grid)
_RSF = 8
_NFEAT = _C2 * _F2          # 1024 padded flat features per sample

_PAD_X = 256                # host-side tail pad on the x tile  (needs >= 4*32+4)
_PAD_A = 128                # conv1-output scratch tail         (needs >= 33)
_PAD_S = 128                # s1 / conv2-output scratch tails   (needs >= 68 / 17)


def _lenet_kernel(TB,
                  x_ref, w1_ref, b1_ref, w2_ref, b2_ref, g1_ref, g2_ref,
                  wf1_ref, bf1_ref, wf2_ref, bf2_ref, wf3_ref, bf3_ref,
                  o_ref,
                  sX1_ref, sA_ref, sP_ref, s1_ref, sX2_ref, sB_ref, sQ_ref,
                  sF_ref):
    f32 = jnp.float32
    M1 = TB * _S1
    M2 = TB * _S2

    # Zero scratch tails: the shifted pool/conv windows of the LAST sample in
    # the tile over-read into them; those lanes are masked by g1/g2 zeros, but
    # they must be finite.
    sA_ref[:, M1:M1 + _PAD_A] = jnp.zeros((_C1, _PAD_A), f32)
    s1_ref[:, M2:M2 + _PAD_S] = jnp.zeros((_C1, _PAD_S), f32)
    sB_ref[:, M2:M2 + _PAD_S] = jnp.zeros((_C2, _PAD_S), f32)

    # ---------------- conv1 (3 -> 6, 5x5) + bias + ReLU ----------------------
    # Stage the 25 shifted windows once (ref slice copies), then one MXU dot.
    for i in range(_K):
        for j in range(_K):
            r = (i * _K + j) * _CIN
            d = i * _RS1 + j
            sX1_ref[r:r + _CIN, :] = x_ref[0, :, d:d + M1]
    sA_ref[:, 0:M1] = jnp.maximum(
        jnp.dot(w1_ref[...], sX1_ref[...], preferred_element_type=f32)
        + b1_ref[...], 0.0)

    # ---------------- pool1 (2x2, stride 2) ----------------------------------
    # Per-sample 4-way max into sample-major rows, then ONE batched gather dot.
    for n in range(TB):
        o = n * _S1
        blk = jnp.maximum(
            jnp.maximum(sA_ref[:, o:o + _S1], sA_ref[:, o + 1:o + 1 + _S1]),
            jnp.maximum(sA_ref[:, o + _RS1:o + _RS1 + _S1],
                        sA_ref[:, o + _RS1 + 1:o + _RS1 + 1 + _S1]))
        sP_ref[n * _C1:(n + 1) * _C1, :] = blk
    p1 = jnp.dot(sP_ref[...], g1_ref[...], preferred_element_type=f32)  # [TB*6, 256]
    for n in range(TB):
        s1_ref[:, n * _S2:(n + 1) * _S2] = p1[n * _C1:(n + 1) * _C1, :]

    # ---------------- conv2 (6 -> 16, 5x5) + bias + ReLU ---------------------
    for i in range(_K):
        for j in range(_K):
            r = (i * _K + j) * _C1
            d = i * _RS2 + j
            sX2_ref[r:r + _C1, :] = s1_ref[:, d:d + M2]
    sB_ref[:, 0:M2] = jnp.maximum(
        jnp.dot(w2_ref[...], sX2_ref[...], preferred_element_type=f32)
        + b2_ref[...], 0.0)

    # ---------------- pool2 (2x2, stride 2) ----------------------------------
    for n in range(TB):
        o = n * _S2
        blk = jnp.maximum(
            jnp.maximum(sB_ref[:, o:o + _S2], sB_ref[:, o + 1:o + 1 + _S2]),
            jnp.maximum(sB_ref[:, o + _RS2:o + _RS2 + _S2],
                        sB_ref[:, o + _RS2 + 1:o + _RS2 + 1 + _S2]))
        sQ_ref[n * _C2:(n + 1) * _C2, :] = blk
    p2 = jnp.dot(sQ_ref[...], g2_ref[...], preferred_element_type=f32)  # [TB*16, 64]

    # ---------------- assemble flat features (PyTorch (c, h, w) order) -------
    # sF[n, c*64 + a*8 + b]; hole columns (a>=5 or b>=5) are exactly zero and
    # line up with the zero rows of the padded fc1 weight.
    for n in range(TB):
        for c in range(_C2):
            sF_ref[n:n + 1, c * _F2:(c + 1) * _F2] = \
                p2[n * _C2 + c:n * _C2 + c + 1, :]

    # ---------------- batched MLP head (400 -> 120 -> 84 -> 10) --------------
    h = jnp.maximum(
        jnp.dot(sF_ref[...], wf1_ref[...], preferred_element_type=f32)
        + bf1_ref[...], 0.0)                                           # [TB, 120]
    h = jnp.maximum(
        jnp.dot(h, wf2_ref[...], preferred_element_type=f32)
        + bf2_ref[...], 0.0)                                           # [TB, 84]
    o_ref[0] = (jnp.dot(h, wf3_ref[...], preferred_element_type=f32)
                + bf3_ref[...])                                        # [TB, 10]


def _pool_gather_matrix(in_row_stride, in_size, out_row_stride, out_h, out_w):
    """0/1 matrix: column a*out_row_stride+b picks source row 2*in_row_stride*a+2*b."""
    out_size = out_row_stride * out_row_stride
    q = np.arange(out_size)
    a, b = q // out_row_stride, q % out_row_stride
    src = 2 * in_row_stride * a + 2 * b
    valid = (a < out_h) & (b < out_w)
    g = (np.arange(in_size)[:, None] == src[None, :]) & valid[None, :]
    return jnp.asarray(g, dtype=jnp.float32)


def lenet_forward(x, params, *, batch_tile=8):
    """x: [N, 3, 32, 32] float32 (NCHW, like the PyTorch module)."""
    N, C, H, W = x.shape
    assert (C, H, W) == (_CIN, _H, _W), "LeNet fc head implies 3x32x32 inputs"
    f32 = jnp.float32
    TB = int(batch_tile)               # keep modest (<= ~16): kernel unrolls over TB
    T = pl.cdiv(N, TB)
    N_pad = T * TB
    M1, M2 = TB * _S1, TB * _S2

    xf = x.astype(f32)
    if N_pad != N:
        xf = jnp.concatenate(
            [xf, jnp.zeros((N_pad - N, _CIN, _H, _W), f32)], axis=0)
    # [T, 3, TB*1024] channel-major flat tiles + tail pad for shifted conv taps.
    x_t = xf.reshape(T, TB, _CIN, _S1).transpose(0, 2, 1, 3).reshape(T, _CIN, M1)
    x_t = jnp.pad(x_t, ((0, 0), (0, 0), (0, _PAD_X)))

    # Conv weights -> [Cout, 25*Cin], matching the staged tap order (i, j, cin).
    w1s = params["cnn0_w"].astype(f32).transpose(2, 3, 1, 0).reshape(
        _K * _K * _CIN, _C1).T
    w2s = params["cnn1_w"].astype(f32).transpose(2, 3, 1, 0).reshape(
        _K * _K * _C1, _C2).T
    b1 = params["cnn0_b"].astype(f32).reshape(_C1, 1)
    b2 = params["cnn1_b"].astype(f32).reshape(_C2, 1)

    # Pooling gather matrices, hoisted out of the kernel.
    g1 = _pool_gather_matrix(_RS1, _S1, _RS2, _PH1, _PW1)   # [1024, 256]
    g2 = _pool_gather_matrix(_RS2, _S2, _RSF, _PH2, _PW2)   # [256, 64]

    # fc1 weight re-laid to the padded (c, a*8+b) feature order (zero hole rows).
    wf1 = params["fc1_w"].astype(f32).reshape(_C2, _PH2, _PW2, 120)
    wf1 = jnp.pad(wf1, ((0, 0), (0, _RSF - _PH2), (0, _RSF - _PW2), (0, 0)))
    wf1 = wf1.reshape(_NFEAT, 120)
    bf1 = params["fc1_b"].astype(f32).reshape(1, 120)
    wf2 = params["fc2_w"].astype(f32)
    bf2 = params["fc2_b"].astype(f32).reshape(1, 84)
    wf3 = params["fc3_w"].astype(f32)
    bf3 = params["fc3_b"].astype(f32).reshape(1, 10)

    def whole(arr):
        nd = arr.ndim
        return pl.BlockSpec(arr.shape, lambda t, _nd=nd: (0,) * _nd)

    out = pl.pallas_call(
        functools.partial(_lenet_kernel, TB),
        out_shape=jax.ShapeDtypeStruct((T, TB, 10), f32),
        grid=(T,),
        in_specs=[
            pl.BlockSpec((1, _CIN, M1 + _PAD_X), lambda t: (t, 0, 0)),
            whole(w1s), whole(b1), whole(w2s), whole(b2),
            whole(g1), whole(g2),
            whole(wf1), whole(bf1), whole(wf2), whole(bf2),
            whole(wf3), whole(bf3),
        ],
        out_specs=pl.BlockSpec((1, TB, 10), lambda t: (t, 0, 0)),
        scratch_shapes=[
            pltpu.VMEM((_K * _K * _CIN, M1), f32),    # sX1: staged conv1 taps
            pltpu.VMEM((_C1, M1 + _PAD_A), f32),      # sA : conv1 output
            pltpu.VMEM((TB * _C1, _S1), f32),         # sP : pool1 lhs (sample-major)
            pltpu.VMEM((_C1, M2 + _PAD_S), f32),      # s1 : pool1 output
            pltpu.VMEM((_K * _K * _C1, M2), f32),     # sX2: staged conv2 taps
            pltpu.VMEM((_C2, M2 + _PAD_S), f32),      # sB : conv2 output
            pltpu.VMEM((TB * _C2, _S2), f32),         # sQ : pool2 lhs (sample-major)
            pltpu.VMEM((TB, _NFEAT), f32),            # sF : flat features
        ],
        compiler_params=pltpu.CompilerParams(
            dimension_semantics=("parallel",),
            vmem_limit_bytes=32 * 1024 * 1024,
        ),
    )(x_t, w1s, b1, w2s, b2, g1, g2, wf1, bf1, wf2, bf2, wf3, bf3)

    return out.reshape(N_pad, 10)[:N]


def init_params(key):
    ks = jax.random.split(key, 8)
    s = 0.1
    return {
        "cnn0_w": s * jax.random.normal(ks[0], (6, 3, 5, 5), jnp.float32),
        "cnn0_b": s * jax.random.normal(ks[1], (6,), jnp.float32),
        "cnn1_w": s * jax.random.normal(ks[2], (16, 6, 5, 5), jnp.float32),
        "cnn1_b": s * jax.random.normal(ks[3], (16,), jnp.float32),
        # Linear weights stored as [in, out] (transpose of PyTorch [out, in]);
        # fc1 rows follow PyTorch's (C, 5, 5) flatten order.
        "fc1_w": s * jax.random.normal(ks[4], (400, 120), jnp.float32),
        "fc1_b": jnp.zeros((120,), jnp.float32),
        "fc2_w": s * jax.random.normal(ks[5], (120, 84), jnp.float32),
        "fc2_b": jnp.zeros((84,), jnp.float32),
        "fc3_w": s * jax.random.normal(ks[6], (84, 10), jnp.float32),
        "fc3_b": jnp.zeros((10,), jnp.float32),
    }


def lenet_reference(x, params):
    """Pure-JAX reference matching the PyTorch module."""
    f32 = jnp.float32
    dn = ("NCHW", "OIHW", "NCHW")
    y = lax.conv_general_dilated(x.astype(f32), params["cnn0_w"].astype(f32),
                                 (1, 1), "VALID", dimension_numbers=dn)
    y = jnp.maximum(y + params["cnn0_b"][None, :, None, None], 0.0)
    y = lax.reduce_window(y, -jnp.inf, lax.max, (1, 1, 2, 2), (1, 1, 2, 2),
                          "VALID")
    y = lax.conv_general_dilated(y, params["cnn1_w"].astype(f32),
                                 (1, 1), "VALID", dimension_numbers=dn)
    y = jnp.maximum(y + params["cnn1_b"][None, :, None, None], 0.0)
    y = lax.reduce_window(y, -jnp.inf, lax.max, (1, 1, 2, 2), (1, 1, 2, 2),
                          "VALID")
    y = y.reshape(y.shape[0], -1)
    y = jnp.maximum(y @ params["fc1_w"] + params["fc1_b"], 0.0)
    y = jnp.maximum(y @ params["fc2_w"] + params["fc2_b"], 0.0)
    return y @ params["fc3_w"] + params["fc3_b"]


if __name__ == "__main__":
    key = jax.random.PRNGKey(0)
    pkey, xkey = jax.random.split(key)
    params = init_params(pkey)
    # LeNet's fc head (16*5*5) implies 3x32x32 inputs; batch=4, 2 samples/tile
    # so the grid actually iterates (and can be split across v7x cores).
    x = jax.random.normal(xkey, (4, 3, 32, 32), jnp.float32)

    fwd = jax.jit(functools.partial(lenet_forward, batch_tile=2))
    out = jax.block_until_ready(fwd(x, params))
    assert out.shape == (4, 10) and out.dtype == jnp.float32
    assert bool(jnp.all(jnp.isfinite(out)))

    ref = lenet_reference(x, params)
    err = float(jnp.max(jnp.abs(out - ref)))
    assert err < 2e-2, f"mismatch vs pure-JAX reference: max abs err = {err}"
    print("KERNEL_OK")
</pallas_src>

<mosaic_0001>
module attributes {stable_mosaic.version = 11 : i64} {
  func.func @_lenet_kernel(%arg0: i32, %arg1: memref<1x3x2304xf32, #tpu.memory_space<vmem>>, %arg2: memref<6x75xf32, #tpu.memory_space<vmem>>, %arg3: memref<6x1xf32, #tpu.memory_space<vmem>>, %arg4: memref<16x150xf32, #tpu.memory_space<vmem>>, %arg5: memref<16x1xf32, #tpu.memory_space<vmem>>, %arg6: memref<1024x256xf32, #tpu.memory_space<vmem>>, %arg7: memref<256x64xf32, #tpu.memory_space<vmem>>, %arg8: memref<1024x120xf32, #tpu.memory_space<vmem>>, %arg9: memref<1x120xf32, #tpu.memory_space<vmem>>, %arg10: memref<120x84xf32, #tpu.memory_space<vmem>>, %arg11: memref<1x84xf32, #tpu.memory_space<vmem>>, %arg12: memref<84x10xf32, #tpu.memory_space<vmem>>, %arg13: memref<1x10xf32, #tpu.memory_space<vmem>>, %arg14: memref<1x2x10xf32, #tpu.memory_space<vmem>>, %arg15: memref<75x2048xf32, #tpu.memory_space<vmem>>, %arg16: memref<6x2176xf32, #tpu.memory_space<vmem>>, %arg17: memref<12x1024xf32, #tpu.memory_space<vmem>>, %arg18: memref<6x640xf32, #tpu.memory_space<vmem>>, %arg19: memref<150x512xf32, #tpu.memory_space<vmem>>, %arg20: memref<16x640xf32, #tpu.memory_space<vmem>>, %arg21: memref<32x256xf32, #tpu.memory_space<vmem>>, %arg22: memref<2x1024xf32, #tpu.memory_space<vmem>>) attributes {dimension_semantics = [#tpu.dimension_semantics<parallel>], iteration_bounds = array<i64: 2>, scalar_prefetch = 0 : i64, scratch_operands = 8 : i64, tpu.core_type = #tpu.core_type<tc>, window_params = [{transform_indices = @transform_0, window_bounds = array<i64: 1, 3, 2304>}, {pipeline_mode = #tpu.pipeline_mode<synchronous>, transform_indices = @transform_1, window_bounds = array<i64: 6, 75>}, {pipeline_mode = #tpu.pipeline_mode<synchronous>, transform_indices = @transform_2, window_bounds = array<i64: 6, 1>}, {pipeline_mode = #tpu.pipeline_mode<synchronous>, transform_indices = @transform_3, window_bounds = array<i64: 16, 150>}, {pipeline_mode = #tpu.pipeline_mode<synchronous>, transform_indices = @transform_4, window_bounds = array<i64: 16, 1>}, {pipeline_mode = #tpu.pipeline_mode<synchronous>, transform_indices = @transform_5, window_bounds = array<i64: 1024, 256>}, {pipeline_mode = #tpu.pipeline_mode<synchronous>, transform_indices = @transform_6, window_bounds = array<i64: 256, 64>}, {pipeline_mode = #tpu.pipeline_mode<synchronous>, transform_indices = @transform_7, window_bounds = array<i64: 1024, 120>}, {pipeline_mode = #tpu.pipeline_mode<synchronous>, transform_indices = @transform_8, window_bounds = array<i64: 1, 120>}, {pipeline_mode = #tpu.pipeline_mode<synchronous>, transform_indices = @transform_9, window_bounds = array<i64: 120, 84>}, {pipeline_mode = #tpu.pipeline_mode<synchronous>, transform_indices = @transform_10, window_bounds = array<i64: 1, 84>}, {pipeline_mode = #tpu.pipeline_mode<synchronous>, transform_indices = @transform_11, window_bounds = array<i64: 84, 10>}, {pipeline_mode = #tpu.pipeline_mode<synchronous>, transform_indices = @transform_12, window_bounds = array<i64: 1, 10>}, {transform_indices = @transform_13, window_bounds = array<i64: 1, 2, 10>}]} {
    %cst = arith.constant 0.000000e+00 : f32
    %0 = vector.broadcast %cst : f32 to vector<6x128xf32>
    %c0 = arith.constant 0 : index
    %c2048 = arith.constant 2048 : index
    %1 = vector.load %arg16[%c0, %c2048] : memref<6x2176xf32, #tpu.memory_space<vmem>>, vector<6x128xf32>
    tpu.vector_store %arg16[%c0, %c2048], %0 {strides = array<i32>} : memref<6x2176xf32, #tpu.memory_space<vmem>>, vector<6x128xf32>,
    %cst_0 = arith.constant 0.000000e+00 : f32
    %2 = vector.broadcast %cst_0 : f32 to vector<6x128xf32>
    %c0_1 = arith.constant 0 : index
    %c512 = arith.constant 512 : index
    %3 = vector.load %arg18[%c0_1, %c512] : memref<6x640xf32, #tpu.memory_space<vmem>>, vector<6x128xf32>
    tpu.vector_store %arg18[%c0_1, %c512], %2 {strides = array<i32>} : memref<6x640xf32, #tpu.memory_space<vmem>>, vector<6x128xf32>,
    %cst_2 = arith.constant 0.000000e+00 : f32
    %4 = vector.broadcast %cst_2 : f32 to vector<16x128xf32>
    %c0_3 = arith.constant 0 : index
    %c512_4 = arith.constant 512 : index
    %5 = vector.load %arg20[%c0_3, %c512_4] : memref<16x640xf32, #tpu.memory_space<vmem>>, vector<16x128xf32>
    tpu.vector_store %arg20[%c0_3, %c512_4], %4 {strides = array<i32>} : memref<16x640xf32, #tpu.memory_space<vmem>>, vector<16x128xf32>,
    %c0_5 = arith.constant 0 : index
    %c0_6 = arith.constant 0 : index
    %c0_7 = arith.constant 0 : index
    %6 = vector.load %arg1[%c0_5, %c0_6, %c0_7] : memref<1x3x2304xf32, #tpu.memory_space<vmem>>, vector<1x3x2048xf32>
    %7 = vector.shape_cast %6 : vector<1x3x2048xf32> to vector<3x2048xf32>
    %c0_8 = arith.constant 0 : index
    %c0_9 = arith.constant 0 : index
    %8 = vector.load %arg15[%c0_8, %c0_9] : memref<75x2048xf32, #tpu.memory_space<vmem>>, vector<3x2048xf32>
    tpu.vector_store %arg15[%c0_8, %c0_9], %7 {strides = array<i32>} : memref<75x2048xf32, #tpu.memory_space<vmem>>, vector<3x2048xf32>,
    %c0_10 = arith.constant 0 : index
    %c0_11 = arith.constant 0 : index
    %c1 = arith.constant 1 : index
    %9 = vector.load %arg1[%c0_10, %c0_11, %c1] : memref<1x3x2304xf32, #tpu.memory_space<vmem>>, vector<1x3x2048xf32>
    %10 = vector.shape_cast %9 : vector<1x3x2048xf32> to vector<3x2048xf32>
    %c3 = arith.constant 3 : index
    %c0_12 = arith.constant 0 : index
    %11 = vector.load %arg15[%c3, %c0_12] : memref<75x2048xf32, #tpu.memory_space<vmem>>, vector<3x2048xf32>
    tpu.vector_store %arg15[%c3, %c0_12], %10 {strides = array<i32>} : memref<75x2048xf32, #tpu.memory_space<vmem>>, vector<3x2048xf32>,
    %c0_13 = arith.constant 0 : index
    %c0_14 = arith.constant 0 : index
    %c2 = arith.constant 2 : index
    %12 = vector.load %arg1[%c0_13, %c0_14, %c2] : memref<1x3x2304xf32, #tpu.memory_space<vmem>>, vector<1x3x2048xf32>
    %13 = vector.shape_cast %12 : vector<1x3x2048xf32> to vector<3x2048xf32>
    %c6 = arith.constant 6 : index
    %c0_15 = arith.constant 0 : index
    %14 = vector.load %arg15[%c6, %c0_15] : memref<75x2048xf32, #tpu.memory_space<vmem>>, vector<3x2048xf32>
    tpu.vector_store %arg15[%c6, %c0_15], %13 {strides = array<i32>} : memref<75x2048xf32, #tpu.memory_space<vmem>>, vector<3x2048xf32>,
    %c0_16 = arith.constant 0 : index
    %c0_17 = arith.constant 0 : index
    %c3_18 = arith.constant 3 : index
    %15 = vector.load %arg1[%c0_16, %c0_17, %c3_18] : memref<1x3x2304xf32, #tpu.memory_space<vmem>>, vector<1x3x2048xf32>
    %16 = vector.shape_cast %15 : vector<1x3x2048xf32> to vector<3x2048xf32>
    %c9 = arith.constant 9 : index
    %c0_19 = arith.constant 0 : index
    %17 = vector.load %arg15[%c9, %c0_19] : memref<75x2048xf32, #tpu.memory_space<vmem>>, vector<3x2048xf32>
    tpu.vector_store %arg15[%c9, %c0_19], %16 {strides = array<i32>} : memref<75x2048xf32, #tpu.memory_space<vmem>>, vector<3x2048xf32>,
    %c0_20 = arith.constant 0 : index
    %c0_21 = arith.constant 0 : index
    %c4 = arith.constant 4 : index
    %18 = vector.load %arg1[%c0_20, %c0_21, %c4] : memref<1x3x2304xf32, #tpu.memory_space<vmem>>, vector<1x3x2048xf32>
    %19 = vector.shape_cast %18 : vector<1x3x2048xf32> to vector<3x2048xf32>
    %c12 = arith.constant 12 : index
    %c0_22 = arith.constant 0 : index
    %20 = vector.load %arg15[%c12, %c0_22] : memref<75x2048xf32, #tpu.memory_space<vmem>>, vector<3x2048xf32>
    tpu.vector_store %arg15[%c12, %c0_22], %19 {strides = array<i32>} : memref<75x2048xf32, #tpu.memory_space<vmem>>, vector<3x2048xf32>,
    %c0_23 = arith.constant 0 : index
    %c0_24 = arith.constant 0 : index
    %c32 = arith.constant 32 : index
    %21 = vector.load %arg1[%c0_23, %c0_24, %c32] : memref<1x3x2304xf32, #tpu.memory_space<vmem>>, vector<1x3x2048xf32>
    %22 = vector.shape_cast %21 : vector<1x3x2048xf32> to vector<3x2048xf32>
    %c15 = arith.constant 15 : index
    %c0_25 = arith.constant 0 : index
    %23 = vector.load %arg15[%c15, %c0_25] : memref<75x2048xf32, #tpu.memory_space<vmem>>, vector<3x2048xf32>
    tpu.vector_store %arg15[%c15, %c0_25], %22 {strides = array<i32>} : memref<75x2048xf32, #tpu.memory_space<vmem>>, vector<3x2048xf32>,
    %c0_26 = arith.constant 0 : index
    %c0_27 = arith.constant 0 : index
    %c33 = arith.constant 33 : index
    %24 = vector.load %arg1[%c0_26, %c0_27, %c33] : memref<1x3x2304xf32, #tpu.memory_space<vmem>>, vector<1x3x2048xf32>
    %25 = vector.shape_cast %24 : vector<1x3x2048xf32> to vector<3x2048xf32>
    %c18 = arith.constant 18 : index
    %c0_28 = arith.constant 0 : index
    %26 = vector.load %arg15[%c18, %c0_28] : memref<75x2048xf32, #tpu.memory_space<vmem>>, vector<3x2048xf32>
    tpu.vector_store %arg15[%c18, %c0_28], %25 {strides = array<i32>} : memref<75x2048xf32, #tpu.memory_space<vmem>>, vector<3x2048xf32>,
    %c0_29 = arith.constant 0 : index
    %c0_30 = arith.constant 0 : index
    %c34 = arith.constant 34 : index
    %27 = vector.load %arg1[%c0_29, %c0_30, %c34] : memref<1x3x2304xf32, #tpu.memory_space<vmem>>, vector<1x3x2048xf32>
    %28 = vector.shape_cast %27 : vector<1x3x2048xf32> to vector<3x2048xf32>
    %c21 = arith.constant 21 : index
    %c0_31 = arith.constant 0 : index
    %29 = vector.load %arg15[%c21, %c0_31] : memref<75x2048xf32, #tpu.memory_space<vmem>>, vector<3x2048xf32>
    tpu.vector_store %arg15[%c21, %c0_31], %28 {strides = array<i32>} : memref<75x2048xf32, #tpu.memory_space<vmem>>, vector<3x2048xf32>,
    %c0_32 = arith.constant 0 : index
    %c0_33 = arith.constant 0 : index
    %c35 = arith.constant 35 : index
    %30 = vector.load %arg1[%c0_32, %c0_33, %c35] : memref<1x3x2304xf32, #tpu.memory_space<vmem>>, vector<1x3x2048xf32>
    %31 = vector.shape_cast %30 : vector<1x3x2048xf32> to vector<3x2048xf32>
    %c24 = arith.constant 24 : index
    %c0_34 = arith.constant 0 : index
    %32 = vector.load %arg15[%c24, %c0_34] : memref<75x2048xf32, #tpu.memory_space<vmem>>, vector<3x2048xf32>
    tpu.vector_store %arg15[%c24, %c0_34], %31 {strides = array<i32>} : memref<75x2048xf32, #tpu.memory_space<vmem>>, vector<3x2048xf32>,
    %c0_35 = arith.constant 0 : index
    %c0_36 = arith.constant 0 : index
    %c36 = arith.constant 36 : index
    %33 = vector.load %arg1[%c0_35, %c0_36, %c36] : memref<1x3x2304xf32, #tpu.memory_space<vmem>>, vector<1x3x2048xf32>
    %34 = vector.shape_cast %33 : vector<1x3x2048xf32> to vector<3x2048xf32>
    %c27 = arith.constant 27 : index
    %c0_37 = arith.constant 0 : index
    %35 = vector.load %arg15[%c27, %c0_37] : memref<75x2048xf32, #tpu.memory_space<vmem>>, vector<3x2048xf32>
    tpu.vector_store %arg15[%c27, %c0_37], %34 {strides = array<i32>} : memref<75x2048xf32, #tpu.memory_space<vmem>>, vector<3x2048xf32>,
    %c0_38 = arith.constant 0 : index
    %c0_39 = arith.constant 0 : index
    %c64 = arith.constant 64 : index
    %36 = vector.load %arg1[%c0_38, %c0_39, %c64] : memref<1x3x2304xf32, #tpu.memory_space<vmem>>, vector<1x3x2048xf32>
    %37 = vector.shape_cast %36 : vector<1x3x2048xf32> to vector<3x2048xf32>
    %c30 = arith.constant 30 : index
    %c0_40 = arith.constant 0 : index
    %38 = vector.load %arg15[%c30, %c0_40] : memref<75x2048xf32, #tpu.memory_space<vmem>>, vector<3x2048xf32>
    tpu.vector_store %arg15[%c30, %c0_40], %37 {strides = array<i32>} : memref<75x2048xf32, #tpu.memory_space<vmem>>, vector<3x2048xf32>,
    %c0_41 = arith.constant 0 : index
    %c0_42 = arith.constant 0 : index
    %c65 = arith.constant 65 : index
    %39 = vector.load %arg1[%c0_41, %c0_42, %c65] : memref<1x3x2304xf32, #tpu.memory_space<vmem>>, vector<1x3x2048xf32>
    %40 = vector.shape_cast %39 : vector<1x3x2048xf32> to vector<3x2048xf32>
    %c33_43 = arith.constant 33 : index
    %c0_44 = arith.constant 0 : index
    %41 = vector.load %arg15[%c33_43, %c0_44] : memref<75x2048xf32, #tpu.memory_space<vmem>>, vector<3x2048xf32>
    tpu.vector_store %arg15[%c33_43, %c0_44], %40 {strides = array<i32>} : memref<75x2048xf32, #tpu.memory_space<vmem>>, vector<3x2048xf32>,
    %c0_45 = arith.constant 0 : index
    %c0_46 = arith.constant 0 : index
    %c66 = arith.constant 66 : index
    %42 = vector.load %arg1[%c0_45, %c0_46, %c66] : memref<1x3x2304xf32, #tpu.memory_space<vmem>>, vector<1x3x2048xf32>
    %43 = vector.shape_cast %42 : vector<1x3x2048xf32> to vector<3x2048xf32>
    %c36_47 = arith.constant 36 : index
    %c0_48 = arith.constant 0 : index
    %44 = vector.load %arg15[%c36_47, %c0_48] : memref<75x2048xf32, #tpu.memory_space<vmem>>, vector<3x2048xf32>
    tpu.vector_store %arg15[%c36_47, %c0_48], %43 {strides = array<i32>} : memref<75x2048xf32, #tpu.memory_space<vmem>>, vector<3x2048xf32>,
    %c0_49 = arith.constant 0 : index
    %c0_50 = arith.constant 0 : index
    %c67 = arith.constant 67 : index
    %45 = vector.load %arg1[%c0_49, %c0_50, %c67] : memref<1x3x2304xf32, #tpu.memory_space<vmem>>, vector<1x3x2048xf32>
    %46 = vector.shape_cast %45 : vector<1x3x2048xf32> to vector<3x2048xf32>
    %c39 = arith.constant 39 : index
    %c0_51 = arith.constant 0 : index
    %47 = vector.load %arg15[%c39, %c0_51] : memref<75x2048xf32, #tpu.memory_space<vmem>>, vector<3x2048xf32>
    tpu.vector_store %arg15[%c39, %c0_51], %46 {strides = array<i32>} : memref<75x2048xf32, #tpu.memory_space<vmem>>, vector<3x2048xf32>,
    %c0_52 = arith.constant 0 : index
    %c0_53 = arith.constant 0 : index
    %c68 = arith.constant 68 : index
    %48 = vector.load %arg1[%c0_52, %c0_53, %c68] : memref<1x3x2304xf32, #tpu.memory_space<vmem>>, vector<1x3x2048xf32>
    %49 = vector.shape_cast %48 : vector<1x3x2048xf32> to vector<3x2048xf32>
    %c42 = arith.constant 42 : index
    %c0_54 = arith.constant 0 : index
    %50 = vector.load %arg15[%c42, %c0_54] : memref<75x2048xf32, #tpu.memory_space<vmem>>, vector<3x2048xf32>
    tpu.vector_store %arg15[%c42, %c0_54], %49 {strides = array<i32>} : memref<75x2048xf32, #tpu.memory_space<vmem>>, vector<3x2048xf32>,
    %c0_55 = arith.constant 0 : index
    %c0_56 = arith.constant 0 : index
    %c96 = arith.constant 96 : index
    %51 = vector.load %arg1[%c0_55, %c0_56, %c96] : memref<1x3x2304xf32, #tpu.memory_space<vmem>>, vector<1x3x2048xf32>
    %52 = vector.shape_cast %51 : vector<1x3x2048xf32> to vector<3x2048xf32>
    %c45 = arith.constant 45 : index
    %c0_57 = arith.constant 0 : index
    %53 = vector.load %arg15[%c45, %c0_57] : memref<75x2048xf32, #tpu.memory_space<vmem>>, vector<3x2048xf32>
    tpu.vector_store %arg15[%c45, %c0_57], %52 {strides = array<i32>} : memref<75x2048xf32, #tpu.memory_space<vmem>>, vector<3x2048xf32>,
    %c0_58 = arith.constant 0 : index
    %c0_59 = arith.constant 0 : index
    %c97 = arith.constant 97 : index
    %54 = vector.load %arg1[%c0_58, %c0_59, %c97] : memref<1x3x2304xf32, #tpu.memory_space<vmem>>, vector<1x3x2048xf32>
    %55 = vector.shape_cast %54 : vector<1x3x2048xf32> to vector<3x2048xf32>
    %c48 = arith.constant 48 : index
    %c0_60 = arith.constant 0 : index
    %56 = vector.load %arg15[%c48, %c0_60] : memref<75x2048xf32, #tpu.memory_space<vmem>>, vector<3x2048xf32>
    tpu.vector_store %arg15[%c48, %c0_60], %55 {strides = array<i32>} : memref<75x2048xf32, #tpu.memory_space<vmem>>, vector<3x2048xf32>,
    %c0_61 = arith.constant 0 : index
    %c0_62 = arith.constant 0 : index
    %c98 = arith.constant 98 : index
    %57 = vector.load %arg1[%c0_61, %c0_62, %c98] : memref<1x3x2304xf32, #tpu.memory_space<vmem>>, vector<1x3x2048xf32>
    %58 = vector.shape_cast %57 : vector<1x3x2048xf32> to vector<3x2048xf32>
    %c51 = arith.constant 51 : index
    %c0_63 = arith.constant 0 : index
    %59 = vector.load %arg15[%c51, %c0_63] : memref<75x2048xf32, #tpu.memory_space<vmem>>, vector<3x2048xf32>
    tpu.vector_store %arg15[%c51, %c0_63], %58 {strides = array<i32>} : memref<75x2048xf32, #tpu.memory_space<vmem>>, vector<3x2048xf32>,
    %c0_64 = arith.constant 0 : index
    %c0_65 = arith.constant 0 : index
    %c99 = arith.constant 99 : index
    %60 = vector.load %arg1[%c0_64, %c0_65, %c99] : memref<1x3x2304xf32, #tpu.memory_space<vmem>>, vector<1x3x2048xf32>
    %61 = vector.shape_cast %60 : vector<1x3x2048xf32> to vector<3x2048xf32>
    %c54 = arith.constant 54 : index
    %c0_66 = arith.constant 0 : index
    %62 = vector.load %arg15[%c54, %c0_66] : memref<75x2048xf32, #tpu.memory_space<vmem>>, vector<3x2048xf32>
    tpu.vector_store %arg15[%c54, %c0_66], %61 {strides = array<i32>} : memref<75x2048xf32, #tpu.memory_space<vmem>>, vector<3x2048xf32>,
    %c0_67 = arith.constant 0 : index
    %c0_68 = arith.constant 0 : index
    %c100 = arith.constant 100 : index
    %63 = vector.load %arg1[%c0_67, %c0_68, %c100] : memref<1x3x2304xf32, #tpu.memory_space<vmem>>, vector<1x3x2048xf32>
    %64 = vector.shape_cast %63 : vector<1x3x2048xf32> to vector<3x2048xf32>
    %c57 = arith.constant 57 : index
    %c0_69 = arith.constant 0 : index
    %65 = vector.load %arg15[%c57, %c0_69] : memref<75x2048xf32, #tpu.memory_space<vmem>>, vector<3x2048xf32>
    tpu.vector_store %arg15[%c57, %c0_69], %64 {strides = array<i32>} : memref<75x2048xf32, #tpu.memory_space<vmem>>, vector<3x2048xf32>,
    %c0_70 = arith.constant 0 : index
    %c0_71 = arith.constant 0 : index
    %c128 = arith.constant 128 : index
    %66 = vector.load %arg1[%c0_70, %c0_71, %c128] : memref<1x3x2304xf32, #tpu.memory_space<vmem>>, vector<1x3x2048xf32>
    %67 = vector.shape_cast %66 : vector<1x3x2048xf32> to vector<3x2048xf32>
    %c60 = arith.constant 60 : index
    %c0_72 = arith.constant 0 : index
    %68 = vector.load %arg15[%c60, %c0_72] : memref<75x2048xf32, #tpu.memory_space<vmem>>, vector<3x2048xf32>
    tpu.vector_store %arg15[%c60, %c0_72], %67 {strides = array<i32>} : memref<75x2048xf32, #tpu.memory_space<vmem>>, vector<3x2048xf32>,
    %c0_73 = arith.constant 0 : index
    %c0_74 = arith.constant 0 : index
    %c129 = arith.constant 129 : index
    %69 = vector.load %arg1[%c0_73, %c0_74, %c129] : memref<1x3x2304xf32, #tpu.memory_space<vmem>>, vector<1x3x2048xf32>
    %70 = vector.shape_cast %69 : vector<1x3x2048xf32> to vector<3x2048xf32>
    %c63 = arith.constant 63 : index
    %c0_75 = arith.constant 0 : index
    %71 = vector.load %arg15[%c63, %c0_75] : memref<75x2048xf32, #tpu.memory_space<vmem>>, vector<3x2048xf32>
    tpu.vector_store %arg15[%c63, %c0_75], %70 {strides = array<i32>} : memref<75x2048xf32, #tpu.memory_space<vmem>>, vector<3x2048xf32>,
    %c0_76 = arith.constant 0 : index
    %c0_77 = arith.constant 0 : index
    %c130 = arith.constant 130 : index
    %72 = vector.load %arg1[%c0_76, %c0_77, %c130] : memref<1x3x2304xf32, #tpu.memory_space<vmem>>, vector<1x3x2048xf32>
    %73 = vector.shape_cast %72 : vector<1x3x2048xf32> to vector<3x2048xf32>
    %c66_78 = arith.constant 66 : index
    %c0_79 = arith.constant 0 : index
    %74 = vector.load %arg15[%c66_78, %c0_79] : memref<75x2048xf32, #tpu.memory_space<vmem>>, vector<3x2048xf32>
    tpu.vector_store %arg15[%c66_78, %c0_79], %73 {strides = array<i32>} : memref<75x2048xf32, #tpu.memory_space<vmem>>, vector<3x2048xf32>,
    %c0_80 = arith.constant 0 : index
    %c0_81 = arith.constant 0 : index
    %c131 = arith.constant 131 : index
    %75 = vector.load %arg1[%c0_80, %c0_81, %c131] : memref<1x3x2304xf32, #tpu.memory_space<vmem>>, vector<1x3x2048xf32>
    %76 = vector.shape_cast %75 : vector<1x3x2048xf32> to vector<3x2048xf32>
    %c69 = arith.constant 69 : index
    %c0_82 = arith.constant 0 : index
    %77 = vector.load %arg15[%c69, %c0_82] : memref<75x2048xf32, #tpu.memory_space<vmem>>, vector<3x2048xf32>
    tpu.vector_store %arg15[%c69, %c0_82], %76 {strides = array<i32>} : memref<75x2048xf32, #tpu.memory_space<vmem>>, vector<3x2048xf32>,
    %c0_83 = arith.constant 0 : index
    %c0_84 = arith.constant 0 : index
    %c132 = arith.constant 132 : index
    %78 = vector.load %arg1[%c0_83, %c0_84, %c132] : memref<1x3x2304xf32, #tpu.memory_space<vmem>>, vector<1x3x2048xf32>
    %79 = vector.shape_cast %78 : vector<1x3x2048xf32> to vector<3x2048xf32>
    %c72 = arith.constant 72 : index
    %c0_85 = arith.constant 0 : index
    %80 = vector.load %arg15[%c72, %c0_85] : memref<75x2048xf32, #tpu.memory_space<vmem>>, vector<3x2048xf32>
    tpu.vector_store %arg15[%c72, %c0_85], %79 {strides = array<i32>} : memref<75x2048xf32, #tpu.memory_space<vmem>>, vector<3x2048xf32>,
    %c0_86 = arith.constant 0 : index
    %c0_87 = arith.constant 0 : index
    %81 = vector.load %arg2[%c0_86, %c0_87] : memref<6x75xf32, #tpu.memory_space<vmem>>, vector<6x75xf32>
    %c0_88 = arith.constant 0 : index
    %c0_89 = arith.constant 0 : index
    %82 = vector.load %arg15[%c0_88, %c0_89] : memref<75x2048xf32, #tpu.memory_space<vmem>>, vector<75x2048xf32>
    %cst_90 = arith.constant dense<0.000000e+00> : vector<6x2048xf32>
    %83 = tpu.matmul %81, %82, %cst_90 {dimension_numbers = #tpu.dot_dimension_numbers<[1], [0], [0], [1], [0, 0, 1, 1], [], []>} : vector<6x75xf32>, vector<75x2048xf32>, vector<6x2048xf32> -> vector<6x2048xf32>
    %c0_91 = arith.constant 0 : index
    %c0_92 = arith.constant 0 : index
    %84 = vector.load %arg3[%c0_91, %c0_92] : memref<6x1xf32, #tpu.memory_space<vmem>>, vector<6x1xf32>
    %85 = vector.broadcast %84 : vector<6x1xf32> to vector<6x2048xf32>
    %86 = arith.addf %83, %85 : vector<6x2048xf32>
    %cst_93 = arith.constant 0.000000e+00 : f32
    %87 = vector.broadcast %cst_93 : f32 to vector<6x2048xf32>
    %88 = arith.maximumf %86, %87 : vector<6x2048xf32>
    %c0_94 = arith.constant 0 : index
    %c0_95 = arith.constant 0 : index
    %89 = vector.load %arg16[%c0_94, %c0_95] : memref<6x2176xf32, #tpu.memory_space<vmem>>, vector<6x2048xf32>
    tpu.vector_store %arg16[%c0_94, %c0_95], %88 {strides = array<i32>} : memref<6x2176xf32, #tpu.memory_space<vmem>>, vector<6x2048xf32>,
    %c0_96 = arith.constant 0 : index
    %c0_97 = arith.constant 0 : index
    %90 = vector.load %arg16[%c0_96, %c0_97] : memref<6x2176xf32, #tpu.memory_space<vmem>>, vector<6x1024xf32>
    %c0_98 = arith.constant 0 : index
    %c1_99 = arith.constant 1 : index
    %91 = vector.load %arg16[%c0_98, %c1_99] : memref<6x2176xf32, #tpu.memory_space<vmem>>, vector<6x1024xf32>
    %92 = arith.maximumf %90, %91 : vector<6x1024xf32>
    %c0_100 = arith.constant 0 : index
    %c32_101 = arith.constant 32 : index
    %93 = vector.load %arg16[%c0_100, %c32_101] : memref<6x2176xf32, #tpu.memory_space<vmem>>, vector<6x1024xf32>
    %c0_102 = arith.constant 0 : index
    %c33_103 = arith.constant 33 : index
    %94 = vector.load %arg16[%c0_102, %c33_103] : memref<6x2176xf32, #tpu.memory_space<vmem>>, vector<6x1024xf32>
    %95 = arith.maximumf %93, %94 : vector<6x1024xf32>
    %96 = arith.maximumf %92, %95 : vector<6x1024xf32>
    %c0_104 = arith.constant 0 : index
    %c0_105 = arith.constant 0 : index
    %97 = vector.load %arg17[%c0_104, %c0_105] : memref<12x1024xf32, #tpu.memory_space<vmem>>, vector<6x1024xf32>
    tpu.vector_store %arg17[%c0_104, %c0_105], %96 {strides = array<i32>} : memref<12x1024xf32, #tpu.memory_space<vmem>>, vector<6x1024xf32>,
    %c0_106 = arith.constant 0 : index
    %c1024 = arith.constant 1024 : index
    %98 = vector.load %arg16[%c0_106, %c1024] : memref<6x2176xf32, #tpu.memory_space<vmem>>, vector<6x1024xf32>
    %c0_107 = arith.constant 0 : index
    %c1025 = arith.constant 1025 : index
    %99 = vector.load %arg16[%c0_107, %c1025] : memref<6x2176xf32, #tpu.memory_space<vmem>>, vector<6x1024xf32>
    %100 = arith.maximumf %98, %99 : vector<6x1024xf32>
    %c0_108 = arith.constant 0 : index
    %c1056 = arith.constant 1056 : index
    %101 = vector.load %arg16[%c0_108, %c1056] : memref<6x2176xf32, #tpu.memory_space<vmem>>, vector<6x1024xf32>
    %c0_109 = arith.constant 0 : index
    %c1057 = arith.constant 1057 : index
    %102 = vector.load %arg16[%c0_109, %c1057] : memref<6x2176xf32, #tpu.memory_space<vmem>>, vector<6x1024xf32>
    %103 = arith.maximumf %101, %102 : vector<6x1024xf32>
    %104 = arith.maximumf %100, %103 : vector<6x1024xf32>
    %c6_110 = arith.constant 6 : index
    %c0_111 = arith.constant 0 : index
    %105 = vector.load %arg17[%c6_110, %c0_111] : memref<12x1024xf32, #tpu.memory_space<vmem>>, vector<6x1024xf32>
    tpu.vector_store %arg17[%c6_110, %c0_111], %104 {strides = array<i32>} : memref<12x1024xf32, #tpu.memory_space<vmem>>, vector<6x1024xf32>,
    %c0_112 = arith.constant 0 : index
    %c0_113 = arith.constant 0 : index
    %106 = vector.load %arg17[%c0_112, %c0_113] : memref<12x1024xf32, #tpu.memory_space<vmem>>, vector<12x1024xf32>
    %c0_114 = arith.constant 0 : index
    %c0_115 = arith.constant 0 : index
    %107 = vector.load %arg6[%c0_114, %c0_115] : memref<1024x256xf32, #tpu.memory_space<vmem>>, vector<1024x256xf32>
    %cst_116 = arith.constant dense<0.000000e+00> : vector<12x256xf32>
    %108 = tpu.matmul %106, %107, %cst_116 {dimension_numbers = #tpu.dot_dimension_numbers<[1], [0], [0], [1], [0, 0, 1, 1], [], []>} : vector<12x1024xf32>, vector<1024x256xf32>, vector<12x256xf32> -> vector<12x256xf32>
    %109 = vector.extract_strided_slice %108 {offsets = [0, 0], sizes = [6, 256], strides = [1, 1]} : vector<12x256xf32> to vector<6x256xf32>
    %c0_117 = arith.constant 0 : index
    %c0_118 = arith.constant 0 : index
    %110 = vector.load %arg18[%c0_117, %c0_118] : memref<6x640xf32, #tpu.memory_space<vmem>>, vector<6x256xf32>
    tpu.vector_store %arg18[%c0_117, %c0_118], %109 {strides = array<i32>} : memref<6x640xf32, #tpu.memory_space<vmem>>, vector<6x256xf32>,
    %111 = vector.extract_strided_slice %108 {offsets = [6, 0], sizes = [6, 256], strides = [1, 1]} : vector<12x256xf32> to vector<6x256xf32>
    %c0_119 = arith.constant 0 : index
    %c256 = arith.constant 256 : index
    %112 = vector.load %arg18[%c0_119, %c256] : memref<6x640xf32, #tpu.memory_space<vmem>>, vector<6x256xf32>
    tpu.vector_store %arg18[%c0_119, %c256], %111 {strides = array<i32>} : memref<6x640xf32, #tpu.memory_space<vmem>>, vector<6x256xf32>,
    %c0_120 = arith.constant 0 : index
    %c0_121 = arith.constant 0 : index
    %113 = vector.load %arg18[%c0_120, %c0_121] : memref<6x640xf32, #tpu.memory_space<vmem>>, vector<6x512xf32>
    %c0_122 = arith.constant 0 : index
    %c0_123 = arith.constant 0 : index
    %114 = vector.load %arg19[%c0_122, %c0_123] : memref<150x512xf32, #tpu.memory_space<vmem>>, vector<6x512xf32>
    tpu.vector_store %arg19[%c0_122, %c0_123], %113 {strides = array<i32>} : memref<150x512xf32, #tpu.memory_space<vmem>>, vector<6x512xf32>,
    %c0_124 = arith.constant 0 : index
    %c1_125 = arith.constant 1 : index
    %115 = vector.load %arg18[%c0_124, %c1_125] : memref<6x640xf32, #tpu.memory_space<vmem>>, vector<6x512xf32>
    %c6_126 = arith.constant 6 : index
    %c0_127 = arith.constant 0 : index
    %116 = vector.load %arg19[%c6_126, %c0_127] : memref<150x512xf32, #tpu.memory_space<vmem>>, vector<6x512xf32>
    tpu.vector_store %arg19[%c6_126, %c0_127], %115 {strides = array<i32>} : memref<150x512xf32, #tpu.memory_space<vmem>>, vector<6x512xf32>,
    %c0_128 = arith.constant 0 : index
    %c2_129 = arith.constant 2 : index
    %117 = vector.load %arg18[%c0_128, %c2_129] : memref<6x640xf32, #tpu.memory_space<vmem>>, vector<6x512xf32>
    %c12_130 = arith.constant 12 : index
    %c0_131 = arith.constant 0 : index
    %118 = vector.load %arg19[%c12_130, %c0_131] : memref<150x512xf32, #tpu.memory_space<vmem>>, vector<6x512xf32>
    tpu.vector_store %arg19[%c12_130, %c0_131], %117 {strides = array<i32>} : memref<150x512xf32, #tpu.memory_space<vmem>>, vector<6x512xf32>,
    %c0_132 = arith.constant 0 : index
    %c3_133 = arith.constant 3 : index
    %119 = vector.load %arg18[%c0_132, %c3_133] : memref<6x640xf32, #tpu.memory_space<vmem>>, vector<6x512xf32>
    %c18_134 = arith.constant 18 : index
    %c0_135 = arith.constant 0 : index
    %120 = vector.load %arg19[%c18_134, %c0_135] : memref<150x512xf32, #tpu.memory_space<vmem>>, vector<6x512xf32>
    tpu.vector_store %arg19[%c18_134, %c0_135], %119 {strides = array<i32>} : memref<150x512xf32, #tpu.memory_space<vmem>>, vector<6x512xf32>,
    %c0_136 = arith.constant 0 : index
    %c4_137 = arith.constant 4 : index
    %121 = vector.load %arg18[%c0_136, %c4_137] : memref<6x640xf32, #tpu.memory_space<vmem>>, vector<6x512xf32>
    %c24_138 = arith.constant 24 : index
    %c0_139 = arith.constant 0 : index
    %122 = vector.load %arg19[%c24_138, %c0_139] : memref<150x512xf32, #tpu.memory_space<vmem>>, vector<6x512xf32>
    tpu.vector_store %arg19[%c24_138, %c0_139], %121 {strides = array<i32>} : memref<150x512xf32, #tpu.memory_space<vmem>>, vector<6x512xf32>,
    %c0_140 = arith.constant 0 : index
    %c16 = arith.constant 16 : index
    %123 = vector.load %arg18[%c0_140, %c16] : memref<6x640xf32, #tpu.memory_space<vmem>>, vector<6x512xf32>
    %c30_141 = arith.constant 30 : index
    %c0_142 = arith.constant 0 : index
    %124 = vector.load %arg19[%c30_141, %c0_142] : memref<150x512xf32, #tpu.memory_space<vmem>>, vector<6x512xf32>
    tpu.vector_store %arg19[%c30_141, %c0_142], %123 {strides = array<i32>} : memref<150x512xf32, #tpu.memory_space<vmem>>, vector<6x512xf32>,
    %c0_143 = arith.constant 0 : index
    %c17 = arith.constant 17 : index
    %125 = vector.load %arg18[%c0_143, %c17] : memref<6x640xf32, #tpu.memory_space<vmem>>, vector<6x512xf32>
    %c36_144 = arith.constant 36 : index
    %c0_145 = arith.constant 0 : index
    %126 = vector.load %arg19[%c36_144, %c0_145] : memref<150x512xf32, #tpu.memory_space<vmem>>, vector<6x512xf32>
    tpu.vector_store %arg19[%c36_144, %c0_145], %125 {strides = array<i32>} : memref<150x512xf32, #tpu.memory_space<vmem>>, vector<6x512xf32>,
    %c0_146 = arith.constant 0 : index
    %c18_147 = arith.constant 18 : index
    %127 = vector.load %arg18[%c0_146, %c18_147] : memref<6x640xf32, #tpu.memory_space<vmem>>, vector<6x512xf32>
    %c42_148 = arith.constant 42 : index
    %c0_149 = arith.constant 0 : index
    %128 = vector.load %arg19[%c42_148, %c0_149] : memref<150x512xf32, #tpu.memory_space<vmem>>, vector<6x512xf32>
    tpu.vector_store %arg19[%c42_148, %c0_149], %127 {strides = array<i32>} : memref<150x512xf32, #tpu.memory_space<vmem>>, vector<6x512xf32>,
    %c0_150 = arith.constant 0 : index
    %c19 = arith.constant 19 : index
    %129 = vector.load %arg18[%c0_150, %c19] : memref<6x640xf32, #tpu.memory_space<vmem>>, vector<6x512xf32>
    %c48_151 = arith.constant 48 : index
    %c0_152 = arith.constant 0 : index
    %130 = vector.load %arg19[%c48_151, %c0_152] : memref<150x512xf32, #tpu.memory_space<vmem>>, vector<6x512xf32>
    tpu.vector_store %arg19[%c48_151, %c0_152], %129 {strides = array<i32>} : memref<150x512xf32, #tpu.memory_space<vmem>>, vector<6x512xf32>,
    %c0_153 = arith.constant 0 : index
    %c20 = arith.constant 20 : index
    %131 = vector.load %arg18[%c0_153, %c20] : memref<6x640xf32, #tpu.memory_space<vmem>>, vector<6x512xf32>
    %c54_154 = arith.constant 54 : index
    %c0_155 = arith.constant 0 : index
    %132 = vector.load %arg19[%c54_154, %c0_155] : memref<150x512xf32, #tpu.memory_space<vmem>>, vector<6x512xf32>
    tpu.vector_store %arg19[%c54_154, %c0_155], %131 {strides = array<i32>} : memref<150x512xf32, #tpu.memory_space<vmem>>, vector<6x512xf32>,
    %c0_156 = arith.constant 0 : index
    %c32_157 = arith.constant 32 : index
    %133 = vector.load %arg18[%c0_156, %c32_157] : memref<6x640xf32, #tpu.memory_space<vmem>>, vector<6x512xf32>
    %c60_158 = arith.constant 60 : index
    %c0_159 = arith.constant 0 : index
    %134 = vector.load %arg19[%c60_158, %c0_159] : memref<150x512xf32, #tpu.memory_space<vmem>>, vector<6x512xf32>
    tpu.vector_store %arg19[%c60_158, %c0_159], %133 {strides = array<i32>} : memref<150x512xf32, #tpu.memory_space<vmem>>, vector<6x512xf32>,
    %c0_160 = arith.constant 0 : index
    %c33_161 = arith.constant 33 : index
    %135 = vector.load %arg18[%c0_160, %c33_161] : memref<6x640xf32, #tpu.memory_space<vmem>>, vector<6x512xf32>
    %c66_162 = arith.constant 66 : index
    %c0_163 = arith.constant 0 : index
    %136 = vector.load %arg19[%c66_162, %c0_163] : memref<150x512xf32, #tpu.memory_space<vmem>>, vector<6x512xf32>
    tpu.vector_store %arg19[%c66_162, %c0_163], %135 {strides = array<i32>} : memref<150x512xf32, #tpu.memory_space<vmem>>, vector<6x512xf32>,
    %c0_164 = arith.constant 0 : index
    %c34_165 = arith.constant 34 : index
    %137 = vector.load %arg18[%c0_164, %c34_165] : memref<6x640xf32, #tpu.memory_space<vmem>>, vector<6x512xf32>
    %c72_166 = arith.constant 72 : index
    %c0_167 = arith.constant 0 : index
    %138 = vector.load %arg19[%c72_166, %c0_167] : memref<150x512xf32, #tpu.memory_space<vmem>>, vector<6x512xf32>
    tpu.vector_store %arg19[%c72_166, %c0_167], %137 {strides = array<i32>} : memref<150x512xf32, #tpu.memory_space<vmem>>, vector<6x512xf32>,
    %c0_168 = arith.constant 0 : index
    %c35_169 = arith.constant 35 : index
    %139 = vector.load %arg18[%c0_168, %c35_169] : memref<6x640xf32, #tpu.memory_space<vmem>>, vector<6x512xf32>
    %c78 = arith.constant 78 : index
    %c0_170 = arith.constant 0 : index
    %140 = vector.load %arg19[%c78, %c0_170] : memref<150x512xf32, #tpu.memory_space<vmem>>, vector<6x512xf32>
    tpu.vector_store %arg19[%c78, %c0_170], %139 {strides = array<i32>} : memref<150x512xf32, #tpu.memory_space<vmem>>, vector<6x512xf32>,
    %c0_171 = arith.constant 0 : index
    %c36_172 = arith.constant 36 : index
    %141 = vector.load %arg18[%c0_171, %c36_172] : memref<6x640xf32, #tpu.memory_space<vmem>>, vector<6x512xf32>
    %c84 = arith.constant 84 : index
    %c0_173 = arith.constant 0 : index
    %142 = vector.load %arg19[%c84, %c0_173] : memref<150x512xf32, #tpu.memory_space<vmem>>, vector<6x512xf32>
    tpu.vector_store %arg19[%c84, %c0_173], %141 {strides = array<i32>} : memref<150x512xf32, #tpu.memory_space<vmem>>, vector<6x512xf32>,
    %c0_174 = arith.constant 0 : index
    %c48_175 = arith.constant 48 : index
    %143 = vector.load %arg18[%c0_174, %c48_175] : memref<6x640xf32, #tpu.memory_space<vmem>>, vector<6x512xf32>
    %c90 = arith.constant 90 : index
    %c0_176 = arith.constant 0 : index
    %144 = vector.load %arg19[%c90, %c0_176] : memref<150x512xf32, #tpu.memory_space<vmem>>, vector<6x512xf32>
    tpu.vector_store %arg19[%c90, %c0_176], %143 {strides = array<i32>} : memref<150x512xf32, #tpu.memory_space<vmem>>, vector<6x512xf32>,
    %c0_177 = arith.constant 0 : index
    %c49 = arith.constant 49 : index
    %145 = vector.load %arg18[%c0_177, %c49] : memref<6x640xf32, #tpu.memory_space<vmem>>, vector<6x512xf32>
    %c96_178 = arith.constant 96 : index
    %c0_179 = arith.constant 0 : index
    %146 = vector.load %arg19[%c96_178, %c0_179] : memref<150x512xf32, #tpu.memory_space<vmem>>, vector<6x512xf32>
    tpu.vector_store %arg19[%c96_178, %c0_179], %145 {strides = array<i32>} : memref<150x512xf32, #tpu.memory_space<vmem>>, vector<6x512xf32>,
    %c0_180 = arith.constant 0 : index
    %c50 = arith.constant 50 : index
    %147 = vector.load %arg18[%c0_180, %c50] : memref<6x640xf32, #tpu.memory_space<vmem>>, vector<6x512xf32>
    %c102 = arith.constant 102 : index
    %c0_181 = arith.constant 0 : index
    %148 = vector.load %arg19[%c102, %c0_181] : memref<150x512xf32, #tpu.memory_space<vmem>>, vector<6x512xf32>
    tpu.vector_store %arg19[%c102, %c0_181], %147 {strides = array<i32>} : memref<150x512xf32, #tpu.memory_space<vmem>>, vector<6x512xf32>,
    %c0_182 = arith.constant 0 : index
    %c51_183 = arith.constant 51 : index
    %149 = vector.load %arg18[%c0_182, %c51_183] : memref<6x640xf32, #tpu.memory_space<vmem>>, vector<6x512xf32>
    %c108 = arith.constant 108 : index
    %c0_184 = arith.constant 0 : index
    %150 = vector.load %arg19[%c108, %c0_184] : memref<150x512xf32, #tpu.memory_space<vmem>>, vector<6x512xf32>
    tpu.vector_store %arg19[%c108, %c0_184], %149 {strides = array<i32>} : memref<150x512xf32, #tpu.memory_space<vmem>>, vector<6x512xf32>,
    %c0_185 = arith.constant 0 : index
    %c52 = arith.constant 52 : index
    %151 = vector.load %arg18[%c0_185, %c52] : memref<6x640xf32, #tpu.memory_space<vmem>>, vector<6x512xf32>
    %c114 = arith.constant 114 : index
    %c0_186 = arith.constant 0 : index
    %152 = vector.load %arg19[%c114, %c0_186] : memref<150x512xf32, #tpu.memory_space<vmem>>, vector<6x512xf32>
    tpu.vector_store %arg19[%c114, %c0_186], %151 {strides = array<i32>} : memref<150x512xf32, #tpu.memory_space<vmem>>, vector<6x512xf32>,
    %c0_187 = arith.constant 0 : index
    %c64_188 = arith.constant 64 : index
    %153 = vector.load %arg18[%c0_187, %c64_188] : memref<6x640xf32, #tpu.memory_space<vmem>>, vector<6x512xf32>
    %c120 = arith.constant 120 : index
    %c0_189 = arith.constant 0 : index
    %154 = vector.load %arg19[%c120, %c0_189] : memref<150x512xf32, #tpu.memory_space<vmem>>, vector<6x512xf32>
    tpu.vector_store %arg19[%c120, %c0_189], %153 {strides = array<i32>} : memref<150x512xf32, #tpu.memory_space<vmem>>, vector<6x512xf32>,
    %c0_190 = arith.constant 0 : index
    %c65_191 = arith.constant 65 : index
    %155 = vector.load %arg18[%c0_190, %c65_191] : memref<6x640xf32, #tpu.memory_space<vmem>>, vector<6x512xf32>
    %c126 = arith.constant 126 : index
    %c0_192 = arith.constant 0 : index
    %156 = vector.load %arg19[%c126, %c0_192] : memref<150x512xf32, #tpu.memory_space<vmem>>, vector<6x512xf32>
    tpu.vector_store %arg19[%c126, %c0_192], %155 {strides = array<i32>} : memref<150x512xf32, #tpu.memory_space<vmem>>, vector<6x512xf32>,
    %c0_193 = arith.constant 0 : index
    %c66_194 = arith.constant 66 : index
    %157 = vector.load %arg18[%c0_193, %c66_194] : memref<6x640xf32, #tpu.memory_space<vmem>>, vector<6x512xf32>
    %c132_195 = arith.constant 132 : index
    %c0_196 = arith.constant 0 : index
    %158 = vector.load %arg19[%c132_195, %c0_196] : memref<150x512xf32, #tpu.memory_space<vmem>>, vector<6x512xf32>
    tpu.vector_store %arg19[%c132_195, %c0_196], %157 {strides = array<i32>} : memref<150x512xf32, #tpu.memory_space<vmem>>, vector<6x512xf32>,
    %c0_197 = arith.constant 0 : index
    %c67_198 = arith.constant 67 : index
    %159 = vector.load %arg18[%c0_197, %c67_198] : memref<6x640xf32, #tpu.memory_space<vmem>>, vector<6x512xf32>
    %c138 = arith.constant 138 : index
    %c0_199 = arith.constant 0 : index
    %160 = vector.load %arg19[%c138, %c0_199] : memref<150x512xf32, #tpu.memory_space<vmem>>, vector<6x512xf32>
    tpu.vector_store %arg19[%c138, %c0_199], %159 {strides = array<i32>} : memref<150x512xf32, #tpu.memory_space<vmem>>, vector<6x512xf32>,
    %c0_200 = arith.constant 0 : index
    %c68_201 = arith.constant 68 : index
    %161 = vector.load %arg18[%c0_200, %c68_201] : memref<6x640xf32, #tpu.memory_space<vmem>>, vector<6x512xf32>
    %c144 = arith.constant 144 : index
    %c0_202 = arith.constant 0 : index
    %162 = vector.load %arg19[%c144, %c0_202] : memref<150x512xf32, #tpu.memory_space<vmem>>, vector<6x512xf32>
    tpu.vector_store %arg19[%c144, %c0_202], %161 {strides = array<i32>} : memref<150x512xf32, #tpu.memory_space<vmem>>, vector<6x512xf32>,
    %c0_203 = arith.constant 0 : index
    %c0_204 = arith.constant 0 : index
    %163 = vector.load %arg4[%c0_203, %c0_204] : memref<16x150xf32, #tpu.memory_space<vmem>>, vector<16x150xf32>
    %c0_205 = arith.constant 0 : index
    %c0_206 = arith.constant 0 : index
    %164 = vector.load %arg19[%c0_205, %c0_206] : memref<150x512xf32, #tpu.memory_space<vmem>>, vector<150x512xf32>
    %cst_207 = arith.constant dense<0.000000e+00> : vector<16x512xf32>
    %165 = tpu.matmul %163, %164, %cst_207 {dimension_numbers = #tpu.dot_dimension_numbers<[1], [0], [0], [1], [0, 0, 1, 1], [], []>} : vector<16x150xf32>, vector<150x512xf32>, vector<16x512xf32> -> vector<16x512xf32>
    %c0_208 = arith.constant 0 : index
    %c0_209 = arith.constant 0 : index
    %166 = vector.load %arg5[%c0_208, %c0_209] : memref<16x1xf32, #tpu.memory_space<vmem>>, vector<16x1xf32>
    %167 = vector.broadcast %166 : vector<16x1xf32> to vector<16x512xf32>
    %168 = arith.addf %165, %167 : vector<16x512xf32>
    %cst_210 = arith.constant 0.000000e+00 : f32
    %169 = vector.broadcast %cst_210 : f32 to vector<16x512xf32>
    %170 = arith.maximumf %168, %169 : vector<16x512xf32>
    %c0_211 = arith.constant 0 : index
    %c0_212 = arith.constant 0 : index
    %171 = vector.load %arg20[%c0_211, %c0_212] : memref<16x640xf32, #tpu.memory_space<vmem>>, vector<16x512xf32>
    tpu.vector_store %arg20[%c0_211, %c0_212], %170 {strides = array<i32>} : memref<16x640xf32, #tpu.memory_space<vmem>>, vector<16x512xf32>,
    %c0_213 = arith.constant 0 : index
    %c0_214 = arith.constant 0 : index
    %172 = vector.load %arg20[%c0_213, %c0_214] : memref<16x640xf32, #tpu.memory_space<vmem>>, vector<16x256xf32>
    %c0_215 = arith.constant 0 : index
    %c1_216 = arith.constant 1 : index
    %173 = vector.load %arg20[%c0_215, %c1_216] : memref<16x640xf32, #tpu.memory_space<vmem>>, vector<16x256xf32>
    %174 = arith.maximumf %172, %173 : vector<16x256xf32>
    %c0_217 = arith.constant 0 : index
    %c16_218 = arith.constant 16 : index
    %175 = vector.load %arg20[%c0_217, %c16_218] : memref<16x640xf32, #tpu.memory_space<vmem>>, vector<16x256xf32>
    %c0_219 = arith.constant 0 : index
    %c17_220 = arith.constant 17 : index
    %176 = vector.load %arg20[%c0_219, %c17_220] : memref<16x640xf32, #tpu.memory_space<vmem>>, vector<16x256xf32>
    %177 = arith.maximumf %175, %176 : vector<16x256xf32>
    %178 = arith.maximumf %174, %177 : vector<16x256xf32>
    %c0_221 = arith.constant 0 : index
    %c0_222 = arith.constant 0 : index
    %179 = vector.load %arg21[%c0_221, %c0_222] : memref<32x256xf32, #tpu.memory_space<vmem>>, vector<16x256xf32>
    tpu.vector_store %arg21[%c0_221, %c0_222], %178 {strides = array<i32>} : memref<32x256xf32, #tpu.memory_space<vmem>>, vector<16x256xf32>,
    %c0_223 = arith.constant 0 : index
    %c256_224 = arith.constant 256 : index
    %180 = vector.load %arg20[%c0_223, %c256_224] : memref<16x640xf32, #tpu.memory_space<vmem>>, vector<16x256xf32>
    %c0_225 = arith.constant 0 : index
    %c257 = arith.constant 257 : index
    %181 = vector.load %arg20[%c0_225, %c257] : memref<16x640xf32, #tpu.memory_space<vmem>>, vector<16x256xf32>
    %182 = arith.maximumf %180, %181 : vector<16x256xf32>
    %c0_226 = arith.constant 0 : index
    %c272 = arith.constant 272 : index
    %183 = vector.load %arg20[%c0_226, %c272] : memref<16x640xf32, #tpu.memory_space<vmem>>, vector<16x256xf32>
    %c0_227 = arith.constant 0 : index
    %c273 = arith.constant 273 : index
    %184 = vector.load %arg20[%c0_227, %c273] : memref<16x640xf32, #tpu.memory_space<vmem>>, vector<16x256xf32>
    %185 = arith.maximumf %183, %184 : vector<16x256xf32>
    %186 = arith.maximumf %182, %185 : vector<16x256xf32>
    %c16_228 = arith.constant 16 : index
    %c0_229 = arith.constant 0 : index
    %187 = vector.load %arg21[%c16_228, %c0_229] : memref<32x256xf32, #tpu.memory_space<vmem>>, vector<16x256xf32>
    tpu.vector_store %arg21[%c16_228, %c0_229], %186 {strides = array<i32>} : memref<32x256xf32, #tpu.memory_space<vmem>>, vector<16x256xf32>,
    %c0_230 = arith.constant 0 : index
    %c0_231 = arith.constant 0 : index
    %188 = vector.load %arg21[%c0_230, %c0_231] : memref<32x256xf32, #tpu.memory_space<vmem>>, vector<32x256xf32>
    %c0_232 = arith.constant 0 : index
    %c0_233 = arith.constant 0 : index
    %189 = vector.load %arg7[%c0_232, %c0_233] : memref<256x64xf32, #tpu.memory_space<vmem>>, vector<256x64xf32>
    %cst_234 = arith.constant dense<0.000000e+00> : vector<32x64xf32>
    %190 = tpu.matmul %188, %189, %cst_234 {dimension_numbers = #tpu.dot_dimension_numbers<[1], [0], [0], [1], [0, 0, 1, 1], [], []>} : vector<32x256xf32>, vector<256x64xf32>, vector<32x64xf32> -> vector<32x64xf32>
    %191 = vector.extract_strided_slice %190 {offsets = [0, 0], sizes = [1, 64], strides = [1, 1]} : vector<32x64xf32> to vector<1x64xf32>
    %c0_235 = arith.constant 0 : index
    %c0_236 = arith.constant 0 : index
    %192 = vector.load %arg22[%c0_235, %c0_236] : memref<2x1024xf32, #tpu.memory_space<vmem>>, vector<1x64xf32>
    tpu.vector_store %arg22[%c0_235, %c0_236], %191 {strides = array<i32>} : memref<2x1024xf32, #tpu.memory_space<vmem>>, vector<1x64xf32>,
    %193 = vector.extract_strided_slice %190 {offsets = [1, 0], sizes = [1, 64], strides = [1, 1]} : vector<32x64xf32> to vector<1x64xf32>
    %c0_237 = arith.constant 0 : index
    %c64_238 = arith.constant 64 : index
    %194 = vector.load %arg22[%c0_237, %c64_238] : memref<2x1024xf32, #tpu.memory_space<vmem>>, vector<1x64xf32>
    tpu.vector_store %arg22[%c0_237, %c64_238], %193 {strides = array<i32>} : memref<2x1024xf32, #tpu.memory_space<vmem>>, vector<1x64xf32>,
    %195 = vector.extract_strided_slice %190 {offsets = [2, 0], sizes = [1, 64], strides = [1, 1]} : vector<32x64xf32> to vector<1x64xf32>
    %c0_239 = arith.constant 0 : index
    %c128_240 = arith.constant 128 : index
    %196 = vector.load %arg22[%c0_239, %c128_240] : memref<2x1024xf32, #tpu.memory_space<vmem>>, vector<1x64xf32>
    tpu.vector_store %arg22[%c0_239, %c128_240], %195 {strides = array<i32>} : memref<2x1024xf32, #tpu.memory_space<vmem>>, vector<1x64xf32>,
    %197 = vector.extract_strided_slice %190 {offsets = [3, 0], sizes = [1, 64], strides = [1, 1]} : vector<32x64xf32> to vector<1x64xf32>
    %c0_241 = arith.constant 0 : index
    %c192 = arith.constant 192 : index
    %198 = vector.load %arg22[%c0_241, %c192] : memref<2x1024xf32, #tpu.memory_space<vmem>>, vector<1x64xf32>
    tpu.vector_store %arg22[%c0_241, %c192], %197 {strides = array<i32>} : memref<2x1024xf32, #tpu.memory_space<vmem>>, vector<1x64xf32>,
    %199 = vector.extract_strided_slice %190 {offsets = [4, 0], sizes = [1, 64], strides = [1, 1]} : vector<32x64xf32> to vector<1x64xf32>
    %c0_242 = arith.constant 0 : index
    %c256_243 = arith.constant 256 : index
    %200 = vector.load %arg22[%c0_242, %c256_243] : memref<2x1024xf32, #tpu.memory_space<vmem>>, vector<1x64xf32>
    tpu.vector_store %arg22[%c0_242, %c256_243], %199 {strides = array<i32>} : memref<2x1024xf32, #tpu.memory_space<vmem>>, vector<1x64xf32>,
    %201 = vector.extract_strided_slice %190 {offsets = [5, 0], sizes = [1, 64], strides = [1, 1]} : vector<32x64xf32> to vector<1x64xf32>
    %c0_244 = arith.constant 0 : index
    %c320 = arith.constant 320 : index
    %202 = vector.load %arg22[%c0_244, %c320] : memref<2x1024xf32, #tpu.memory_space<vmem>>, vector<1x64xf32>
    tpu.vector_store %arg22[%c0_244, %c320], %201 {strides = array<i32>} : memref<2x1024xf32, #tpu.memory_space<vmem>>, vector<1x64xf32>,
    %203 = vector.extract_strided_slice %190 {offsets = [6, 0], sizes = [1, 64], strides = [1, 1]} : vector<32x64xf32> to vector<1x64xf32>
    %c0_245 = arith.constant 0 : index
    %c384 = arith.constant 384 : index
    %204 = vector.load %arg22[%c0_245, %c384] : memref<2x1024xf32, #tpu.memory_space<vmem>>, vector<1x64xf32>
    tpu.vector_store %arg22[%c0_245, %c384], %203 {strides = array<i32>} : memref<2x1024xf32, #tpu.memory_space<vmem>>, vector<1x64xf32>,
    %205 = vector.extract_strided_slice %190 {offsets = [7, 0], sizes = [1, 64], strides = [1, 1]} : vector<32x64xf32> to vector<1x64xf32>
    %c0_246 = arith.constant 0 : index
    %c448 = arith.constant 448 : index
    %206 = vector.load %arg22[%c0_246, %c448] : memref<2x1024xf32, #tpu.memory_space<vmem>>, vector<1x64xf32>
    tpu.vector_store %arg22[%c0_246, %c448], %205 {strides = array<i32>} : memref<2x1024xf32, #tpu.memory_space<vmem>>, vector<1x64xf32>,
    %207 = vector.extract_strided_slice %190 {offsets = [8, 0], sizes = [1, 64], strides = [1, 1]} : vector<32x64xf32> to vector<1x64xf32>
    %c0_247 = arith.constant 0 : index
    %c512_248 = arith.constant 512 : index
    %208 = vector.load %arg22[%c0_247, %c512_248] : memref<2x1024xf32, #tpu.memory_space<vmem>>, vector<1x64xf32>
    tpu.vector_store %arg22[%c0_247, %c512_248], %207 {strides = array<i32>} : memref<2x1024xf32, #tpu.memory_space<vmem>>, vector<1x64xf32>,
    %209 = vector.extract_strided_slice %190 {offsets = [9, 0], sizes = [1, 64], strides = [1, 1]} : vector<32x64xf32> to vector<1x64xf32>
    %c0_249 = arith.constant 0 : index
    %c576 = arith.constant 576 : index
    %210 = vector.load %arg22[%c0_249, %c576] : memref<2x1024xf32, #tpu.memory_space<vmem>>, vector<1x64xf32>
    tpu.vector_store %arg22[%c0_249, %c576], %209 {strides = array<i32>} : memref<2x1024xf32, #tpu.memory_space<vmem>>, vector<1x64xf32>,
    %211 = vector.extract_strided_slice %190 {offsets = [10, 0], sizes = [1, 64], strides = [1, 1]} : vector<32x64xf32> to vector<1x64xf32>
    %c0_250 = arith.constant 0 : index
    %c640 = arith.constant 640 : index
    %212 = vector.load %arg22[%c0_250, %c640] : memref<2x1024xf32, #tpu.memory_space<vmem>>, vector<1x64xf32>
    tpu.vector_store %arg22[%c0_250, %c640], %211 {strides = array<i32>} : memref<2x1024xf32, #tpu.memory_space<vmem>>, vector<1x64xf32>,
    %213 = vector.extract_strided_slice %190 {offsets = [11, 0], sizes = [1, 64], strides = [1, 1]} : vector<32x64xf32> to vector<1x64xf32>
    %c0_251 = arith.constant 0 : index
    %c704 = arith.constant 704 : index
    %214 = vector.load %arg22[%c0_251, %c704] : memref<2x1024xf32, #tpu.memory_space<vmem>>, vector<1x64xf32>
    tpu.vector_store %arg22[%c0_251, %c704], %213 {strides = array<i32>} : memref<2x1024xf32, #tpu.memory_space<vmem>>, vector<1x64xf32>,
    %215 = vector.extract_strided_slice %190 {offsets = [12, 0], sizes = [1, 64], strides = [1, 1]} : vector<32x64xf32> to vector<1x64xf32>
    %c0_252 = arith.constant 0 : index
    %c768 = arith.constant 768 : index
    %216 = vector.load %arg22[%c0_252, %c768] : memref<2x1024xf32, #tpu.memory_space<vmem>>, vector<1x64xf32>
    tpu.vector_store %arg22[%c0_252, %c768], %215 {strides = array<i32>} : memref<2x1024xf32, #tpu.memory_space<vmem>>, vector<1x64xf32>,
    %217 = vector.extract_strided_slice %190 {offsets = [13, 0], sizes = [1, 64], strides = [1, 1]} : vector<32x64xf32> to vector<1x64xf32>
    %c0_253 = arith.constant 0 : index
    %c832 = arith.constant 832 : index
    %218 = vector.load %arg22[%c0_253, %c832] : memref<2x1024xf32, #tpu.memory_space<vmem>>, vector<1x64xf32>
    tpu.vector_store %arg22[%c0_253, %c832], %217 {strides = array<i32>} : memref<2x1024xf32, #tpu.memory_space<vmem>>, vector<1x64xf32>,
    %219 = vector.extract_strided_slice %190 {offsets = [14, 0], sizes = [1, 64], strides = [1, 1]} : vector<32x64xf32> to vector<1x64xf32>
    %c0_254 = arith.constant 0 : index
    %c896 = arith.constant 896 : index
    %220 = vector.load %arg22[%c0_254, %c896] : memref<2x1024xf32, #tpu.memory_space<vmem>>, vector<1x64xf32>
    tpu.vector_store %arg22[%c0_254, %c896], %219 {strides = array<i32>} : memref<2x1024xf32, #tpu.memory_space<vmem>>, vector<1x64xf32>,
    %221 = vector.extract_strided_slice %190 {offsets = [15, 0], sizes = [1, 64], strides = [1, 1]} : vector<32x64xf32> to vector<1x64xf32>
    %c0_255 = arith.constant 0 : index
    %c960 = arith.constant 960 : index
    %222 = vector.load %arg22[%c0_255, %c960] : memref<2x1024xf32, #tpu.memory_space<vmem>>, vector<1x64xf32>
    tpu.vector_store %arg22[%c0_255, %c960], %221 {strides = array<i32>} : memref<2x1024xf32, #tpu.memory_space<vmem>>, vector<1x64xf32>,
    %223 = vector.extract_strided_slice %190 {offsets = [16, 0], sizes = [1, 64], strides = [1, 1]} : vector<32x64xf32> to vector<1x64xf32>
    %c1_256 = arith.constant 1 : index
    %c0_257 = arith.constant 0 : index
    %224 = vector.load %arg22[%c1_256, %c0_257] : memref<2x1024xf32, #tpu.memory_space<vmem>>, vector<1x64xf32>
    tpu.vector_store %arg22[%c1_256, %c0_257], %223 {strides = array<i32>} : memref<2x1024xf32, #tpu.memory_space<vmem>>, vector<1x64xf32>,
    %225 = vector.extract_strided_slice %190 {offsets = [17, 0], sizes = [1, 64], strides = [1, 1]} : vector<32x64xf32> to vector<1x64xf32>
    %c1_258 = arith.constant 1 : index
    %c64_259 = arith.constant 64 : index
    %226 = vector.load %arg22[%c1_258, %c64_259] : memref<2x1024xf32, #tpu.memory_space<vmem>>, vector<1x64xf32>
    tpu.vector_store %arg22[%c1_258, %c64_259], %225 {strides = array<i32>} : memref<2x1024xf32, #tpu.memory_space<vmem>>, vector<1x64xf32>,
    %227 = vector.extract_strided_slice %190 {offsets = [18, 0], sizes = [1, 64], strides = [1, 1]} : vector<32x64xf32> to vector<1x64xf32>
    %c1_260 = arith.constant 1 : index
    %c128_261 = arith.constant 128 : index
    %228 = vector.load %arg22[%c1_260, %c128_261] : memref<2x1024xf32, #tpu.memory_space<vmem>>, vector<1x64xf32>
    tpu.vector_store %arg22[%c1_260, %c128_261], %227 {strides = array<i32>} : memref<2x1024xf32, #tpu.memory_space<vmem>>, vector<1x64xf32>,
    %229 = vector.extract_strided_slice %190 {offsets = [19, 0], sizes = [1, 64], strides = [1, 1]} : vector<32x64xf32> to vector<1x64xf32>
    %c1_262 = arith.constant 1 : index
    %c192_263 = arith.constant 192 : index
    %230 = vector.load %arg22[%c1_262, %c192_263] : memref<2x1024xf32, #tpu.memory_space<vmem>>, vector<1x64xf32>
    tpu.vector_store %arg22[%c1_262, %c192_263], %229 {strides = array<i32>} : memref<2x1024xf32, #tpu.memory_space<vmem>>, vector<1x64xf32>,
    %231 = vector.extract_strided_slice %190 {offsets = [20, 0], sizes = [1, 64], strides = [1, 1]} : vector<32x64xf32> to vector<1x64xf32>
    %c1_264 = arith.constant 1 : index
    %c256_265 = arith.constant 256 : index
    %232 = vector.load %arg22[%c1_264, %c256_265] : memref<2x1024xf32, #tpu.memory_space<vmem>>, vector<1x64xf32>
    tpu.vector_store %arg22[%c1_264, %c256_265], %231 {strides = array<i32>} : memref<2x1024xf32, #tpu.memory_space<vmem>>, vector<1x64xf32>,
    %233 = vector.extract_strided_slice %190 {offsets = [21, 0], sizes = [1, 64], strides = [1, 1]} : vector<32x64xf32> to vector<1x64xf32>
    %c1_266 = arith.constant 1 : index
    %c320_267 = arith.constant 320 : index
    %234 = vector.load %arg22[%c1_266, %c320_267] : memref<2x1024xf32, #tpu.memory_space<vmem>>, vector<1x64xf32>
    tpu.vector_store %arg22[%c1_266, %c320_267], %233 {strides = array<i32>} : memref<2x1024xf32, #tpu.memory_space<vmem>>, vector<1x64xf32>,
    %235 = vector.extract_strided_slice %190 {offsets = [22, 0], sizes = [1, 64], strides = [1, 1]} : vector<32x64xf32> to vector<1x64xf32>
    %c1_268 = arith.constant 1 : index
    %c384_269 = arith.constant 384 : index
    %236 = vector.load %arg22[%c1_268, %c384_269] : memref<2x1024xf32, #tpu.memory_space<vmem>>, vector<1x64xf32>
    tpu.vector_store %arg22[%c1_268, %c384_269], %235 {strides = array<i32>} : memref<2x1024xf32, #tpu.memory_space<vmem>>, vector<1x64xf32>,
    %237 = vector.extract_strided_slice %190 {offsets = [23, 0], sizes = [1, 64], strides = [1, 1]} : vector<32x64xf32> to vector<1x64xf32>
    %c1_270 = arith.constant 1 : index
    %c448_271 = arith.constant 448 : index
    %238 = vector.load %arg22[%c1_270, %c448_271] : memref<2x1024xf32, #tpu.memory_space<vmem>>, vector<1x64xf32>
    tpu.vector_store %arg22[%c1_270, %c448_271], %237 {strides = array<i32>} : memref<2x1024xf32, #tpu.memory_space<vmem>>, vector<1x64xf32>,
    %239 = vector.extract_strided_slice %190 {offsets = [24, 0], sizes = [1, 64], strides = [1, 1]} : vector<32x64xf32> to vector<1x64xf32>
    %c1_272 = arith.constant 1 : index
    %c512_273 = arith.constant 512 : index
    %240 = vector.load %arg22[%c1_272, %c512_273] : memref<2x1024xf32, #tpu.memory_space<vmem>>, vector<1x64xf32>
    tpu.vector_store %arg22[%c1_272, %c512_273], %239 {strides = array<i32>} : memref<2x1024xf32, #tpu.memory_space<vmem>>, vector<1x64xf32>,
    %241 = vector.extract_strided_slice %190 {offsets = [25, 0], sizes = [1, 64], strides = [1, 1]} : vector<32x64xf32> to vector<1x64xf32>
    %c1_274 = arith.constant 1 : index
    %c576_275 = arith.constant 576 : index
    %242 = vector.load %arg22[%c1_274, %c576_275] : memref<2x1024xf32, #tpu.memory_space<vmem>>, vector<1x64xf32>
    tpu.vector_store %arg22[%c1_274, %c576_275], %241 {strides = array<i32>} : memref<2x1024xf32, #tpu.memory_space<vmem>>, vector<1x64xf32>,
    %243 = vector.extract_strided_slice %190 {offsets = [26, 0], sizes = [1, 64], strides = [1, 1]} : vector<32x64xf32> to vector<1x64xf32>
    %c1_276 = arith.constant 1 : index
    %c640_277 = arith.constant 640 : index
    %244 = vector.load %arg22[%c1_276, %c640_277] : memref<2x1024xf32, #tpu.memory_space<vmem>>, vector<1x64xf32>
    tpu.vector_store %arg22[%c1_276, %c640_277], %243 {strides = array<i32>} : memref<2x1024xf32, #tpu.memory_space<vmem>>, vector<1x64xf32>,
    %245 = vector.extract_strided_slice %190 {offsets = [27, 0], sizes = [1, 64], strides = [1, 1]} : vector<32x64xf32> to vector<1x64xf32>
    %c1_278 = arith.constant 1 : index
    %c704_279 = arith.constant 704 : index
    %246 = vector.load %arg22[%c1_278, %c704_279] : memref<2x1024xf32, #tpu.memory_space<vmem>>, vector<1x64xf32>
    tpu.vector_store %arg22[%c1_278, %c704_279], %245 {strides = array<i32>} : memref<2x1024xf32, #tpu.memory_space<vmem>>, vector<1x64xf32>,
    %247 = vector.extract_strided_slice %190 {offsets = [28, 0], sizes = [1, 64], strides = [1, 1]} : vector<32x64xf32> to vector<1x64xf32>
    %c1_280 = arith.constant 1 : index
    %c768_281 = arith.constant 768 : index
    %248 = vector.load %arg22[%c1_280, %c768_281] : memref<2x1024xf32, #tpu.memory_space<vmem>>, vector<1x64xf32>
    tpu.vector_store %arg22[%c1_280, %c768_281], %247 {strides = array<i32>} : memref<2x1024xf32, #tpu.memory_space<vmem>>, vector<1x64xf32>,
    %249 = vector.extract_strided_slice %190 {offsets = [29, 0], sizes = [1, 64], strides = [1, 1]} : vector<32x64xf32> to vector<1x64xf32>
    %c1_282 = arith.constant 1 : index
    %c832_283 = arith.constant 832 : index
    %250 = vector.load %arg22[%c1_282, %c832_283] : memref<2x1024xf32, #tpu.memory_space<vmem>>, vector<1x64xf32>
    tpu.vector_store %arg22[%c1_282, %c832_283], %249 {strides = array<i32>} : memref<2x1024xf32, #tpu.memory_space<vmem>>, vector<1x64xf32>,
    %251 = vector.extract_strided_slice %190 {offsets = [30, 0], sizes = [1, 64], strides = [1, 1]} : vector<32x64xf32> to vector<1x64xf32>
    %c1_284 = arith.constant 1 : index
    %c896_285 = arith.constant 896 : index
    %252 = vector.load %arg22[%c1_284, %c896_285] : memref<2x1024xf32, #tpu.memory_space<vmem>>, vector<1x64xf32>
    tpu.vector_store %arg22[%c1_284, %c896_285], %251 {strides = array<i32>} : memref<2x1024xf32, #tpu.memory_space<vmem>>, vector<1x64xf32>,
    %253 = vector.extract_strided_slice %190 {offsets = [31, 0], sizes = [1, 64], strides = [1, 1]} : vector<32x64xf32> to vector<1x64xf32>
    %c1_286 = arith.constant 1 : index
    %c960_287 = arith.constant 960 : index
    %254 = vector.load %arg22[%c1_286, %c960_287] : memref<2x1024xf32, #tpu.memory_space<vmem>>, vector<1x64xf32>
    tpu.vector_store %arg22[%c1_286, %c960_287], %253 {strides = array<i32>} : memref<2x1024xf32, #tpu.memory_space<vmem>>, vector<1x64xf32>,
    %c0_288 = arith.constant 0 : index
    %c0_289 = arith.constant 0 : index
    %255 = vector.load %arg22[%c0_288, %c0_289] : memref<2x1024xf32, #tpu.memory_space<vmem>>, vector<2x1024xf32>
    %c0_290 = arith.constant 0 : index
    %c0_291 = arith.constant 0 : index
    %256 = vector.load %arg8[%c0_290, %c0_291] : memref<1024x120xf32, #tpu.memory_space<vmem>>, vector<1024x120xf32>
    %cst_292 = arith.constant dense<0.000000e+00> : vector<2x120xf32>
    %257 = tpu.matmul %255, %256, %cst_292 {dimension_numbers = #tpu.dot_dimension_numbers<[1], [0], [0], [1], [0, 0, 1, 1], [], []>} : vector<2x1024xf32>, vector<1024x120xf32>, vector<2x120xf32> -> vector<2x120xf32>
    %c0_293 = arith.constant 0 : index
    %c0_294 = arith.constant 0 : index
    %258 = vector.load %arg9[%c0_293, %c0_294] : memref<1x120xf32, #tpu.memory_space<vmem>>, vector<1x120xf32>
    %259 = vector.broadcast %258 : vector<1x120xf32> to vector<2x120xf32>
    %260 = arith.addf %257, %259 : vector<2x120xf32>
    %cst_295 = arith.constant 0.000000e+00 : f32
    %261 = vector.broadcast %cst_295 : f32 to vector<2x120xf32>
    %262 = arith.maximumf %260, %261 : vector<2x120xf32>
    %c0_296 = arith.constant 0 : index
    %c0_297 = arith.constant 0 : index
    %263 = vector.load %arg10[%c0_296, %c0_297] : memref<120x84xf32, #tpu.memory_space<vmem>>, vector<120x84xf32>
    %cst_298 = arith.constant dense<0.000000e+00> : vector<2x84xf32>
    %264 = tpu.matmul %262, %263, %cst_298 {dimension_numbers = #tpu.dot_dimension_numbers<[1], [0], [0], [1], [0, 0, 1, 1], [], []>} : vector<2x120xf32>, vector<120x84xf32>, vector<2x84xf32> -> vector<2x84xf32>
    %c0_299 = arith.constant 0 : index
    %c0_300 = arith.constant 0 : index
    %265 = vector.load %arg11[%c0_299, %c0_300] : memref<1x84xf32, #tpu.memory_space<vmem>>, vector<1x84xf32>
    %266 = vector.broadcast %265 : vector<1x84xf32> to vector<2x84xf32>
    %267 = arith.addf %264, %266 : vector<2x84xf32>
    %cst_301 = arith.constant 0.000000e+00 : f32
    %268 = vector.broadcast %cst_301 : f32 to vector<2x84xf32>
    %269 = arith.maximumf %267, %268 : vector<2x84xf32>
    %c0_302 = arith.constant 0 : index
    %c0_303 = arith.constant 0 : index
    %270 = vector.load %arg12[%c0_302, %c0_303] : memref<84x10xf32, #tpu.memory_space<vmem>>, vector<84x10xf32>
    %cst_304 = arith.constant dense<0.000000e+00> : vector<2x10xf32>
    %271 = tpu.matmul %269, %270, %cst_304 {dimension_numbers = #tpu.dot_dimension_numbers<[1], [0], [0], [1], [0, 0, 1, 1], [], []>} : vector<2x84xf32>, vector<84x10xf32>, vector<2x10xf32> -> vector<2x10xf32>
    %c0_305 = arith.constant 0 : index
    %c0_306 = arith.constant 0 : index
    %272 = vector.load %arg13[%c0_305, %c0_306] : memref<1x10xf32, #tpu.memory_space<vmem>>, vector<1x10xf32>
    %273 = vector.broadcast %272 : vector<1x10xf32> to vector<2x10xf32>
    %274 = arith.addf %271, %273 : vector<2x10xf32>
    %c0_307 = arith.constant 0 : index
    %c0_308 = arith.constant 0 : index
    %c0_309 = arith.constant 0 : index
    %275 = vector.load %arg14[%c0_307, %c0_308, %c0_309] : memref<1x2x10xf32, #tpu.memory_space<vmem>>, vector<1x2x10xf32>
    %276 = vector.shape_cast %275 : vector<1x2x10xf32> to vector<2x10xf32>
    %277 = vector.shape_cast %274 : vector<2x10xf32> to vector<1x2x10xf32>
    tpu.vector_store %arg14[%c0_307, %c0_308, %c0_309], %277 {strides = array<i32>} : memref<1x2x10xf32, #tpu.memory_space<vmem>>, vector<1x2x10xf32>,
    return
  }
  func.func @transform_0(%arg0: i32) -> (i32, i32, i32) {
    %c0_i32 = arith.constant 0 : i32
    %c0_i32_0 = arith.constant 0 : i32
    %c0_i32_1 = arith.constant 0 : i32
    return %arg0, %c0_i32, %c0_i32_0 : i32, i32, i32
  }
  func.func @transform_1(%arg0: i32) -> (i32, i32) {
    %c0_i32 = arith.constant 0 : i32
    %c0_i32_0 = arith.constant 0 : i32
    %c0_i32_1 = arith.constant 0 : i32
    return %c0_i32, %c0_i32_0 : i32, i32
  }
  func.func @transform_2(%arg0: i32) -> (i32, i32) {
    %c0_i32 = arith.constant 0 : i32
    %c0_i32_0 = arith.constant 0 : i32
    %c0_i32_1 = arith.constant 0 : i32
    return %c0_i32, %c0_i32_0 : i32, i32
  }
  func.func @transform_3(%arg0: i32) -> (i32, i32) {
    %c0_i32 = arith.constant 0 : i32
    %c0_i32_0 = arith.constant 0 : i32
    %c0_i32_1 = arith.constant 0 : i32
    return %c0_i32, %c0_i32_0 : i32, i32
  }
  func.func @transform_4(%arg0: i32) -> (i32, i32) {
    %c0_i32 = arith.constant 0 : i32
    %c0_i32_0 = arith.constant 0 : i32
    %c0_i32_1 = arith.constant 0 : i32
    return %c0_i32, %c0_i32_0 : i32, i32
  }
  func.func @transform_5(%arg0: i32) -> (i32, i32) {
    %c0_i32 = arith.constant 0 : i32
    %c0_i32_0 = arith.constant 0 : i32
    %c0_i32_1 = arith.constant 0 : i32
    return %c0_i32, %c0_i32_0 : i32, i32
  }
  func.func @transform_6(%arg0: i32) -> (i32, i32) {
    %c0_i32 = arith.constant 0 : i32
    %c0_i32_0 = arith.constant 0 : i32
    %c0_i32_1 = arith.constant 0 : i32
    return %c0_i32, %c0_i32_0 : i32, i32
  }
  func.func @transform_7(%arg0: i32) -> (i32, i32) {
    %c0_i32 = arith.constant 0 : i32
    %c0_i32_0 = arith.constant 0 : i32
    %c0_i32_1 = arith.constant 0 : i32
    return %c0_i32, %c0_i32_0 : i32, i32
  }
  func.func @transform_8(%arg0: i32) -> (i32, i32) {
    %c0_i32 = arith.constant 0 : i32
    %c0_i32_0 = arith.constant 0 : i32
    %c0_i32_1 = arith.constant 0 : i32
    return %c0_i32, %c0_i32_0 : i32, i32
  }
  func.func @transform_9(%arg0: i32) -> (i32, i32) {
    %c0_i32 = arith.constant 0 : i32
    %c0_i32_0 = arith.constant 0 : i32
    %c0_i32_1 = arith.constant 0 : i32
    return %c0_i32, %c0_i32_0 : i32, i32
  }
  func.func @transform_10(%arg0: i32) -> (i32, i32) {
    %c0_i32 = arith.constant 0 : i32
    %c0_i32_0 = arith.constant 0 : i32
    %c0_i32_1 = arith.constant 0 : i32
    return %c0_i32, %c0_i32_0 : i32, i32
  }
  func.func @transform_11(%arg0: i32) -> (i32, i32) {
    %c0_i32 = arith.constant 0 : i32
    %c0_i32_0 = arith.constant 0 : i32
    %c0_i32_1 = arith.constant 0 : i32
    return %c0_i32, %c0_i32_0 : i32, i32
  }
  func.func @transform_12(%arg0: i32) -> (i32, i32) {
    %c0_i32 = arith.constant 0 : i32
    %c0_i32_0 = arith.constant 0 : i32
    %c0_i32_1 = arith.constant 0 : i32
    return %c0_i32, %c0_i32_0 : i32, i32
  }
  func.func @transform_13(%arg0: i32) -> (i32, i32, i32) {
    %c0_i32 = arith.constant 0 : i32
    %c0_i32_0 = arith.constant 0 : i32
    %c0_i32_1 = arith.constant 0 : i32
    return %arg0, %c0_i32, %c0_i32_0 : i32, i32, i32
  }
}

</mosaic_0001>

<llo_original>
// kernel: lenet_forward.1
$region0: #{lenet_forward.1}
  #allocation0 [shape = 'u32[]', space=smem, size = 0x4, offset = 0x4, fixed_abs, tag = 'smem constant byte address 0x4 - core index']
  #allocation1 [shape = 'u32[144,128]{1,0:T(1,128)}', space=vmem, size = 0x12000, scoped, tag = 'internal scratch']
  #allocation2 [shape = 'f32[75,2048]{1,0:T(8,128)}', space=vmem, size = 0xa0000, scoped, tag = 'scratch operand']
  #allocation3 [shape = 'f32[6,2176]{1,0:T(8,128)}', space=vmem, size = 0x11000, scoped, tag = 'scratch operand']
  #allocation4 [shape = 'f32[12,1024]{1,0:T(8,128)}', space=vmem, size = 0x10000, scoped, tag = 'scratch operand']
  #allocation5 [shape = 'f32[6,640]{1,0:T(8,128)}', space=vmem, size = 0x5000, scoped, tag = 'scratch operand']
  #allocation6 [shape = 'f32[150,512]{1,0:T(8,128)}', space=vmem, size = 0x4c000, scoped, tag = 'scratch operand']
  #allocation7 [shape = 'f32[16,640]{1,0:T(8,128)}', space=vmem, size = 0xa000, scoped, tag = 'scratch operand']
  #allocation8 [shape = 'f32[32,256]{1,0:T(8,128)}', space=vmem, size = 0x8000, scoped, tag = 'scratch operand']
  #allocation9 [shape = 'f32[2,1024]{1,0:T(2,128)}', space=vmem, size = 0x2000, scoped, tag = 'scratch operand']
  %s0 = inlined_call_operand.vmem [shape: f32[2,3,2304], index: 0, kind: input, shape index: {}]
  %s1 = inlined_call_operand.vmem [shape: f32[6,75], index: 1, kind: input, shape index: {}]
  %s2 = inlined_call_operand.vmem [shape: f32[6,1], index: 2, kind: input, shape index: {}]
  %s3 = inlined_call_operand.vmem [shape: f32[16,150], index: 3, kind: input, shape index: {}]
  %s4 = inlined_call_operand.vmem [shape: f32[16,1], index: 4, kind: input, shape index: {}]
  %s5 = inlined_call_operand.vmem [shape: f32[1024,256], index: 5, kind: input, shape index: {}]
  %s6 = inlined_call_operand.vmem [shape: f32[256,64], index: 6, kind: input, shape index: {}]
  %s7 = inlined_call_operand.vmem [shape: f32[1024,120], index: 7, kind: input, shape index: {}]
  %s8 = inlined_call_operand.vmem [shape: f32[1,120], index: 8, kind: input, shape index: {}]
  %s9 = inlined_call_operand.vmem [shape: f32[120,84], index: 9, kind: input, shape index: {}]
  %s10 = inlined_call_operand.vmem [shape: f32[1,84], index: 10, kind: input, shape index: {}]
  %s11 = inlined_call_operand.vmem [shape: f32[84,10], index: 11, kind: input, shape index: {}]
  %s12 = inlined_call_operand.vmem [shape: f32[1,10], index: 12, kind: input, shape index: {}]
  %s13 = inlined_call_operand.hbm [shape: f32[2,2,10], index: 13, kind: output, shape index: {}]
  %s14 = sld [smem:[#allocation0]]
  $region85: #{lenet_forward.1} parent=0
    _
  %s16 = ssub.s32 1, %s14
  %s17 = scalar_select 0, %s16, %s14
  $region1: #{lenet_forward.1} parent=0
    #allocation10 [shape = 'u8[2048]{0}', space=vmem, size = 0x800, scoped, tag = 'output window, operand 0']
    #allocation11 [shape = 's32[2]{0}', space=sflag, size = 0x8, scoped, tag = 'scoped memory for lenet_forward.1']
    %18 = vsyncpa [#allocation11], 0
    %s19 = scalar_lea.sflag [#allocation11], 1
    %20 = vsyncpa %s19, 0
    loop: start=0, step=1, limit=4
    $region2: #{lenet_forward.1} parent=1 // loop_pre_header
      _
    $region3: #{lenet_forward.1} parent=1 // loop_header
      %s22 = sphi 0, %s26
      %p23 = scmp.ge.s32.totalorder %s22, 4
      %s32 = sphi 0, %s34
      %s35 = sphi 0, %s32
      %s36 = sphi 0, %s35
      %s52 = sphi 0, %s36
      %s56 = sphi 0, %s56
      %s58 = sphi 0, %s56
      %s59 = sphi 0, %s58
      %s73 = sphi 0, %s59
      %s77 = sphi 0, %s77
      %s79 = sphi 0, %s77
      %s80 = sphi 0, %s79
      %s94 = sphi 0, %s80
      %s98 = sphi 0, %s98
      %s100 = sphi 0, %s98
      %s101 = sphi 0, %s100
      %s115 = sphi 0, %s101
      %s119 = sphi 0, %s119
      %s121 = sphi 0, %s119
      %s122 = sphi 0, %s121
      %s136 = sphi 0, %s122
      %s140 = sphi 0, %s140
      %s142 = sphi 0, %s140
      %s143 = sphi 0, %s142
      %s157 = sphi 0, %s143
      %s161 = sphi 0, %s161
      %s163 = sphi 0, %s161
      %s164 = sphi 0, %s163
      %s178 = sphi 0, %s164
      %s182 = sphi 0, %s182
      %s184 = sphi 0, %s182
      %s185 = sphi 0, %s184
      %s199 = sphi 0, %s185
      %s203 = sphi 0, %s203
      %s205 = sphi 0, %s203
      %s206 = sphi 0, %s205
      %s220 = sphi 0, %s206
      %s224 = sphi 0, %s224
      %s226 = sphi 0, %s224
      %s227 = sphi 0, %s226
      %s241 = sphi 0, %s227
      %s245 = sphi 0, %s245
      %s247 = sphi 0, %s245
      %s248 = sphi 0, %s247
      %s262 = sphi 0, %s248
      %s266 = sphi 0, %s266
      %s268 = sphi 0, %s266
      %s269 = sphi 0, %s268
      %s283 = sphi 0, %s269
      %s287 = sphi 0, %s287
      %s289 = sphi 0, %s287
      %s290 = sphi 0, %s289
      %s304 = sphi 0, %s290
      %s310 = sphi 0, %s312
      %s313 = sphi 0, %s310
      %s314 = sphi 0, %s313
      %s330 = sphi 0, %s314
    $region4: #{lenet_forward.1} parent=1 // loop_header_branch
      %25 = sbr.rel (%p23) target = $region8
    $region5: #{lenet_forward.1} parent=1 // loop_body
      %s27 = ssub.s32 %s22, 1
      %s28 = ssub.s32 %s22, 2
      %s29 = sadd.s32 %s22, 1
      %s30 = ssub.s32 %s22, %s29
      %p31 = scmp.eq.s32.totalorder %s30, 0
      %s33 = sadd.s32 %s32, 1
      %s34 = scalar_select %p31, %s32, %s33
      %p37 = pneg %p31
      %p38 = scmp.eq.s32.totalorder %s22, 1
      %p39 = por %p37, %p38
      %p40 = scmp.ne.s32.totalorder %s32, %s35
      %p41 = scmp.eq.s32.totalorder %s22, 0
      %p42 = por %p40, %p41
      %p43 = scmp.ne.s32.totalorder %s32, %s35
      %p44 = scmp.eq.s32.totalorder %s27, 1
      %p45 = por %p43, %p44
      %p46 = scmp.ne.s32.totalorder %s35, %s36
      %p47 = scmp.eq.s32.totalorder %s27, 0
      %p48 = por %p46, %p47
      %p49 = scmp.ne.s32.totalorder %s35, %s36
      %p50 = scmp.eq.s32.totalorder %s28, 1
      %p51 = por %p49, %p50
      %p53 = scmp.ne.s32.totalorder %s36, %s52
      %p54 = scmp.eq.s32.totalorder %s28, 0
      %p55 = por %p53, %p54
      %s57 = sadd.s32 %s56, 1
      %p60 = scmp.eq.s32.totalorder %s22, 1
      %p61 = scmp.ne.s32.totalorder %s56, %s58
      %p62 = scmp.eq.s32.totalorder %s22, 0
      %p63 = por %p61, %p62
      %p64 = scmp.ne.s32.totalorder %s56, %s58
      %p65 = scmp.eq.s32.totalorder %s27, 1
      %p66 = por %p64, %p65
      %p67 = scmp.ne.s32.totalorder %s58, %s59
      %p68 = scmp.eq.s32.totalorder %s27, 0
      %p69 = por %p67, %p68
      %p70 = scmp.ne.s32.totalorder %s58, %s59
      %p71 = scmp.eq.s32.totalorder %s28, 1
      %p72 = por %p70, %p71
      %p74 = scmp.ne.s32.totalorder %s59, %s73
      %p75 = scmp.eq.s32.totalorder %s28, 0
      %p76 = por %p74, %p75
      %s78 = sadd.s32 %s77, 1
      %p81 = scmp.eq.s32.totalorder %s22, 1
      %p82 = scmp.ne.s32.totalorder %s77, %s79
      %p83 = scmp.eq.s32.totalorder %s22, 0
      %p84 = por %p82, %p83
      %p85 = scmp.ne.s32.totalorder %s77, %s79
      %p86 = scmp.eq.s32.totalorder %s27, 1
      %p87 = por %p85, %p86
      %p88 = scmp.ne.s32.totalorder %s79, %s80
      %p89 = scmp.eq.s32.totalorder %s27, 0
      %p90 = por %p88, %p89
      %p91 = scmp.ne.s32.totalorder %s79, %s80
      %p92 = scmp.eq.s32.totalorder %s28, 1
      %p93 = por %p91, %p92
      %p95 = scmp.ne.s32.totalorder %s80, %s94
      %p96 = scmp.eq.s32.totalorder %s28, 0
      %p97 = por %p95, %p96
      %s99 = sadd.s32 %s98, 1
      %p102 = scmp.eq.s32.totalorder %s22, 1
      %p103 = scmp.ne.s32.totalorder %s98, %s100
      %p104 = scmp.eq.s32.totalorder %s22, 0
      %p105 = por %p103, %p104
      %p106 = scmp.ne.s32.totalorder %s98, %s100
      %p107 = scmp.eq.s32.totalorder %s27, 1
      %p108 = por %p106, %p107
      %p109 = scmp.ne.s32.totalorder %s100, %s101
      %p110 = scmp.eq.s32.totalorder %s27, 0
      %p111 = por %p109, %p110
      %p112 = scmp.ne.s32.totalorder %s100, %s101
      %p113 = scmp.eq.s32.totalorder %s28, 1
      %p114 = por %p112, %p113
      %p116 = scmp.ne.s32.totalorder %s101, %s115
      %p117 = scmp.eq.s32.totalorder %s28, 0
      %p118 = por %p116, %p117
      %s120 = sadd.s32 %s119, 1
      %p123 = scmp.eq.s32.totalorder %s22, 1
      %p124 = scmp.ne.s32.totalorder %s119, %s121
      %p125 = scmp.eq.s32.totalorder %s22, 0
      %p126 = por %p124, %p125
      %p127 = scmp.ne.s32.totalorder %s119, %s121
      %p128 = scmp.eq.s32.totalorder %s27, 1
      %p129 = por %p127, %p128
      %p130 = scmp.ne.s32.totalorder %s121, %s122
      %p131 = scmp.eq.s32.totalorder %s27, 0
      %p132 = por %p130, %p131
      %p133 = scmp.ne.s32.totalorder %s121, %s122
      %p134 = scmp.eq.s32.totalorder %s28, 1
      %p135 = por %p133, %p134
      %p137 = scmp.ne.s32.totalorder %s122, %s136
      %p138 = scmp.eq.s32.totalorder %s28, 0
      %p139 = por %p137, %p138
      %s141 = sadd.s32 %s140, 1
      %p144 = scmp.eq.s32.totalorder %s22, 1
      %p145 = scmp.ne.s32.totalorder %s140, %s142
      %p146 = scmp.eq.s32.totalorder %s22, 0
      %p147 = por %p145, %p146
      %p148 = scmp.ne.s32.totalorder %s140, %s142
      %p149 = scmp.eq.s32.totalorder %s27, 1
      %p150 = por %p148, %p149
      %p151 = scmp.ne.s32.totalorder %s142, %s143
      %p152 = scmp.eq.s32.totalorder %s27, 0
      %p153 = por %p151, %p152
      %p154 = scmp.ne.s32.totalorder %s142, %s143
      %p155 = scmp.eq.s32.totalorder %s28, 1
      %p156 = por %p154, %p155
      %p158 = scmp.ne.s32.totalorder %s143, %s157
      %p159 = scmp.eq.s32.totalorder %s28, 0
      %p160 = por %p158, %p159
      %s162 = sadd.s32 %s161, 1
      %p165 = scmp.eq.s32.totalorder %s22, 1
      %p166 = scmp.ne.s32.totalorder %s161, %s163
      %p167 = scmp.eq.s32.totalorder %s22, 0
      %p168 = por %p166, %p167
      %p169 = scmp.ne.s32.totalorder %s161, %s163
      %p170 = scmp.eq.s32.totalorder %s27, 1
      %p171 = por %p169, %p170
      %p172 = scmp.ne.s32.totalorder %s163, %s164
      %p173 = scmp.eq.s32.totalorder %s27, 0
      %p174 = por %p172, %p173
      %p175 = scmp.ne.s32.totalorder %s163, %s164
      %p176 = scmp.eq.s32.totalorder %s28, 1
      %p177 = por %p175, %p176
      %p179 = scmp.ne.s32.totalorder %s164, %s178
      %p180 = scmp.eq.s32.totalorder %s28, 0
      %p181 = por %p179, %p180
      %s183 = sadd.s32 %s182, 1
      %p186 = scmp.eq.s32.totalorder %s22, 1
      %p187 = scmp.ne.s32.totalorder %s182, %s184
      %p188 = scmp.eq.s32.totalorder %s22, 0
      %p189 = por %p187, %p188
      %p190 = scmp.ne.s32.totalorder %s182, %s184
      %p191 = scmp.eq.s32.totalorder %s27, 1
      %p192 = por %p190, %p191
      %p193 = scmp.ne.s32.totalorder %s184, %s185
      %p194 = scmp.eq.s32.totalorder %s27, 0
      %p195 = por %p193, %p194
      %p196 = scmp.ne.s32.totalorder %s184, %s185
      %p197 = scmp.eq.s32.totalorder %s28, 1
      %p198 = por %p196, %p197
      %p200 = scmp.ne.s32.totalorder %s185, %s199
      %p201 = scmp.eq.s32.totalorder %s28, 0
      %p202 = por %p200, %p201
      %s204 = sadd.s32 %s203, 1
      %p207 = scmp.eq.s32.totalorder %s22, 1
      %p208 = scmp.ne.s32.totalorder %s203, %s205
      %p209 = scmp.eq.s32.totalorder %s22, 0
      %p210 = por %p208, %p209
      %p211 = scmp.ne.s32.totalorder %s203, %s205
      %p212 = scmp.eq.s32.totalorder %s27, 1
      %p213 = por %p211, %p212
      %p214 = scmp.ne.s32.totalorder %s205, %s206
      %p215 = scmp.eq.s32.totalorder %s27, 0
      %p216 = por %p214, %p215
      %p217 = scmp.ne.s32.totalorder %s205, %s206
      %p218 = scmp.eq.s32.totalorder %s28, 1
      %p219 = por %p217, %p218
      %p221 = scmp.ne.s32.totalorder %s206, %s220
      %p222 = scmp.eq.s32.totalorder %s28, 0
      %p223 = por %p221, %p222
      %s225 = sadd.s32 %s224, 1
      %p228 = scmp.eq.s32.totalorder %s22, 1
      %p229 = scmp.ne.s32.totalorder %s224, %s226
      %p230 = scmp.eq.s32.totalorder %s22, 0
      %p231 = por %p229, %p230
      %p232 = scmp.ne.s32.totalorder %s224, %s226
      %p233 = scmp.eq.s32.totalorder %s27, 1
      %p234 = por %p232, %p233
      %p235 = scmp.ne.s32.totalorder %s226, %s227
      %p236 = scmp.eq.s32.totalorder %s27, 0
      %p237 = por %p235, %p236
      %p238 = scmp.ne.s32.totalorder %s226, %s227
      %p239 = scmp.eq.s32.totalorder %s28, 1
      %p240 = por %p238, %p239
      %p242 = scmp.ne.s32.totalorder %s227, %s241
      %p243 = scmp.eq.s32.totalorder %s28, 0
      %p244 = por %p242, %p243
      %s246 = sadd.s32 %s245, 1
      %p249 = scmp.eq.s32.totalorder %s22, 1
      %p250 = scmp.ne.s32.totalorder %s245, %s247
      %p251 = scmp.eq.s32.totalorder %s22, 0
      %p252 = por %p250, %p251
      %p253 = scmp.ne.s32.totalorder %s245, %s247
      %p254 = scmp.eq.s32.totalorder %s27, 1
      %p255 = por %p253, %p254
      %p256 = scmp.ne.s32.totalorder %s247, %s248
      %p257 = scmp.eq.s32.totalorder %s27, 0
      %p258 = por %p256, %p257
      %p259 = scmp.ne.s32.totalorder %s247, %s248
      %p260 = scmp.eq.s32.totalorder %s28, 1
      %p261 = por %p259, %p260
      %p263 = scmp.ne.s32.totalorder %s248, %s262
      %p264 = scmp.eq.s32.totalorder %s28, 0
      %p265 = por %p263, %p264
      %s267 = sadd.s32 %s266, 1
      %p270 = scmp.eq.s32.totalorder %s22, 1
      %p271 = scmp.ne.s32.totalorder %s266, %s268
      %p272 = scmp.eq.s32.totalorder %s22, 0
      %p273 = por %p271, %p272
      %p274 = scmp.ne.s32.totalorder %s266, %s268
      %p275 = scmp.eq.s32.totalorder %s27, 1
      %p276 = por %p274, %p275
      %p277 = scmp.ne.s32.totalorder %s268, %s269
      %p278 = scmp.eq.s32.totalorder %s27, 0
      %p279 = por %p277, %p278
      %p280 = scmp.ne.s32.totalorder %s268, %s269
      %p281 = scmp.eq.s32.totalorder %s28, 1
      %p282 = por %p280, %p281
      %p284 = scmp.ne.s32.totalorder %s269, %s283
      %p285 = scmp.eq.s32.totalorder %s28, 0
      %p286 = por %p284, %p285
      %s288 = sadd.s32 %s287, 1
      %p291 = scmp.eq.s32.totalorder %s22, 1
      %p292 = scmp.ne.s32.totalorder %s287, %s289
      %p293 = scmp.eq.s32.totalorder %s22, 0
      %p294 = por %p292, %p293
      %p295 = scmp.ne.s32.totalorder %s287, %s289
      %p296 = scmp.eq.s32.totalorder %s27, 1
      %p297 = por %p295, %p296
      %p298 = scmp.ne.s32.totalorder %s289, %s290
      %p299 = scmp.eq.s32.totalorder %s27, 0
      %p300 = por %p298, %p299
      %p301 = scmp.ne.s32.totalorder %s289, %s290
      %p302 = scmp.eq.s32.totalorder %s28, 1
      %p303 = por %p301, %p302
      %p305 = scmp.ne.s32.totalorder %s290, %s304
      %p306 = scmp.eq.s32.totalorder %s28, 0
      %p307 = por %p305, %p306
      %s308 = ssub.s32 %s22, %s29
      %p309 = scmp.eq.s32.totalorder %s308, 0
      %s311 = sadd.s32 %s310, 1
      %s312 = scalar_select %p309, %s310, %s311
      %p315 = pneg %p309
      %p316 = scmp.eq.s32.totalorder %s22, 1
      %p317 = por %p315, %p316
      %p318 = scmp.ne.s32.totalorder %s310, %s313
      %p319 = scmp.eq.s32.totalorder %s22, 0
      %p320 = por %p318, %p319
      %p321 = scmp.ne.s32.totalorder %s310, %s313
      %p322 = scmp.eq.s32.totalorder %s27, 1
      %p323 = por %p321, %p322
      %p324 = scmp.ne.s32.totalorder %s313, %s314
      %p325 = scmp.eq.s32.totalorder %s27, 0
      %p326 = por %p324, %p325
      %p327 = scmp.ne.s32.totalorder %s313, %s314
      %p328 = scmp.eq.s32.totalorder %s28, 1
      %p329 = por %p327, %p328
      %p331 = scmp.ne.s32.totalorder %s314, %s330
      %p332 = scmp.eq.s32.totalorder %s28, 0
      %p333 = por %p331, %p332
      %p334 = scmp.le.s32.totalorder 1, %s22
      %p335 = scmp.lt.s32.totalorder %s22, 3
      %p336 = pnand %p334, %p335
      %p337 = pneg %p336
      // Predicated region
      $region9: #{lenet_forward.1} parent=5 // pred_check
        _
      $region10: #{lenet_forward.1} parent=5 // pred_check_branch
        %339 = sbr.rel (%p336) target = $region12
      $region11: #{lenet_forward.1} parent=5 // pred_region
        %s340 = ssub.s32 %s22, 1
        // Predicated region
        $region13: #{lenet_forward.1} parent=11 // pred_check
          %p341 = pneg %p69
        $region14: #{lenet_forward.1} parent=11 // pred_check_branch
          %343 = sbr.rel (%p341) target = $region16
        $region15: #{lenet_forward.1} parent=11 // pred_region
          _
        $region16: #{lenet_forward.1} parent=11 // pred_fallthru
          _
        // Predicated region
        $region17: #{lenet_forward.1} parent=11 // pred_check
          %p344 = pneg %p90
        $region18: #{lenet_forward.1} parent=11 // pred_check_branch
          %346 = sbr.rel (%p344) target = $region20
        $region19: #{lenet_forward.1} parent=11 // pred_region
          _
        $region20: #{lenet_forward.1} parent=11 // pred_fallthru
          _
        // Predicated region
        $region21: #{lenet_forward.1} parent=11 // pred_check
          %p347 = pneg %p111
        $region22: #{lenet_forward.1} parent=11 // pred_check_branch
          %349 = sbr.rel (%p347) target = $region24
        $region23: #{lenet_forward.1} parent=11 // pred_region
          _
        $region24: #{lenet_forward.1} parent=11 // pred_fallthru
          _
        // Predicated region
        $region25: #{lenet_forward.1} parent=11 // pred_check
          %p350 = pneg %p132
        $region26: #{lenet_forward.1} parent=11 // pred_check_branch
          %352 = sbr.rel (%p350) target = $region28
        $region27: #{lenet_forward.1} parent=11 // pred_region
          _
        $region28: #{lenet_forward.1} parent=11 // pred_fallthru
          _
        // Predicated region
        $region29: #{lenet_forward.1} parent=11 // pred_check
          %p353 = pneg %p153
        $region30: #{lenet_forward.1} parent=11 // pred_check_branch
          %355 = sbr.rel (%p353) target = $region32
        $region31: #{lenet_forward.1} parent=11 // pred_region
          _
        $region32: #{lenet_forward.1} parent=11 // pred_fallthru
          _
        // Predicated region
        $region33: #{lenet_forward.1} parent=11 // pred_check
          %p356 = pneg %p174
        $region34: #{lenet_forward.1} parent=11 // pred_check_branch
          %358 = sbr.rel (%p356) target = $region36
        $region35: #{lenet_forward.1} parent=11 // pred_region
          _
        $region36: #{lenet_forward.1} parent=11 // pred_fallthru
          _
        // Predicated region
        $region37: #{lenet_forward.1} parent=11 // pred_check
          %p359 = pneg %p195
        $region38: #{lenet_forward.1} parent=11 // pred_check_branch
          %361 = sbr.rel (%p359) target = $region40
        $region39: #{lenet_forward.1} parent=11 // pred_region
          _
        $region40: #{lenet_forward.1} parent=11 // pred_fallthru
          _
        // Predicated region
        $region41: #{lenet_forward.1} parent=11 // pred_check
          %p362 = pneg %p216
        $region42: #{lenet_forward.1} parent=11 // pred_check_branch
          %364 = sbr.rel (%p362) target = $region44
        $region43: #{lenet_forward.1} parent=11 // pred_region
          _
        $region44: #{lenet_forward.1} parent=11 // pred_fallthru
          _
        // Predicated region
        $region45: #{lenet_forward.1} parent=11 // pred_check
          %p365 = pneg %p237
        $region46: #{lenet_forward.1} parent=11 // pred_check_branch
          %367 = sbr.rel (%p365) target = $region48
        $region47: #{lenet_forward.1} parent=11 // pred_region
          _
        $region48: #{lenet_forward.1} parent=11 // pred_fallthru
          _
        // Predicated region
        $region49: #{lenet_forward.1} parent=11 // pred_check
          %p368 = pneg %p258
        $region50: #{lenet_forward.1} parent=11 // pred_check_branch
          %370 = sbr.rel (%p368) target = $region52
        $region51: #{lenet_forward.1} parent=11 // pred_region
          _
        $region52: #{lenet_forward.1} parent=11 // pred_fallthru
          _
        // Predicated region
        $region53: #{lenet_forward.1} parent=11 // pred_check
          %p371 = pneg %p279
        $region54: #{lenet_forward.1} parent=11 // pred_check_branch
          %373 = sbr.rel (%p371) target = $region56
        $region55: #{lenet_forward.1} parent=11 // pred_region
          _
        $region56: #{lenet_forward.1} parent=11 // pred_fallthru
          _
        // Predicated region
        $region57: #{lenet_forward.1} parent=11 // pred_check
          %p374 = pneg %p300
        $region58: #{lenet_forward.1} parent=11 // pred_check_branch
          %376 = sbr.rel (%p374) target = $region60
        $region59: #{lenet_forward.1} parent=11 // pred_region
          _
        $region60: #{lenet_forward.1} parent=11 // pred_fallthru
          _
      $region12: #{lenet_forward.1} parent=5 // pred_fallthru
        _
      %p377 = scmp.lt.s32.totalorder %s22, 2
      // Predicated region
      $region61: #{lenet_forward.1} parent=5 // pred_check
        %p378 = pneg %p377
      $region62: #{lenet_forward.1} parent=5 // pred_check_branch
        %380 = sbr.rel (%p378) target = $region64
      $region63: #{lenet_forward.1} parent=5 // pred_region
        // Predicated region
        $region65: #{lenet_forward.1} parent=63 // pred_check
          %p381 = pneg %p42
        $region66: #{lenet_forward.1} parent=63 // pred_check_branch
          %383 = sbr.rel (%p381) target = $region68
        $region67: #{lenet_forward.1} parent=63 // pred_region
          %p384 = scmp.lt.s32.totalorder %s22, 1
          %s385 = scalar_select %p384, %s22, 1
          %s386 = smul.addr %s385, 18
          %s387 = smul.addr %s386, 4
          %s388 = scalar_lea.vmem %s0, %s387
        $region68: #{lenet_forward.1} parent=63 // pred_fallthru
          _
      $region64: #{lenet_forward.1} parent=5 // pred_fallthru
        _
      %p389 = scmp.le.s32.totalorder 1, %s22
      %p390 = scmp.lt.s32.totalorder %s22, 3
      %p391 = pnand %p389, %p390
      %p392 = pneg %p391
      // Predicated region
      $region69: #{lenet_forward.1} parent=5 // pred_check
        _
      $region70: #{lenet_forward.1} parent=5 // pred_check_branch
        %394 = sbr.rel (%p391) target = $region72
      $region71: #{lenet_forward.1} parent=5 // pred_region
        %s395 = ssub.s32 %s22, 1
        %p396 = scmp.lt.s32.totalorder %s27, 1
        %s397 = scalar_select %p396, %s27, 1
        %s398 = smul.addr %s397, 18
        %s399 = smul.addr %s398, 4
        %s400 = scalar_lea.vmem %s0, %s399
        %p401 = pneg %p48
        %p402 = pneg %p45
        %p403 = pneg %p69
        %p404 = pneg %p66
        %p405 = pneg %p90
        %p406 = pneg %p87
        %p407 = pneg %p111
        %p408 = pneg %p108
        %p409 = pneg %p132
        %p410 = pneg %p129
        %p411 = pneg %p153
        %p412 = pneg %p150
        %p413 = pneg %p174
        %p414 = pneg %p171
        %p415 = pneg %p195
        %p416 = pneg %p192
        %p417 = pneg %p216
        %p418 = pneg %p213
        %p419 = pneg %p237
        %p420 = pneg %p234
        %p421 = pneg %p258
        %p422 = pneg %p255
        %p423 = pneg %p279
        %p424 = pneg %p276
        %p425 = pneg %p300
        %p426 = pneg %p297
        %p427 = pneg %p326
        %p428 = pneg %p323
        %s429 = sand.u32 %s313, 1
        %s430 = scalar_lea.sflag [#allocation11], %s429
        %s431 = sand.u32 %s313, 1
        %s432 = smul.addr %s431, 2
        %s433 = scalar_lea.vmem [#allocation10], %s432
        %p434 = scmp.lt.s32.totalorder %s27, 1
        %s435 = scalar_select %p434, %s27, 1
        %s436 = smul.addr %s435, 18
        %s437 = smul.addr %s436, 4
        %s438 = scalar_lea.vmem %s0, %s437
        %439 = vst [vmem:[#allocation3 + $0x80] sm:$0x3f] 0.0
        %440 = vst [vmem:[#allocation5 + $0x20] sm:$0x3f] 0.0
        %441 = vst [vmem:[#allocation7 + $0x20] sm:$0xff] 0.0
        %442 = vst [vmem:[#allocation7 + $0x48] sm:$0xff] 0.0
        %v443 = vld [vmem:[%s438] sm:$0x77]
        %v444 = vld [vmem:[%s438 + $0x8] sm:$0x77]
        %v445 = vld [vmem:[%s438 + $0x10] sm:$0x77]
        %v446 = vld [vmem:[%s438 + $0x18] sm:$0x77]
        %v447 = vld [vmem:[%s438 + $0x20] sm:$0x77]
        %v448 = vld [vmem:[%s438 + $0x28] sm:$0x77]
        %v449 = vld [vmem:[%s438 + $0x30] sm:$0x77]
        %v450 = vld [vmem:[%s438 + $0x38] sm:$0x77]
        %v459 = vcombine.high %v443, %v443
        %v460 = vcombine.high %v444, %v444
        %v461 = vcombine.high %v445, %v445
        %v462 = vcombine.high %v446, %v446
        %v463 = vcombine.high %v447, %v447
        %v464 = vcombine.high %v448, %v448
        %v465 = vcombine.high %v449, %v449
        %v466 = vcombine.high %v450, %v450
        %475 = vst [vmem:[#allocation2] sm:$0x7] %v443
        %476 = vst [vmem:[#allocation2 + $0x8] sm:$0x7] %v459
        %477 = vst [vmem:[#allocation2 + $0x10] sm:$0x7] %v444
        %478 = vst [vmem:[#allocation2 + $0x18] sm:$0x7] %v460
        %479 = vst [vmem:[#allocation2 + $0x20] sm:$0x7] %v445
        %480 = vst [vmem:[#allocation2 + $0x28] sm:$0x7] %v461
        %481 = vst [vmem:[#allocation2 + $0x30] sm:$0x7] %v446
        %482 = vst [vmem:[#allocation2 + $0x38] sm:$0x7] %v462
        %483 = vst [vmem:[#allocation2 + $0x40] sm:$0x7] %v447
        %484 = vst [vmem:[#allocation2 + $0x48] sm:$0x7] %v463
        %485 = vst [vmem:[#allocation2 + $0x50] sm:$0x7] %v448
        %486 = vst [vmem:[#allocation2 + $0x58] sm:$0x7] %v464
        %487 = vst [vmem:[#allocation2 + $0x60] sm:$0x7] %v449
        %488 = vst [vmem:[#allocation2 + $0x68] sm:$0x7] %v465
        %489 = vst [vmem:[#allocation2 + $0x70] sm:$0x7] %v450
        %490 = vst [vmem:[#allocation2 + $0x78] sm:$0x7] %v466
        %v491 = vld [vmem:[%s438] sm:$0x77]
        %v492 = vld [vmem:[%s438 + $0x8] sm:$0x77]
        %v493 = vld [vmem:[%s438 + $0x10] sm:$0x77]
        %v494 = vld [vmem:[%s438 + $0x18] sm:$0x77]
        %v495 = vld [vmem:[%s438 + $0x20] sm:$0x77]
        %v496 = vld [vmem:[%s438 + $0x28] sm:$0x77]
        %v497 = vld [vmem:[%s438 + $0x30] sm:$0x77]
        %v498 = vld [vmem:[%s438 + $0x38] sm:$0x77]
        %v499 = vld [vmem:[%s438 + $0x40] sm:$0x7]
        %v509 = vcombine.high %v491, %v491
        %v510 = vcombine.high %v492, %v492
        %v511 = vcombine.high %v493, %v493
        %v512 = vcombine.high %v494, %v494
        %v513 = vcombine.high %v495, %v495
        %v514 = vcombine.high %v496, %v496
        %v515 = vcombine.high %v497, %v497
        %v516 = vcombine.high %v498, %v498
        %v517 = vrot.slane %v491, 5
        %v518 = vrot.slane %v509, 5
        %v519 = vrot.slane %v492, 5
        %v520 = vrot.slane %v510, 5
        %v521 = vrot.slane %v493, 5
        %v522 = vrot.slane %v511, 5
        %v523 = vrot.slane %v494, 5
        %v524 = vrot.slane %v512, 5
        %v525 = vrot.slane %v495, 5
        %v526 = vrot.slane %v513, 5
        %v527 = vrot.slane %v496, 5
        %v528 = vrot.slane %v514, 5
        %v529 = vrot.slane %v497, 5
        %v530 = vrot.slane %v515, 5
        %v531 = vrot.slane %v498, 5
        %v532 = vrot.slane %v516, 5
        %v533 = vrot.slane %v499, 5
        %534 = vrot.lane.b32.xlu0 %v517, 127
        %v535 = vpop.permute.xlu0 %534
        %536 = vrot.lane.b32.xlu0 %v518, 127
        %v537 = vpop.permute.xlu0 %536
        %538 = vrot.lane.b32.xlu0 %v519, 127
        %v539 = vpop.permute.xlu0 %538
        %540 = vrot.lane.b32.xlu0 %v520, 127
        %v541 = vpop.permute.xlu0 %540
        %542 = vrot.lane.b32.xlu0 %v521, 127
        %v543 = vpop.permute.xlu0 %542
        %544 = vrot.lane.b32.xlu0 %v522, 127
        %v545 = vpop.permute.xlu0 %544
        %546 = vrot.lane.b32.xlu0 %v523, 127
        %v547 = vpop.permute.xlu0 %546
        %548 = vrot.lane.b32.xlu0 %v524, 127
        %v549 = vpop.permute.xlu0 %548
        %550 = vrot.lane.b32.xlu0 %v525, 127
        %v551 = vpop.permute.xlu0 %550
        %552 = vrot.lane.b32.xlu0 %v526, 127
        %v553 = vpop.permute.xlu0 %552
        %554 = vrot.lane.b32.xlu0 %v527, 127
        %v555 = vpop.permute.xlu0 %554
        %556 = vrot.lane.b32.xlu0 %v528, 127
        %v557 = vpop.permute.xlu0 %556
        %558 = vrot.lane.b32.xlu0 %v529, 127
        %v559 = vpop.permute.xlu0 %558
        %560 = vrot.lane.b32.xlu0 %v530, 127
        %v561 = vpop.permute.xlu0 %560
        %562 = vrot.lane.b32.xlu0 %v531, 127
        %v563 = vpop.permute.xlu0 %562
        %564 = vrot.lane.b32.xlu0 %v532, 127
        %v565 = vpop.permute.xlu0 %564
        %566 = vrot.lane.b32.xlu0 %v533, 127
        %v567 = vpop.permute.xlu0 %566
        %vm568 = vcmask 1039360
        %v569 = vsel %vm568, %v535, %v537
        %v570 = vsel %vm568, %v537, %v539
        %v571 = vsel %vm568, %v539, %v541
        %v572 = vsel %vm568, %v541, %v543
        %v573 = vsel %vm568, %v543, %v545
        %v574 = vsel %vm568, %v545, %v547
        %v575 = vsel %vm568, %v547, %v549
        %v576 = vsel %vm568, %v549, %v551
        %v577 = vsel %vm568, %v551, %v553
        %v578 = vsel %vm568, %v553, %v555
        %v579 = vsel %vm568, %v555, %v557
        %v580 = vsel %vm568, %v557, %v559
        %v581 = vsel %vm568, %v559, %v561
        %v582 = vsel %vm568, %v561, %v563
        %v583 = vsel %vm568, %v563, %v565
        %v584 = vsel %vm568, %v565, %v567
        %601 = vst [vmem:[#allocation2] sm:$0x38] %v569
        %602 = vst [vmem:[#allocation2 + $0x8] sm:$0x38] %v570
        %603 = vst [vmem:[#allocation2 + $0x10] sm:$0x38] %v571
        %604 = vst [vmem:[#allocation2 + $0x18] sm:$0x38] %v572
        %605 = vst [vmem:[#allocation2 + $0x20] sm:$0x38] %v573
        %606 = vst [vmem:[#allocation2 + $0x28] sm:$0x38] %v574
        %607 = vst [vmem:[#allocation2 + $0x30] sm:$0x38] %v575
        %608 = vst [vmem:[#allocation2 + $0x38] sm:$0x38] %v576
        %609 = vst [vmem:[#allocation2 + $0x40] sm:$0x38] %v577
        %610 = vst [vmem:[#allocation2 + $0x48] sm:$0x38] %v578
        %611 = vst [vmem:[#allocation2 + $0x50] sm:$0x38] %v579
        %612 = vst [vmem:[#allocation2 + $0x58] sm:$0x38] %v580
        %613 = vst [vmem:[#allocation2 + $0x60] sm:$0x38] %v581
        %614 = vst [vmem:[#allocation2 + $0x68] sm:$0x38] %v582
        %615 = vst [vmem:[#allocation2 + $0x70] sm:$0x38] %v583
        %616 = vst [vmem:[#allocation2 + $0x78] sm:$0x38] %v584
        %v617 = vld [vmem:[%s438] sm:$0x77]
        %v618 = vld [vmem:[%s438 + $0x8] sm:$0x77]
        %v619 = vld [vmem:[%s438 + $0x10] sm:$0x77]
        %v620 = vld [vmem:[%s438 + $0x18] sm:$0x77]
        %v621 = vld [vmem:[%s438 + $0x20] sm:$0x77]
        %v622 = vld [vmem:[%s438 + $0x28] sm:$0x77]
        %v623 = vld [vmem:[%s438 + $0x30] sm:$0x77]
        %v624 = vld [vmem:[%s438 + $0x38] sm:$0x77]
        %v625 = vld [vmem:[%s438 + $0x40] sm:$0x7]
        %v635 = vcombine.high %v617, %v617
        %v636 = vcombine.high %v618, %v618
        %v637 = vcombine.high %v619, %v619
        %v638 = vcombine.high %v620, %v620
        %v639 = vcombine.high %v621, %v621
        %v640 = vcombine.high %v622, %v622
        %v641 = vcombine.high %v623, %v623
        %v642 = vcombine.high %v624, %v624
        %v643 = vrot.slane %v617, 2
        %v644 = vrot.slane %v635, 2
        %v645 = vrot.slane %v618, 2
        %v646 = vrot.slane %v636, 2
        %v647 = vrot.slane %v619, 2
        %v648 = vrot.slane %v637, 2
        %v649 = vrot.slane %v620, 2
        %v650 = vrot.slane %v638, 2
        %v651 = vrot.slane %v621, 2
        %v652 = vrot.slane %v639, 2
        %v653 = vrot.slane %v622, 2
        %v654 = vrot.slane %v640, 2
        %v655 = vrot.slane %v623, 2
        %v656 = vrot.slane %v641, 2
        %v657 = vrot.slane %v624, 2
        %v658 = vrot.slane %v642, 2
        %v659 = vrot.slane %v625, 2
        %660 = vrot.lane.b32.xlu0 %v643, 126
        %v661 = vpop.permute.xlu0 %660
        %662 = vrot.lane.b32.xlu0 %v644, 126
        %v663 = vpop.permute.xlu0 %662
        %664 = vrot.lane.b32.xlu0 %v645, 126
        %v665 = vpop.permute.xlu0 %664
        %666 = vrot.lane.b32.xlu0 %v646, 126
        %v667 = vpop.permute.xlu0 %666
        %668 = vrot.lane.b32.xlu0 %v647, 126
        %v669 = vpop.permute.xlu0 %668
        %670 = vrot.lane.b32.xlu0 %v648, 126
        %v671 = vpop.permute.xlu0 %670
        %672 = vrot.lane.b32.xlu0 %v649, 126
        %v673 = vpop.permute.xlu0 %672
        %674 = vrot.lane.b32.xlu0 %v650, 126
        %v675 = vpop.permute.xlu0 %674
        %676 = vrot.lane.b32.xlu0 %v651, 126
        %v677 = vpop.permute.xlu0 %676
        %678 = vrot.lane.b32.xlu0 %v652, 126
        %v679 = vpop.permute.xlu0 %678
        %680 = vrot.lane.b32.xlu0 %v653, 126
        %v681 = vpop.permute.xlu0 %680
        %682 = vrot.lane.b32.xlu0 %v654, 126
        %v683 = vpop.permute.xlu0 %682
        %684 = vrot.lane.b32.xlu0 %v655, 126
        %v685 = vpop.permute.xlu0 %684
        %686 = vrot.lane.b32.xlu0 %v656, 126
        %v687 = vpop.permute.xlu0 %686
        %688 = vrot.lane.b32.xlu0 %v657, 126
        %v689 = vpop.permute.xlu0 %688
        %690 = vrot.lane.b32.xlu0 %v658, 126
        %v691 = vpop.permute.xlu0 %690
        %692 = vrot.lane.b32.xlu0 %v659, 126
        %v693 = vpop.permute.xlu0 %692
        %vm694 = vcmask 1031168
        %v695 = vsel %vm694, %v661, %v663
        %v696 = vsel %vm694, %v663, %v665
        %v697 = vsel %vm694, %v665, %v667
        %v698 = vsel %vm694, %v667, %v669
        %v699 = vsel %vm694, %v669, %v671
        %v700 = vsel %vm694, %v671, %v673
        %v701 = vsel %vm694, %v673, %v675
        %v702 = vsel %vm694, %v675, %v677
        %v703 = vsel %vm694, %v677, %v679
        %v704 = vsel %vm694, %v679, %v681
        %v705 = vsel %vm694, %v681, %v683
        %v706 = vsel %vm694, %v683, %v685
        %v707 = vsel %vm694, %v685, %v687
        %v708 = vsel %vm694, %v687, %v689
        %v709 = vsel %vm694, %v689, %v691
        %v710 = vsel %vm694, %v691, %v693
        %727 = vst [vmem:[#allocation2] sm:$0xc0] %v695
        %728 = vst [vmem:[#allocation2 + $0x8] sm:$0xc0] %v696
        %729 = vst [vmem:[#allocation2 + $0x10] sm:$0xc0] %v697
        %730 = vst [vmem:[#allocation2 + $0x18] sm:$0xc0] %v698
        %731 = vst [vmem:[#allocation2 + $0x20] sm:$0xc0] %v699
        %732 = vst [vmem:[#allocation2 + $0x28] sm:$0xc0] %v700
        %733 = vst [vmem:[#allocation2 + $0x30] sm:$0xc0] %v701
        %734 = vst [vmem:[#allocation2 + $0x38] sm:$0xc0] %v702
        %735 = vst [vmem:[#allocation2 + $0x40] sm:$0xc0] %v703
        %736 = vst [vmem:[#allocation2 + $0x48] sm:$0xc0] %v704
        %737 = vst [vmem:[#allocation2 + $0x50] sm:$0xc0] %v705
        %738 = vst [vmem:[#allocation2 + $0x58] sm:$0xc0] %v706
        %739 = vst [vmem:[#allocation2 + $0x60] sm:$0xc0] %v707
        %740 = vst [vmem:[#allocation2 + $0x68] sm:$0xc0] %v708
        %741 = vst [vmem:[#allocation2 + $0x70] sm:$0xc0] %v709
        %742 = vst [vmem:[#allocation2 + $0x78] sm:$0xc0] %v710
        %743 = vst [vmem:[#allocation2 + $0x80] sm:$0x1] %v695
        %744 = vst [vmem:[#allocation2 + $0x88] sm:$0x1] %v696
        %745 = vst [vmem:[#allocation2 + $0x90] sm:$0x1] %v697
        %746 = vst [vmem:[#allocation2 + $0x98] sm:$0x1] %v698
        %747 = vst [vmem:[#allocation2 + $0xa0] sm:$0x1] %v699
        %748 = vst [vmem:[#allocation2 + $0xa8] sm:$0x1] %v700
        %749 = vst [vmem:[#allocation2 + $0xb0] sm:$0x1] %v701
        %750 = vst [vmem:[#allocation2 + $0xb8] sm:$0x1] %v702
        %751 = vst [vmem:[#allocation2 + $0xc0] sm:$0x1] %v703
        %752 = vst [vmem:[#allocation2 + $0xc8] sm:$0x1] %v704
        %753 = vst [vmem:[#allocation2 + $0xd0] sm:$0x1] %v705
        %754 = vst [vmem:[#allocation2 + $0xd8] sm:$0x1] %v706
        %755 = vst [vmem:[#allocation2 + $0xe0] sm:$0x1] %v707
        %756 = vst [vmem:[#allocation2 + $0xe8] sm:$0x1] %v708
        %757 = vst [vmem:[#allocation2 + $0xf0] sm:$0x1] %v709
        %758 = vst [vmem:[#allocation2 + $0xf8] sm:$0x1] %v710
        %v759 = vld [vmem:[%s438] sm:$0x77]
        %v760 = vld [vmem:[%s438 + $0x8] sm:$0x77]
        %v761 = vld [vmem:[%s438 + $0x10] sm:$0x77]
        %v762 = vld [vmem:[%s438 + $0x18] sm:$0x77]
        %v763 = vld [vmem:[%s438 + $0x20] sm:$0x77]
        %v764 = vld [vmem:[%s438 + $0x28] sm:$0x77]
        %v765 = vld [vmem:[%s438 + $0x30] sm:$0x77]
        %v766 = vld [vmem:[%s438 + $0x38] sm:$0x77]
        %v767 = vld [vmem:[%s438 + $0x40] sm:$0x7]
        %v777 = vcombine.high %v759, %v759
        %v778 = vcombine.high %v760, %v760
        %v779 = vcombine.high %v761, %v761
        %v780 = vcombine.high %v762, %v762
        %v781 = vcombine.high %v763, %v763
        %v782 = vcombine.high %v764, %v764
        %v783 = vcombine.high %v765, %v765
        %v784 = vcombine.high %v766, %v766
        %v785 = vrot.slane %v759, 7
        %v786 = vrot.slane %v777, 7
        %v787 = vrot.slane %v760, 7
        %v788 = vrot.slane %v778, 7
        %v789 = vrot.slane %v761, 7
        %v790 = vrot.slane %v779, 7
        %v791 = vrot.slane %v762, 7
        %v792 = vrot.slane %v780, 7
        %v793 = vrot.slane %v763, 7
        %v794 = vrot.slane %v781, 7
        %v795 = vrot.slane %v764, 7
        %v796 = vrot.slane %v782, 7
        %v797 = vrot.slane %v765, 7
        %v798 = vrot.slane %v783, 7
        %v799 = vrot.slane %v766, 7
        %v800 = vrot.slane %v784, 7
        %v801 = vrot.slane %v767, 7
        %802 = vrot.lane.b32.xlu0 %v785, 125
        %v803 = vpop.permute.xlu0 %802
        %804 = vrot.lane.b32.xlu0 %v786, 125
        %v805 = vpop.permute.xlu0 %804
        %806 = vrot.lane.b32.xlu0 %v787, 125
        %v807 = vpop.permute.xlu0 %806
        %808 = vrot.lane.b32.xlu0 %v788, 125
        %v809 = vpop.permute.xlu0 %808
        %810 = vrot.lane.b32.xlu0 %v789, 125
        %v811 = vpop.permute.xlu0 %810
        %812 = vrot.lane.b32.xlu0 %v790, 125
        %v813 = vpop.permute.xlu0 %812
        %814 = vrot.lane.b32.xlu0 %v791, 125
        %v815 = vpop.permute.xlu0 %814
        %816 = vrot.lane.b32.xlu0 %v792, 125
        %v817 = vpop.permute.xlu0 %816
        %818 = vrot.lane.b32.xlu0 %v793, 125
        %v819 = vpop.permute.xlu0 %818
        %820 = vrot.lane.b32.xlu0 %v794, 125
        %v821 = vpop.permute.xlu0 %820
        %822 = vrot.lane.b32.xlu0 %v795, 125
        %v823 = vpop.permute.xlu0 %822
        %824 = vrot.lane.b32.xlu0 %v796, 125
        %v825 = vpop.permute.xlu0 %824
        %826 = vrot.lane.b32.xlu0 %v797, 125
        %v827 = vpop.permute.xlu0 %826
        %828 = vrot.lane.b32.xlu0 %v798, 125
        %v829 = vpop.permute.xlu0 %828
        %830 = vrot.lane.b32.xlu0 %v799, 125
        %v831 = vpop.permute.xlu0 %830
        %832 = vrot.lane.b32.xlu0 %v800, 125
        %v833 = vpop.permute.xlu0 %832
        %834 = vrot.lane.b32.xlu0 %v801, 125
        %v835 = vpop.permute.xlu0 %834
        %vm836 = vcmask 1022976
        %v837 = vsel %vm836, %v803, %v805
        %v838 = vsel %vm836, %v805, %v807
        %v839 = vsel %vm836, %v807, %v809
        %v840 = vsel %vm836, %v809, %v811
        %v841 = vsel %vm836, %v811, %v813
        %v842 = vsel %vm836, %v813, %v815
        %v843 = vsel %vm836, %v815, %v817
        %v844 = vsel %vm836, %v817, %v819
        %v845 = vsel %vm836, %v819, %v821
        %v846 = vsel %vm836, %v821, %v823
        %v847 = vsel %vm836, %v823, %v825
        %v848 = vsel %vm836, %v825, %v827
        %v849 = vsel %vm836, %v827, %v829
        %v850 = vsel %vm836, %v829, %v831
        %v851 = vsel %vm836, %v831, %v833
        %v852 = vsel %vm836, %v833, %v835
        %869 = vst [vmem:[#allocation2 + $0x80] sm:$0xe] %v837
        %870 = vst [vmem:[#allocation2 + $0x88] sm:$0xe] %v838
        %871 = vst [vmem:[#allocation2 + $0x90] sm:$0xe] %v839
        %872 = vst [vmem:[#allocation2 + $0x98] sm:$0xe] %v840
        %873 = vst [vmem:[#allocation2 + $0xa0] sm:$0xe] %v841
        %874 = vst [vmem:[#allocation2 + $0xa8] sm:$0xe] %v842
        %875 = vst [vmem:[#allocation2 + $0xb0] sm:$0xe] %v843
        %876 = vst [vmem:[#allocation2 + $0xb8] sm:$0xe] %v844
        %877 = vst [vmem:[#allocation2 + $0xc0] sm:$0xe] %v845
        %878 = vst [vmem:[#allocation2 + $0xc8] sm:$0xe] %v846
        %879 = vst [vmem:[#allocation2 + $0xd0] sm:$0xe] %v847
        %880 = vst [vmem:[#allocation2 + $0xd8] sm:$0xe] %v848
        %881 = vst [vmem:[#allocation2 + $0xe0] sm:$0xe] %v849
        %882 = vst [vmem:[#allocation2 + $0xe8] sm:$0xe] %v850
        %883 = vst [vmem:[#allocation2 + $0xf0] sm:$0xe] %v851
        %884 = vst [vmem:[#allocation2 + $0xf8] sm:$0xe] %v852
        %v885 = vld [vmem:[%s438] sm:$0x77]
        %v886 = vld [vmem:[%s438 + $0x8] sm:$0x77]
        %v887 = vld [vmem:[%s438 + $0x10] sm:$0x77]
        %v888 = vld [vmem:[%s438 + $0x18] sm:$0x77]
        %v889 = vld [vmem:[%s438 + $0x20] sm:$0x77]
        %v890 = vld [vmem:[%s438 + $0x28] sm:$0x77]
        %v891 = vld [vmem:[%s438 + $0x30] sm:$0x77]
        %v892 = vld [vmem:[%s438 + $0x38] sm:$0x77]
        %v893 = vld [vmem:[%s438 + $0x40] sm:$0x7]
        %v903 = vcombine.low %v885, %v885
        %v904 = vcombine.low %v886, %v886
        %v905 = vcombine.low %v887, %v887
        %v906 = vcombine.low %v888, %v888
        %v907 = vcombine.low %v889, %v889
        %v908 = vcombine.low %v890, %v890
        %v909 = vcombine.low %v891, %v891
        %v910 = vcombine.low %v892, %v892
        %v911 = vcombine.low %v893, %v893
        %912 = vrot.lane.b32.xlu0 %v903, 124
        %v913 = vpop.permute.xlu0 %912
        %914 = vrot.lane.b32.xlu0 %v885, 124
        %v915 = vpop.permute.xlu0 %914
        %916 = vrot.lane.b32.xlu0 %v904, 124
        %v917 = vpop.permute.xlu0 %916
        %918 = vrot.lane.b32.xlu0 %v886, 124
        %v919 = vpop.permute.xlu0 %918
        %920 = vrot.lane.b32.xlu0 %v905, 124
        %v921 = vpop.permute.xlu0 %920
        %922 = vrot.lane.b32.xlu0 %v887, 124
        %v923 = vpop.permute.xlu0 %922
        %924 = vrot.lane.b32.xlu0 %v906, 124
        %v925 = vpop.permute.xlu0 %924
        %926 = vrot.lane.b32.xlu0 %v888, 124
        %v927 = vpop.permute.xlu0 %926
        %928 = vrot.lane.b32.xlu0 %v907, 124
        %v929 = vpop.permute.xlu0 %928
        %930 = vrot.lane.b32.xlu0 %v889, 124
        %v931 = vpop.permute.xlu0 %930
        %932 = vrot.lane.b32.xlu0 %v908, 124
        %v933 = vpop.permute.xlu0 %932
        %934 = vrot.lane.b32.xlu0 %v890, 124
        %v935 = vpop.permute.xlu0 %934
        %936 = vrot.lane.b32.xlu0 %v909, 124
        %v937 = vpop.permute.xlu0 %936
        %938 = vrot.lane.b32.xlu0 %v891, 124
        %v939 = vpop.permute.xlu0 %938
        %940 = vrot.lane.b32.xlu0 %v910, 124
        %v941 = vpop.permute.xlu0 %940
        %942 = vrot.lane.b32.xlu0 %v892, 124
        %v943 = vpop.permute.xlu0 %942
        %944 = vrot.lane.b32.xlu0 %v911, 124
        %v945 = vpop.permute.xlu0 %944
        %vm946 = vcmask 1014784
        %v947 = vsel %vm946, %v913, %v915
        %v948 = vsel %vm946, %v915, %v917
        %v949 = vsel %vm946, %v917, %v919
        %v950 = vsel %vm946, %v919, %v921
        %v951 = vsel %vm946, %v921, %v923
        %v952 = vsel %vm946, %v923, %v925
        %v953 = vsel %vm946, %v925, %v927
        %v954 = vsel %vm946, %v927, %v929
        %v955 = vsel %vm946, %v929, %v931
        %v956 = vsel %vm946, %v931, %v933
        %v957 = vsel %vm946, %v933, %v935
        %v958 = vsel %vm946, %v935, %v937
        %v959 = vsel %vm946, %v937, %v939
        %v960 = vsel %vm946, %v939, %v941
        %v961 = vsel %vm946, %v941, %v943
        %v962 = vsel %vm946, %v943, %v945
        %979 = vst [vmem:[#allocation2 + $0x80] sm:$0x70] %v947
        %980 = vst [vmem:[#allocation2 + $0x88] sm:$0x70] %v948
        %981 = vst [vmem:[#allocation2 + $0x90] sm:$0x70] %v949
        %982 = vst [vmem:[#allocation2 + $0x98] sm:$0x70] %v950
        %983 = vst [vmem:[#allocation2 + $0xa0] sm:$0x70] %v951
        %984 = vst [vmem:[#allocation2 + $0xa8] sm:$0x70] %v952
        %985 = vst [vmem:[#allocation2 + $0xb0] sm:$0x70] %v953
        %986 = vst [vmem:[#allocation2 + $0xb8] sm:$0x70] %v954
        %987 = vst [vmem:[#allocation2 + $0xc0] sm:$0x70] %v955
        %988 = vst [vmem:[#allocation2 + $0xc8] sm:$0x70] %v956
        %989 = vst [vmem:[#allocation2 + $0xd0] sm:$0x70] %v957
        %990 = vst [vmem:[#allocation2 + $0xd8] sm:$0x70] %v958
        %991 = vst [vmem:[#allocation2 + $0xe0] sm:$0x70] %v959
        %992 = vst [vmem:[#allocation2 + $0xe8] sm:$0x70] %v960
        %993 = vst [vmem:[#allocation2 + $0xf0] sm:$0x70] %v961
        %994 = vst [vmem:[#allocation2 + $0xf8] sm:$0x70] %v962
        %v995 = vld [vmem:[%s438] sm:$0x77]
        %v996 = vld [vmem:[%s438 + $0x8] sm:$0x77]
        %v997 = vld [vmem:[%s438 + $0x10] sm:$0x77]
        %v998 = vld [vmem:[%s438 + $0x18] sm:$0x77]
        %v999 = vld [vmem:[%s438 + $0x20] sm:$0x77]
        %v1000 = vld [vmem:[%s438 + $0x28] sm:$0x77]
        %v1001 = vld [vmem:[%s438 + $0x30] sm:$0x77]
        %v1002 = vld [vmem:[%s438 + $0x38] sm:$0x77]
        %v1003 = vld [vmem:[%s438 + $0x40] sm:$0x7]
        %v1013 = vcombine.high %v995, %v995
        %v1014 = vcombine.high %v996, %v996
        %v1015 = vcombine.high %v997, %v997
        %v1016 = vcombine.high %v998, %v998
        %v1017 = vcombine.high %v999, %v999
        %v1018 = vcombine.high %v1000, %v1000
        %v1019 = vcombine.high %v1001, %v1001
        %v1020 = vcombine.high %v1002, %v1002
        %v1021 = vrot.slane %v995, 1
        %v1022 = vrot.slane %v1013, 1
        %v1023 = vrot.slane %v996, 1
        %v1024 = vrot.slane %v1014, 1
        %v1025 = vrot.slane %v997, 1
        %v1026 = vrot.slane %v1015, 1
        %v1027 = vrot.slane %v998, 1
        %v1028 = vrot.slane %v1016, 1
        %v1029 = vrot.slane %v999, 1
        %v1030 = vrot.slane %v1017, 1
        %v1031 = vrot.slane %v1000, 1
        %v1032 = vrot.slane %v1018, 1
        %v1033 = vrot.slane %v1001, 1
        %v1034 = vrot.slane %v1019, 1
        %v1035 = vrot.slane %v1002, 1
        %v1036 = vrot.slane %v1020, 1
        %v1037 = vrot.slane %v1003, 1
        %1038 = vrot.lane.b32.xlu0 %v1021, 96
        %v1039 = vpop.permute.xlu0 %1038
        %1040 = vrot.lane.b32.xlu0 %v1022, 96
        %v1041 = vpop.permute.xlu0 %1040
        %1042 = vrot.lane.b32.xlu0 %v1023, 96
        %v1043 = vpop.permute.xlu0 %1042
        %1044 = vrot.lane.b32.xlu0 %v1024, 96
        %v1045 = vpop.permute.xlu0 %1044
        %1046 = vrot.lane.b32.xlu0 %v1025, 96
        %v1047 = vpop.permute.xlu0 %1046
        %1048 = vrot.lane.b32.xlu0 %v1026, 96
        %v1049 = vpop.permute.xlu0 %1048
        %1050 = vrot.lane.b32.xlu0 %v1027, 96
        %v1051 = vpop.permute.xlu0 %1050
        %1052 = vrot.lane.b32.xlu0 %v1028, 96
        %v1053 = vpop.permute.xlu0 %1052
        %1054 = vrot.lane.b32.xlu0 %v1029, 96
        %v1055 = vpop.permute.xlu0 %1054
        %1056 = vrot.lane.b32.xlu0 %v1030, 96
        %v1057 = vpop.permute.xlu0 %1056
        %1058 = vrot.lane.b32.xlu0 %v1031, 96
        %v1059 = vpop.permute.xlu0 %1058
        %1060 = vrot.lane.b32.xlu0 %v1032, 96
        %v1061 = vpop.permute.xlu0 %1060
        %1062 = vrot.lane.b32.xlu0 %v1033, 96
        %v1063 = vpop.permute.xlu0 %1062
        %1064 = vrot.lane.b32.xlu0 %v1034, 96
        %v1065 = vpop.permute.xlu0 %1064
        %1066 = vrot.lane.b32.xlu0 %v1035, 96
        %v1067 = vpop.permute.xlu0 %1066
        %1068 = vrot.lane.b32.xlu0 %v1036, 96
        %v1069 = vpop.permute.xlu0 %1068
        %1070 = vrot.lane.b32.xlu0 %v1037, 96
        %v1071 = vpop.permute.xlu0 %1070
        %vm1072 = vcmask 785408
        %v1073 = vsel %vm1072, %v1039, %v1041
        %v1074 = vsel %vm1072, %v1041, %v1043
        %v1075 = vsel %vm1072, %v1043, %v1045
        %v1076 = vsel %vm1072, %v1045, %v1047
        %v1077 = vsel %vm1072, %v1047, %v1049
        %v1078 = vsel %vm1072, %v1049, %v1051
        %v1079 = vsel %vm1072, %v1051, %v1053
        %v1080 = vsel %vm1072, %v1053, %v1055
        %v1081 = vsel %vm1072, %v1055, %v1057
        %v1082 = vsel %vm1072, %v1057, %v1059
        %v1083 = vsel %vm1072, %v1059, %v1061
        %v1084 = vsel %vm1072, %v1061, %v1063
        %v1085 = vsel %vm1072, %v1063, %v1065
        %v1086 = vsel %vm1072, %v1065, %v1067
        %v1087 = vsel %vm1072, %v1067, %v1069
        %v1088 = vsel %vm1072, %v1069, %v1071
        %1105 = vst [vmem:[#allocation2 + $0x80] sm:$0x80] %v1073
        %1106 = vst [vmem:[#allocation2 + $0x88] sm:$0x80] %v1074
        %1107 = vst [vmem:[#allocation2 + $0x90] sm:$0x80] %v1075
        %1108 = vst [vmem:[#allocation2 + $0x98] sm:$0x80] %v1076
        %1109 = vst [vmem:[#allocation2 + $0xa0] sm:$0x80] %v1077
        %1110 = vst [vmem:[#allocation2 + $0xa8] sm:$0x80] %v1078
        %1111 = vst [vmem:[#allocation2 + $0xb0] sm:$0x80] %v1079
        %1112 = vst [vmem:[#allocation2 + $0xb8] sm:$0x80] %v1080
        %1113 = vst [vmem:[#allocation2 + $0xc0] sm:$0x80] %v1081
        %1114 = vst [vmem:[#allocation2 + $0xc8] sm:$0x80] %v1082
        %1115 = vst [vmem:[#allocation2 + $0xd0] sm:$0x80] %v1083
        %1116 = vst [vmem:[#allocation2 + $0xd8] sm:$0x80] %v1084
        %1117 = vst [vmem:[#allocation2 + $0xe0] sm:$0x80] %v1085
        %1118 = vst [vmem:[#allocation2 + $0xe8] sm:$0x80] %v1086
        %1119 = vst [vmem:[#allocation2 + $0xf0] sm:$0x80] %v1087
        %1120 = vst [vmem:[#allocation2 + $0xf8] sm:$0x80] %v1088
        %1121 = vst [vmem:[#allocation2 + $0x100] sm:$0x3] %v1073
        %1122 = vst [vmem:[#allocation2 + $0x108] sm:$0x3] %v1074
        %1123 = vst [vmem:[#allocation2 + $0x110] sm:$0x3] %v1075
        %1124 = vst [vmem:[#allocation2 + $0x118] sm:$0x3] %v1076
        %1125 = vst [vmem:[#allocation2 + $0x120] sm:$0x3] %v1077
        %1126 = vst [vmem:[#allocation2 + $0x128] sm:$0x3] %v1078
        %1127 = vst [vmem:[#allocation2 + $0x130] sm:$0x3] %v1079
        %1128 = vst [vmem:[#allocation2 + $0x138] sm:$0x3] %v1080
        %1129 = vst [vmem:[#allocation2 + $0x140] sm:$0x3] %v1081
        %1130 = vst [vmem:[#allocation2 + $0x148] sm:$0x3] %v1082
        %1131 = vst [vmem:[#allocation2 + $0x150] sm:$0x3] %v1083
        %1132 = vst [vmem:[#allocation2 + $0x158] sm:$0x3] %v1084
        %1133 = vst [vmem:[#allocation2 + $0x160] sm:$0x3] %v1085
        %1134 = vst [vmem:[#allocation2 + $0x168] sm:$0x3] %v1086
        %1135 = vst [vmem:[#allocation2 + $0x170] sm:$0x3] %v1087
        %1136 = vst [vmem:[#allocation2 + $0x178] sm:$0x3] %v1088
        %v1137 = vld [vmem:[%s438] sm:$0x77]
        %v1138 = vld [vmem:[%s438 + $0x8] sm:$0x77]
        %v1139 = vld [vmem:[%s438 + $0x10] sm:$0x77]
        %v1140 = vld [vmem:[%s438 + $0x18] sm:$0x77]
        %v1141 = vld [vmem:[%s438 + $0x20] sm:$0x77]
        %v1142 = vld [vmem:[%s438 + $0x28] sm:$0x77]
        %v1143 = vld [vmem:[%s438 + $0x30] sm:$0x77]
        %v1144 = vld [vmem:[%s438 + $0x38] sm:$0x77]
        %v1145 = vld [vmem:[%s438 + $0x40] sm:$0x7]
        %v1155 = vcombine.high %v1137, %v1137
        %v1156 = vcombine.high %v1138, %v1138
        %v1157 = vcombine.high %v1139, %v1139
        %v1158 = vcombine.high %v1140, %v1140
        %v1159 = vcombine.high %v1141, %v1141
        %v1160 = vcombine.high %v1142, %v1142
        %v1161 = vcombine.high %v1143, %v1143
        %v1162 = vcombine.high %v1144, %v1144
        %v1163 = vrot.slane %v1137, 6
        %v1164 = vrot.slane %v1155, 6
        %v1165 = vrot.slane %v1138, 6
        %v1166 = vrot.slane %v1156, 6
        %v1167 = vrot.slane %v1139, 6
        %v1168 = vrot.slane %v1157, 6
        %v1169 = vrot.slane %v1140, 6
        %v1170 = vrot.slane %v1158, 6
        %v1171 = vrot.slane %v1141, 6
        %v1172 = vrot.slane %v1159, 6
        %v1173 = vrot.slane %v1142, 6
        %v1174 = vrot.slane %v1160, 6
        %v1175 = vrot.slane %v1143, 6
        %v1176 = vrot.slane %v1161, 6
        %v1177 = vrot.slane %v1144, 6
        %v1178 = vrot.slane %v1162, 6
        %v1179 = vrot.slane %v1145, 6
        %1180 = vrot.lane.b32.xlu0 %v1163, 95
        %v1181 = vpop.permute.xlu0 %1180
        %1182 = vrot.lane.b32.xlu0 %v1164, 95
        %v1183 = vpop.permute.xlu0 %1182
        %1184 = vrot.lane.b32.xlu0 %v1165, 95
        %v1185 = vpop.permute.xlu0 %1184
        %1186 = vrot.lane.b32.xlu0 %v1166, 95
        %v1187 = vpop.permute.xlu0 %1186
        %1188 = vrot.lane.b32.xlu0 %v1167, 95
        %v1189 = vpop.permute.xlu0 %1188
        %1190 = vrot.lane.b32.xlu0 %v1168, 95
        %v1191 = vpop.permute.xlu0 %1190
        %1192 = vrot.lane.b32.xlu0 %v1169, 95
        %v1193 = vpop.permute.xlu0 %1192
        %1194 = vrot.lane.b32.xlu0 %v1170, 95
        %v1195 = vpop.permute.xlu0 %1194
        %1196 = vrot.lane.b32.xlu0 %v1171, 95
        %v1197 = vpop.permute.xlu0 %1196
        %1198 = vrot.lane.b32.xlu0 %v1172, 95
        %v1199 = vpop.permute.xlu0 %1198
        %1200 = vrot.lane.b32.xlu0 %v1173, 95
        %v1201 = vpop.permute.xlu0 %1200
        %1202 = vrot.lane.b32.xlu0 %v1174, 95
        %v1203 = vpop.permute.xlu0 %1202
        %1204 = vrot.lane.b32.xlu0 %v1175, 95
        %v1205 = vpop.permute.xlu0 %1204
        %1206 = vrot.lane.b32.xlu0 %v1176, 95
        %v1207 = vpop.permute.xlu0 %1206
        %1208 = vrot.lane.b32.xlu0 %v1177, 95
        %v1209 = vpop.permute.xlu0 %1208
        %1210 = vrot.lane.b32.xlu0 %v1178, 95
        %v1211 = vpop.permute.xlu0 %1210
        %1212 = vrot.lane.b32.xlu0 %v1179, 95
        %v1213 = vpop.permute.xlu0 %1212
        %vm1214 = vcmask 777216
        %v1215 = vsel %vm1214, %v1181, %v1183
        %v1216 = vsel %vm1214, %v1183, %v1185
        %v1217 = vsel %vm1214, %v1185, %v1187
        %v1218 = vsel %vm1214, %v1187, %v1189
        %v1219 = vsel %vm1214, %v1189, %v1191
        %v1220 = vsel %vm1214, %v1191, %v1193
        %v1221 = vsel %vm1214, %v1193, %v1195
        %v1222 = vsel %vm1214, %v1195, %v1197
        %v1223 = vsel %vm1214, %v1197, %v1199
        %v1224 = vsel %vm1214, %v1199, %v1201
        %v1225 = vsel %vm1214, %v1201, %v1203
        %v1226 = vsel %vm1214, %v1203, %v1205
        %v1227 = vsel %vm1214, %v1205, %v1207
        %v1228 = vsel %vm1214, %v1207, %v1209
        %v1229 = vsel %vm1214, %v1209, %v1211
        %v1230 = vsel %vm1214, %v1211, %v1213
        %1247 = vst [vmem:[#allocation2 + $0x100] sm:$0x1c] %v1215
        %1248 = vst [vmem:[#allocation2 + $0x108] sm:$0x1c] %v1216
        %1249 = vst [vmem:[#allocation2 + $0x110] sm:$0x1c] %v1217
        %1250 = vst [vmem:[#allocation2 + $0x118] sm:$0x1c] %v1218
        %1251 = vst [vmem:[#allocation2 + $0x120] sm:$0x1c] %v1219
        %1252 = vst [vmem:[#allocation2 + $0x128] sm:$0x1c] %v1220
        %1253 = vst [vmem:[#allocation2 + $0x130] sm:$0x1c] %v1221
        %1254 = vst [vmem:[#allocation2 + $0x138] sm:$0x1c] %v1222
        %1255 = vst [vmem:[#allocation2 + $0x140] sm:$0x1c] %v1223
        %1256 = vst [vmem:[#allocation2 + $0x148] sm:$0x1c] %v1224
        %1257 = vst [vmem:[#allocation2 + $0x150] sm:$0x1c] %v1225
        %1258 = vst [vmem:[#allocation2 + $0x158] sm:$0x1c] %v1226
        %1259 = vst [vmem:[#allocation2 + $0x160] sm:$0x1c] %v1227
        %1260 = vst [vmem:[#allocation2 + $0x168] sm:$0x1c] %v1228
        %1261 = vst [vmem:[#allocation2 + $0x170] sm:$0x1c] %v1229
        %1262 = vst [vmem:[#allocation2 + $0x178] sm:$0x1c] %v1230
        %v1263 = vld [vmem:[%s438] sm:$0x77]
        %v1264 = vld [vmem:[%s438 + $0x8] sm:$0x77]
        %v1265 = vld [vmem:[%s438 + $0x10] sm:$0x77]
        %v1266 = vld [vmem:[%s438 + $0x18] sm:$0x77]
        %v1267 = vld [vmem:[%s438 + $0x20] sm:$0x77]
        %v1268 = vld [vmem:[%s438 + $0x28] sm:$0x77]
        %v1269 = vld [vmem:[%s438 + $0x30] sm:$0x77]
        %v1270 = vld [vmem:[%s438 + $0x38] sm:$0x77]
        %v1271 = vld [vmem:[%s438 + $0x40] sm:$0x7]
        %v1281 = vcombine.high %v1263, %v1263
        %v1282 = vcombine.high %v1264, %v1264
        %v1283 = vcombine.high %v1265, %v1265
        %v1284 = vcombine.high %v1266, %v1266
        %v1285 = vcombine.high %v1267, %v1267
        %v1286 = vcombine.high %v1268, %v1268
        %v1287 = vcombine.high %v1269, %v1269
        %v1288 = vcombine.high %v1270, %v1270
        %v1289 = vrot.slane %v1263, 3
        %v1290 = vrot.slane %v1281, 3
        %v1291 = vrot.slane %v1264, 3
        %v1292 = vrot.slane %v1282, 3
        %v1293 = vrot.slane %v1265, 3
        %v1294 = vrot.slane %v1283, 3
        %v1295 = vrot.slane %v1266, 3
        %v1296 = vrot.slane %v1284, 3
        %v1297 = vrot.slane %v1267, 3
        %v1298 = vrot.slane %v1285, 3
        %v1299 = vrot.slane %v1268, 3
        %v1300 = vrot.slane %v1286, 3
        %v1301 = vrot.slane %v1269, 3
        %v1302 = vrot.slane %v1287, 3
        %v1303 = vrot.slane %v1270, 3
        %v1304 = vrot.slane %v1288, 3
        %v1305 = vrot.slane %v1271, 3
        %1306 = vrot.lane.b32.xlu0 %v1289, 94
        %v1307 = vpop.permute.xlu0 %1306
        %1308 = vrot.lane.b32.xlu0 %v1290, 94
        %v1309 = vpop.permute.xlu0 %1308
        %1310 = vrot.lane.b32.xlu0 %v1291, 94
        %v1311 = vpop.permute.xlu0 %1310
        %1312 = vrot.lane.b32.xlu0 %v1292, 94
        %v1313 = vpop.permute.xlu0 %1312
        %1314 = vrot.lane.b32.xlu0 %v1293, 94
        %v1315 = vpop.permute.xlu0 %1314
        %1316 = vrot.lane.b32.xlu0 %v1294, 94
        %v1317 = vpop.permute.xlu0 %1316
        %1318 = vrot.lane.b32.xlu0 %v1295, 94
        %v1319 = vpop.permute.xlu0 %1318
        %1320 = vrot.lane.b32.xlu0 %v1296, 94
        %v1321 = vpop.permute.xlu0 %1320
        %1322 = vrot.lane.b32.xlu0 %v1297, 94
        %v1323 = vpop.permute.xlu0 %1322
        %1324 = vrot.lane.b32.xlu0 %v1298, 94
        %v1325 = vpop.permute.xlu0 %1324
        %1326 = vrot.lane.b32.xlu0 %v1299, 94
        %v1327 = vpop.permute.xlu0 %1326
        %1328 = vrot.lane.b32.xlu0 %v1300, 94
        %v1329 = vpop.permute.xlu0 %1328
        %1330 = vrot.lane.b32.xlu0 %v1301, 94
        %v1331 = vpop.permute.xlu0 %1330
        %1332 = vrot.lane.b32.xlu0 %v1302, 94
        %v1333 = vpop.permute.xlu0 %1332
        %1334 = vrot.lane.b32.xlu0 %v1303, 94
        %v1335 = vpop.permute.xlu0 %1334
        %1336 = vrot.lane.b32.xlu0 %v1304, 94
        %v1337 = vpop.permute.xlu0 %1336
        %1338 = vrot.lane.b32.xlu0 %v1305, 94
        %v1339 = vpop.permute.xlu0 %1338
        %vm1340 = vcmask 769024
        %v1341 = vsel %vm1340, %v1307, %v1309
        %v1342 = vsel %vm1340, %v1309, %v1311
        %v1343 = vsel %vm1340, %v1311, %v1313
        %v1344 = vsel %vm1340, %v1313, %v1315
        %v1345 = vsel %vm1340, %v1315, %v1317
        %v1346 = vsel %vm1340, %v1317, %v1319
        %v1347 = vsel %vm1340, %v1319, %v1321
        %v1348 = vsel %vm1340, %v1321, %v1323
        %v1349 = vsel %vm1340, %v1323, %v1325
        %v1350 = vsel %vm1340, %v1325, %v1327
        %v1351 = vsel %vm1340, %v1327, %v1329
        %v1352 = vsel %vm1340, %v1329, %v1331
        %v1353 = vsel %vm1340, %v1331, %v1333
        %v1354 = vsel %vm1340, %v1333, %v1335
        %v1355 = vsel %vm1340, %v1335, %v1337
        %v1356 = vsel %vm1340, %v1337, %v1339
        %1373 = vst [vmem:[#allocation2 + $0x100] sm:$0xe0] %v1341
        %1374 = vst [vmem:[#allocation2 + $0x108] sm:$0xe0] %v1342
        %1375 = vst [vmem:[#allocation2 + $0x110] sm:$0xe0] %v1343
        %1376 = vst [vmem:[#allocation2 + $0x118] sm:$0xe0] %v1344
        %1377 = vst [vmem:[#allocation2 + $0x120] sm:$0xe0] %v1345
        %1378 = vst [vmem:[#allocation2 + $0x128] sm:$0xe0] %v1346
        %1379 = vst [vmem:[#allocation2 + $0x130] sm:$0xe0] %v1347
        %1380 = vst [vmem:[#allocation2 + $0x138] sm:$0xe0] %v1348
        %1381 = vst [vmem:[#allocation2 + $0x140] sm:$0xe0] %v1349
        %1382 = vst [vmem:[#allocation2 + $0x148] sm:$0xe0] %v1350
        %1383 = vst [vmem:[#allocation2 + $0x150] sm:$0xe0] %v1351
        %1384 = vst [vmem:[#allocation2 + $0x158] sm:$0xe0] %v1352
        %1385 = vst [vmem:[#allocation2 + $0x160] sm:$0xe0] %v1353
        %1386 = vst [vmem:[#allocation2 + $0x168] sm:$0xe0] %v1354
        %1387 = vst [vmem:[#allocation2 + $0x170] sm:$0xe0] %v1355
        %1388 = vst [vmem:[#allocation2 + $0x178] sm:$0xe0] %v1356
        %v1389 = vld [vmem:[%s438] sm:$0x77]
        %v1390 = vld [vmem:[%s438 + $0x8] sm:$0x77]
        %v1391 = vld [vmem:[%s438 + $0x10] sm:$0x77]
        %v1392 = vld [vmem:[%s438 + $0x18] sm:$0x77]
        %v1393 = vld [vmem:[%s438 + $0x20] sm:$0x77]
        %v1394 = vld [vmem:[%s438 + $0x28] sm:$0x77]
        %v1395 = vld [vmem:[%s438 + $0x30] sm:$0x77]
        %v1396 = vld [vmem:[%s438 + $0x38] sm:$0x77]
        %v1397 = vld [vmem:[%s438 + $0x40] sm:$0x7]
        %v1407 = vcombine.high %v1389, %v1389
        %v1408 = vcombine.high %v1390, %v1390
        %v1409 = vcombine.high %v1391, %v1391
        %v1410 = vcombine.high %v1392, %v1392
        %v1411 = vcombine.high %v1393, %v1393
        %v1412 = vcombine.high %v1394, %v1394
        %v1413 = vcombine.high %v1395, %v1395
        %v1414 = vcombine.high %v1396, %v1396
        %1415 = vrot.lane.b32.xlu0 %v1389, 93
        %v1416 = vpop.permute.xlu0 %1415
        %1417 = vrot.lane.b32.xlu0 %v1407, 93
        %v1418 = vpop.permute.xlu0 %1417
        %1419 = vrot.lane.b32.xlu0 %v1390, 93
        %v1420 = vpop.permute.xlu0 %1419
        %1421 = vrot.lane.b32.xlu0 %v1408, 93
        %v1422 = vpop.permute.xlu0 %1421
        %1423 = vrot.lane.b32.xlu0 %v1391, 93
        %v1424 = vpop.permute.xlu0 %1423
        %1425 = vrot.lane.b32.xlu0 %v1409, 93
        %v1426 = vpop.permute.xlu0 %1425
        %1427 = vrot.lane.b32.xlu0 %v1392, 93
        %v1428 = vpop.permute.xlu0 %1427
        %1429 = vrot.lane.b32.xlu0 %v1410, 93
        %v1430 = vpop.permute.xlu0 %1429
        %1431 = vrot.lane.b32.xlu0 %v1393, 93
        %v1432 = vpop.permute.xlu0 %1431
        %1433 = vrot.lane.b32.xlu0 %v1411, 93
        %v1434 = vpop.permute.xlu0 %1433
        %1435 = vrot.lane.b32.xlu0 %v1394, 93
        %v1436 = vpop.permute.xlu0 %1435
        %1437 = vrot.lane.b32.xlu0 %v1412, 93
        %v1438 = vpop.permute.xlu0 %1437
        %1439 = vrot.lane.b32.xlu0 %v1395, 93
        %v1440 = vpop.permute.xlu0 %1439
        %1441 = vrot.lane.b32.xlu0 %v1413, 93
        %v1442 = vpop.permute.xlu0 %1441
        %1443 = vrot.lane.b32.xlu0 %v1396, 93
        %v1444 = vpop.permute.xlu0 %1443
        %1445 = vrot.lane.b32.xlu0 %v1414, 93
        %v1446 = vpop.permute.xlu0 %1445
        %1447 = vrot.lane.b32.xlu0 %v1397, 93
        %v1448 = vpop.permute.xlu0 %1447
        %vm1449 = vcmask 760832
        %v1450 = vsel %vm1449, %v1416, %v1418
        %v1451 = vsel %vm1449, %v1418, %v1420
        %v1452 = vsel %vm1449, %v1420, %v1422
        %v1453 = vsel %vm1449, %v1422, %v1424
        %v1454 = vsel %vm1449, %v1424, %v1426
        %v1455 = vsel %vm1449, %v1426, %v1428
        %v1456 = vsel %vm1449, %v1428, %v1430
        %v1457 = vsel %vm1449, %v1430, %v1432
        %v1458 = vsel %vm1449, %v1432, %v1434
        %v1459 = vsel %vm1449, %v1434, %v1436
        %v1460 = vsel %vm1449, %v1436, %v1438
        %v1461 = vsel %vm1449, %v1438, %v1440
        %v1462 = vsel %vm1449, %v1440, %v1442
        %v1463 = vsel %vm1449, %v1442, %v1444
        %v1464 = vsel %vm1449, %v1444, %v1446
        %v1465 = vsel %vm1449, %v1446, %v1448
        %1482 = vst [vmem:[#allocation2 + $0x180] sm:$0x7] %v1450
        %1483 = vst [vmem:[#allocation2 + $0x188] sm:$0x7] %v1451
        %1484 = vst [vmem:[#allocation2 + $0x190] sm:$0x7] %v1452
        %1485 = vst [vmem:[#allocation2 + $0x198] sm:$0x7] %v1453
        %1486 = vst [vmem:[#allocation2 + $0x1a0] sm:$0x7] %v1454
        %1487 = vst [vmem:[#allocation2 + $0x1a8] sm:$0x7] %v1455
        %1488 = vst [vmem:[#allocation2 + $0x1b0] sm:$0x7] %v1456
        %1489 = vst [vmem:[#allocation2 + $0x1b8] sm:$0x7] %v1457
        %1490 = vst [vmem:[#allocation2 + $0x1c0] sm:$0x7] %v1458
        %1491 = vst [vmem:[#allocation2 + $0x1c8] sm:$0x7] %v1459
        %1492 = vst [vmem:[#allocation2 + $0x1d0] sm:$0x7] %v1460
        %1493 = vst [vmem:[#allocation2 + $0x1d8] sm:$0x7] %v1461
        %1494 = vst [vmem:[#allocation2 + $0x1e0] sm:$0x7] %v1462
        %1495 = vst [vmem:[#allocation2 + $0x1e8] sm:$0x7] %v1463
        %1496 = vst [vmem:[#allocation2 + $0x1f0] sm:$0x7] %v1464
        %1497 = vst [vmem:[#allocation2 + $0x1f8] sm:$0x7] %v1465
        %v1498 = vld [vmem:[%s438] sm:$0x77]
        %v1499 = vld [vmem:[%s438 + $0x8] sm:$0x77]
        %v1500 = vld [vmem:[%s438 + $0x10] sm:$0x77]
        %v1501 = vld [vmem:[%s438 + $0x18] sm:$0x77]
        %v1502 = vld [vmem:[%s438 + $0x20] sm:$0x77]
        %v1503 = vld [vmem:[%s438 + $0x28] sm:$0x77]
        %v1504 = vld [vmem:[%s438 + $0x30] sm:$0x77]
        %v1505 = vld [vmem:[%s438 + $0x38] sm:$0x77]
        %v1506 = vld [vmem:[%s438 + $0x40] sm:$0x7]
        %v1516 = vcombine.high %v1498, %v1498
        %v1517 = vcombine.high %v1499, %v1499
        %v1518 = vcombine.high %v1500, %v1500
        %v1519 = vcombine.high %v1501, %v1501
        %v1520 = vcombine.high %v1502, %v1502
        %v1521 = vcombine.high %v1503, %v1503
        %v1522 = vcombine.high %v1504, %v1504
        %v1523 = vcombine.high %v1505, %v1505
        %v1524 = vrot.slane %v1498, 5
        %v1525 = vrot.slane %v1516, 5
        %v1526 = vrot.slane %v1499, 5
        %v1527 = vrot.slane %v1517, 5
        %v1528 = vrot.slane %v1500, 5
        %v1529 = vrot.slane %v1518, 5
        %v1530 = vrot.slane %v1501, 5
        %v1531 = vrot.slane %v1519, 5
        %v1532 = vrot.slane %v1502, 5
        %v1533 = vrot.slane %v1520, 5
        %v1534 = vrot.slane %v1503, 5
        %v1535 = vrot.slane %v1521, 5
        %v1536 = vrot.slane %v1504, 5
        %v1537 = vrot.slane %v1522, 5
        %v1538 = vrot.slane %v1505, 5
        %v1539 = vrot.slane %v1523, 5
        %v1540 = vrot.slane %v1506, 5
        %1541 = vrot.lane.b32.xlu0 %v1524, 92
        %v1542 = vpop.permute.xlu0 %1541
        %1543 = vrot.lane.b32.xlu0 %v1525, 92
        %v1544 = vpop.permute.xlu0 %1543
        %1545 = vrot.lane.b32.xlu0 %v1526, 92
        %v1546 = vpop.permute.xlu0 %1545
        %1547 = vrot.lane.b32.xlu0 %v1527, 92
        %v1548 = vpop.permute.xlu0 %1547
        %1549 = vrot.lane.b32.xlu0 %v1528, 92
        %v1550 = vpop.permute.xlu0 %1549
        %1551 = vrot.lane.b32.xlu0 %v1529, 92
        %v1552 = vpop.permute.xlu0 %1551
        %1553 = vrot.lane.b32.xlu0 %v1530, 92
        %v1554 = vpop.permute.xlu0 %1553
        %1555 = vrot.lane.b32.xlu0 %v1531, 92
        %v1556 = vpop.permute.xlu0 %1555
        %1557 = vrot.lane.b32.xlu0 %v1532, 92
        %v1558 = vpop.permute.xlu0 %1557
        %1559 = vrot.lane.b32.xlu0 %v1533, 92
        %v1560 = vpop.permute.xlu0 %1559
        %1561 = vrot.lane.b32.xlu0 %v1534, 92
        %v1562 = vpop.permute.xlu0 %1561
        %1563 = vrot.lane.b32.xlu0 %v1535, 92
        %v1564 = vpop.permute.xlu0 %1563
        %1565 = vrot.lane.b32.xlu0 %v1536, 92
        %v1566 = vpop.permute.xlu0 %1565
        %1567 = vrot.lane.b32.xlu0 %v1537, 92
        %v1568 = vpop.permute.xlu0 %1567
        %1569 = vrot.lane.b32.xlu0 %v1538, 92
        %v1570 = vpop.permute.xlu0 %1569
        %1571 = vrot.lane.b32.xlu0 %v1539, 92
        %v1572 = vpop.permute.xlu0 %1571
        %1573 = vrot.lane.b32.xlu0 %v1540, 92
        %v1574 = vpop.permute.xlu0 %1573
        %vm1575 = vcmask 752640
        %v1576 = vsel %vm1575, %v1542, %v1544
        %v1577 = vsel %vm1575, %v1544, %v1546
        %v1578 = vsel %vm1575, %v1546, %v1548
        %v1579 = vsel %vm1575, %v1548, %v1550
        %v1580 = vsel %vm1575, %v1550, %v1552
        %v1581 = vsel %vm1575, %v1552, %v1554
        %v1582 = vsel %vm1575, %v1554, %v1556
        %v1583 = vsel %vm1575, %v1556, %v1558
        %v1584 = vsel %vm1575, %v1558, %v1560
        %v1585 = vsel %vm1575, %v1560, %v1562
        %v1586 = vsel %vm1575, %v1562, %v1564
        %v1587 = vsel %vm1575, %v1564, %v1566
        %v1588 = vsel %vm1575, %v1566, %v1568
        %v1589 = vsel %vm1575, %v1568, %v1570
        %v1590 = vsel %vm1575, %v1570, %v1572
        %v1591 = vsel %vm1575, %v1572, %v1574
        %1608 = vst [vmem:[#allocation2 + $0x180] sm:$0x38] %v1576
        %1609 = vst [vmem:[#allocation2 + $0x188] sm:$0x38] %v1577
        %1610 = vst [vmem:[#allocation2 + $0x190] sm:$0x38] %v1578
        %1611 = vst [vmem:[#allocation2 + $0x198] sm:$0x38] %v1579
        %1612 = vst [vmem:[#allocation2 + $0x1a0] sm:$0x38] %v1580
        %1613 = vst [vmem:[#allocation2 + $0x1a8] sm:$0x38] %v1581
        %1614 = vst [vmem:[#allocation2 + $0x1b0] sm:$0x38] %v1582
        %1615 = vst [vmem:[#allocation2 + $0x1b8] sm:$0x38] %v1583
        %1616 = vst [vmem:[#allocation2 + $0x1c0] sm:$0x38] %v1584
        %1617 = vst [vmem:[#allocation2 + $0x1c8] sm:$0x38] %v1585
        %1618 = vst [vmem:[#allocation2 + $0x1d0] sm:$0x38] %v1586
        %1619 = vst [vmem:[#allocation2 + $0x1d8] sm:$0x38] %v1587
        %1620 = vst [vmem:[#allocation2 + $0x1e0] sm:$0x38] %v1588
        %1621 = vst [vmem:[#allocation2 + $0x1e8] sm:$0x38] %v1589
        %1622 = vst [vmem:[#allocation2 + $0x1f0] sm:$0x38] %v1590
        %1623 = vst [vmem:[#allocation2 + $0x1f8] sm:$0x38] %v1591
        %v1624 = vld [vmem:[%s438] sm:$0x77]
        %v1625 = vld [vmem:[%s438 + $0x8] sm:$0x77]
        %v1626 = vld [vmem:[%s438 + $0x10] sm:$0x77]
        %v1627 = vld [vmem:[%s438 + $0x18] sm:$0x77]
        %v1628 = vld [vmem:[%s438 + $0x20] sm:$0x77]
        %v1629 = vld [vmem:[%s438 + $0x28] sm:$0x77]
        %v1630 = vld [vmem:[%s438 + $0x30] sm:$0x77]
        %v1631 = vld [vmem:[%s438 + $0x38] sm:$0x77]
        %v1632 = vld [vmem:[%s438 + $0x40] sm:$0x7]
        %v1642 = vcombine.high %v1624, %v1624
        %v1643 = vcombine.high %v1625, %v1625
        %v1644 = vcombine.high %v1626, %v1626
        %v1645 = vcombine.high %v1627, %v1627
        %v1646 = vcombine.high %v1628, %v1628
        %v1647 = vcombine.high %v1629, %v1629
        %v1648 = vcombine.high %v1630, %v1630
        %v1649 = vcombine.high %v1631, %v1631
        %v1650 = vrot.slane %v1624, 2
        %v1651 = vrot.slane %v1642, 2
        %v1652 = vrot.slane %v1625, 2
        %v1653 = vrot.slane %v1643, 2
        %v1654 = vrot.slane %v1626, 2
        %v1655 = vrot.slane %v1644, 2
        %v1656 = vrot.slane %v1627, 2
        %v1657 = vrot.slane %v1645, 2
        %v1658 = vrot.slane %v1628, 2
        %v1659 = vrot.slane %v1646, 2
        %v1660 = vrot.slane %v1629, 2
        %v1661 = vrot.slane %v1647, 2
        %v1662 = vrot.slane %v1630, 2
        %v1663 = vrot.slane %v1648, 2
        %v1664 = vrot.slane %v1631, 2
        %v1665 = vrot.slane %v1649, 2
        %v1666 = vrot.slane %v1632, 2
        %1667 = vrot.lane.b32.xlu0 %v1650, 64
        %v1668 = vpop.permute.xlu0 %1667
        %1669 = vrot.lane.b32.xlu0 %v1651, 64
        %v1670 = vpop.permute.xlu0 %1669
        %1671 = vrot.lane.b32.xlu0 %v1652, 64
        %v1672 = vpop.permute.xlu0 %1671
        %1673 = vrot.lane.b32.xlu0 %v1653, 64
        %v1674 = vpop.permute.xlu0 %1673
        %1675 = vrot.lane.b32.xlu0 %v1654, 64
        %v1676 = vpop.permute.xlu0 %1675
        %1677 = vrot.lane.b32.xlu0 %v1655, 64
        %v1678 = vpop.permute.xlu0 %1677
        %1679 = vrot.lane.b32.xlu0 %v1656, 64
        %v1680 = vpop.permute.xlu0 %1679
        %1681 = vrot.lane.b32.xlu0 %v1657, 64
        %v1682 = vpop.permute.xlu0 %1681
        %1683 = vrot.lane.b32.xlu0 %v1658, 64
        %v1684 = vpop.permute.xlu0 %1683
        %1685 = vrot.lane.b32.xlu0 %v1659, 64
        %v1686 = vpop.permute.xlu0 %1685
        %1687 = vrot.lane.b32.xlu0 %v1660, 64
        %v1688 = vpop.permute.xlu0 %1687
        %1689 = vrot.lane.b32.xlu0 %v1661, 64
        %v1690 = vpop.permute.xlu0 %1689
        %1691 = vrot.lane.b32.xlu0 %v1662, 64
        %v1692 = vpop.permute.xlu0 %1691
        %1693 = vrot.lane.b32.xlu0 %v1663, 64
        %v1694 = vpop.permute.xlu0 %1693
        %1695 = vrot.lane.b32.xlu0 %v1664, 64
        %v1696 = vpop.permute.xlu0 %1695
        %1697 = vrot.lane.b32.xlu0 %v1665, 64
        %v1698 = vpop.permute.xlu0 %1697
        %1699 = vrot.lane.b32.xlu0 %v1666, 64
        %v1700 = vpop.permute.xlu0 %1699
        %vm1701 = vcmask 523264
        %v1702 = vsel %vm1701, %v1668, %v1670
        %v1703 = vsel %vm1701, %v1670, %v1672
        %v1704 = vsel %vm1701, %v1672, %v1674
        %v1705 = vsel %vm1701, %v1674, %v1676
        %v1706 = vsel %vm1701, %v1676, %v1678
        %v1707 = vsel %vm1701, %v1678, %v1680
        %v1708 = vsel %vm1701, %v1680, %v1682
        %v1709 = vsel %vm1701, %v1682, %v1684
        %v1710 = vsel %vm1701, %v1684, %v1686
        %v1711 = vsel %vm1701, %v1686, %v1688
        %v1712 = vsel %vm1701, %v1688, %v1690
        %v1713 = vsel %vm1701, %v1690, %v1692
        %v1714 = vsel %vm1701, %v1692, %v1694
        %v1715 = vsel %vm1701, %v1694, %v1696
        %v1716 = vsel %vm1701, %v1696, %v1698
        %v1717 = vsel %vm1701, %v1698, %v1700
        %1734 = vst [vmem:[#allocation2 + $0x180] sm:$0xc0] %v1702
        %1735 = vst [vmem:[#allocation2 + $0x188] sm:$0xc0] %v1703
        %1736 = vst [vmem:[#allocation2 + $0x190] sm:$0xc0] %v1704
        %1737 = vst [vmem:[#allocation2 + $0x198] sm:$0xc0] %v1705
        %1738 = vst [vmem:[#allocation2 + $0x1a0] sm:$0xc0] %v1706
        %1739 = vst [vmem:[#allocation2 + $0x1a8] sm:$0xc0] %v1707
        %1740 = vst [vmem:[#allocation2 + $0x1b0] sm:$0xc0] %v1708
        %1741 = vst [vmem:[#allocation2 + $0x1b8] sm:$0xc0] %v1709
        %1742 = vst [vmem:[#allocation2 + $0x1c0] sm:$0xc0] %v1710
        %1743 = vst [vmem:[#allocation2 + $0x1c8] sm:$0xc0] %v1711
        %1744 = vst [vmem:[#allocation2 + $0x1d0] sm:$0xc0] %v1712
        %1745 = vst [vmem:[#allocation2 + $0x1d8] sm:$0xc0] %v1713
        %1746 = vst [vmem:[#allocation2 + $0x1e0] sm:$0xc0] %v1714
        %1747 = vst [vmem:[#allocation2 + $0x1e8] sm:$0xc0] %v1715
        %1748 = vst [vmem:[#allocation2 + $0x1f0] sm:$0xc0] %v1716
        %1749 = vst [vmem:[#allocation2 + $0x1f8] sm:$0xc0] %v1717
        %1750 = vst [vmem:[#allocation2 + $0x200] sm:$0x1] %v1702
        %1751 = vst [vmem:[#allocation2 + $0x208] sm:$0x1] %v1703
        %1752 = vst [vmem:[#allocation2 + $0x210] sm:$0x1] %v1704
        %1753 = vst [vmem:[#allocation2 + $0x218] sm:$0x1] %v1705
        %1754 = vst [vmem:[#allocation2 + $0x220] sm:$0x1] %v1706
        %1755 = vst [vmem:[#allocation2 + $0x228] sm:$0x1] %v1707
        %1756 = vst [vmem:[#allocation2 + $0x230] sm:$0x1] %v1708
        %1757 = vst [vmem:[#allocation2 + $0x238] sm:$0x1] %v1709
        %1758 = vst [vmem:[#allocation2 + $0x240] sm:$0x1] %v1710
        %1759 = vst [vmem:[#allocation2 + $0x248] sm:$0x1] %v1711
        %1760 = vst [vmem:[#allocation2 + $0x250] sm:$0x1] %v1712
        %1761 = vst [vmem:[#allocation2 + $0x258] sm:$0x1] %v1713
        %1762 = vst [vmem:[#allocation2 + $0x260] sm:$0x1] %v1714
        %1763 = vst [vmem:[#allocation2 + $0x268] sm:$0x1] %v1715
        %1764 = vst [vmem:[#allocation2 + $0x270] sm:$0x1] %v1716
        %1765 = vst [vmem:[#allocation2 + $0x278] sm:$0x1] %v1717
        %v1766 = vld [vmem:[%s438] sm:$0x77]
        %v1767 = vld [vmem:[%s438 + $0x8] sm:$0x77]
        %v1768 = vld [vmem:[%s438 + $0x10] sm:$0x77]
        %v1769 = vld [vmem:[%s438 + $0x18] sm:$0x77]
        %v1770 = vld [vmem:[%s438 + $0x20] sm:$0x77]
        %v1771 = vld [vmem:[%s438 + $0x28] sm:$0x77]
        %v1772 = vld [vmem:[%s438 + $0x30] sm:$0x77]
        %v1773 = vld [vmem:[%s438 + $0x38] sm:$0x77]
        %v1774 = vld [vmem:[%s438 + $0x40] sm:$0x7]
        %v1784 = vcombine.high %v1766, %v1766
        %v1785 = vcombine.high %v1767, %v1767
        %v1786 = vcombine.high %v1768, %v1768
        %v1787 = vcombine.high %v1769, %v1769
        %v1788 = vcombine.high %v1770, %v1770
        %v1789 = vcombine.high %v1771, %v1771
        %v1790 = vcombine.high %v1772, %v1772
        %v1791 = vcombine.high %v1773, %v1773
        %v1792 = vrot.slane %v1766, 7
        %v1793 = vrot.slane %v1784, 7
        %v1794 = vrot.slane %v1767, 7
        %v1795 = vrot.slane %v1785, 7
        %v1796 = vrot.slane %v1768, 7
        %v1797 = vrot.slane %v1786, 7
        %v1798 = vrot.slane %v1769, 7
        %v1799 = vrot.slane %v1787, 7
        %v1800 = vrot.slane %v1770, 7
        %v1801 = vrot.slane %v1788, 7
        %v1802 = vrot.slane %v1771, 7
        %v1803 = vrot.slane %v1789, 7
        %v1804 = vrot.slane %v1772, 7
        %v1805 = vrot.slane %v1790, 7
        %v1806 = vrot.slane %v1773, 7
        %v1807 = vrot.slane %v1791, 7
        %v1808 = vrot.slane %v1774, 7
        %1809 = vrot.lane.b32.xlu0 %v1792, 63
        %v1810 = vpop.permute.xlu0 %1809
        %1811 = vrot.lane.b32.xlu0 %v1793, 63
        %v1812 = vpop.permute.xlu0 %1811
        %1813 = vrot.lane.b32.xlu0 %v1794, 63
        %v1814 = vpop.permute.xlu0 %1813
        %1815 = vrot.lane.b32.xlu0 %v1795, 63
        %v1816 = vpop.permute.xlu0 %1815
        %1817 = vrot.lane.b32.xlu0 %v1796, 63
        %v1818 = vpop.permute.xlu0 %1817
        %1819 = vrot.lane.b32.xlu0 %v1797, 63
        %v1820 = vpop.permute.xlu0 %1819
        %1821 = vrot.lane.b32.xlu0 %v1798, 63
        %v1822 = vpop.permute.xlu0 %1821
        %1823 = vrot.lane.b32.xlu0 %v1799, 63
        %v1824 = vpop.permute.xlu0 %1823
        %1825 = vrot.lane.b32.xlu0 %v1800, 63
        %v1826 = vpop.permute.xlu0 %1825
        %1827 = vrot.lane.b32.xlu0 %v1801, 63
        %v1828 = vpop.permute.xlu0 %1827
        %1829 = vrot.lane.b32.xlu0 %v1802, 63
        %v1830 = vpop.permute.xlu0 %1829
        %1831 = vrot.lane.b32.xlu0 %v1803, 63
        %v1832 = vpop.permute.xlu0 %1831
        %1833 = vrot.lane.b32.xlu0 %v1804, 63
        %v1834 = vpop.permute.xlu0 %1833
        %1835 = vrot.lane.b32.xlu0 %v1805, 63
        %v1836 = vpop.permute.xlu0 %1835
        %1837 = vrot.lane.b32.xlu0 %v1806, 63
        %v1838 = vpop.permute.xlu0 %1837
        %1839 = vrot.lane.b32.xlu0 %v1807, 63
        %v1840 = vpop.permute.xlu0 %1839
        %1841 = vrot.lane.b32.xlu0 %v1808, 63
        %v1842 = vpop.permute.xlu0 %1841
        %vm1843 = vcmask 515072
        %v1844 = vsel %vm1843, %v1810, %v1812
        %v1845 = vsel %vm1843, %v1812, %v1814
        %v1846 = vsel %vm1843, %v1814, %v1816
        %v1847 = vsel %vm1843, %v1816, %v1818
        %v1848 = vsel %vm1843, %v1818, %v1820
        %v1849 = vsel %vm1843, %v1820, %v1822
        %v1850 = vsel %vm1843, %v1822, %v1824
        %v1851 = vsel %vm1843, %v1824, %v1826
        %v1852 = vsel %vm1843, %v1826, %v1828
        %v1853 = vsel %vm1843, %v1828, %v1830
        %v1854 = vsel %vm1843, %v1830, %v1832
        %v1855 = vsel %vm1843, %v1832, %v1834
        %v1856 = vsel %vm1843, %v1834, %v1836
        %v1857 = vsel %vm1843, %v1836, %v1838
        %v1858 = vsel %vm1843, %v1838, %v1840
        %v1859 = vsel %vm1843, %v1840, %v1842
        %1876 = vst [vmem:[#allocation2 + $0x200] sm:$0xe] %v1844
        %1877 = vst [vmem:[#allocation2 + $0x208] sm:$0xe] %v1845
        %1878 = vst [vmem:[#allocation2 + $0x210] sm:$0xe] %v1846
        %1879 = vst [vmem:[#allocation2 + $0x218] sm:$0xe] %v1847
        %1880 = vst [vmem:[#allocation2 + $0x220] sm:$0xe] %v1848
        %1881 = vst [vmem:[#allocation2 + $0x228] sm:$0xe] %v1849
        %1882 = vst [vmem:[#allocation2 + $0x230] sm:$0xe] %v1850
        %1883 = vst [vmem:[#allocation2 + $0x238] sm:$0xe] %v1851
        %1884 = vst [vmem:[#allocation2 + $0x240] sm:$0xe] %v1852
        %1885 = vst [vmem:[#allocation2 + $0x248] sm:$0xe] %v1853
        %1886 = vst [vmem:[#allocation2 + $0x250] sm:$0xe] %v1854
        %1887 = vst [vmem:[#allocation2 + $0x258] sm:$0xe] %v1855
        %1888 = vst [vmem:[#allocation2 + $0x260] sm:$0xe] %v1856
        %1889 = vst [vmem:[#allocation2 + $0x268] sm:$0xe] %v1857
        %1890 = vst [vmem:[#allocation2 + $0x270] sm:$0xe] %v1858
        %1891 = vst [vmem:[#allocation2 + $0x278] sm:$0xe] %v1859
        %v1892 = vld [vmem:[%s438] sm:$0x77]
        %v1893 = vld [vmem:[%s438 + $0x8] sm:$0x77]
        %v1894 = vld [vmem:[%s438 + $0x10] sm:$0x77]
        %v1895 = vld [vmem:[%s438 + $0x18] sm:$0x77]
        %v1896 = vld [vmem:[%s438 + $0x20] sm:$0x77]
        %v1897 = vld [vmem:[%s438 + $0x28] sm:$0x77]
        %v1898 = vld [vmem:[%s438 + $0x30] sm:$0x77]
        %v1899 = vld [vmem:[%s438 + $0x38] sm:$0x77]
        %v1900 = vld [vmem:[%s438 + $0x40] sm:$0x7]
        %v1910 = vcombine.low %v1892, %v1892
        %v1911 = vcombine.low %v1893, %v1893
        %v1912 = vcombine.low %v1894, %v1894
        %v1913 = vcombine.low %v1895, %v1895
        %v1914 = vcombine.low %v1896, %v1896
        %v1915 = vcombine.low %v1897, %v1897
        %v1916 = vcombine.low %v1898, %v1898
        %v1917 = vcombine.low %v1899, %v1899
        %v1918 = vcombine.low %v1900, %v1900
        %1919 = vrot.lane.b32.xlu0 %v1910, 62
        %v1920 = vpop.permute.xlu0 %1919
        %1921 = vrot.lane.b32.xlu0 %v1892, 62
        %v1922 = vpop.permute.xlu0 %1921
        %1923 = vrot.lane.b32.xlu0 %v1911, 62
        %v1924 = vpop.permute.xlu0 %1923
        %1925 = vrot.lane.b32.xlu0 %v1893, 62
        %v1926 = vpop.permute.xlu0 %1925
        %1927 = vrot.lane.b32.xlu0 %v1912, 62
        %v1928 = vpop.permute.xlu0 %1927
        %1929 = vrot.lane.b32.xlu0 %v1894, 62
        %v1930 = vpop.permute.xlu0 %1929
        %1931 = vrot.lane.b32.xlu0 %v1913, 62
        %v1932 = vpop.permute.xlu0 %1931
        %1933 = vrot.lane.b32.xlu0 %v1895, 62
        %v1934 = vpop.permute.xlu0 %1933
        %1935 = vrot.lane.b32.xlu0 %v1914, 62
        %v1936 = vpop.permute.xlu0 %1935
        %1937 = vrot.lane.b32.xlu0 %v1896, 62
        %v1938 = vpop.permute.xlu0 %1937
        %1939 = vrot.lane.b32.xlu0 %v1915, 62
        %v1940 = vpop.permute.xlu0 %1939
        %1941 = vrot.lane.b32.xlu0 %v1897, 62
        %v1942 = vpop.permute.xlu0 %1941
        %1943 = vrot.lane.b32.xlu0 %v1916, 62
        %v1944 = vpop.permute.xlu0 %1943
        %1945 = vrot.lane.b32.xlu0 %v1898, 62
        %v1946 = vpop.permute.xlu0 %1945
        %1947 = vrot.lane.b32.xlu0 %v1917, 62
        %v1948 = vpop.permute.xlu0 %1947
        %1949 = vrot.lane.b32.xlu0 %v1899, 62
        %v1950 = vpop.permute.xlu0 %1949
        %1951 = vrot.lane.b32.xlu0 %v1918, 62
        %v1952 = vpop.permute.xlu0 %1951
        %vm1953 = vcmask 506880
        %v1954 = vsel %vm1953, %v1920, %v1922
        %v1955 = vsel %vm1953, %v1922, %v1924
        %v1956 = vsel %vm1953, %v1924, %v1926
        %v1957 = vsel %vm1953, %v1926, %v1928
        %v1958 = vsel %vm1953, %v1928, %v1930
        %v1959 = vsel %vm1953, %v1930, %v1932
        %v1960 = vsel %vm1953, %v1932, %v1934
        %v1961 = vsel %vm1953, %v1934, %v1936
        %v1962 = vsel %vm1953, %v1936, %v1938
        %v1963 = vsel %vm1953, %v1938, %v1940
        %v1964 = vsel %vm1953, %v1940, %v1942
        %v1965 = vsel %vm1953, %v1942, %v1944
        %v1966 = vsel %vm1953, %v1944, %v1946
        %v1967 = vsel %vm1953, %v1946, %v1948
        %v1968 = vsel %vm1953, %v1948, %v1950
        %v1969 = vsel %vm1953, %v1950, %v1952
        %1986 = vst [vmem:[#allocation2 + $0x200] sm:$0x70] %v1954
        %1987 = vst [vmem:[#allocation2 + $0x208] sm:$0x70] %v1955
        %1988 = vst [vmem:[#allocation2 + $0x210] sm:$0x70] %v1956
        %1989 = vst [vmem:[#allocation2 + $0x218] sm:$0x70] %v1957
        %1990 = vst [vmem:[#allocation2 + $0x220] sm:$0x70] %v1958
        %1991 = vst [vmem:[#allocation2 + $0x228] sm:$0x70] %v1959
        %1992 = vst [vmem:[#allocation2 + $0x230] sm:$0x70] %v1960
        %1993 = vst [vmem:[#allocation2 + $0x238] sm:$0x70] %v1961
        %1994 = vst [vmem:[#allocation2 + $0x240] sm:$0x70] %v1962
        %1995 = vst [vmem:[#allocation2 + $0x248] sm:$0x70] %v1963
        %1996 = vst [vmem:[#allocation2 + $0x250] sm:$0x70] %v1964
        %1997 = vst [vmem:[#allocation2 + $0x258] sm:$0x70] %v1965
        %1998 = vst [vmem:[#allocation2 + $0x260] sm:$0x70] %v1966
        %1999 = vst [vmem:[#allocation2 + $0x268] sm:$0x70] %v1967
        %2000 = vst [vmem:[#allocation2 + $0x270] sm:$0x70] %v1968
        %2001 = vst [vmem:[#allocation2 + $0x278] sm:$0x70] %v1969
        %v2002 = vld [vmem:[%s438] sm:$0x77]
        %v2003 = vld [vmem:[%s438 + $0x8] sm:$0x77]
        %v2004 = vld [vmem:[%s438 + $0x10] sm:$0x77]
        %v2005 = vld [vmem:[%s438 + $0x18] sm:$0x77]
        %v2006 = vld [vmem:[%s438 + $0x20] sm:$0x77]
        %v2007 = vld [vmem:[%s438 + $0x28] sm:$0x77]
        %v2008 = vld [vmem:[%s438 + $0x30] sm:$0x77]
        %v2009 = vld [vmem:[%s438 + $0x38] sm:$0x77]
        %v2010 = vld [vmem:[%s438 + $0x40] sm:$0x7]
        %v2020 = vcombine.high %v2002, %v2002
        %v2021 = vcombine.high %v2003, %v2003
        %v2022 = vcombine.high %v2004, %v2004
        %v2023 = vcombine.high %v2005, %v2005
        %v2024 = vcombine.high %v2006, %v2006
        %v2025 = vcombine.high %v2007, %v2007
        %v2026 = vcombine.high %v2008, %v2008
        %v2027 = vcombine.high %v2009, %v2009
        %v2028 = vrot.slane %v2002, 1
        %v2029 = vrot.slane %v2020, 1
        %v2030 = vrot.slane %v2003, 1
        %v2031 = vrot.slane %v2021, 1
        %v2032 = vrot.slane %v2004, 1
        %v2033 = vrot.slane %v2022, 1
        %v2034 = vrot.slane %v2005, 1
        %v2035 = vrot.slane %v2023, 1
        %v2036 = vrot.slane %v2006, 1
        %v2037 = vrot.slane %v2024, 1
        %v2038 = vrot.slane %v2007, 1
        %v2039 = vrot.slane %v2025, 1
        %v2040 = vrot.slane %v2008, 1
        %v2041 = vrot.slane %v2026, 1
        %v2042 = vrot.slane %v2009, 1
        %v2043 = vrot.slane %v2027, 1
        %v2044 = vrot.slane %v2010, 1
        %2045 = vrot.lane.b32.xlu0 %v2028, 61
        %v2046 = vpop.permute.xlu0 %2045
        %2047 = vrot.lane.b32.xlu0 %v2029, 61
        %v2048 = vpop.permute.xlu0 %2047
        %2049 = vrot.lane.b32.xlu0 %v2030, 61
        %v2050 = vpop.permute.xlu0 %2049
        %2051 = vrot.lane.b32.xlu0 %v2031, 61
        %v2052 = vpop.permute.xlu0 %2051
        %2053 = vrot.lane.b32.xlu0 %v2032, 61
        %v2054 = vpop.permute.xlu0 %2053
        %2055 = vrot.lane.b32.xlu0 %v2033, 61
        %v2056 = vpop.permute.xlu0 %2055
        %2057 = vrot.lane.b32.xlu0 %v2034, 61
        %v2058 = vpop.permute.xlu0 %2057
        %2059 = vrot.lane.b32.xlu0 %v2035, 61
        %v2060 = vpop.permute.xlu0 %2059
        %2061 = vrot.lane.b32.xlu0 %v2036, 61
        %v2062 = vpop.permute.xlu0 %2061
        %2063 = vrot.lane.b32.xlu0 %v2037, 61
        %v2064 = vpop.permute.xlu0 %2063
        %2065 = vrot.lane.b32.xlu0 %v2038, 61
        %v2066 = vpop.permute.xlu0 %2065
        %2067 = vrot.lane.b32.xlu0 %v2039, 61
        %v2068 = vpop.permute.xlu0 %2067
        %2069 = vrot.lane.b32.xlu0 %v2040, 61
        %v2070 = vpop.permute.xlu0 %2069
        %2071 = vrot.lane.b32.xlu0 %v2041, 61
        %v2072 = vpop.permute.xlu0 %2071
        %2073 = vrot.lane.b32.xlu0 %v2042, 61
        %v2074 = vpop.permute.xlu0 %2073
        %2075 = vrot.lane.b32.xlu0 %v2043, 61
        %v2076 = vpop.permute.xlu0 %2075
        %2077 = vrot.lane.b32.xlu0 %v2044, 61
        %v2078 = vpop.permute.xlu0 %2077
        %vm2079 = vcmask 498688
        %v2080 = vsel %vm2079, %v2046, %v2048
        %v2081 = vsel %vm2079, %v2048, %v2050
        %v2082 = vsel %vm2079, %v2050, %v2052
        %v2083 = vsel %vm2079, %v2052, %v2054
        %v2084 = vsel %vm2079, %v2054, %v2056
        %v2085 = vsel %vm2079, %v2056, %v2058
        %v2086 = vsel %vm2079, %v2058, %v2060
        %v2087 = vsel %vm2079, %v2060, %v2062
        %v2088 = vsel %vm2079, %v2062, %v2064
        %v2089 = vsel %vm2079, %v2064, %v2066
        %v2090 = vsel %vm2079, %v2066, %v2068
        %v2091 = vsel %vm2079, %v2068, %v2070
        %v2092 = vsel %vm2079, %v2070, %v2072
        %v2093 = vsel %vm2079, %v2072, %v2074
        %v2094 = vsel %vm2079, %v2074, %v2076
        %v2095 = vsel %vm2079, %v2076, %v2078
        %2112 = vst [vmem:[#allocation2 + $0x200] sm:$0x80] %v2080
        %2113 = vst [vmem:[#allocation2 + $0x208] sm:$0x80] %v2081
        %2114 = vst [vmem:[#allocation2 + $0x210] sm:$0x80] %v2082
        %2115 = vst [vmem:[#allocation2 + $0x218] sm:$0x80] %v2083
        %2116 = vst [vmem:[#allocation2 + $0x220] sm:$0x80] %v2084
        %2117 = vst [vmem:[#allocation2 + $0x228] sm:$0x80] %v2085
        %2118 = vst [vmem:[#allocation2 + $0x230] sm:$0x80] %v2086
        %2119 = vst [vmem:[#allocation2 + $0x238] sm:$0x80] %v2087
        %2120 = vst [vmem:[#allocation2 + $0x240] sm:$0x80] %v2088
        %2121 = vst [vmem:[#allocation2 + $0x248] sm:$0x80] %v2089
        %2122 = vst [vmem:[#allocation2 + $0x250] sm:$0x80] %v2090
        %2123 = vst [vmem:[#allocation2 + $0x258] sm:$0x80] %v2091
        %2124 = vst [vmem:[#allocation2 + $0x260] sm:$0x80] %v2092
        %2125 = vst [vmem:[#allocation2 + $0x268] sm:$0x80] %v2093
        %2126 = vst [vmem:[#allocation2 + $0x270] sm:$0x80] %v2094
        %2127 = vst [vmem:[#allocation2 + $0x278] sm:$0x80] %v2095
        %2128 = vst [vmem:[#allocation2 + $0x280] sm:$0x3] %v2080
        %2129 = vst [vmem:[#allocation2 + $0x288] sm:$0x3] %v2081
        %2130 = vst [vmem:[#allocation2 + $0x290] sm:$0x3] %v2082
        %2131 = vst [vmem:[#allocation2 + $0x298] sm:$0x3] %v2083
        %2132 = vst [vmem:[#allocation2 + $0x2a0] sm:$0x3] %v2084
        %2133 = vst [vmem:[#allocation2 + $0x2a8] sm:$0x3] %v2085
        %2134 = vst [vmem:[#allocation2 + $0x2b0] sm:$0x3] %v2086
        %2135 = vst [vmem:[#allocation2 + $0x2b8] sm:$0x3] %v2087
        %2136 = vst [vmem:[#allocation2 + $0x2c0] sm:$0x3] %v2088
        %2137 = vst [vmem:[#allocation2 + $0x2c8] sm:$0x3] %v2089
        %2138 = vst [vmem:[#allocation2 + $0x2d0] sm:$0x3] %v2090
        %2139 = vst [vmem:[#allocation2 + $0x2d8] sm:$0x3] %v2091
        %2140 = vst [vmem:[#allocation2 + $0x2e0] sm:$0x3] %v2092
        %2141 = vst [vmem:[#allocation2 + $0x2e8] sm:$0x3] %v2093
        %2142 = vst [vmem:[#allocation2 + $0x2f0] sm:$0x3] %v2094
        %2143 = vst [vmem:[#allocation2 + $0x2f8] sm:$0x3] %v2095
        %v2144 = vld [vmem:[%s438] sm:$0x77]
        %v2145 = vld [vmem:[%s438 + $0x8] sm:$0x77]
        %v2146 = vld [vmem:[%s438 + $0x10] sm:$0x77]
        %v2147 = vld [vmem:[%s438 + $0x18] sm:$0x77]
        %v2148 = vld [vmem:[%s438 + $0x20] sm:$0x77]
        %v2149 = vld [vmem:[%s438 + $0x28] sm:$0x77]
        %v2150 = vld [vmem:[%s438 + $0x30] sm:$0x77]
        %v2151 = vld [vmem:[%s438 + $0x38] sm:$0x77]
        %v2152 = vld [vmem:[%s438 + $0x40] sm:$0x7]
        %v2162 = vcombine.high %v2144, %v2144
        %v2163 = vcombine.high %v2145, %v2145
        %v2164 = vcombine.high %v2146, %v2146
        %v2165 = vcombine.high %v2147, %v2147
        %v2166 = vcombine.high %v2148, %v2148
        %v2167 = vcombine.high %v2149, %v2149
        %v2168 = vcombine.high %v2150, %v2150
        %v2169 = vcombine.high %v2151, %v2151
        %v2170 = vrot.slane %v2144, 6
        %v2171 = vrot.slane %v2162, 6
        %v2172 = vrot.slane %v2145, 6
        %v2173 = vrot.slane %v2163, 6
        %v2174 = vrot.slane %v2146, 6
        %v2175 = vrot.slane %v2164, 6
        %v2176 = vrot.slane %v2147, 6
        %v2177 = vrot.slane %v2165, 6
        %v2178 = vrot.slane %v2148, 6
        %v2179 = vrot.slane %v2166, 6
        %v2180 = vrot.slane %v2149, 6
        %v2181 = vrot.slane %v2167, 6
        %v2182 = vrot.slane %v2150, 6
        %v2183 = vrot.slane %v2168, 6
        %v2184 = vrot.slane %v2151, 6
        %v2185 = vrot.slane %v2169, 6
        %v2186 = vrot.slane %v2152, 6
        %2187 = vrot.lane.b32.xlu0 %v2170, 60
        %v2188 = vpop.permute.xlu0 %2187
        %2189 = vrot.lane.b32.xlu0 %v2171, 60
        %v2190 = vpop.permute.xlu0 %2189
        %2191 = vrot.lane.b32.xlu0 %v2172, 60
        %v2192 = vpop.permute.xlu0 %2191
        %2193 = vrot.lane.b32.xlu0 %v2173, 60
        %v2194 = vpop.permute.xlu0 %2193
        %2195 = vrot.lane.b32.xlu0 %v2174, 60
        %v2196 = vpop.permute.xlu0 %2195
        %2197 = vrot.lane.b32.xlu0 %v2175, 60
        %v2198 = vpop.permute.xlu0 %2197
        %2199 = vrot.lane.b32.xlu0 %v2176, 60
        %v2200 = vpop.permute.xlu0 %2199
        %2201 = vrot.lane.b32.xlu0 %v2177, 60
        %v2202 = vpop.permute.xlu0 %2201
        %2203 = vrot.lane.b32.xlu0 %v2178, 60
        %v2204 = vpop.permute.xlu0 %2203
        %2205 = vrot.lane.b32.xlu0 %v2179, 60
        %v2206 = vpop.permute.xlu0 %2205
        %2207 = vrot.lane.b32.xlu0 %v2180, 60
        %v2208 = vpop.permute.xlu0 %2207
        %2209 = vrot.lane.b32.xlu0 %v2181, 60
        %v2210 = vpop.permute.xlu0 %2209
        %2211 = vrot.lane.b32.xlu0 %v2182, 60
        %v2212 = vpop.permute.xlu0 %2211
        %2213 = vrot.lane.b32.xlu0 %v2183, 60
        %v2214 = vpop.permute.xlu0 %2213
        %2215 = vrot.lane.b32.xlu0 %v2184, 60
        %v2216 = vpop.permute.xlu0 %2215
        %2217 = vrot.lane.b32.xlu0 %v2185, 60
        %v2218 = vpop.permute.xlu0 %2217
        %2219 = vrot.lane.b32.xlu0 %v2186, 60
        %v2220 = vpop.permute.xlu0 %2219
        %vm2221 = vcmask 490496
        %v2222 = vsel %vm2221, %v2188, %v2190
        %v2223 = vsel %vm2221, %v2190, %v2192
        %v2224 = vsel %vm2221, %v2192, %v2194
        %v2225 = vsel %vm2221, %v2194, %v2196
        %v2226 = vsel %vm2221, %v2196, %v2198
        %v2227 = vsel %vm2221, %v2198, %v2200
        %v2228 = vsel %vm2221, %v2200, %v2202
        %v2229 = vsel %vm2221, %v2202, %v2204
        %v2230 = vsel %vm2221, %v2204, %v2206
        %v2231 = vsel %vm2221, %v2206, %v2208
        %v2232 = vsel %vm2221, %v2208, %v2210
        %v2233 = vsel %vm2221, %v2210, %v2212
        %v2234 = vsel %vm2221, %v2212, %v2214
        %v2235 = vsel %vm2221, %v2214, %v2216
        %v2236 = vsel %vm2221, %v2216, %v2218
        %v2237 = vsel %vm2221, %v2218, %v2220
        %2254 = vst [vmem:[#allocation2 + $0x280] sm:$0x1c] %v2222
        %2255 = vst [vmem:[#allocation2 + $0x288] sm:$0x1c] %v2223
        %2256 = vst [vmem:[#allocation2 + $0x290] sm:$0x1c] %v2224
        %2257 = vst [vmem:[#allocation2 + $0x298] sm:$0x1c] %v2225
        %2258 = vst [vmem:[#allocation2 + $0x2a0] sm:$0x1c] %v2226
        %2259 = vst [vmem:[#allocation2 + $0x2a8] sm:$0x1c] %v2227
        %2260 = vst [vmem:[#allocation2 + $0x2b0] sm:$0x1c] %v2228
        %2261 = vst [vmem:[#allocation2 + $0x2b8] sm:$0x1c] %v2229
        %2262 = vst [vmem:[#allocation2 + $0x2c0] sm:$0x1c] %v2230
        %2263 = vst [vmem:[#allocation2 + $0x2c8] sm:$0x1c] %v2231
        %2264 = vst [vmem:[#allocation2 + $0x2d0] sm:$0x1c] %v2232
        %2265 = vst [vmem:[#allocation2 + $0x2d8] sm:$0x1c] %v2233
        %2266 = vst [vmem:[#allocation2 + $0x2e0] sm:$0x1c] %v2234
        %2267 = vst [vmem:[#allocation2 + $0x2e8] sm:$0x1c] %v2235
        %2268 = vst [vmem:[#allocation2 + $0x2f0] sm:$0x1c] %v2236
        %2269 = vst [vmem:[#allocation2 + $0x2f8] sm:$0x1c] %v2237
        %v2270 = vld [vmem:[%s438] sm:$0x77]
        %v2271 = vld [vmem:[%s438 + $0x8] sm:$0x77]
        %v2272 = vld [vmem:[%s438 + $0x10] sm:$0x77]
        %v2273 = vld [vmem:[%s438 + $0x18] sm:$0x77]
        %v2274 = vld [vmem:[%s438 + $0x20] sm:$0x77]
        %v2275 = vld [vmem:[%s438 + $0x28] sm:$0x77]
        %v2276 = vld [vmem:[%s438 + $0x30] sm:$0x77]
        %v2277 = vld [vmem:[%s438 + $0x38] sm:$0x77]
        %v2278 = vld [vmem:[%s438 + $0x40] sm:$0x7]
        %v2288 = vcombine.high %v2270, %v2270
        %v2289 = vcombine.high %v2271, %v2271
        %v2290 = vcombine.high %v2272, %v2272
        %v2291 = vcombine.high %v2273, %v2273
        %v2292 = vcombine.high %v2274, %v2274
        %v2293 = vcombine.high %v2275, %v2275
        %v2294 = vcombine.high %v2276, %v2276
        %v2295 = vcombine.high %v2277, %v2277
        %v2296 = vrot.slane %v2270, 3
        %v2297 = vrot.slane %v2288, 3
        %v2298 = vrot.slane %v2271, 3
        %v2299 = vrot.slane %v2289, 3
        %v2300 = vrot.slane %v2272, 3
        %v2301 = vrot.slane %v2290, 3
        %v2302 = vrot.slane %v2273, 3
        %v2303 = vrot.slane %v2291, 3
        %v2304 = vrot.slane %v2274, 3
        %v2305 = vrot.slane %v2292, 3
        %v2306 = vrot.slane %v2275, 3
        %v2307 = vrot.slane %v2293, 3
        %v2308 = vrot.slane %v2276, 3
        %v2309 = vrot.slane %v2294, 3
        %v2310 = vrot.slane %v2277, 3
        %v2311 = vrot.slane %v2295, 3
        %v2312 = vrot.slane %v2278, 3
        %2313 = vrot.lane.b32.xlu0 %v2296, 32
        %v2314 = vpop.permute.xlu0 %2313
        %2315 = vrot.lane.b32.xlu0 %v2297, 32
        %v2316 = vpop.permute.xlu0 %2315
        %2317 = vrot.lane.b32.xlu0 %v2298, 32
        %v2318 = vpop.permute.xlu0 %2317
        %2319 = vrot.lane.b32.xlu0 %v2299, 32
        %v2320 = vpop.permute.xlu0 %2319
        %2321 = vrot.lane.b32.xlu0 %v2300, 32
        %v2322 = vpop.permute.xlu0 %2321
        %2323 = vrot.lane.b32.xlu0 %v2301, 32
        %v2324 = vpop.permute.xlu0 %2323
        %2325 = vrot.lane.b32.xlu0 %v2302, 32
        %v2326 = vpop.permute.xlu0 %2325
        %2327 = vrot.lane.b32.xlu0 %v2303, 32
        %v2328 = vpop.permute.xlu0 %2327
        %2329 = vrot.lane.b32.xlu0 %v2304, 32
        %v2330 = vpop.permute.xlu0 %2329
        %2331 = vrot.lane.b32.xlu0 %v2305, 32
        %v2332 = vpop.permute.xlu0 %2331
        %2333 = vrot.lane.b32.xlu0 %v2306, 32
        %v2334 = vpop.permute.xlu0 %2333
        %2335 = vrot.lane.b32.xlu0 %v2307, 32
        %v2336 = vpop.permute.xlu0 %2335
        %2337 = vrot.lane.b32.xlu0 %v2308, 32
        %v2338 = vpop.permute.xlu0 %2337
        %2339 = vrot.lane.b32.xlu0 %v2309, 32
        %v2340 = vpop.permute.xlu0 %2339
        %2341 = vrot.lane.b32.xlu0 %v2310, 32
        %v2342 = vpop.permute.xlu0 %2341
        %2343 = vrot.lane.b32.xlu0 %v2311, 32
        %v2344 = vpop.permute.xlu0 %2343
        %2345 = vrot.lane.b32.xlu0 %v2312, 32
        %v2346 = vpop.permute.xlu0 %2345
        %vm2347 = vcmask 261120
        %v2348 = vsel %vm2347, %v2314, %v2316
        %v2349 = vsel %vm2347, %v2316, %v2318
        %v2350 = vsel %vm2347, %v2318, %v2320
        %v2351 = vsel %vm2347, %v2320, %v2322
        %v2352 = vsel %vm2347, %v2322, %v2324
        %v2353 = vsel %vm2347, %v2324, %v2326
        %v2354 = vsel %vm2347, %v2326, %v2328
        %v2355 = vsel %vm2347, %v2328, %v2330
        %v2356 = vsel %vm2347, %v2330, %v2332
        %v2357 = vsel %vm2347, %v2332, %v2334
        %v2358 = vsel %vm2347, %v2334, %v2336
        %v2359 = vsel %vm2347, %v2336, %v2338
        %v2360 = vsel %vm2347, %v2338, %v2340
        %v2361 = vsel %vm2347, %v2340, %v2342
        %v2362 = vsel %vm2347, %v2342, %v2344
        %v2363 = vsel %vm2347, %v2344, %v2346
        %2380 = vst [vmem:[#allocation2 + $0x280] sm:$0xe0] %v2348
        %2381 = vst [vmem:[#allocation2 + $0x288] sm:$0xe0] %v2349
        %2382 = vst [vmem:[#allocation2 + $0x290] sm:$0xe0] %v2350
        %2383 = vst [vmem:[#allocation2 + $0x298] sm:$0xe0] %v2351
        %2384 = vst [vmem:[#allocation2 + $0x2a0] sm:$0xe0] %v2352
        %2385 = vst [vmem:[#allocation2 + $0x2a8] sm:$0xe0] %v2353
        %2386 = vst [vmem:[#allocation2 + $0x2b0] sm:$0xe0] %v2354
        %2387 = vst [vmem:[#allocation2 + $0x2b8] sm:$0xe0] %v2355
        %2388 = vst [vmem:[#allocation2 + $0x2c0] sm:$0xe0] %v2356
        %2389 = vst [vmem:[#allocation2 + $0x2c8] sm:$0xe0] %v2357
        %2390 = vst [vmem:[#allocation2 + $0x2d0] sm:$0xe0] %v2358
        %2391 = vst [vmem:[#allocation2 + $0x2d8] sm:$0xe0] %v2359
        %2392 = vst [vmem:[#allocation2 + $0x2e0] sm:$0xe0] %v2360
        %2393 = vst [vmem:[#allocation2 + $0x2e8] sm:$0xe0] %v2361
        %2394 = vst [vmem:[#allocation2 + $0x2f0] sm:$0xe0] %v2362
        %2395 = vst [vmem:[#allocation2 + $0x2f8] sm:$0xe0] %v2363
        %v2396 = vld [vmem:[%s438] sm:$0x77]
        %v2397 = vld [vmem:[%s438 + $0x8] sm:$0x77]
        %v2398 = vld [vmem:[%s438 + $0x10] sm:$0x77]
        %v2399 = vld [vmem:[%s438 + $0x18] sm:$0x77]
        %v2400 = vld [vmem:[%s438 + $0x20] sm:$0x77]
        %v2401 = vld [vmem:[%s438 + $0x28] sm:$0x77]
        %v2402 = vld [vmem:[%s438 + $0x30] sm:$0x77]
        %v2403 = vld [vmem:[%s438 + $0x38] sm:$0x77]
        %v2404 = vld [vmem:[%s438 + $0x40] sm:$0x7]
        %v2414 = vcombine.high %v2396, %v2396
        %v2415 = vcombine.high %v2397, %v2397
        %v2416 = vcombine.high %v2398, %v2398
        %v2417 = vcombine.high %v2399, %v2399
        %v2418 = vcombine.high %v2400, %v2400
        %v2419 = vcombine.high %v2401, %v2401
        %v2420 = vcombine.high %v2402, %v2402
        %v2421 = vcombine.high %v2403, %v2403
        %2422 = vrot.lane.b32.xlu0 %v2396, 31
        %v2423 = vpop.permute.xlu0 %2422
        %2424 = vrot.lane.b32.xlu0 %v2414, 31
        %v2425 = vpop.permute.xlu0 %2424
        %2426 = vrot.lane.b32.xlu0 %v2397, 31
        %v2427 = vpop.permute.xlu0 %2426
        %2428 = vrot.lane.b32.xlu0 %v2415, 31
        %v2429 = vpop.permute.xlu0 %2428
        %2430 = vrot.lane.b32.xlu0 %v2398, 31
        %v2431 = vpop.permute.xlu0 %2430
        %2432 = vrot.lane.b32.xlu0 %v2416, 31
        %v2433 = vpop.permute.xlu0 %2432
        %2434 = vrot.lane.b32.xlu0 %v2399, 31
        %v2435 = vpop.permute.xlu0 %2434
        %2436 = vrot.lane.b32.xlu0 %v2417, 31
        %v2437 = vpop.permute.xlu0 %2436
        %2438 = vrot.lane.b32.xlu0 %v2400, 31
        %v2439 = vpop.permute.xlu0 %2438
        %2440 = vrot.lane.b32.xlu0 %v2418, 31
        %v2441 = vpop.permute.xlu0 %2440
        %2442 = vrot.lane.b32.xlu0 %v2401, 31
        %v2443 = vpop.permute.xlu0 %2442
        %2444 = vrot.lane.b32.xlu0 %v2419, 31
        %v2445 = vpop.permute.xlu0 %2444
        %2446 = vrot.lane.b32.xlu0 %v2402, 31
        %v2447 = vpop.permute.xlu0 %2446
        %2448 = vrot.lane.b32.xlu0 %v2420, 31
        %v2449 = vpop.permute.xlu0 %2448
        %2450 = vrot.lane.b32.xlu0 %v2403, 31
        %v2451 = vpop.permute.xlu0 %2450
        %2452 = vrot.lane.b32.xlu0 %v2421, 31
        %v2453 = vpop.permute.xlu0 %2452
        %2454 = vrot.lane.b32.xlu0 %v2404, 31
        %v2455 = vpop.permute.xlu0 %2454
        %vm2456 = vcmask 252928
        %v2457 = vsel %vm2456, %v2423, %v2425
        %v2458 = vsel %vm2456, %v2425, %v2427
        %v2459 = vsel %vm2456, %v2427, %v2429
        %v2460 = vsel %vm2456, %v2429, %v2431
        %v2461 = vsel %vm2456, %v2431, %v2433
        %v2462 = vsel %vm2456, %v2433, %v2435
        %v2463 = vsel %vm2456, %v2435, %v2437
        %v2464 = vsel %vm2456, %v2437, %v2439
        %v2465 = vsel %vm2456, %v2439, %v2441
        %v2466 = vsel %vm2456, %v2441, %v2443
        %v2467 = vsel %vm2456, %v2443, %v2445
        %v2468 = vsel %vm2456, %v2445, %v2447
        %v2469 = vsel %vm2456, %v2447, %v2449
        %v2470 = vsel %vm2456, %v2449, %v2451
        %v2471 = vsel %vm2456, %v2451, %v2453
        %v2472 = vsel %vm2456, %v2453, %v2455
        %2489 = vst [vmem:[#allocation2 + $0x300] sm:$0x7] %v2457
        %2490 = vst [vmem:[#allocation2 + $0x308] sm:$0x7] %v2458
        %2491 = vst [vmem:[#allocation2 + $0x310] sm:$0x7] %v2459
        %2492 = vst [vmem:[#allocation2 + $0x318] sm:$0x7] %v2460
        %2493 = vst [vmem:[#allocation2 + $0x320] sm:$0x7] %v2461
        %2494 = vst [vmem:[#allocation2 + $0x328] sm:$0x7] %v2462
        %2495 = vst [vmem:[#allocation2 + $0x330] sm:$0x7] %v2463
        %2496 = vst [vmem:[#allocation2 + $0x338] sm:$0x7] %v2464
        %2497 = vst [vmem:[#allocation2 + $0x340] sm:$0x7] %v2465
        %2498 = vst [vmem:[#allocation2 + $0x348] sm:$0x7] %v2466
        %2499 = vst [vmem:[#allocation2 + $0x350] sm:$0x7] %v2467
        %2500 = vst [vmem:[#allocation2 + $0x358] sm:$0x7] %v2468
        %2501 = vst [vmem:[#allocation2 + $0x360] sm:$0x7] %v2469
        %2502 = vst [vmem:[#allocation2 + $0x368] sm:$0x7] %v2470
        %2503 = vst [vmem:[#allocation2 + $0x370] sm:$0x7] %v2471
        %2504 = vst [vmem:[#allocation2 + $0x378] sm:$0x7] %v2472
        %v2505 = vld [vmem:[%s438] sm:$0x77]
        %v2506 = vld [vmem:[%s438 + $0x8] sm:$0x77]
        %v2507 = vld [vmem:[%s438 + $0x10] sm:$0x77]
        %v2508 = vld [vmem:[%s438 + $0x18] sm:$0x77]
        %v2509 = vld [vmem:[%s438 + $0x20] sm:$0x77]
        %v2510 = vld [vmem:[%s438 + $0x28] sm:$0x77]
        %v2511 = vld [vmem:[%s438 + $0x30] sm:$0x77]
        %v2512 = vld [vmem:[%s438 + $0x38] sm:$0x77]
        %v2513 = vld [vmem:[%s438 + $0x40] sm:$0x7]
        %v2523 = vcombine.high %v2505, %v2505
        %v2524 = vcombine.high %v2506, %v2506
        %v2525 = vcombine.high %v2507, %v2507
        %v2526 = vcombine.high %v2508, %v2508
        %v2527 = vcombine.high %v2509, %v2509
        %v2528 = vcombine.high %v2510, %v2510
        %v2529 = vcombine.high %v2511, %v2511
        %v2530 = vcombine.high %v2512, %v2512
        %v2531 = vrot.slane %v2505, 5
        %v2532 = vrot.slane %v2523, 5
        %v2533 = vrot.slane %v2506, 5
        %v2534 = vrot.slane %v2524, 5
        %v2535 = vrot.slane %v2507, 5
        %v2536 = vrot.slane %v2525, 5
        %v2537 = vrot.slane %v2508, 5
        %v2538 = vrot.slane %v2526, 5
        %v2539 = vrot.slane %v2509, 5
        %v2540 = vrot.slane %v2527, 5
        %v2541 = vrot.slane %v2510, 5
        %v2542 = vrot.slane %v2528, 5
        %v2543 = vrot.slane %v2511, 5
        %v2544 = vrot.slane %v2529, 5
        %v2545 = vrot.slane %v2512, 5
        %v2546 = vrot.slane %v2530, 5
        %v2547 = vrot.slane %v2513, 5
        %2548 = vrot.lane.b32.xlu0 %v2531, 30
        %v2549 = vpop.permute.xlu0 %2548
        %2550 = vrot.lane.b32.xlu0 %v2532, 30
        %v2551 = vpop.permute.xlu0 %2550
        %2552 = vrot.lane.b32.xlu0 %v2533, 30
        %v2553 = vpop.permute.xlu0 %2552
        %2554 = vrot.lane.b32.xlu0 %v2534, 30
        %v2555 = vpop.permute.xlu0 %2554
        %2556 = vrot.lane.b32.xlu0 %v2535, 30
        %v2557 = vpop.permute.xlu0 %2556
        %2558 = vrot.lane.b32.xlu0 %v2536, 30
        %v2559 = vpop.permute.xlu0 %2558
        %2560 = vrot.lane.b32.xlu0 %v2537, 30
        %v2561 = vpop.permute.xlu0 %2560
        %2562 = vrot.lane.b32.xlu0 %v2538, 30
        %v2563 = vpop.permute.xlu0 %2562
        %2564 = vrot.lane.b32.xlu0 %v2539, 30
        %v2565 = vpop.permute.xlu0 %2564
        %2566 = vrot.lane.b32.xlu0 %v2540, 30
        %v2567 = vpop.permute.xlu0 %2566
        %2568 = vrot.lane.b32.xlu0 %v2541, 30
        %v2569 = vpop.permute.xlu0 %2568
        %2570 = vrot.lane.b32.xlu0 %v2542, 30
        %v2571 = vpop.permute.xlu0 %2570
        %2572 = vrot.lane.b32.xlu0 %v2543, 30
        %v2573 = vpop.permute.xlu0 %2572
        %2574 = vrot.lane.b32.xlu0 %v2544, 30
        %v2575 = vpop.permute.xlu0 %2574
        %2576 = vrot.lane.b32.xlu0 %v2545, 30
        %v2577 = vpop.permute.xlu0 %2576
        %2578 = vrot.lane.b32.xlu0 %v2546, 30
        %v2579 = vpop.permute.xlu0 %2578
        %2580 = vrot.lane.b32.xlu0 %v2547, 30
        %v2581 = vpop.permute.xlu0 %2580
        %vm2582 = vcmask 244736
        %v2583 = vsel %vm2582, %v2549, %v2551
        %v2584 = vsel %vm2582, %v2551, %v2553
        %v2585 = vsel %vm2582, %v2553, %v2555
        %v2586 = vsel %vm2582, %v2555, %v2557
        %v2587 = vsel %vm2582, %v2557, %v2559
        %v2588 = vsel %vm2582, %v2559, %v2561
        %v2589 = vsel %vm2582, %v2561, %v2563
        %v2590 = vsel %vm2582, %v2563, %v2565
        %v2591 = vsel %vm2582, %v2565, %v2567
        %v2592 = vsel %vm2582, %v2567, %v2569
        %v2593 = vsel %vm2582, %v2569, %v2571
        %v2594 = vsel %vm2582, %v2571, %v2573
        %v2595 = vsel %vm2582, %v2573, %v2575
        %v2596 = vsel %vm2582, %v2575, %v2577
        %v2597 = vsel %vm2582, %v2577, %v2579
        %v2598 = vsel %vm2582, %v2579, %v2581
        %2615 = vst [vmem:[#allocation2 + $0x300] sm:$0x38] %v2583
        %2616 = vst [vmem:[#allocation2 + $0x308] sm:$0x38] %v2584
        %2617 = vst [vmem:[#allocation2 + $0x310] sm:$0x38] %v2585
        %2618 = vst [vmem:[#allocation2 + $0x318] sm:$0x38] %v2586
        %2619 = vst [vmem:[#allocation2 + $0x320] sm:$0x38] %v2587
        %2620 = vst [vmem:[#allocation2 + $0x328] sm:$0x38] %v2588
        %2621 = vst [vmem:[#allocation2 + $0x330] sm:$0x38] %v2589
        %2622 = vst [vmem:[#allocation2 + $0x338] sm:$0x38] %v2590
        %2623 = vst [vmem:[#allocation2 + $0x340] sm:$0x38] %v2591
        %2624 = vst [vmem:[#allocation2 + $0x348] sm:$0x38] %v2592
        %2625 = vst [vmem:[#allocation2 + $0x350] sm:$0x38] %v2593
        %2626 = vst [vmem:[#allocation2 + $0x358] sm:$0x38] %v2594
        %2627 = vst [vmem:[#allocation2 + $0x360] sm:$0x38] %v2595
        %2628 = vst [vmem:[#allocation2 + $0x368] sm:$0x38] %v2596
        %2629 = vst [vmem:[#allocation2 + $0x370] sm:$0x38] %v2597
        %2630 = vst [vmem:[#allocation2 + $0x378] sm:$0x38] %v2598
        %v2631 = vld [vmem:[%s438] sm:$0x77]
        %v2632 = vld [vmem:[%s438 + $0x8] sm:$0x77]
        %v2633 = vld [vmem:[%s438 + $0x10] sm:$0x77]
        %v2634 = vld [vmem:[%s438 + $0x18] sm:$0x77]
        %v2635 = vld [vmem:[%s438 + $0x20] sm:$0x77]
        %v2636 = vld [vmem:[%s438 + $0x28] sm:$0x77]
        %v2637 = vld [vmem:[%s438 + $0x30] sm:$0x77]
        %v2638 = vld [vmem:[%s438 + $0x38] sm:$0x77]
        %v2639 = vld [vmem:[%s438 + $0x40] sm:$0x7]
        %v2649 = vcombine.high %v2631, %v2631
        %v2650 = vcombine.high %v2632, %v2632
        %v2651 = vcombine.high %v2633, %v2633
        %v2652 = vcombine.high %v2634, %v2634
        %v2653 = vcombine.high %v2635, %v2635
        %v2654 = vcombine.high %v2636, %v2636
        %v2655 = vcombine.high %v2637, %v2637
        %v2656 = vcombine.high %v2638, %v2638
        %v2657 = vrot.slane %v2631, 2
        %v2658 = vrot.slane %v2649, 2
        %v2659 = vrot.slane %v2632, 2
        %v2660 = vrot.slane %v2650, 2
        %v2661 = vrot.slane %v2633, 2
        %v2662 = vrot.slane %v2651, 2
        %v2663 = vrot.slane %v2634, 2
        %v2664 = vrot.slane %v2652, 2
        %v2665 = vrot.slane %v2635, 2
        %v2666 = vrot.slane %v2653, 2
        %v2667 = vrot.slane %v2636, 2
        %v2668 = vrot.slane %v2654, 2
        %v2669 = vrot.slane %v2637, 2
        %v2670 = vrot.slane %v2655, 2
        %v2671 = vrot.slane %v2638, 2
        %v2672 = vrot.slane %v2656, 2
        %v2673 = vrot.slane %v2639, 2
        %2674 = vrot.lane.b32.xlu0 %v2657, 29
        %v2675 = vpop.permute.xlu0 %2674
        %2676 = vrot.lane.b32.xlu0 %v2658, 29
        %v2677 = vpop.permute.xlu0 %2676
        %2678 = vrot.lane.b32.xlu0 %v2659, 29
        %v2679 = vpop.permute.xlu0 %2678
        %2680 = vrot.lane.b32.xlu0 %v2660, 29
        %v2681 = vpop.permute.xlu0 %2680
        %2682 = vrot.lane.b32.xlu0 %v2661, 29
        %v2683 = vpop.permute.xlu0 %2682
        %2684 = vrot.lane.b32.xlu0 %v2662, 29
        %v2685 = vpop.permute.xlu0 %2684
        %2686 = vrot.lane.b32.xlu0 %v2663, 29
        %v2687 = vpop.permute.xlu0 %2686
        %2688 = vrot.lane.b32.xlu0 %v2664, 29
        %v2689 = vpop.permute.xlu0 %2688
        %2690 = vrot.lane.b32.xlu0 %v2665, 29
        %v2691 = vpop.permute.xlu0 %2690
        %2692 = vrot.lane.b32.xlu0 %v2666, 29
        %v2693 = vpop.permute.xlu0 %2692
        %2694 = vrot.lane.b32.xlu0 %v2667, 29
        %v2695 = vpop.permute.xlu0 %2694
        %2696 = vrot.lane.b32.xlu0 %v2668, 29
        %v2697 = vpop.permute.xlu0 %2696
        %2698 = vrot.lane.b32.xlu0 %v2669, 29
        %v2699 = vpop.permute.xlu0 %2698
        %2700 = vrot.lane.b32.xlu0 %v2670, 29
        %v2701 = vpop.permute.xlu0 %2700
        %2702 = vrot.lane.b32.xlu0 %v2671, 29
        %v2703 = vpop.permute.xlu0 %2702
        %2704 = vrot.lane.b32.xlu0 %v2672, 29
        %v2705 = vpop.permute.xlu0 %2704
        %2706 = vrot.lane.b32.xlu0 %v2673, 29
        %v2707 = vpop.permute.xlu0 %2706
        %vm2708 = vcmask 236544
        %v2709 = vsel %vm2708, %v2675, %v2677
        %v2710 = vsel %vm2708, %v2677, %v2679
        %v2711 = vsel %vm2708, %v2679, %v2681
        %v2712 = vsel %vm2708, %v2681, %v2683
        %v2713 = vsel %vm2708, %v2683, %v2685
        %v2714 = vsel %vm2708, %v2685, %v2687
        %v2715 = vsel %vm2708, %v2687, %v2689
        %v2716 = vsel %vm2708, %v2689, %v2691
        %v2717 = vsel %vm2708, %v2691, %v2693
        %v2718 = vsel %vm2708, %v2693, %v2695
        %v2719 = vsel %vm2708, %v2695, %v2697
        %v2720 = vsel %vm2708, %v2697, %v2699
        %v2721 = vsel %vm2708, %v2699, %v2701
        %v2722 = vsel %vm2708, %v2701, %v2703
        %v2723 = vsel %vm2708, %v2703, %v2705
        %v2724 = vsel %vm2708, %v2705, %v2707
        %2741 = vst [vmem:[#allocation2 + $0x300] sm:$0xc0] %v2709
        %2742 = vst [vmem:[#allocation2 + $0x308] sm:$0xc0] %v2710
        %2743 = vst [vmem:[#allocation2 + $0x310] sm:$0xc0] %v2711
        %2744 = vst [vmem:[#allocation2 + $0x318] sm:$0xc0] %v2712
        %2745 = vst [vmem:[#allocation2 + $0x320] sm:$0xc0] %v2713
        %2746 = vst [vmem:[#allocation2 + $0x328] sm:$0xc0] %v2714
        %2747 = vst [vmem:[#allocation2 + $0x330] sm:$0xc0] %v2715
        %2748 = vst [vmem:[#allocation2 + $0x338] sm:$0xc0] %v2716
        %2749 = vst [vmem:[#allocation2 + $0x340] sm:$0xc0] %v2717
        %2750 = vst [vmem:[#allocation2 + $0x348] sm:$0xc0] %v2718
        %2751 = vst [vmem:[#allocation2 + $0x350] sm:$0xc0] %v2719
        %2752 = vst [vmem:[#allocation2 + $0x358] sm:$0xc0] %v2720
        %2753 = vst [vmem:[#allocation2 + $0x360] sm:$0xc0] %v2721
        %2754 = vst [vmem:[#allocation2 + $0x368] sm:$0xc0] %v2722
        %2755 = vst [vmem:[#allocation2 + $0x370] sm:$0xc0] %v2723
        %2756 = vst [vmem:[#allocation2 + $0x378] sm:$0xc0] %v2724
        %2757 = vst [vmem:[#allocation2 + $0x380] sm:$0x1] %v2709
        %2758 = vst [vmem:[#allocation2 + $0x388] sm:$0x1] %v2710
        %2759 = vst [vmem:[#allocation2 + $0x390] sm:$0x1] %v2711
        %2760 = vst [vmem:[#allocation2 + $0x398] sm:$0x1] %v2712
        %2761 = vst [vmem:[#allocation2 + $0x3a0] sm:$0x1] %v2713
        %2762 = vst [vmem:[#allocation2 + $0x3a8] sm:$0x1] %v2714
        %2763 = vst [vmem:[#allocation2 + $0x3b0] sm:$0x1] %v2715
        %2764 = vst [vmem:[#allocation2 + $0x3b8] sm:$0x1] %v2716
        %2765 = vst [vmem:[#allocation2 + $0x3c0] sm:$0x1] %v2717
        %2766 = vst [vmem:[#allocation2 + $0x3c8] sm:$0x1] %v2718
        %2767 = vst [vmem:[#allocation2 + $0x3d0] sm:$0x1] %v2719
        %2768 = vst [vmem:[#allocation2 + $0x3d8] sm:$0x1] %v2720
        %2769 = vst [vmem:[#allocation2 + $0x3e0] sm:$0x1] %v2721
        %2770 = vst [vmem:[#allocation2 + $0x3e8] sm:$0x1] %v2722
        %2771 = vst [vmem:[#allocation2 + $0x3f0] sm:$0x1] %v2723
        %2772 = vst [vmem:[#allocation2 + $0x3f8] sm:$0x1] %v2724
        %v2773 = vld [vmem:[%s438] sm:$0x77]
        %v2774 = vld [vmem:[%s438 + $0x8] sm:$0x77]
        %v2775 = vld [vmem:[%s438 + $0x10] sm:$0x77]
        %v2776 = vld [vmem:[%s438 + $0x18] sm:$0x77]
        %v2777 = vld [vmem:[%s438 + $0x20] sm:$0x77]
        %v2778 = vld [vmem:[%s438 + $0x28] sm:$0x77]
        %v2779 = vld [vmem:[%s438 + $0x30] sm:$0x77]
        %v2780 = vld [vmem:[%s438 + $0x38] sm:$0x77]
        %v2781 = vld [vmem:[%s438 + $0x40] sm:$0x7]
        %v2791 = vcombine.high %v2773, %v2773
        %v2792 = vcombine.high %v2774, %v2774
        %v2793 = vcombine.high %v2775, %v2775
        %v2794 = vcombine.high %v2776, %v2776
        %v2795 = vcombine.high %v2777, %v2777
        %v2796 = vcombine.high %v2778, %v2778
        %v2797 = vcombine.high %v2779, %v2779
        %v2798 = vcombine.high %v2780, %v2780
        %v2799 = vrot.slane %v2773, 7
        %v2800 = vrot.slane %v2791, 7
        %v2801 = vrot.slane %v2774, 7
        %v2802 = vrot.slane %v2792, 7
        %v2803 = vrot.slane %v2775, 7
        %v2804 = vrot.slane %v2793, 7
        %v2805 = vrot.slane %v2776, 7
        %v2806 = vrot.slane %v2794, 7
        %v2807 = vrot.slane %v2777, 7
        %v2808 = vrot.slane %v2795, 7
        %v2809 = vrot.slane %v2778, 7
        %v2810 = vrot.slane %v2796, 7
        %v2811 = vrot.slane %v2779, 7
        %v2812 = vrot.slane %v2797, 7
        %v2813 = vrot.slane %v2780, 7
        %v2814 = vrot.slane %v2798, 7
        %v2815 = vrot.slane %v2781, 7
        %2816 = vrot.lane.b32.xlu0 %v2799, 28
        %v2817 = vpop.permute.xlu0 %2816
        %2818 = vrot.lane.b32.xlu0 %v2800, 28
        %v2819 = vpop.permute.xlu0 %2818
        %2820 = vrot.lane.b32.xlu0 %v2801, 28
        %v2821 = vpop.permute.xlu0 %2820
        %2822 = vrot.lane.b32.xlu0 %v2802, 28
        %v2823 = vpop.permute.xlu0 %2822
        %2824 = vrot.lane.b32.xlu0 %v2803, 28
        %v2825 = vpop.permute.xlu0 %2824
        %2826 = vrot.lane.b32.xlu0 %v2804, 28
        %v2827 = vpop.permute.xlu0 %2826
        %2828 = vrot.lane.b32.xlu0 %v2805, 28
        %v2829 = vpop.permute.xlu0 %2828
        %2830 = vrot.lane.b32.xlu0 %v2806, 28
        %v2831 = vpop.permute.xlu0 %2830
        %2832 = vrot.lane.b32.xlu0 %v2807, 28
        %v2833 = vpop.permute.xlu0 %2832
        %2834 = vrot.lane.b32.xlu0 %v2808, 28
        %v2835 = vpop.permute.xlu0 %2834
        %2836 = vrot.lane.b32.xlu0 %v2809, 28
        %v2837 = vpop.permute.xlu0 %2836
        %2838 = vrot.lane.b32.xlu0 %v2810, 28
        %v2839 = vpop.permute.xlu0 %2838
        %2840 = vrot.lane.b32.xlu0 %v2811, 28
        %v2841 = vpop.permute.xlu0 %2840
        %2842 = vrot.lane.b32.xlu0 %v2812, 28
        %v2843 = vpop.permute.xlu0 %2842
        %2844 = vrot.lane.b32.xlu0 %v2813, 28
        %v2845 = vpop.permute.xlu0 %2844
        %2846 = vrot.lane.b32.xlu0 %v2814, 28
        %v2847 = vpop.permute.xlu0 %2846
        %2848 = vrot.lane.b32.xlu0 %v2815, 28
        %v2849 = vpop.permute.xlu0 %2848
        %vm2850 = vcmask 228352
        %v2851 = vsel %vm2850, %v2817, %v2819
        %v2852 = vsel %vm2850, %v2819, %v2821
        %v2853 = vsel %vm2850, %v2821, %v2823
        %v2854 = vsel %vm2850, %v2823, %v2825
        %v2855 = vsel %vm2850, %v2825, %v2827
        %v2856 = vsel %vm2850, %v2827, %v2829
        %v2857 = vsel %vm2850, %v2829, %v2831
        %v2858 = vsel %vm2850, %v2831, %v2833
        %v2859 = vsel %vm2850, %v2833, %v2835
        %v2860 = vsel %vm2850, %v2835, %v2837
        %v2861 = vsel %vm2850, %v2837, %v2839
        %v2862 = vsel %vm2850, %v2839, %v2841
        %v2863 = vsel %vm2850, %v2841, %v2843
        %v2864 = vsel %vm2850, %v2843, %v2845
        %v2865 = vsel %vm2850, %v2845, %v2847
        %v2866 = vsel %vm2850, %v2847, %v2849
        %2883 = vst [vmem:[#allocation2 + $0x380] sm:$0xe] %v2851
        %2884 = vst [vmem:[#allocation2 + $0x388] sm:$0xe] %v2852
        %2885 = vst [vmem:[#allocation2 + $0x390] sm:$0xe] %v2853
        %2886 = vst [vmem:[#allocation2 + $0x398] sm:$0xe] %v2854
        %2887 = vst [vmem:[#allocation2 + $0x3a0] sm:$0xe] %v2855
        %2888 = vst [vmem:[#allocation2 + $0x3a8] sm:$0xe] %v2856
        %2889 = vst [vmem:[#allocation2 + $0x3b0] sm:$0xe] %v2857
        %2890 = vst [vmem:[#allocation2 + $0x3b8] sm:$0xe] %v2858
        %2891 = vst [vmem:[#allocation2 + $0x3c0] sm:$0xe] %v2859
        %2892 = vst [vmem:[#allocation2 + $0x3c8] sm:$0xe] %v2860
        %2893 = vst [vmem:[#allocation2 + $0x3d0] sm:$0xe] %v2861
        %2894 = vst [vmem:[#allocation2 + $0x3d8] sm:$0xe] %v2862
        %2895 = vst [vmem:[#allocation2 + $0x3e0] sm:$0xe] %v2863
        %2896 = vst [vmem:[#allocation2 + $0x3e8] sm:$0xe] %v2864
        %2897 = vst [vmem:[#allocation2 + $0x3f0] sm:$0xe] %v2865
        %2898 = vst [vmem:[#allocation2 + $0x3f8] sm:$0xe] %v2866
        %v2899 = vld [vmem:[%s438 + $0x4] sm:$0x77]
        %v2900 = vld [vmem:[%s438 + $0xc] sm:$0x77]
        %v2901 = vld [vmem:[%s438 + $0x14] sm:$0x77]
        %v2902 = vld [vmem:[%s438 + $0x1c] sm:$0x77]
        %v2903 = vld [vmem:[%s438 + $0x24] sm:$0x77]
        %v2904 = vld [vmem:[%s438 + $0x2c] sm:$0x77]
        %v2905 = vld [vmem:[%s438 + $0x34] sm:$0x77]
        %v2906 = vld [vmem:[%s438 + $0x3c] sm:$0x77]
        %v2915 = vcombine.low %v2899, %v2899
        %v2916 = vcombine.low %v2900, %v2900
        %v2917 = vcombine.low %v2901, %v2901
        %v2918 = vcombine.low %v2902, %v2902
        %v2919 = vcombine.low %v2903, %v2903
        %v2920 = vcombine.low %v2904, %v2904
        %v2921 = vcombine.low %v2905, %v2905
        %v2922 = vcombine.low %v2906, %v2906
        %2931 = vst [vmem:[#allocation2 + $0x380] sm:$0x70] %v2915
        %2932 = vst [vmem:[#allocation2 + $0x388] sm:$0x70] %v2899
        %2933 = vst [vmem:[#allocation2 + $0x390] sm:$0x70] %v2916
        %2934 = vst [vmem:[#allocation2 + $0x398] sm:$0x70] %v2900
        %2935 = vst [vmem:[#allocation2 + $0x3a0] sm:$0x70] %v2917
        %2936 = vst [vmem:[#allocation2 + $0x3a8] sm:$0x70] %v2901
        %2937 = vst [vmem:[#allocation2 + $0x3b0] sm:$0x70] %v2918
        %2938 = vst [vmem:[#allocation2 + $0x3b8] sm:$0x70] %v2902
        %2939 = vst [vmem:[#allocation2 + $0x3c0] sm:$0x70] %v2919
        %2940 = vst [vmem:[#allocation2 + $0x3c8] sm:$0x70] %v2903
        %2941 = vst [vmem:[#allocation2 + $0x3d0] sm:$0x70] %v2920
        %2942 = vst [vmem:[#allocation2 + $0x3d8] sm:$0x70] %v2904
        %2943 = vst [vmem:[#allocation2 + $0x3e0] sm:$0x70] %v2921
        %2944 = vst [vmem:[#allocation2 + $0x3e8] sm:$0x70] %v2905
        %2945 = vst [vmem:[#allocation2 + $0x3f0] sm:$0x70] %v2922
        %2946 = vst [vmem:[#allocation2 + $0x3f8] sm:$0x70] %v2906
        %v2947 = vld [vmem:[%s438 + $0x4] sm:$0x77]
        %v2948 = vld [vmem:[%s438 + $0xc] sm:$0x77]
        %v2949 = vld [vmem:[%s438 + $0x14] sm:$0x77]
        %v2950 = vld [vmem:[%s438 + $0x1c] sm:$0x77]
        %v2951 = vld [vmem:[%s438 + $0x24] sm:$0x77]
        %v2952 = vld [vmem:[%s438 + $0x2c] sm:$0x77]
        %v2953 = vld [vmem:[%s438 + $0x34] sm:$0x77]
        %v2954 = vld [vmem:[%s438 + $0x3c] sm:$0x77]
        %v2955 = vld [vmem:[%s438 + $0x44] sm:$0x7]
        %v2965 = vcombine.high %v2947, %v2947
        %v2966 = vcombine.high %v2948, %v2948
        %v2967 = vcombine.high %v2949, %v2949
        %v2968 = vcombine.high %v2950, %v2950
        %v2969 = vcombine.high %v2951, %v2951
        %v2970 = vcombine.high %v2952, %v2952
        %v2971 = vcombine.high %v2953, %v2953
        %v2972 = vcombine.high %v2954, %v2954
        %v2973 = vrot.slane %v2947, 1
        %v2974 = vrot.slane %v2965, 1
        %v2975 = vrot.slane %v2948, 1
        %v2976 = vrot.slane %v2966, 1
        %v2977 = vrot.slane %v2949, 1
        %v2978 = vrot.slane %v2967, 1
        %v2979 = vrot.slane %v2950, 1
        %v2980 = vrot.slane %v2968, 1
        %v2981 = vrot.slane %v2951, 1
        %v2982 = vrot.slane %v2969, 1
        %v2983 = vrot.slane %v2952, 1
        %v2984 = vrot.slane %v2970, 1
        %v2985 = vrot.slane %v2953, 1
        %v2986 = vrot.slane %v2971, 1
        %v2987 = vrot.slane %v2954, 1
        %v2988 = vrot.slane %v2972, 1
        %v2989 = vrot.slane %v2955, 1
        %2990 = vrot.lane.b32.xlu0 %v2973, 127
        %v2991 = vpop.permute.xlu0 %2990
        %2992 = vrot.lane.b32.xlu0 %v2974, 127
        %v2993 = vpop.permute.xlu0 %2992
        %2994 = vrot.lane.b32.xlu0 %v2975, 127
        %v2995 = vpop.permute.xlu0 %2994
        %2996 = vrot.lane.b32.xlu0 %v2976, 127
        %v2997 = vpop.permute.xlu0 %2996
        %2998 = vrot.lane.b32.xlu0 %v2977, 127
        %v2999 = vpop.permute.xlu0 %2998
        %3000 = vrot.lane.b32.xlu0 %v2978, 127
        %v3001 = vpop.permute.xlu0 %3000
        %3002 = vrot.lane.b32.xlu0 %v2979, 127
        %v3003 = vpop.permute.xlu0 %3002
        %3004 = vrot.lane.b32.xlu0 %v2980, 127
        %v3005 = vpop.permute.xlu0 %3004
        %3006 = vrot.lane.b32.xlu0 %v2981, 127
        %v3007 = vpop.permute.xlu0 %3006
        %3008 = vrot.lane.b32.xlu0 %v2982, 127
        %v3009 = vpop.permute.xlu0 %3008
        %3010 = vrot.lane.b32.xlu0 %v2983, 127
        %v3011 = vpop.permute.xlu0 %3010
        %3012 = vrot.lane.b32.xlu0 %v2984, 127
        %v3013 = vpop.permute.xlu0 %3012
        %3014 = vrot.lane.b32.xlu0 %v2985, 127
        %v3015 = vpop.permute.xlu0 %3014
        %3016 = vrot.lane.b32.xlu0 %v2986, 127
        %v3017 = vpop.permute.xlu0 %3016
        %3018 = vrot.lane.b32.xlu0 %v2987, 127
        %v3019 = vpop.permute.xlu0 %3018
        %3020 = vrot.lane.b32.xlu0 %v2988, 127
        %v3021 = vpop.permute.xlu0 %3020
        %3022 = vrot.lane.b32.xlu0 %v2989, 127
        %v3023 = vpop.permute.xlu0 %3022
        %v3024 = vsel %vm568, %v2991, %v2993
        %v3025 = vsel %vm568, %v2993, %v2995
        %v3026 = vsel %vm568, %v2995, %v2997
        %v3027 = vsel %vm568, %v2997, %v2999
        %v3028 = vsel %vm568, %v2999, %v3001
        %v3029 = vsel %vm568, %v3001, %v3003
        %v3030 = vsel %vm568, %v3003, %v3005
        %v3031 = vsel %vm568, %v3005, %v3007
        %v3032 = vsel %vm568, %v3007, %v3009
        %v3033 = vsel %vm568, %v3009, %v3011
        %v3034 = vsel %vm568, %v3011, %v3013
        %v3035 = vsel %vm568, %v3013, %v3015
        %v3036 = vsel %vm568, %v3015, %v3017
        %v3037 = vsel %vm568, %v3017, %v3019
        %v3038 = vsel %vm568, %v3019, %v3021
        %v3039 = vsel %vm568, %v3021, %v3023
        %3056 = vst [vmem:[#allocation2 + $0x380] sm:$0x80] %v3024
        %3057 = vst [vmem:[#allocation2 + $0x388] sm:$0x80] %v3025
        %3058 = vst [vmem:[#allocation2 + $0x390] sm:$0x80] %v3026
        %3059 = vst [vmem:[#allocation2 + $0x398] sm:$0x80] %v3027
        %3060 = vst [vmem:[#allocation2 + $0x3a0] sm:$0x80] %v3028
        %3061 = vst [vmem:[#allocation2 + $0x3a8] sm:$0x80] %v3029
        %3062 = vst [vmem:[#allocation2 + $0x3b0] sm:$0x80] %v3030
        %3063 = vst [vmem:[#allocation2 + $0x3b8] sm:$0x80] %v3031
        %3064 = vst [vmem:[#allocation2 + $0x3c0] sm:$0x80] %v3032
        %3065 = vst [vmem:[#allocation2 + $0x3c8] sm:$0x80] %v3033
        %3066 = vst [vmem:[#allocation2 + $0x3d0] sm:$0x80] %v3034
        %3067 = vst [vmem:[#allocation2 + $0x3d8] sm:$0x80] %v3035
        %3068 = vst [vmem:[#allocation2 + $0x3e0] sm:$0x80] %v3036
        %3069 = vst [vmem:[#allocation2 + $0x3e8] sm:$0x80] %v3037
        %3070 = vst [vmem:[#allocation2 + $0x3f0] sm:$0x80] %v3038
        %3071 = vst [vmem:[#allocation2 + $0x3f8] sm:$0x80] %v3039
        %3072 = vst [vmem:[#allocation2 + $0x400] sm:$0x3] %v3024
        %3073 = vst [vmem:[#allocation2 + $0x408] sm:$0x3] %v3025
        %3074 = vst [vmem:[#allocation2 + $0x410] sm:$0x3] %v3026
        %3075 = vst [vmem:[#allocation2 + $0x418] sm:$0x3] %v3027
        %3076 = vst [vmem:[#allocation2 + $0x420] sm:$0x3] %v3028
        %3077 = vst [vmem:[#allocation2 + $0x428] sm:$0x3] %v3029
        %3078 = vst [vmem:[#allocation2 + $0x430] sm:$0x3] %v3030
        %3079 = vst [vmem:[#allocation2 + $0x438] sm:$0x3] %v3031
        %3080 = vst [vmem:[#allocation2 + $0x440] sm:$0x3] %v3032
        %3081 = vst [vmem:[#allocation2 + $0x448] sm:$0x3] %v3033
        %3082 = vst [vmem:[#allocation2 + $0x450] sm:$0x3] %v3034
        %3083 = vst [vmem:[#allocation2 + $0x458] sm:$0x3] %v3035
        %3084 = vst [vmem:[#allocation2 + $0x460] sm:$0x3] %v3036
        %3085 = vst [vmem:[#allocation2 + $0x468] sm:$0x3] %v3037
        %3086 = vst [vmem:[#allocation2 + $0x470] sm:$0x3] %v3038
        %3087 = vst [vmem:[#allocation2 + $0x478] sm:$0x3] %v3039
        %v3088 = vld [vmem:[%s438 + $0x4] sm:$0x77]
        %v3089 = vld [vmem:[%s438 + $0xc] sm:$0x77]
        %v3090 = vld [vmem:[%s438 + $0x14] sm:$0x77]
        %v3091 = vld [vmem:[%s438 + $0x1c] sm:$0x77]
        %v3092 = vld [vmem:[%s438 + $0x24] sm:$0x77]
        %v3093 = vld [vmem:[%s438 + $0x2c] sm:$0x77]
        %v3094 = vld [vmem:[%s438 + $0x34] sm:$0x77]
        %v3095 = vld [vmem:[%s438 + $0x3c] sm:$0x77]
        %v3096 = vld [vmem:[%s438 + $0x44] sm:$0x7]
        %v3106 = vcombine.high %v3088, %v3088
        %v3107 = vcombine.high %v3089, %v3089
        %v3108 = vcombine.high %v3090, %v3090
        %v3109 = vcombine.high %v3091, %v3091
        %v3110 = vcombine.high %v3092, %v3092
        %v3111 = vcombine.high %v3093, %v3093
        %v3112 = vcombine.high %v3094, %v3094
        %v3113 = vcombine.high %v3095, %v3095
        %v3114 = vrot.slane %v3088, 6
        %v3115 = vrot.slane %v3106, 6
        %v3116 = vrot.slane %v3089, 6
        %v3117 = vrot.slane %v3107, 6
        %v3118 = vrot.slane %v3090, 6
        %v3119 = vrot.slane %v3108, 6
        %v3120 = vrot.slane %v3091, 6
        %v3121 = vrot.slane %v3109, 6
        %v3122 = vrot.slane %v3092, 6
        %v3123 = vrot.slane %v3110, 6
        %v3124 = vrot.slane %v3093, 6
        %v3125 = vrot.slane %v3111, 6
        %v3126 = vrot.slane %v3094, 6
        %v3127 = vrot.slane %v3112, 6
        %v3128 = vrot.slane %v3095, 6
        %v3129 = vrot.slane %v3113, 6
        %v3130 = vrot.slane %v3096, 6
        %3131 = vrot.lane.b32.xlu0 %v3114, 126
        %v3132 = vpop.permute.xlu0 %3131
        %3133 = vrot.lane.b32.xlu0 %v3115, 126
        %v3134 = vpop.permute.xlu0 %3133
        %3135 = vrot.lane.b32.xlu0 %v3116, 126
        %v3136 = vpop.permute.xlu0 %3135
        %3137 = vrot.lane.b32.xlu0 %v3117, 126
        %v3138 = vpop.permute.xlu0 %3137
        %3139 = vrot.lane.b32.xlu0 %v3118, 126
        %v3140 = vpop.permute.xlu0 %3139
        %3141 = vrot.lane.b32.xlu0 %v3119, 126
        %v3142 = vpop.permute.xlu0 %3141
        %3143 = vrot.lane.b32.xlu0 %v3120, 126
        %v3144 = vpop.permute.xlu0 %3143
        %3145 = vrot.lane.b32.xlu0 %v3121, 126
        %v3146 = vpop.permute.xlu0 %3145
        %3147 = vrot.lane.b32.xlu0 %v3122, 126
        %v3148 = vpop.permute.xlu0 %3147
        %3149 = vrot.lane.b32.xlu0 %v3123, 126
        %v3150 = vpop.permute.xlu0 %3149
        %3151 = vrot.lane.b32.xlu0 %v3124, 126
        %v3152 = vpop.permute.xlu0 %3151
        %3153 = vrot.lane.b32.xlu0 %v3125, 126
        %v3154 = vpop.permute.xlu0 %3153
        %3155 = vrot.lane.b32.xlu0 %v3126, 126
        %v3156 = vpop.permute.xlu0 %3155
        %3157 = vrot.lane.b32.xlu0 %v3127, 126
        %v3158 = vpop.permute.xlu0 %3157
        %3159 = vrot.lane.b32.xlu0 %v3128, 126
        %v3160 = vpop.permute.xlu0 %3159
        %3161 = vrot.lane.b32.xlu0 %v3129, 126
        %v3162 = vpop.permute.xlu0 %3161
        %3163 = vrot.lane.b32.xlu0 %v3130, 126
        %v3164 = vpop.permute.xlu0 %3163
        %v3165 = vsel %vm694, %v3132, %v3134
        %v3166 = vsel %vm694, %v3134, %v3136
        %v3167 = vsel %vm694, %v3136, %v3138
        %v3168 = vsel %vm694, %v3138, %v3140
        %v3169 = vsel %vm694, %v3140, %v3142
        %v3170 = vsel %vm694, %v3142, %v3144
        %v3171 = vsel %vm694, %v3144, %v3146
        %v3172 = vsel %vm694, %v3146, %v3148
        %v3173 = vsel %vm694, %v3148, %v3150
        %v3174 = vsel %vm694, %v3150, %v3152
        %v3175 = vsel %vm694, %v3152, %v3154
        %v3176 = vsel %vm694, %v3154, %v3156
        %v3177 = vsel %vm694, %v3156, %v3158
        %v3178 = vsel %vm694, %v3158, %v3160
        %v3179 = vsel %vm694, %v3160, %v3162
        %v3180 = vsel %vm694, %v3162, %v3164
        %3197 = vst [vmem:[#allocation2 + $0x400] sm:$0x1c] %v3165
        %3198 = vst [vmem:[#allocation2 + $0x408] sm:$0x1c] %v3166
        %3199 = vst [vmem:[#allocation2 + $0x410] sm:$0x1c] %v3167
        %3200 = vst [vmem:[#allocation2 + $0x418] sm:$0x1c] %v3168
        %3201 = vst [vmem:[#allocation2 + $0x420] sm:$0x1c] %v3169
        %3202 = vst [vmem:[#allocation2 + $0x428] sm:$0x1c] %v3170
        %3203 = vst [vmem:[#allocation2 + $0x430] sm:$0x1c] %v3171
        %3204 = vst [vmem:[#allocation2 + $0x438] sm:$0x1c] %v3172
        %3205 = vst [vmem:[#allocation2 + $0x440] sm:$0x1c] %v3173
        %3206 = vst [vmem:[#allocation2 + $0x448] sm:$0x1c] %v3174
        %3207 = vst [vmem:[#allocation2 + $0x450] sm:$0x1c] %v3175
        %3208 = vst [vmem:[#allocation2 + $0x458] sm:$0x1c] %v3176
        %3209 = vst [vmem:[#allocation2 + $0x460] sm:$0x1c] %v3177
        %3210 = vst [vmem:[#allocation2 + $0x468] sm:$0x1c] %v3178
        %3211 = vst [vmem:[#allocation2 + $0x470] sm:$0x1c] %v3179
        %3212 = vst [vmem:[#allocation2 + $0x478] sm:$0x1c] %v3180
        %v3213 = vld [vmem:[%s438 + $0x4] sm:$0x77]
        %v3214 = vld [vmem:[%s438 + $0xc] sm:$0x77]
        %v3215 = vld [vmem:[%s438 + $0x14] sm:$0x77]
        %v3216 = vld [vmem:[%s438 + $0x1c] sm:$0x77]
        %v3217 = vld [vmem:[%s438 + $0x24] sm:$0x77]
        %v3218 = vld [vmem:[%s438 + $0x2c] sm:$0x77]
        %v3219 = vld [vmem:[%s438 + $0x34] sm:$0x77]
        %v3220 = vld [vmem:[%s438 + $0x3c] sm:$0x77]
        %v3221 = vld [vmem:[%s438 + $0x44] sm:$0x7]
        %v3231 = vcombine.high %v3213, %v3213
        %v3232 = vcombine.high %v3214, %v3214
        %v3233 = vcombine.high %v3215, %v3215
        %v3234 = vcombine.high %v3216, %v3216
        %v3235 = vcombine.high %v3217, %v3217
        %v3236 = vcombine.high %v3218, %v3218
        %v3237 = vcombine.high %v3219, %v3219
        %v3238 = vcombine.high %v3220, %v3220
        %v3239 = vrot.slane %v3213, 3
        %v3240 = vrot.slane %v3231, 3
        %v3241 = vrot.slane %v3214, 3
        %v3242 = vrot.slane %v3232, 3
        %v3243 = vrot.slane %v3215, 3
        %v3244 = vrot.slane %v3233, 3
        %v3245 = vrot.slane %v3216, 3
        %v3246 = vrot.slane %v3234, 3
        %v3247 = vrot.slane %v3217, 3
        %v3248 = vrot.slane %v3235, 3
        %v3249 = vrot.slane %v3218, 3
        %v3250 = vrot.slane %v3236, 3
        %v3251 = vrot.slane %v3219, 3
        %v3252 = vrot.slane %v3237, 3
        %v3253 = vrot.slane %v3220, 3
        %v3254 = vrot.slane %v3238, 3
        %v3255 = vrot.slane %v3221, 3
        %3256 = vrot.lane.b32.xlu0 %v3239, 125
        %v3257 = vpop.permute.xlu0 %3256
        %3258 = vrot.lane.b32.xlu0 %v3240, 125
        %v3259 = vpop.permute.xlu0 %3258
        %3260 = vrot.lane.b32.xlu0 %v3241, 125
        %v3261 = vpop.permute.xlu0 %3260
        %3262 = vrot.lane.b32.xlu0 %v3242, 125
        %v3263 = vpop.permute.xlu0 %3262
        %3264 = vrot.lane.b32.xlu0 %v3243, 125
        %v3265 = vpop.permute.xlu0 %3264
        %3266 = vrot.lane.b32.xlu0 %v3244, 125
        %v3267 = vpop.permute.xlu0 %3266
        %3268 = vrot.lane.b32.xlu0 %v3245, 125
        %v3269 = vpop.permute.xlu0 %3268
        %3270 = vrot.lane.b32.xlu0 %v3246, 125
        %v3271 = vpop.permute.xlu0 %3270
        %3272 = vrot.lane.b32.xlu0 %v3247, 125
        %v3273 = vpop.permute.xlu0 %3272
        %3274 = vrot.lane.b32.xlu0 %v3248, 125
        %v3275 = vpop.permute.xlu0 %3274
        %3276 = vrot.lane.b32.xlu0 %v3249, 125
        %v3277 = vpop.permute.xlu0 %3276
        %3278 = vrot.lane.b32.xlu0 %v3250, 125
        %v3279 = vpop.permute.xlu0 %3278
        %3280 = vrot.lane.b32.xlu0 %v3251, 125
        %v3281 = vpop.permute.xlu0 %3280
        %3282 = vrot.lane.b32.xlu0 %v3252, 125
        %v3283 = vpop.permute.xlu0 %3282
        %3284 = vrot.lane.b32.xlu0 %v3253, 125
        %v3285 = vpop.permute.xlu0 %3284
        %3286 = vrot.lane.b32.xlu0 %v3254, 125
        %v3287 = vpop.permute.xlu0 %3286
        %3288 = vrot.lane.b32.xlu0 %v3255, 125
        %v3289 = vpop.permute.xlu0 %3288
        %v3290 = vsel %vm836, %v3257, %v3259
        %v3291 = vsel %vm836, %v3259, %v3261
        %v3292 = vsel %vm836, %v3261, %v3263
        %v3293 = vsel %vm836, %v3263, %v3265
        %v3294 = vsel %vm836, %v3265, %v3267
        %v3295 = vsel %vm836, %v3267, %v3269
        %v3296 = vsel %vm836, %v3269, %v3271
        %v3297 = vsel %vm836, %v3271, %v3273
        %v3298 = vsel %vm836, %v3273, %v3275
        %v3299 = vsel %vm836, %v3275, %v3277
        %v3300 = vsel %vm836, %v3277, %v3279
        %v3301 = vsel %vm836, %v3279, %v3281
        %v3302 = vsel %vm836, %v3281, %v3283
        %v3303 = vsel %vm836, %v3283, %v3285
        %v3304 = vsel %vm836, %v3285, %v3287
        %v3305 = vsel %vm836, %v3287, %v3289
        %3322 = vst [vmem:[#allocation2 + $0x400] sm:$0xe0] %v3290
        %3323 = vst [vmem:[#allocation2 + $0x408] sm:$0xe0] %v3291
        %3324 = vst [vmem:[#allocation2 + $0x410] sm:$0xe0] %v3292
        %3325 = vst [vmem:[#allocation2 + $0x418] sm:$0xe0] %v3293
        %3326 = vst [vmem:[#allocation2 + $0x420] sm:$0xe0] %v3294
        %3327 = vst [vmem:[#allocation2 + $0x428] sm:$0xe0] %v3295
        %3328 = vst [vmem:[#allocation2 + $0x430] sm:$0xe0] %v3296
        %3329 = vst [vmem:[#allocation2 + $0x438] sm:$0xe0] %v3297
        %3330 = vst [vmem:[#allocation2 + $0x440] sm:$0xe0] %v3298
        %3331 = vst [vmem:[#allocation2 + $0x448] sm:$0xe0] %v3299
        %3332 = vst [vmem:[#allocation2 + $0x450] sm:$0xe0] %v3300
        %3333 = vst [vmem:[#allocation2 + $0x458] sm:$0xe0] %v3301
        %3334 = vst [vmem:[#allocation2 + $0x460] sm:$0xe0] %v3302
        %3335 = vst [vmem:[#allocation2 + $0x468] sm:$0xe0] %v3303
        %3336 = vst [vmem:[#allocation2 + $0x470] sm:$0xe0] %v3304
        %3337 = vst [vmem:[#allocation2 + $0x478] sm:$0xe0] %v3305
        %v3338 = vld [vmem:[%s438 + $0x4] sm:$0x77]
        %v3339 = vld [vmem:[%s438 + $0xc] sm:$0x77]
        %v3340 = vld [vmem:[%s438 + $0x14] sm:$0x77]
        %v3341 = vld [vmem:[%s438 + $0x1c] sm:$0x77]
        %v3342 = vld [vmem:[%s438 + $0x24] sm:$0x77]
        %v3343 = vld [vmem:[%s438 + $0x2c] sm:$0x77]
        %v3344 = vld [vmem:[%s438 + $0x34] sm:$0x77]
        %v3345 = vld [vmem:[%s438 + $0x3c] sm:$0x77]
        %v3346 = vld [vmem:[%s438 + $0x44] sm:$0x7]
        %v3356 = vcombine.high %v3338, %v3338
        %v3357 = vcombine.high %v3339, %v3339
        %v3358 = vcombine.high %v3340, %v3340
        %v3359 = vcombine.high %v3341, %v3341
        %v3360 = vcombine.high %v3342, %v3342
        %v3361 = vcombine.high %v3343, %v3343
        %v3362 = vcombine.high %v3344, %v3344
        %v3363 = vcombine.high %v3345, %v3345
        %3364 = vrot.lane.b32.xlu0 %v3338, 124
        %v3365 = vpop.permute.xlu0 %3364
        %3366 = vrot.lane.b32.xlu0 %v3356, 124
        %v3367 = vpop.permute.xlu0 %3366
        %3368 = vrot.lane.b32.xlu0 %v3339, 124
        %v3369 = vpop.permute.xlu0 %3368
        %3370 = vrot.lane.b32.xlu0 %v3357, 124
        %v3371 = vpop.permute.xlu0 %3370
        %3372 = vrot.lane.b32.xlu0 %v3340, 124
        %v3373 = vpop.permute.xlu0 %3372
        %3374 = vrot.lane.b32.xlu0 %v3358, 124
        %v3375 = vpop.permute.xlu0 %3374
        %3376 = vrot.lane.b32.xlu0 %v3341, 124
        %v3377 = vpop.permute.xlu0 %3376
        %3378 = vrot.lane.b32.xlu0 %v3359, 124
        %v3379 = vpop.permute.xlu0 %3378
        %3380 = vrot.lane.b32.xlu0 %v3342, 124
        %v3381 = vpop.permute.xlu0 %3380
        %3382 = vrot.lane.b32.xlu0 %v3360, 124
        %v3383 = vpop.permute.xlu0 %3382
        %3384 = vrot.lane.b32.xlu0 %v3343, 124
        %v3385 = vpop.permute.xlu0 %3384
        %3386 = vrot.lane.b32.xlu0 %v3361, 124
        %v3387 = vpop.permute.xlu0 %3386
        %3388 = vrot.lane.b32.xlu0 %v3344, 124
        %v3389 = vpop.permute.xlu0 %3388
        %3390 = vrot.lane.b32.xlu0 %v3362, 124
        %v3391 = vpop.permute.xlu0 %3390
        %3392 = vrot.lane.b32.xlu0 %v3345, 124
        %v3393 = vpop.permute.xlu0 %3392
        %3394 = vrot.lane.b32.xlu0 %v3363, 124
        %v3395 = vpop.permute.xlu0 %3394
        %3396 = vrot.lane.b32.xlu0 %v3346, 124
        %v3397 = vpop.permute.xlu0 %3396
        %v3398 = vsel %vm946, %v3365, %v3367
        %v3399 = vsel %vm946, %v3367, %v3369
        %v3400 = vsel %vm946, %v3369, %v3371
        %v3401 = vsel %vm946, %v3371, %v3373
        %v3402 = vsel %vm946, %v3373, %v3375
        %v3403 = vsel %vm946, %v3375, %v3377
        %v3404 = vsel %vm946, %v3377, %v3379
        %v3405 = vsel %vm946, %v3379, %v3381
        %v3406 = vsel %vm946, %v3381, %v3383
        %v3407 = vsel %vm946, %v3383, %v3385
        %v3408 = vsel %vm946, %v3385, %v3387
        %v3409 = vsel %vm946, %v3387, %v3389
        %v3410 = vsel %vm946, %v3389, %v3391
        %v3411 = vsel %vm946, %v3391, %v3393
        %v3412 = vsel %vm946, %v3393, %v3395
        %v3413 = vsel %vm946, %v3395, %v3397
        %3430 = vst [vmem:[#allocation2 + $0x480] sm:$0x7] %v3398
        %3431 = vst [vmem:[#allocation2 + $0x488] sm:$0x7] %v3399
        %3432 = vst [vmem:[#allocation2 + $0x490] sm:$0x7] %v3400
        %3433 = vst [vmem:[#allocation2 + $0x498] sm:$0x7] %v3401
        %3434 = vst [vmem:[#allocation2 + $0x4a0] sm:$0x7] %v3402
        %3435 = vst [vmem:[#allocation2 + $0x4a8] sm:$0x7] %v3403
        %3436 = vst [vmem:[#allocation2 + $0x4b0] sm:$0x7] %v3404
        %3437 = vst [vmem:[#allocation2 + $0x4b8] sm:$0x7] %v3405
        %3438 = vst [vmem:[#allocation2 + $0x4c0] sm:$0x7] %v3406
        %3439 = vst [vmem:[#allocation2 + $0x4c8] sm:$0x7] %v3407
        %3440 = vst [vmem:[#allocation2 + $0x4d0] sm:$0x7] %v3408
        %3441 = vst [vmem:[#allocation2 + $0x4d8] sm:$0x7] %v3409
        %3442 = vst [vmem:[#allocation2 + $0x4e0] sm:$0x7] %v3410
        %3443 = vst [vmem:[#allocation2 + $0x4e8] sm:$0x7] %v3411
        %3444 = vst [vmem:[#allocation2 + $0x4f0] sm:$0x7] %v3412
        %3445 = vst [vmem:[#allocation2 + $0x4f8] sm:$0x7] %v3413
        %v3446 = vld [vmem:[%s1] sm:$0x3f]
        %v3447 = vld [vmem:[#allocation2] sm:$0xff]
        %v3448 = vld [vmem:[#allocation2 + $0x8] sm:$0xff]
        %v3449 = vld [vmem:[#allocation2 + $0x10] sm:$0xff]
        %v3450 = vld [vmem:[#allocation2 + $0x18] sm:$0xff]
        %v3451 = vld [vmem:[#allocation2 + $0x20] sm:$0xff]
        %v3452 = vld [vmem:[#allocation2 + $0x28] sm:$0xff]
        %v3453 = vld [vmem:[#allocation2 + $0x30] sm:$0xff]
        %v3454 = vld [vmem:[#allocation2 + $0x38] sm:$0xff]
        %v3455 = vld [vmem:[#allocation2 + $0x40] sm:$0xff]
        %v3456 = vld [vmem:[#allocation2 + $0x48] sm:$0xff]
        %v3457 = vld [vmem:[#allocation2 + $0x50] sm:$0xff]
        %v3458 = vld [vmem:[#allocation2 + $0x58] sm:$0xff]
        %v3459 = vld [vmem:[#allocation2 + $0x60] sm:$0xff]
        %v3460 = vld [vmem:[#allocation2 + $0x68] sm:$0xff]
        %v3461 = vld [vmem:[#allocation2 + $0x70] sm:$0xff]
        %v3462 = vld [vmem:[#allocation2 + $0x78] sm:$0xff]
        %v3463 = vld [vmem:[#allocation2 + $0x80] sm:$0xff]
        %v3464 = vld [vmem:[#allocation2 + $0x88] sm:$0xff]
        %v3465 = vld [vmem:[#allocation2 + $0x90] sm:$0xff]
        %v3466 = vld [vmem:[#allocation2 + $0x98] sm:$0xff]
        %v3467 = vld [vmem:[#allocation2 + $0xa0] sm:$0xff]
        %v3468 = vld [vmem:[#allocation2 + $0xa8] sm:$0xff]
        %v3469 = vld [vmem:[#allocation2 + $0xb0] sm:$0xff]
        %v3470 = vld [vmem:[#allocation2 + $0xb8] sm:$0xff]
        %v3471 = vld [vmem:[#allocation2 + $0xc0] sm:$0xff]
        %v3472 = vld [vmem:[#allocation2 + $0xc8] sm:$0xff]
        %v3473 = vld [vmem:[#allocation2 + $0xd0] sm:$0xff]
        %v3474 = vld [vmem:[#allocation2 + $0xd8] sm:$0xff]
        %v3475 = vld [vmem:[#allocation2 + $0xe0] sm:$0xff]
        %v3476 = vld [vmem:[#allocation2 + $0xe8] sm:$0xff]
        %v3477 = vld [vmem:[#allocation2 + $0xf0] sm:$0xff]
        %v3478 = vld [vmem:[#allocation2 + $0xf8] sm:$0xff]
        %v3479 = vld [vmem:[#allocation2 + $0x100] sm:$0xff]
        %v3480 = vld [vmem:[#allocation2 + $0x108] sm:$0xff]
        %v3481 = vld [vmem:[#allocation2 + $0x110] sm:$0xff]
        %v3482 = vld [vmem:[#allocation2 + $0x118] sm:$0xff]
        %v3483 = vld [vmem:[#allocation2 + $0x120] sm:$0xff]
        %v3484 = vld [vmem:[#allocation2 + $0x128] sm:$0xff]
        %v3485 = vld [vmem:[#allocation2 + $0x130] sm:$0xff]
        %v3486 = vld [vmem:[#allocation2 + $0x138] sm:$0xff]
        %v3487 = vld [vmem:[#allocation2 + $0x140] sm:$0xff]
        %v3488 = vld [vmem:[#allocation2 + $0x148] sm:$0xff]
        %v3489 = vld [vmem:[#allocation2 + $0x150] sm:$0xff]
        %v3490 = vld [vmem:[#allocation2 + $0x158] sm:$0xff]
        %v3491 = vld [vmem:[#allocation2 + $0x160] sm:$0xff]
        %v3492 = vld [vmem:[#allocation2 + $0x168] sm:$0xff]
        %v3493 = vld [vmem:[#allocation2 + $0x170] sm:$0xff]
        %v3494 = vld [vmem:[#allocation2 + $0x178] sm:$0xff]
        %v3495 = vld [vmem:[#allocation2 + $0x180] sm:$0xff]
        %v3496 = vld [vmem:[#allocation2 + $0x188] sm:$0xff]
        %v3497 = vld [vmem:[#allocation2 + $0x190] sm:$0xff]
        %v3498 = vld [vmem:[#allocation2 + $0x198] sm:$0xff]
        %v3499 = vld [vmem:[#allocation2 + $0x1a0] sm:$0xff]
        %v3500 = vld [vmem:[#allocation2 + $0x1a8] sm:$0xff]
        %v3501 = vld [vmem:[#allocation2 + $0x1b0] sm:$0xff]
        %v3502 = vld [vmem:[#allocation2 + $0x1b8] sm:$0xff]
        %v3503 = vld [vmem:[#allocation2 + $0x1c0] sm:$0xff]
        %v3504 = vld [vmem:[#allocation2 + $0x1c8] sm:$0xff]
        %v3505 = vld [vmem:[#allocation2 + $0x1d0] sm:$0xff]
        %v3506 = vld [vmem:[#allocation2 + $0x1d8] sm:$0xff]
        %v3507 = vld [vmem:[#allocation2 + $0x1e0] sm:$0xff]
        %v3508 = vld [vmem:[#allocation2 + $0x1e8] sm:$0xff]
        %v3509 = vld [vmem:[#allocation2 + $0x1f0] sm:$0xff]
        %v3510 = vld [vmem:[#allocation2 + $0x1f8] sm:$0xff]
        %v3511 = vld [vmem:[#allocation2 + $0x200] sm:$0xff]
        %v3512 = vld [vmem:[#allocation2 + $0x208] sm:$0xff]
        %v3513 = vld [vmem:[#allocation2 + $0x210] sm:$0xff]
        %v3514 = vld [vmem:[#allocation2 + $0x218] sm:$0xff]
        %v3515 = vld [vmem:[#allocation2 + $0x220] sm:$0xff]
        %v3516 = vld [vmem:[#allocation2 + $0x228] sm:$0xff]
        %v3517 = vld [vmem:[#allocation2 + $0x230] sm:$0xff]
        %v3518 = vld [vmem:[#allocation2 + $0x238] sm:$0xff]
        %v3519 = vld [vmem:[#allocation2 + $0x240] sm:$0xff]
        %v3520 = vld [vmem:[#allocation2 + $0x248] sm:$0xff]
        %v3521 = vld [vmem:[#allocation2 + $0x250] sm:$0xff]
        %v3522 = vld [vmem:[#allocation2 + $0x258] sm:$0xff]
        %v3523 = vld [vmem:[#allocation2 + $0x260] sm:$0xff]
        %v3524 = vld [vmem:[#allocation2 + $0x268] sm:$0xff]
        %v3525 = vld [vmem:[#allocation2 + $0x270] sm:$0xff]
        %v3526 = vld [vmem:[#allocation2 + $0x278] sm:$0xff]
        %v3527 = vld [vmem:[#allocation2 + $0x280] sm:$0xff]
        %v3528 = vld [vmem:[#allocation2 + $0x288] sm:$0xff]
        %v3529 = vld [vmem:[#allocation2 + $0x290] sm:$0xff]
        %v3530 = vld [vmem:[#allocation2 + $0x298] sm:$0xff]
        %v3531 = vld [vmem:[#allocation2 + $0x2a0] sm:$0xff]
        %v3532 = vld [vmem:[#allocation2 + $0x2a8] sm:$0xff]
        %v3533 = vld [vmem:[#allocation2 + $0x2b0] sm:$0xff]
        %v3534 = vld [vmem:[#allocation2 + $0x2b8] sm:$0xff]
        %v3535 = vld [vmem:[#allocation2 + $0x2c0] sm:$0xff]
        %v3536 = vld [vmem:[#allocation2 + $0x2c8] sm:$0xff]
        %v3537 = vld [vmem:[#allocation2 + $0x2d0] sm:$0xff]
        %v3538 = vld [vmem:[#allocation2 + $0x2d8] sm:$0xff]
        %v3539 = vld [vmem:[#allocation2 + $0x2e0] sm:$0xff]
        %v3540 = vld [vmem:[#allocation2 + $0x2e8] sm:$0xff]
        %v3541 = vld [vmem:[#allocation2 + $0x2f0] sm:$0xff]
        %v3542 = vld [vmem:[#allocation2 + $0x2f8] sm:$0xff]
        %v3543 = vld [vmem:[#allocation2 + $0x300] sm:$0xff]
        %v3544 = vld [vmem:[#allocation2 + $0x308] sm:$0xff]
        %v3545 = vld [vmem:[#allocation2 + $0x310] sm:$0xff]
        %v3546 = vld [vmem:[#allocation2 + $0x318] sm:$0xff]
        %v3547 = vld [vmem:[#allocation2 + $0x320] sm:$0xff]
        %v3548 = vld [vmem:[#allocation2 + $0x328] sm:$0xff]
        %v3549 = vld [vmem:[#allocation2 + $0x330] sm:$0xff]
        %v3550 = vld [vmem:[#allocation2 + $0x338] sm:$0xff]
        %v3551 = vld [vmem:[#allocation2 + $0x340] sm:$0xff]
        %v3552 = vld [vmem:[#allocation2 + $0x348] sm:$0xff]
        %v3553 = vld [vmem:[#allocation2 + $0x350] sm:$0xff]
        %v3554 = vld [vmem:[#allocation2 + $0x358] sm:$0xff]
        %v3555 = vld [vmem:[#allocation2 + $0x360] sm:$0xff]
        %v3556 = vld [vmem:[#allocation2 + $0x368] sm:$0xff]
        %v3557 = vld [vmem:[#allocation2 + $0x370] sm:$0xff]
        %v3558 = vld [vmem:[#allocation2 + $0x378] sm:$0xff]
        %v3559 = vld [vmem:[#allocation2 + $0x380] sm:$0xff]
        %v3560 = vld [vmem:[#allocation2 + $0x388] sm:$0xff]
        %v3561 = vld [vmem:[#allocation2 + $0x390] sm:$0xff]
        %v3562 = vld [vmem:[#allocation2 + $0x398] sm:$0xff]
        %v3563 = vld [vmem:[#allocation2 + $0x3a0] sm:$0xff]
        %v3564 = vld [vmem:[#allocation2 + $0x3a8] sm:$0xff]
        %v3565 = vld [vmem:[#allocation2 + $0x3b0] sm:$0xff]
        %v3566 = vld [vmem:[#allocation2 + $0x3b8] sm:$0xff]
        %v3567 = vld [vmem:[#allocation2 + $0x3c0] sm:$0xff]
        %v3568 = vld [vmem:[#allocation2 + $0x3c8] sm:$0xff]
        %v3569 = vld [vmem:[#allocation2 + $0x3d0] sm:$0xff]
        %v3570 = vld [vmem:[#allocation2 + $0x3d8] sm:$0xff]
        %v3571 = vld [vmem:[#allocation2 + $0x3e0] sm:$0xff]
        %v3572 = vld [vmem:[#allocation2 + $0x3e8] sm:$0xff]
        %v3573 = vld [vmem:[#allocation2 + $0x3f0] sm:$0xff]
        %v3574 = vld [vmem:[#allocation2 + $0x3f8] sm:$0xff]
        %v3575 = vld [vmem:[#allocation2 + $0x400] sm:$0xff]
        %v3576 = vld [vmem:[#allocation2 + $0x408] sm:$0xff]
        %v3577 = vld [vmem:[#allocation2 + $0x410] sm:$0xff]
        %v3578 = vld [vmem:[#allocation2 + $0x418] sm:$0xff]
        %v3579 = vld [vmem:[#allocation2 + $0x420] sm:$0xff]
        %v3580 = vld [vmem:[#allocation2 + $0x428] sm:$0xff]
        %v3581 = vld [vmem:[#allocation2 + $0x430] sm:$0xff]
        %v3582 = vld [vmem:[#allocation2 + $0x438] sm:$0xff]
        %v3583 = vld [vmem:[#allocation2 + $0x440] sm:$0xff]
        %v3584 = vld [vmem:[#allocation2 + $0x448] sm:$0xff]
        %v3585 = vld [vmem:[#allocation2 + $0x450] sm:$0xff]
        %v3586 = vld [vmem:[#allocation2 + $0x458] sm:$0xff]
        %v3587 = vld [vmem:[#allocation2 + $0x460] sm:$0xff]
        %v3588 = vld [vmem:[#allocation2 + $0x468] sm:$0xff]
        %v3589 = vld [vmem:[#allocation2 + $0x470] sm:$0xff]
        %v3590 = vld [vmem:[#allocation2 + $0x478] sm:$0xff]
        %v3591 = vld [vmem:[#allocation2 + $0x480] sm:$0x7]
        %v3592 = vld [vmem:[#allocation2 + $0x488] sm:$0x7]
        %v3593 = vld [vmem:[#allocation2 + $0x490] sm:$0x7]
        %v3594 = vld [vmem:[#allocation2 + $0x498] sm:$0x7]
        %v3595 = vld [vmem:[#allocation2 + $0x4a0] sm:$0x7]
        %v3596 = vld [vmem:[#allocation2 + $0x4a8] sm:$0x7]
        %v3597 = vld [vmem:[#allocation2 + $0x4b0] sm:$0x7]
        %v3598 = vld [vmem:[#allocation2 + $0x4b8] sm:$0x7]
        %v3599 = vld [vmem:[#allocation2 + $0x4c0] sm:$0x7]
        %v3600 = vld [vmem:[#allocation2 + $0x4c8] sm:$0x7]
        %v3601 = vld [vmem:[#allocation2 + $0x4d0] sm:$0x7]
        %v3602 = vld [vmem:[#allocation2 + $0x4d8] sm:$0x7]
        %v3603 = vld [vmem:[#allocation2 + $0x4e0] sm:$0x7]
        %v3604 = vld [vmem:[#allocation2 + $0x4e8] sm:$0x7]
        %v3605 = vld [vmem:[#allocation2 + $0x4f0] sm:$0x7]
        %v3606 = vld [vmem:[#allocation2 + $0x4f8] sm:$0x7]
        %v3607 = vld [vmem:[%s2] sm:$0x3f]
        %3609 = vset.pattern.permute.xlu0 0
        %3610 = vperm.xlu0 %3609, %v3607
        %v3611 = vpop.permute.xlu0 %3610
        %vm3613 = vcmask 613376
        %v3615 = vsel %vm3613, %v3446, 0
        %vm3617 = vcmask 1042432
        %v3619 = vsel %vm3617, %v3591, 0
        %v3622 = vsel %vm3617, %v3592, 0
        %v3625 = vsel %vm3617, %v3593, 0
        %v3628 = vsel %vm3617, %v3594, 0
        %v3631 = vsel %vm3617, %v3595, 0
        %v3634 = vsel %vm3617, %v3596, 0
        %v3637 = vsel %vm3617, %v3597, 0
        %v3640 = vsel %vm3617, %v3598, 0
        %v3643 = vsel %vm3617, %v3599, 0
        %v3646 = vsel %vm3617, %v3600, 0
        %v3649 = vsel %vm3617, %v3601, 0
        %v3652 = vsel %vm3617, %v3602, 0
        %v3655 = vsel %vm3617, %v3603, 0
        %v3658 = vsel %vm3617, %v3604, 0
        %v3661 = vsel %vm3617, %v3605, 0
        %v3664 = vsel %vm3617, %v3606, 0
        %3666 = vmatprep.subr.mxu0 %v3448
        %3667 = vmatpush1.msra.mxu0 %v3447
        %3668 = vmatprep.subr.mxu0 %v3464
        %3669 = vmatpush1.msra.mxu0 %v3463
        %3670 = vmatprep.subr.mxu0 %v3480
        %3671 = vmatpush1.msra.mxu0 %v3479
        %3672 = vmatprep.subr.mxu0 %v3496
        %3673 = vmatpush1.msra.mxu0 %v3495
        %3674 = vmatprep.subr.mxu0 %v3512
        %3675 = vmatpush1.msra.mxu0 %v3511
        %3676 = vmatprep.subr.mxu0 %v3528
        %3677 = vmatpush1.msra.mxu0 %v3527
        %3678 = vmatprep.subr.mxu0 %v3544
        %3679 = vmatpush1.msra.mxu0 %v3543
        %3680 = vmatprep.subr.mxu0 %v3560
        %3681 = vmatpush1.msra.mxu0 %v3559
        %3682 = vmatprep.subr.mxu0 %v3576
        %3683 = vmatpush1.msra.mxu0 %v3575
        %3684 = vmatprep.subr.mxu0 %v3622
        %3685 = vmatpush1.msra.mxu0 %v3619
        %3686 = vmatprep.subr.mxu0 0.0
        %3687 = vmatpush1.msra.mxu0 0.0
        %3688 = vmatprep.subr.mxu0 0.0
        %3689 = vmatpush1.msra.mxu0 0.0
        %3690 = vmatprep.subr.mxu0 0.0
        %3691 = vmatpush1.msra.mxu0 0.0
        %3692 = vmatprep.subr.mxu0 0.0
        %3693 = vmatpush1.msra.mxu0 0.0
        %3694 = vmatprep.subr.mxu0 0.0
        %3695 = vmatpush1.msra.mxu0 0.0
        %3696 = vmatprep.subr.mxu0 0.0
        %3697 = vmatpush1.msra.mxu0 0.0
        %3698 = vmatprep.subr.mxu0 0.0
        %3699 = vmatpush1.msra.mxu0 0.0
        %3700 = vmatprep.subr.mxu0 0.0
        %3701 = vmatpush1.msra.mxu0 0.0
        %3702 = vmatprep.subr.mxu0 0.0
        %3703 = vmatpush1.msra.mxu0 0.0
        %3704 = vmatprep.subr.mxu0 0.0
        %3705 = vmatpush1.msra.mxu0 0.0
        %3706 = vmatprep.subr.mxu0 0.0
        %3707 = vmatpush1.msra.mxu0 0.0
        %3708 = vmatprep.subr.mxu0 0.0
        %3709 = vmatpush1.msra.mxu0 0.0
        %3710 = vmatprep.subr.mxu0 0.0
        %3711 = vmatpush1.msra.mxu0 0.0
        %3712 = vmatprep.subr.mxu0 0.0
        %3713 = vmatpush1.msra.mxu0 0.0
        %3714 = vmatprep.subr.mxu0 0.0
        %3715 = vmatpush1.msra.mxu0 0.0
        %3716 = vmatprep.subr.mxu0 0.0
        %3717 = vmatpush1.msra.mxu0 0.0
        %3718 = vmatprep.subr.mxu0 0.0
        %3719 = vmatpush1.msra.mxu0 0.0
        %3720 = vmatprep.subr.mxu0 0.0
        %3721 = vmatpush1.msra.mxu0 0.0
        %3722 = vmatprep.subr.mxu0 0.0
        %3723 = vmatpush1.msra.mxu0 0.0
        %3724 = vmatprep.subr.mxu0 0.0
        %3725 = vmatpush1.msra.mxu0 0.0
        %3726 = vmatprep.subr.mxu0 0.0
        %3727 = vmatpush1.msra.mxu0 0.0
        %3728 = vmatprep.subr.mxu0 0.0
        %3729 = vmatpush1.msra.mxu0 0.0
        %3730 = vmatprep.mubr.f32.mxu0 0.0
        %3731 = vmatmul.mubr.f32.gmra.mrb[0].mxu0 %v3615
        %v3732 = vpop.f32.mrb[0].mxu0
        %v3733 = vadd.f32 %v3611, %v3732
        %v3734 = vpop.f32.mrb[0].mxu0
        %v3735 = vadd.f32 %v3611, %v3734
        %3736 = vdwg.mxu0
        %3737 = vmatprep.subr.mxu0 %v3450
        %3738 = vmatpush1.msra.mxu0 %v3449
        %3739 = vmatprep.subr.mxu0 %v3466
        %3740 = vmatpush1.msra.mxu0 %v3465
        %3741 = vmatprep.subr.mxu0 %v3482
        %3742 = vmatpush1.msra.mxu0 %v3481
        %3743 = vmatprep.subr.mxu0 %v3498
        %3744 = vmatpush1.msra.mxu0 %v3497
        %3745 = vmatprep.subr.mxu0 %v3514
        %3746 = vmatpush1.msra.mxu0 %v3513
        %3747 = vmatprep.subr.mxu0 %v3530
        %3748 = vmatpush1.msra.mxu0 %v3529
        %3749 = vmatprep.subr.mxu0 %v3546
        %3750 = vmatpush1.msra.mxu0 %v3545
        %3751 = vmatprep.subr.mxu0 %v3562
        %3752 = vmatpush1.msra.mxu0 %v3561
        %3753 = vmatprep.subr.mxu0 %v3578
        %3754 = vmatpush1.msra.mxu0 %v3577
        %3755 = vmatprep.subr.mxu0 %v3628
        %3756 = vmatpush1.msra.mxu0 %v3625
        %3757 = vmatprep.subr.mxu0 0.0
        %3758 = vmatpush1.msra.mxu0 0.0
        %3759 = vmatprep.subr.mxu0 0.0
        %3760 = vmatpush1.msra.mxu0 0.0
        %3761 = vmatprep.subr.mxu0 0.0
        %3762 = vmatpush1.msra.mxu0 0.0
        %3763 = vmatprep.subr.mxu0 0.0
        %3764 = vmatpush1.msra.mxu0 0.0
        %3765 = vmatprep.subr.mxu0 0.0
        %3766 = vmatpush1.msra.mxu0 0.0
        %3767 = vmatprep.subr.mxu0 0.0
        %3768 = vmatpush1.msra.mxu0 0.0
        %3769 = vmatprep.subr.mxu0 0.0
        %3770 = vmatpush1.msra.mxu0 0.0
        %3771 = vmatprep.subr.mxu0 0.0
        %3772 = vmatpush1.msra.mxu0 0.0
        %3773 = vmatprep.subr.mxu0 0.0
        %3774 = vmatpush1.msra.mxu0 0.0
        %3775 = vmatprep.subr.mxu0 0.0
        %3776 = vmatpush1.msra.mxu0 0.0
        %3777 = vmatprep.subr.mxu0 0.0
        %3778 = vmatpush1.msra.mxu0 0.0
        %3779 = vmatprep.subr.mxu0 0.0
        %3780 = vmatpush1.msra.mxu0 0.0
        %3781 = vmatprep.subr.mxu0 0.0
        %3782 = vmatpush1.msra.mxu0 0.0
        %3783 = vmatprep.subr.mxu0 0.0
        %3784 = vmatpush1.msra.mxu0 0.0
        %3785 = vmatprep.subr.mxu0 0.0
        %3786 = vmatpush1.msra.mxu0 0.0
        %3787 = vmatprep.subr.mxu0 0.0
        %3788 = vmatpush1.msra.mxu0 0.0
        %3789 = vmatprep.subr.mxu0 0.0
        %3790 = vmatpush1.msra.mxu0 0.0
        %3791 = vmatprep.subr.mxu0 0.0
        %3792 = vmatpush1.msra.mxu0 0.0
        %3793 = vmatprep.subr.mxu0 0.0
        %3794 = vmatpush1.msra.mxu0 0.0
        %3795 = vmatprep.subr.mxu0 0.0
        %3796 = vmatpush1.msra.mxu0 0.0
        %3797 = vmatprep.subr.mxu0 0.0
        %3798 = vmatpush1.msra.mxu0 0.0
        %3799 = vmatprep.subr.mxu0 0.0
        %3800 = vmatpush1.msra.mxu0 0.0
        %3801 = vmatprep.mubr.f32.mxu0 0.0
        %3802 = vmatmul.mubr.f32.gmra.mrb[0].mxu0 %v3615
        %v3803 = vpop.f32.mrb[0].mxu0
        %v3804 = vadd.f32 %v3611, %v3803
        %v3805 = vpop.f32.mrb[0].mxu0
        %v3806 = vadd.f32 %v3611, %v3805
        %3807 = vdwg.mxu0
        %3808 = vmatprep.subr.mxu0 %v3452
        %3809 = vmatpush1.msra.mxu0 %v3451
        %3810 = vmatprep.subr.mxu0 %v3468
        %3811 = vmatpush1.msra.mxu0 %v3467
        %3812 = vmatprep.subr.mxu0 %v3484
        %3813 = vmatpush1.msra.mxu0 %v3483
        %3814 = vmatprep.subr.mxu0 %v3500
        %3815 = vmatpush1.msra.mxu0 %v3499
        %3816 = vmatprep.subr.mxu0 %v3516
        %3817 = vmatpush1.msra.mxu0 %v3515
        %3818 = vmatprep.subr.mxu0 %v3532
        %3819 = vmatpush1.msra.mxu0 %v3531
        %3820 = vmatprep.subr.mxu0 %v3548
        %3821 = vmatpush1.msra.mxu0 %v3547
        %3822 = vmatprep.subr.mxu0 %v3564
        %3823 = vmatpush1.msra.mxu0 %v3563
        %3824 = vmatprep.subr.mxu0 %v3580
        %3825 = vmatpush1.msra.mxu0 %v3579
        %3826 = vmatprep.subr.mxu0 %v3634
        %3827 = vmatpush1.msra.mxu0 %v3631
        %3828 = vmatprep.subr.mxu0 0.0
        %3829 = vmatpush1.msra.mxu0 0.0
        %3830 = vmatprep.subr.mxu0 0.0
        %3831 = vmatpush1.msra.mxu0 0.0
        %3832 = vmatprep.subr.mxu0 0.0
        %3833 = vmatpush1.msra.mxu0 0.0
        %3834 = vmatprep.subr.mxu0 0.0
        %3835 = vmatpush1.msra.mxu0 0.0
        %3836 = vmatprep.subr.mxu0 0.0
        %3837 = vmatpush1.msra.mxu0 0.0
        %3838 = vmatprep.subr.mxu0 0.0
        %3839 = vmatpush1.msra.mxu0 0.0
        %3840 = vmatprep.subr.mxu0 0.0
        %3841 = vmatpush1.msra.mxu0 0.0
        %3842 = vmatprep.subr.mxu0 0.0
        %3843 = vmatpush1.msra.mxu0 0.0
        %3844 = vmatprep.subr.mxu0 0.0
        %3845 = vmatpush1.msra.mxu0 0.0
        %3846 = vmatprep.subr.mxu0 0.0
        %3847 = vmatpush1.msra.mxu0 0.0
        %3848 = vmatprep.subr.mxu0 0.0
        %3849 = vmatpush1.msra.mxu0 0.0
        %3850 = vmatprep.subr.mxu0 0.0
        %3851 = vmatpush1.msra.mxu0 0.0
        %3852 = vmatprep.subr.mxu0 0.0
        %3853 = vmatpush1.msra.mxu0 0.0
        %3854 = vmatprep.subr.mxu0 0.0
        %3855 = vmatpush1.msra.mxu0 0.0
        %3856 = vmatprep.subr.mxu0 0.0
        %3857 = vmatpush1.msra.mxu0 0.0
        %3858 = vmatprep.subr.mxu0 0.0
        %3859 = vmatpush1.msra.mxu0 0.0
        %3860 = vmatprep.subr.mxu0 0.0
        %3861 = vmatpush1.msra.mxu0 0.0
        %3862 = vmatprep.subr.mxu0 0.0
        %3863 = vmatpush1.msra.mxu0 0.0
        %3864 = vmatprep.subr.mxu0 0.0
        %3865 = vmatpush1.msra.mxu0 0.0
        %3866 = vmatprep.subr.mxu0 0.0
        %3867 = vmatpush1.msra.mxu0 0.0
        %3868 = vmatprep.subr.mxu0 0.0
        %3869 = vmatpush1.msra.mxu0 0.0
        %3870 = vmatprep.subr.mxu0 0.0
        %3871 = vmatpush1.msra.mxu0 0.0
        %3872 = vmatprep.mubr.f32.mxu0 0.0
        %3873 = vmatmul.mubr.f32.gmra.mrb[0].mxu0 %v3615
        %v3874 = vpop.f32.mrb[0].mxu0
        %v3875 = vadd.f32 %v3611, %v3874
        %v3876 = vpop.f32.mrb[0].mxu0
        %v3877 = vadd.f32 %v3611, %v3876
        %3878 = vdwg.mxu0
        %3879 = vmatprep.subr.mxu0 %v3454
        %3880 = vmatpush1.msra.mxu0 %v3453
        %3881 = vmatprep.subr.mxu0 %v3470
        %3882 = vmatpush1.msra.mxu0 %v3469
        %3883 = vmatprep.subr.mxu0 %v3486
        %3884 = vmatpush1.msra.mxu0 %v3485
        %3885 = vmatprep.subr.mxu0 %v3502
        %3886 = vmatpush1.msra.mxu0 %v3501
        %3887 = vmatprep.subr.mxu0 %v3518
        %3888 = vmatpush1.msra.mxu0 %v3517
        %3889 = vmatprep.subr.mxu0 %v3534
        %3890 = vmatpush1.msra.mxu0 %v3533
        %3891 = vmatprep.subr.mxu0 %v3550
        %3892 = vmatpush1.msra.mxu0 %v3549
        %3893 = vmatprep.subr.mxu0 %v3566
        %3894 = vmatpush1.msra.mxu0 %v3565
        %3895 = vmatprep.subr.mxu0 %v3582
        %3896 = vmatpush1.msra.mxu0 %v3581
        %3897 = vmatprep.subr.mxu0 %v3640
        %3898 = vmatpush1.msra.mxu0 %v3637
        %3899 = vmatprep.subr.mxu0 0.0
        %3900 = vmatpush1.msra.mxu0 0.0
        %3901 = vmatprep.subr.mxu0 0.0
        %3902 = vmatpush1.msra.mxu0 0.0
        %3903 = vmatprep.subr.mxu0 0.0
        %3904 = vmatpush1.msra.mxu0 0.0
        %3905 = vmatprep.subr.mxu0 0.0
        %3906 = vmatpush1.msra.mxu0 0.0
        %3907 = vmatprep.subr.mxu0 0.0
        %3908 = vmatpush1.msra.mxu0 0.0
        %3909 = vmatprep.subr.mxu0 0.0
        %3910 = vmatpush1.msra.mxu0 0.0
        %3911 = vmatprep.subr.mxu0 0.0
        %3912 = vmatpush1.msra.mxu0 0.0
        %3913 = vmatprep.subr.mxu0 0.0
        %3914 = vmatpush1.msra.mxu0 0.0
        %3915 = vmatprep.subr.mxu0 0.0
        %3916 = vmatpush1.msra.mxu0 0.0
        %3917 = vmatprep.subr.mxu0 0.0
        %3918 = vmatpush1.msra.mxu0 0.0
        %3919 = vmatprep.subr.mxu0 0.0
        %3920 = vmatpush1.msra.mxu0 0.0
        %3921 = vmatprep.subr.mxu0 0.0
        %3922 = vmatpush1.msra.mxu0 0.0
        %3923 = vmatprep.subr.mxu0 0.0
        %3924 = vmatpush1.msra.mxu0 0.0
        %3925 = vmatprep.subr.mxu0 0.0
        %3926 = vmatpush1.msra.mxu0 0.0
        %3927 = vmatprep.subr.mxu0 0.0
        %3928 = vmatpush1.msra.mxu0 0.0
        %3929 = vmatprep.subr.mxu0 0.0
        %3930 = vmatpush1.msra.mxu0 0.0
        %3931 = vmatprep.subr.mxu0 0.0
        %3932 = vmatpush1.msra.mxu0 0.0
        %3933 = vmatprep.subr.mxu0 0.0
        %3934 = vmatpush1.msra.mxu0 0.0
        %3935 = vmatprep.subr.mxu0 0.0
        %3936 = vmatpush1.msra.mxu0 0.0
        %3937 = vmatprep.subr.mxu0 0.0
        %3938 = vmatpush1.msra.mxu0 0.0
        %3939 = vmatprep.subr.mxu0 0.0
        %3940 = vmatpush1.msra.mxu0 0.0
        %3941 = vmatprep.subr.mxu0 0.0
        %3942 = vmatpush1.msra.mxu0 0.0
        %3943 = vmatprep.mubr.f32.mxu0 0.0
        %3944 = vmatmul.mubr.f32.gmra.mrb[0].mxu0 %v3615
        %v3945 = vpop.f32.mrb[0].mxu0
        %v3946 = vadd.f32 %v3611, %v3945
        %v3947 = vpop.f32.mrb[0].mxu0
        %v3948 = vadd.f32 %v3611, %v3947
        %3949 = vdwg.mxu0
        %3950 = vmatprep.subr.mxu0 %v3456
        %3951 = vmatpush1.msra.mxu0 %v3455
        %3952 = vmatprep.subr.mxu0 %v3472
        %3953 = vmatpush1.msra.mxu0 %v3471
        %3954 = vmatprep.subr.mxu0 %v3488
        %3955 = vmatpush1.msra.mxu0 %v3487
        %3956 = vmatprep.subr.mxu0 %v3504
        %3957 = vmatpush1.msra.mxu0 %v3503
        %3958 = vmatprep.subr.mxu0 %v3520
        %3959 = vmatpush1.msra.mxu0 %v3519
        %3960 = vmatprep.subr.mxu0 %v3536
        %3961 = vmatpush1.msra.mxu0 %v3535
        %3962 = vmatprep.subr.mxu0 %v3552
        %3963 = vmatpush1.msra.mxu0 %v3551
        %3964 = vmatprep.subr.mxu0 %v3568
        %3965 = vmatpush1.msra.mxu0 %v3567
        %3966 = vmatprep.subr.mxu0 %v3584
        %3967 = vmatpush1.msra.mxu0 %v3583
        %3968 = vmatprep.subr.mxu0 %v3646
        %3969 = vmatpush1.msra.mxu0 %v3643
        %3970 = vmatprep.subr.mxu0 0.0
        %3971 = vmatpush1.msra.mxu0 0.0
        %3972 = vmatprep.subr.mxu0 0.0
        %3973 = vmatpush1.msra.mxu0 0.0
        %3974 = vmatprep.subr.mxu0 0.0
        %3975 = vmatpush1.msra.mxu0 0.0
        %3976 = vmatprep.subr.mxu0 0.0
        %3977 = vmatpush1.msra.mxu0 0.0
        %3978 = vmatprep.subr.mxu0 0.0
        %3979 = vmatpush1.msra.mxu0 0.0
        %3980 = vmatprep.subr.mxu0 0.0
        %3981 = vmatpush1.msra.mxu0 0.0
        %3982 = vmatprep.subr.mxu0 0.0
        %3983 = vmatpush1.msra.mxu0 0.0
        %3984 = vmatprep.subr.mxu0 0.0
        %3985 = vmatpush1.msra.mxu0 0.0
        %3986 = vmatprep.subr.mxu0 0.0
        %3987 = vmatpush1.msra.mxu0 0.0
        %3988 = vmatprep.subr.mxu0 0.0
        %3989 = vmatpush1.msra.mxu0 0.0
        %3990 = vmatprep.subr.mxu0 0.0
        %3991 = vmatpush1.msra.mxu0 0.0
        %3992 = vmatprep.subr.mxu0 0.0
        %3993 = vmatpush1.msra.mxu0 0.0
        %3994 = vmatprep.subr.mxu0 0.0
        %3995 = vmatpush1.msra.mxu0 0.0
        %3996 = vmatprep.subr.mxu0 0.0
        %3997 = vmatpush1.msra.mxu0 0.0
        %3998 = vmatprep.subr.mxu0 0.0
        %3999 = vmatpush1.msra.mxu0 0.0
        %4000 = vmatprep.subr.mxu0 0.0
        %4001 = vmatpush1.msra.mxu0 0.0
        %4002 = vmatprep.subr.mxu0 0.0
        %4003 = vmatpush1.msra.mxu0 0.0
        %4004 = vmatprep.subr.mxu0 0.0
        %4005 = vmatpush1.msra.mxu0 0.0
        %4006 = vmatprep.subr.mxu0 0.0
        %4007 = vmatpush1.msra.mxu0 0.0
        %4008 = vmatprep.subr.mxu0 0.0
        %4009 = vmatpush1.msra.mxu0 0.0
        %4010 = vmatprep.subr.mxu0 0.0
        %4011 = vmatpush1.msra.mxu0 0.0
        %4012 = vmatprep.subr.mxu0 0.0
        %4013 = vmatpush1.msra.mxu0 0.0
        %4014 = vmatprep.mubr.f32.mxu0 0.0
        %4015 = vmatmul.mubr.f32.gmra.mrb[0].mxu0 %v3615
        %v4016 = vpop.f32.mrb[0].mxu0
        %v4017 = vadd.f32 %v3611, %v4016
        %v4018 = vpop.f32.mrb[0].mxu0
        %v4019 = vadd.f32 %v3611, %v4018
        %4020 = vdwg.mxu0
        %4021 = vmatprep.subr.mxu0 %v3458
        %4022 = vmatpush1.msra.mxu0 %v3457
        %4023 = vmatprep.subr.mxu0 %v3474
        %4024 = vmatpush1.msra.mxu0 %v3473
        %4025 = vmatprep.subr.mxu0 %v3490
        %4026 = vmatpush1.msra.mxu0 %v3489
        %4027 = vmatprep.subr.mxu0 %v3506
        %4028 = vmatpush1.msra.mxu0 %v3505
        %4029 = vmatprep.subr.mxu0 %v3522
        %4030 = vmatpush1.msra.mxu0 %v3521
        %4031 = vmatprep.subr.mxu0 %v3538
        %4032 = vmatpush1.msra.mxu0 %v3537
        %4033 = vmatprep.subr.mxu0 %v3554
        %4034 = vmatpush1.msra.mxu0 %v3553
        %4035 = vmatprep.subr.mxu0 %v3570
        %4036 = vmatpush1.msra.mxu0 %v3569
        %4037 = vmatprep.subr.mxu0 %v3586
        %4038 = vmatpush1.msra.mxu0 %v3585
        %4039 = vmatprep.subr.mxu0 %v3652
        %4040 = vmatpush1.msra.mxu0 %v3649
        %4041 = vmatprep.subr.mxu0 0.0
        %4042 = vmatpush1.msra.mxu0 0.0
        %4043 = vmatprep.subr.mxu0 0.0
        %4044 = vmatpush1.msra.mxu0 0.0
        %4045 = vmatprep.subr.mxu0 0.0
        %4046 = vmatpush1.msra.mxu0 0.0
        %4047 = vmatprep.subr.mxu0 0.0
        %4048 = vmatpush1.msra.mxu0 0.0
        %4049 = vmatprep.subr.mxu0 0.0
        %4050 = vmatpush1.msra.mxu0 0.0
        %4051 = vmatprep.subr.mxu0 0.0
        %4052 = vmatpush1.msra.mxu0 0.0
        %4053 = vmatprep.subr.mxu0 0.0
        %4054 = vmatpush1.msra.mxu0 0.0
        %4055 = vmatprep.subr.mxu0 0.0
        %4056 = vmatpush1.msra.mxu0 0.0
        %4057 = vmatprep.subr.mxu0 0.0
        %4058 = vmatpush1.msra.mxu0 0.0
        %4059 = vmatprep.subr.mxu0 0.0
        %4060 = vmatpush1.msra.mxu0 0.0
        %4061 = vmatprep.subr.mxu0 0.0
        %4062 = vmatpush1.msra.mxu0 0.0
        %4063 = vmatprep.subr.mxu0 0.0
        %4064 = vmatpush1.msra.mxu0 0.0
        %4065 = vmatprep.subr.mxu0 0.0
        %4066 = vmatpush1.msra.mxu0 0.0
        %4067 = vmatprep.subr.mxu0 0.0
        %4068 = vmatpush1.msra.mxu0 0.0
        %4069 = vmatprep.subr.mxu0 0.0
        %4070 = vmatpush1.msra.mxu0 0.0
        %4071 = vmatprep.subr.mxu0 0.0
        %4072 = vmatpush1.msra.mxu0 0.0
        %4073 = vmatprep.subr.mxu0 0.0
        %4074 = vmatpush1.msra.mxu0 0.0
        %4075 = vmatprep.subr.mxu0 0.0
        %4076 = vmatpush1.msra.mxu0 0.0
        %4077 = vmatprep.subr.mxu0 0.0
        %4078 = vmatpush1.msra.mxu0 0.0
        %4079 = vmatprep.subr.mxu0 0.0
        %4080 = vmatpush1.msra.mxu0 0.0
        %4081 = vmatprep.subr.mxu0 0.0
        %4082 = vmatpush1.msra.mxu0 0.0
        %4083 = vmatprep.subr.mxu0 0.0
        %4084 = vmatpush1.msra.mxu0 0.0
        %4085 = vmatprep.mubr.f32.mxu0 0.0
        %4086 = vmatmul.mubr.f32.gmra.mrb[0].mxu0 %v3615
        %v4087 = vpop.f32.mrb[0].mxu0
        %v4088 = vadd.f32 %v3611, %v4087
        %v4089 = vpop.f32.mrb[0].mxu0
        %v4090 = vadd.f32 %v3611, %v4089
        %4091 = vdwg.mxu0
        %4092 = vmatprep.subr.mxu0 %v3460
        %4093 = vmatpush1.msra.mxu0 %v3459
        %4094 = vmatprep.subr.mxu0 %v3476
        %4095 = vmatpush1.msra.mxu0 %v3475
        %4096 = vmatprep.subr.mxu0 %v3492
        %4097 = vmatpush1.msra.mxu0 %v3491
        %4098 = vmatprep.subr.mxu0 %v3508
        %4099 = vmatpush1.msra.mxu0 %v3507
        %4100 = vmatprep.subr.mxu0 %v3524
        %4101 = vmatpush1.msra.mxu0 %v3523
        %4102 = vmatprep.subr.mxu0 %v3540
        %4103 = vmatpush1.msra.mxu0 %v3539
        %4104 = vmatprep.subr.mxu0 %v3556
        %4105 = vmatpush1.msra.mxu0 %v3555
        %4106 = vmatprep.subr.mxu0 %v3572
        %4107 = vmatpush1.msra.mxu0 %v3571
        %4108 = vmatprep.subr.mxu0 %v3588
        %4109 = vmatpush1.msra.mxu0 %v3587
        %4110 = vmatprep.subr.mxu0 %v3658
        %4111 = vmatpush1.msra.mxu0 %v3655
        %4112 = vmatprep.subr.mxu0 0.0
        %4113 = vmatpush1.msra.mxu0 0.0
        %4114 = vmatprep.subr.mxu0 0.0
        %4115 = vmatpush1.msra.mxu0 0.0
        %4116 = vmatprep.subr.mxu0 0.0
        %4117 = vmatpush1.msra.mxu0 0.0
        %4118 = vmatprep.subr.mxu0 0.0
        %4119 = vmatpush1.msra.mxu0 0.0
        %4120 = vmatprep.subr.mxu0 0.0
        %4121 = vmatpush1.msra.mxu0 0.0
        %4122 = vmatprep.subr.mxu0 0.0
        %4123 = vmatpush1.msra.mxu0 0.0
        %4124 = vmatprep.subr.mxu0 0.0
        %4125 = vmatpush1.msra.mxu0 0.0
        %4126 = vmatprep.subr.mxu0 0.0
        %4127 = vmatpush1.msra.mxu0 0.0
        %4128 = vmatprep.subr.mxu0 0.0
        %4129 = vmatpush1.msra.mxu0 0.0
        %4130 = vmatprep.subr.mxu0 0.0
        %4131 = vmatpush1.msra.mxu0 0.0
        %4132 = vmatprep.subr.mxu0 0.0
        %4133 = vmatpush1.msra.mxu0 0.0
        %4134 = vmatprep.subr.mxu0 0.0
        %4135 = vmatpush1.msra.mxu0 0.0
        %4136 = vmatprep.subr.mxu0 0.0
        %4137 = vmatpush1.msra.mxu0 0.0
        %4138 = vmatprep.subr.mxu0 0.0
        %4139 = vmatpush1.msra.mxu0 0.0
        %4140 = vmatprep.subr.mxu0 0.0
        %4141 = vmatpush1.msra.mxu0 0.0
        %4142 = vmatprep.subr.mxu0 0.0
        %4143 = vmatpush1.msra.mxu0 0.0
        %4144 = vmatprep.subr.mxu0 0.0
        %4145 = vmatpush1.msra.mxu0 0.0
        %4146 = vmatprep.subr.mxu0 0.0
        %4147 = vmatpush1.msra.mxu0 0.0
        %4148 = vmatprep.subr.mxu0 0.0
        %4149 = vmatpush1.msra.mxu0 0.0
        %4150 = vmatprep.subr.mxu0 0.0
        %4151 = vmatpush1.msra.mxu0 0.0
        %4152 = vmatprep.subr.mxu0 0.0
        %4153 = vmatpush1.msra.mxu0 0.0
        %4154 = vmatprep.subr.mxu0 0.0
        %4155 = vmatpush1.msra.mxu0 0.0
        %4156 = vmatprep.mubr.f32.mxu0 0.0
        %4157 = vmatmul.mubr.f32.gmra.mrb[0].mxu0 %v3615
        %v4158 = vpop.f32.mrb[0].mxu0
        %v4159 = vadd.f32 %v3611, %v4158
        %v4160 = vpop.f32.mrb[0].mxu0
        %v4161 = vadd.f32 %v3611, %v4160
        %4162 = vdwg.mxu0
        %4163 = vmatprep.subr.mxu0 %v3462
        %4164 = vmatpush1.msra.mxu0 %v3461
        %4165 = vmatprep.subr.mxu0 %v3478
        %4166 = vmatpush1.msra.mxu0 %v3477
        %4167 = vmatprep.subr.mxu0 %v3494
        %4168 = vmatpush1.msra.mxu0 %v3493
        %4169 = vmatprep.subr.mxu0 %v3510
        %4170 = vmatpush1.msra.mxu0 %v3509
        %4171 = vmatprep.subr.mxu0 %v3526
        %4172 = vmatpush1.msra.mxu0 %v3525
        %4173 = vmatprep.subr.mxu0 %v3542
        %4174 = vmatpush1.msra.mxu0 %v3541
        %4175 = vmatprep.subr.mxu0 %v3558
        %4176 = vmatpush1.msra.mxu0 %v3557
        %4177 = vmatprep.subr.mxu0 %v3574
        %4178 = vmatpush1.msra.mxu0 %v3573
        %4179 = vmatprep.subr.mxu0 %v3590
        %4180 = vmatpush1.msra.mxu0 %v3589
        %4181 = vmatprep.subr.mxu0 %v3664
        %4182 = vmatpush1.msra.mxu0 %v3661
        %4183 = vmatprep.subr.mxu0 0.0
        %4184 = vmatpush1.msra.mxu0 0.0
        %4185 = vmatprep.subr.mxu0 0.0
        %4186 = vmatpush1.msra.mxu0 0.0
        %4187 = vmatprep.subr.mxu0 0.0
        %4188 = vmatpush1.msra.mxu0 0.0
        %4189 = vmatprep.subr.mxu0 0.0
        %4190 = vmatpush1.msra.mxu0 0.0
        %4191 = vmatprep.subr.mxu0 0.0
        %4192 = vmatpush1.msra.mxu0 0.0
        %4193 = vmatprep.subr.mxu0 0.0
        %4194 = vmatpush1.msra.mxu0 0.0
        %4195 = vmatprep.subr.mxu0 0.0
        %4196 = vmatpush1.msra.mxu0 0.0
        %4197 = vmatprep.subr.mxu0 0.0
        %4198 = vmatpush1.msra.mxu0 0.0
        %4199 = vmatprep.subr.mxu0 0.0
        %4200 = vmatpush1.msra.mxu0 0.0
        %4201 = vmatprep.subr.mxu0 0.0
        %4202 = vmatpush1.msra.mxu0 0.0
        %4203 = vmatprep.subr.mxu0 0.0
        %4204 = vmatpush1.msra.mxu0 0.0
        %4205 = vmatprep.subr.mxu0 0.0
        %4206 = vmatpush1.msra.mxu0 0.0
        %4207 = vmatprep.subr.mxu0 0.0
        %4208 = vmatpush1.msra.mxu0 0.0
        %4209 = vmatprep.subr.mxu0 0.0
        %4210 = vmatpush1.msra.mxu0 0.0
        %4211 = vmatprep.subr.mxu0 0.0
        %4212 = vmatpush1.msra.mxu0 0.0
        %4213 = vmatprep.subr.mxu0 0.0
        %4214 = vmatpush1.msra.mxu0 0.0
        %4215 = vmatprep.subr.mxu0 0.0
        %4216 = vmatpush1.msra.mxu0 0.0
        %4217 = vmatprep.subr.mxu0 0.0
        %4218 = vmatpush1.msra.mxu0 0.0
        %4219 = vmatprep.subr.mxu0 0.0
        %4220 = vmatpush1.msra.mxu0 0.0
        %4221 = vmatprep.subr.mxu0 0.0
        %4222 = vmatpush1.msra.mxu0 0.0
        %4223 = vmatprep.subr.mxu0 0.0
        %4224 = vmatpush1.msra.mxu0 0.0
        %4225 = vmatprep.subr.mxu0 0.0
        %4226 = vmatpush1.msra.mxu0 0.0
        %4227 = vmatprep.mubr.f32.mxu0 0.0
        %4228 = vmatmul.mubr.f32.gmra.mrb[0].mxu0 %v3615
        %v4229 = vpop.f32.mrb[0].mxu0
        %v4230 = vadd.f32 %v3611, %v4229
        %v4231 = vpop.f32.mrb[0].mxu0
        %v4232 = vadd.f32 %v3611, %v4231
        %4233 = vdwg.mxu0
        %v4234 = vmax.f32 %v3733, 0.0
        %v4235 = vmax.f32 %v3735, 0.0
        %v4236 = vmax.f32 %v3804, 0.0
        %v4237 = vmax.f32 %v3806, 0.0
        %v4238 = vmax.f32 %v3875, 0.0
        %v4239 = vmax.f32 %v3877, 0.0
        %v4240 = vmax.f32 %v3946, 0.0
        %v4241 = vmax.f32 %v3948, 0.0
        %v4242 = vmax.f32 %v4017, 0.0
        %v4243 = vmax.f32 %v4019, 0.0
        %v4244 = vmax.f32 %v4088, 0.0
        %v4245 = vmax.f32 %v4090, 0.0
        %v4246 = vmax.f32 %v4159, 0.0
        %v4247 = vmax.f32 %v4161, 0.0
        %v4248 = vmax.f32 %v4230, 0.0
        %v4249 = vmax.f32 %v4232, 0.0
        %4250 = vst [vmem:[#allocation3] sm:$0x3f] %v4234
        %4251 = vst [vmem:[#allocation3 + $0x8] sm:$0x3f] %v4235
        %4252 = vst [vmem:[#allocation3 + $0x10] sm:$0x3f] %v4236
        %4253 = vst [vmem:[#allocation3 + $0x18] sm:$0x3f] %v4237
        %4254 = vst [vmem:[#allocation3 + $0x20] sm:$0x3f] %v4238
        %4255 = vst [vmem:[#allocation3 + $0x28] sm:$0x3f] %v4239
        %4256 = vst [vmem:[#allocation3 + $0x30] sm:$0x3f] %v4240
        %4257 = vst [vmem:[#allocation3 + $0x38] sm:$0x3f] %v4241
        %4258 = vst [vmem:[#allocation3 + $0x40] sm:$0x3f] %v4242
        %4259 = vst [vmem:[#allocation3 + $0x48] sm:$0x3f] %v4243
        %4260 = vst [vmem:[#allocation3 + $0x50] sm:$0x3f] %v4244
        %4261 = vst [vmem:[#allocation3 + $0x58] sm:$0x3f] %v4245
        %4262 = vst [vmem:[#allocation3 + $0x60] sm:$0x3f] %v4246
        %4263 = vst [vmem:[#allocation3 + $0x68] sm:$0x3f] %v4247
        %4264 = vst [vmem:[#allocation3 + $0x70] sm:$0x3f] %v4248
        %4265 = vst [vmem:[#allocation3 + $0x78] sm:$0x3f] %v4249
        %v4266 = vld [vmem:[#allocation3] sm:$0x3f]
        %v4267 = vld [vmem:[#allocation3 + $0x8] sm:$0x3f]
        %v4268 = vld [vmem:[#allocation3 + $0x10] sm:$0x3f]
        %v4269 = vld [vmem:[#allocation3 + $0x18] sm:$0x3f]
        %v4270 = vld [vmem:[#allocation3 + $0x20] sm:$0x3f]
        %v4271 = vld [vmem:[#allocation3 + $0x28] sm:$0x3f]
        %v4272 = vld [vmem:[#allocation3 + $0x30] sm:$0x3f]
        %v4273 = vld [vmem:[#allocation3 + $0x38] sm:$0x3f]
        %v4274 = vld [vmem:[#allocation3 + $0x40] sm:$0x3f]
        %4284 = vrot.lane.b32.xlu0 %v4266, 127
        %v4285 = vpop.permute.xlu0 %4284
        %4286 = vrot.lane.b32.xlu0 %v4267, 127
        %v4287 = vpop.permute.xlu0 %4286
        %4288 = vrot.lane.b32.xlu0 %v4268, 127
        %v4289 = vpop.permute.xlu0 %4288
        %4290 = vrot.lane.b32.xlu0 %v4269, 127
        %v4291 = vpop.permute.xlu0 %4290
        %4292 = vrot.lane.b32.xlu0 %v4270, 127
        %v4293 = vpop.permute.xlu0 %4292
        %4294 = vrot.lane.b32.xlu0 %v4271, 127
        %v4295 = vpop.permute.xlu0 %4294
        %4296 = vrot.lane.b32.xlu0 %v4272, 127
        %v4297 = vpop.permute.xlu0 %4296
        %4298 = vrot.lane.b32.xlu0 %v4273, 127
        %v4299 = vpop.permute.xlu0 %4298
        %4300 = vrot.lane.b32.xlu0 %v4274, 127
        %v4301 = vpop.permute.xlu0 %4300
        %v4302 = vsel %vm568, %v4285, %v4287
        %v4303 = vsel %vm568, %v4287, %v4289
        %v4304 = vsel %vm568, %v4289, %v4291
        %v4305 = vsel %vm568, %v4291, %v4293
        %v4306 = vsel %vm568, %v4293, %v4295
        %v4307 = vsel %vm568, %v4295, %v4297
        %v4308 = vsel %vm568, %v4297, %v4299
        %v4309 = vsel %vm568, %v4299, %v4301
        %v4318 = vmax.f32 %v4266, %v4302
        %v4319 = vmax.f32 %v4267, %v4303
        %v4320 = vmax.f32 %v4268, %v4304
        %v4321 = vmax.f32 %v4269, %v4305
        %v4322 = vmax.f32 %v4270, %v4306
        %v4323 = vmax.f32 %v4271, %v4307
        %v4324 = vmax.f32 %v4272, %v4308
        %v4325 = vmax.f32 %v4273, %v4309
        %v4327 = vmax.f32 %v4274, %v4301
        %4337 = vrot.lane.b32.xlu0 %v4318, 96
        %v4338 = vpop.permute.xlu0 %4337
        %4339 = vrot.lane.b32.xlu0 %v4319, 96
        %v4340 = vpop.permute.xlu0 %4339
        %4341 = vrot.lane.b32.xlu0 %v4320, 96
        %v4342 = vpop.permute.xlu0 %4341
        %4343 = vrot.lane.b32.xlu0 %v4321, 96
        %v4344 = vpop.permute.xlu0 %4343
        %4345 = vrot.lane.b32.xlu0 %v4322, 96
        %v4346 = vpop.permute.xlu0 %4345
        %4347 = vrot.lane.b32.xlu0 %v4323, 96
        %v4348 = vpop.permute.xlu0 %4347
        %4349 = vrot.lane.b32.xlu0 %v4324, 96
        %v4350 = vpop.permute.xlu0 %4349
        %4351 = vrot.lane.b32.xlu0 %v4325, 96
        %v4352 = vpop.permute.xlu0 %4351
        %4353 = vrot.lane.b32.xlu0 %v4327, 96
        %v4354 = vpop.permute.xlu0 %4353
        %v4355 = vsel %vm1072, %v4338, %v4340
        %v4356 = vsel %vm1072, %v4340, %v4342
        %v4357 = vsel %vm1072, %v4342, %v4344
        %v4358 = vsel %vm1072, %v4344, %v4346
        %v4359 = vsel %vm1072, %v4346, %v4348
        %v4360 = vsel %vm1072, %v4348, %v4350
        %v4361 = vsel %vm1072, %v4350, %v4352
        %v4362 = vsel %vm1072, %v4352, %v4354
        %v4371 = vmax.f32 %v4318, %v4355
        %v4372 = vmax.f32 %v4319, %v4356
        %v4373 = vmax.f32 %v4320, %v4357
        %v4374 = vmax.f32 %v4321, %v4358
        %v4375 = vmax.f32 %v4322, %v4359
        %v4376 = vmax.f32 %v4323, %v4360
        %v4377 = vmax.f32 %v4324, %v4361
        %v4378 = vmax.f32 %v4325, %v4362
        %4379 = vst [vmem:[#allocation4] sm:$0x3f] %v4371
        %4380 = vst [vmem:[#allocation4 + $0x8] sm:$0x3f] %v4372
        %4381 = vst [vmem:[#allocation4 + $0x10] sm:$0x3f] %v4373
        %4382 = vst [vmem:[#allocation4 + $0x18] sm:$0x3f] %v4374
        %4383 = vst [vmem:[#allocation4 + $0x20] sm:$0x3f] %v4375
        %4384 = vst [vmem:[#allocation4 + $0x28] sm:$0x3f] %v4376
        %4385 = vst [vmem:[#allocation4 + $0x30] sm:$0x3f] %v4377
        %4386 = vst [vmem:[#allocation4 + $0x38] sm:$0x3f] %v4378
        %v4387 = vld [vmem:[#allocation3 + $0x40] sm:$0x3f]
        %v4388 = vld [vmem:[#allocation3 + $0x48] sm:$0x3f]
        %v4389 = vld [vmem:[#allocation3 + $0x50] sm:$0x3f]
        %v4390 = vld [vmem:[#allocation3 + $0x58] sm:$0x3f]
        %v4391 = vld [vmem:[#allocation3 + $0x60] sm:$0x3f]
        %v4392 = vld [vmem:[#allocation3 + $0x68] sm:$0x3f]
        %v4393 = vld [vmem:[#allocation3 + $0x70] sm:$0x3f]
        %v4394 = vld [vmem:[#allocation3 + $0x78] sm:$0x3f]
        %v4395 = vld [vmem:[#allocation3 + $0x80] sm:$0x3f]
        %4405 = vrot.lane.b32.xlu0 %v4387, 127
        %v4406 = vpop.permute.xlu0 %4405
        %4407 = vrot.lane.b32.xlu0 %v4388, 127
        %v4408 = vpop.permute.xlu0 %4407
        %4409 = vrot.lane.b32.xlu0 %v4389, 127
        %v4410 = vpop.permute.xlu0 %4409
        %4411 = vrot.lane.b32.xlu0 %v4390, 127
        %v4412 = vpop.permute.xlu0 %4411
        %4413 = vrot.lane.b32.xlu0 %v4391, 127
        %v4414 = vpop.permute.xlu0 %4413
        %4415 = vrot.lane.b32.xlu0 %v4392, 127
        %v4416 = vpop.permute.xlu0 %4415
        %4417 = vrot.lane.b32.xlu0 %v4393, 127
        %v4418 = vpop.permute.xlu0 %4417
        %4419 = vrot.lane.b32.xlu0 %v4394, 127
        %v4420 = vpop.permute.xlu0 %4419
        %4421 = vrot.lane.b32.xlu0 %v4395, 127
        %v4422 = vpop.permute.xlu0 %4421
        %v4423 = vsel %vm568, %v4406, %v4408
        %v4424 = vsel %vm568, %v4408, %v4410
        %v4425 = vsel %vm568, %v4410, %v4412
        %v4426 = vsel %vm568, %v4412, %v4414
        %v4427 = vsel %vm568, %v4414, %v4416
        %v4428 = vsel %vm568, %v4416, %v4418
        %v4429 = vsel %vm568, %v4418, %v4420
        %v4430 = vsel %vm568, %v4420, %v4422
        %v4439 = vmax.f32 %v4387, %v4423
        %v4440 = vmax.f32 %v4388, %v4424
        %v4441 = vmax.f32 %v4389, %v4425
        %v4442 = vmax.f32 %v4390, %v4426
        %v4443 = vmax.f32 %v4391, %v4427
        %v4444 = vmax.f32 %v4392, %v4428
        %v4445 = vmax.f32 %v4393, %v4429
        %v4446 = vmax.f32 %v4394, %v4430
        %v4448 = vmax.f32 %v4395, %v4422
        %4458 = vrot.lane.b32.xlu0 %v4439, 96
        %v4459 = vpop.permute.xlu0 %4458
        %4460 = vrot.lane.b32.xlu0 %v4440, 96
        %v4461 = vpop.permute.xlu0 %4460
        %4462 = vrot.lane.b32.xlu0 %v4441, 96
        %v4463 = vpop.permute.xlu0 %4462
        %4464 = vrot.lane.b32.xlu0 %v4442, 96
        %v4465 = vpop.permute.xlu0 %4464
        %4466 = vrot.lane.b32.xlu0 %v4443, 96
        %v4467 = vpop.permute.xlu0 %4466
        %4468 = vrot.lane.b32.xlu0 %v4444, 96
        %v4469 = vpop.permute.xlu0 %4468
        %4470 = vrot.lane.b32.xlu0 %v4445, 96
        %v4471 = vpop.permute.xlu0 %4470
        %4472 = vrot.lane.b32.xlu0 %v4446, 96
        %v4473 = vpop.permute.xlu0 %4472
        %4474 = vrot.lane.b32.xlu0 %v4448, 96
        %v4475 = vpop.permute.xlu0 %4474
        %v4476 = vsel %vm1072, %v4459, %v4461
        %v4477 = vsel %vm1072, %v4461, %v4463
        %v4478 = vsel %vm1072, %v4463, %v4465
        %v4479 = vsel %vm1072, %v4465, %v4467
        %v4480 = vsel %vm1072, %v4467, %v4469
        %v4481 = vsel %vm1072, %v4469, %v4471
        %v4482 = vsel %vm1072, %v4471, %v4473
        %v4483 = vsel %vm1072, %v4473, %v4475
        %v4492 = vmax.f32 %v4439, %v4476
        %v4493 = vmax.f32 %v4440, %v4477
        %v4494 = vmax.f32 %v4441, %v4478
        %v4495 = vmax.f32 %v4442, %v4479
        %v4496 = vmax.f32 %v4443, %v4480
        %v4497 = vmax.f32 %v4444, %v4481
        %v4498 = vmax.f32 %v4445, %v4482
        %v4499 = vmax.f32 %v4446, %v4483
        %v4508 = vrot.slane %v4492, 2
        %v4509 = vrot.slane %v4493, 2
        %v4510 = vrot.slane %v4494, 2
        %v4511 = vrot.slane %v4495, 2
        %v4512 = vrot.slane %v4496, 2
        %v4513 = vrot.slane %v4497, 2
        %v4514 = vrot.slane %v4498, 2
        %v4515 = vrot.slane %v4499, 2
        %4524 = vst [vmem:[#allocation4] sm:$0xc0] %v4508
        %4525 = vst [vmem:[#allocation4 + $0x8] sm:$0xc0] %v4509
        %4526 = vst [vmem:[#allocation4 + $0x10] sm:$0xc0] %v4510
        %4527 = vst [vmem:[#allocation4 + $0x18] sm:$0xc0] %v4511
        %4528 = vst [vmem:[#allocation4 + $0x20] sm:$0xc0] %v4512
        %4529 = vst [vmem:[#allocation4 + $0x28] sm:$0xc0] %v4513
        %4530 = vst [vmem:[#allocation4 + $0x30] sm:$0xc0] %v4514
        %4531 = vst [vmem:[#allocation4 + $0x38] sm:$0xc0] %v4515
        %4532 = vst [vmem:[#allocation4 + $0x40] sm:$0xf] %v4508
        %4533 = vst [vmem:[#allocation4 + $0x48] sm:$0xf] %v4509
        %4534 = vst [vmem:[#allocation4 + $0x50] sm:$0xf] %v4510
        %4535 = vst [vmem:[#allocation4 + $0x58] sm:$0xf] %v4511
        %4536 = vst [vmem:[#allocation4 + $0x60] sm:$0xf] %v4512
        %4537 = vst [vmem:[#allocation4 + $0x68] sm:$0xf] %v4513
        %4538 = vst [vmem:[#allocation4 + $0x70] sm:$0xf] %v4514
        %4539 = vst [vmem:[#allocation4 + $0x78] sm:$0xf] %v4515
        %v4540 = vld [vmem:[#allocation4] sm:$0xff]
        %v4541 = vld [vmem:[#allocation4 + $0x8] sm:$0xff]
        %v4542 = vld [vmem:[#allocation4 + $0x10] sm:$0xff]
        %v4543 = vld [vmem:[#allocation4 + $0x18] sm:$0xff]
        %v4544 = vld [vmem:[#allocation4 + $0x20] sm:$0xff]
        %v4545 = vld [vmem:[#allocation4 + $0x28] sm:$0xff]
        %v4546 = vld [vmem:[#allocation4 + $0x30] sm:$0xff]
        %v4547 = vld [vmem:[#allocation4 + $0x38] sm:$0xff]
        %v4548 = vld [vmem:[#allocation4 + $0x40] sm:$0xf]
        %v4549 = vld [vmem:[#allocation4 + $0x48] sm:$0xf]
        %v4550 = vld [vmem:[#allocation4 + $0x50] sm:$0xf]
        %v4551 = vld [vmem:[#allocation4 + $0x58] sm:$0xf]
        %v4552 = vld [vmem:[#allocation4 + $0x60] sm:$0xf]
        %v4553 = vld [vmem:[#allocation4 + $0x68] sm:$0xf]
        %v4554 = vld [vmem:[#allocation4 + $0x70] sm:$0xf]
        %v4555 = vld [vmem:[#allocation4 + $0x78] sm:$0xf]
        %v4556 = vld [vmem:[%s5] sm:$0xff]
        %v4557 = vld [vmem:[%s5 + $0x8] sm:$0xff]
        %v4558 = vld [vmem:[%s5 + $0x10] sm:$0xff]
        %v4559 = vld [vmem:[%s5 + $0x18] sm:$0xff]
        %v4560 = vld [vmem:[%s5 + $0x20] sm:$0xff]
        %v4561 = vld [vmem:[%s5 + $0x28] sm:$0xff]
        %v4562 = vld [vmem:[%s5 + $0x30] sm:$0xff]
        %v4563 = vld [vmem:[%s5 + $0x38] sm:$0xff]
        %v4564 = vld [vmem:[%s5 + $0x40] sm:$0xff]
        %v4565 = vld [vmem:[%s5 + $0x48] sm:$0xff]
        %v4566 = vld [vmem:[%s5 + $0x50] sm:$0xff]
        %v4567 = vld [vmem:[%s5 + $0x58] sm:$0xff]
        %v4568 = vld [vmem:[%s5 + $0x60] sm:$0xff]
        %v4569 = vld [vmem:[%s5 + $0x68] sm:$0xff]
        %v4570 = vld [vmem:[%s5 + $0x70] sm:$0xff]
        %v4571 = vld [vmem:[%s5 + $0x78] sm:$0xff]
        %v4572 = vld [vmem:[%s5 + $0x80] sm:$0xff]
        %v4573 = vld [vmem:[%s5 + $0x88] sm:$0xff]
        %v4574 = vld [vmem:[%s5 + $0x90] sm:$0xff]
        %v4575 = vld [vmem:[%s5 + $0x98] sm:$0xff]
        %v4576 = vld [vmem:[%s5 + $0xa0] sm:$0xff]
        %v4577 = vld [vmem:[%s5 + $0xa8] sm:$0xff]
        %v4578 = vld [vmem:[%s5 + $0xb0] sm:$0xff]
        %v4579 = vld [vmem:[%s5 + $0xb8] sm:$0xff]
        %v4580 = vld [vmem:[%s5 + $0xc0] sm:$0xff]
        %v4581 = vld [vmem:[%s5 + $0xc8] sm:$0xff]
        %v4582 = vld [vmem:[%s5 + $0xd0] sm:$0xff]
        %v4583 = vld [vmem:[%s5 + $0xd8] sm:$0xff]
        %v4584 = vld [vmem:[%s5 + $0xe0] sm:$0xff]
        %v4585 = vld [vmem:[%s5 + $0xe8] sm:$0xff]
        %v4586 = vld [vmem:[%s5 + $0xf0] sm:$0xff]
        %v4587 = vld [vmem:[%s5 + $0xf8] sm:$0xff]
        %v4588 = vld [vmem:[%s5 + $0x100] sm:$0xff]
        %v4589 = vld [vmem:[%s5 + $0x108] sm:$0xff]
        %v4590 = vld [vmem:[%s5 + $0x110] sm:$0xff]
        %v4591 = vld [vmem:[%s5 + $0x118] sm:$0xff]
        %v4592 = vld [vmem:[%s5 + $0x120] sm:$0xff]
        %v4593 = vld [vmem:[%s5 + $0x128] sm:$0xff]
        %v4594 = vld [vmem:[%s5 + $0x130] sm:$0xff]
        %v4595 = vld [vmem:[%s5 + $0x138] sm:$0xff]
        %v4596 = vld [vmem:[%s5 + $0x140] sm:$0xff]
        %v4597 = vld [vmem:[%s5 + $0x148] sm:$0xff]
        %v4598 = vld [vmem:[%s5 + $0x150] sm:$0xff]
        %v4599 = vld [vmem:[%s5 + $0x158] sm:$0xff]
        %v4600 = vld [vmem:[%s5 + $0x160] sm:$0xff]
        %v4601 = vld [vmem:[%s5 + $0x168] sm:$0xff]
        %v4602 = vld [vmem:[%s5 + $0x170] sm:$0xff]
        %v4603 = vld [vmem:[%s5 + $0x178] sm:$0xff]
        %v4604 = vld [vmem:[%s5 + $0x180] sm:$0xff]
        %v4605 = vld [vmem:[%s5 + $0x188] sm:$0xff]
        %v4606 = vld [vmem:[%s5 + $0x190] sm:$0xff]
        %v4607 = vld [vmem:[%s5 + $0x198] sm:$0xff]
        %v4608 = vld [vmem:[%s5 + $0x1a0] sm:$0xff]
        %v4609 = vld [vmem:[%s5 + $0x1a8] sm:$0xff]
        %v4610 = vld [vmem:[%s5 + $0x1b0] sm:$0xff]
        %v4611 = vld [vmem:[%s5 + $0x1b8] sm:$0xff]
        %v4612 = vld [vmem:[%s5 + $0x1c0] sm:$0xff]
        %v4613 = vld [vmem:[%s5 + $0x1c8] sm:$0xff]
        %v4614 = vld [vmem:[%s5 + $0x1d0] sm:$0xff]
        %v4615 = vld [vmem:[%s5 + $0x1d8] sm:$0xff]
        %v4616 = vld [vmem:[%s5 + $0x1e0] sm:$0xff]
        %v4617 = vld [vmem:[%s5 + $0x1e8] sm:$0xff]
        %v4618 = vld [vmem:[%s5 + $0x1f0] sm:$0xff]
        %v4619 = vld [vmem:[%s5 + $0x1f8] sm:$0xff]
        %v4620 = vld [vmem:[%s5 + $0x200] sm:$0xff]
        %v4621 = vld [vmem:[%s5 + $0x208] sm:$0xff]
        %v4622 = vld [vmem:[%s5 + $0x210] sm:$0xff]
        %v4623 = vld [vmem:[%s5 + $0x218] sm:$0xff]
        %v4624 = vld [vmem:[%s5 + $0x220] sm:$0xff]
        %v4625 = vld [vmem:[%s5 + $0x228] sm:$0xff]
        %v4626 = vld [vmem:[%s5 + $0x230] sm:$0xff]
        %v4627 = vld [vmem:[%s5 + $0x238] sm:$0xff]
        %v4628 = vld [vmem:[%s5 + $0x240] sm:$0xff]
        %v4629 = vld [vmem:[%s5 + $0x248] sm:$0xff]
        %v4630 = vld [vmem:[%s5 + $0x250] sm:$0xff]
        %v4631 = vld [vmem:[%s5 + $0x258] sm:$0xff]
        %v4632 = vld [vmem:[%s5 + $0x260] sm:$0xff]
        %v4633 = vld [vmem:[%s5 + $0x268] sm:$0xff]
        %v4634 = vld [vmem:[%s5 + $0x270] sm:$0xff]
        %v4635 = vld [vmem:[%s5 + $0x278] sm:$0xff]
        %v4636 = vld [vmem:[%s5 + $0x280] sm:$0xff]
        %v4637 = vld [vmem:[%s5 + $0x288] sm:$0xff]
        %v4638 = vld [vmem:[%s5 + $0x290] sm:$0xff]
        %v4639 = vld [vmem:[%s5 + $0x298] sm:$0xff]
        %v4640 = vld [vmem:[%s5 + $0x2a0] sm:$0xff]
        %v4641 = vld [vmem:[%s5 + $0x2a8] sm:$0xff]
        %v4642 = vld [vmem:[%s5 + $0x2b0] sm:$0xff]
        %v4643 = vld [vmem:[%s5 + $0x2b8] sm:$0xff]
        %v4644 = vld [vmem:[%s5 + $0x2c0] sm:$0xff]
        %v4645 = vld [vmem:[%s5 + $0x2c8] sm:$0xff]
        %v4646 = vld [vmem:[%s5 + $0x2d0] sm:$0xff]
        %v4647 = vld [vmem:[%s5 + $0x2d8] sm:$0xff]
        %v4648 = vld [vmem:[%s5 + $0x2e0] sm:$0xff]
        %v4649 = vld [vmem:[%s5 + $0x2e8] sm:$0xff]
        %v4650 = vld [vmem:[%s5 + $0x2f0] sm:$0xff]
        %v4651 = vld [vmem:[%s5 + $0x2f8] sm:$0xff]
        %v4652 = vld [vmem:[%s5 + $0x300] sm:$0xff]
        %v4653 = vld [vmem:[%s5 + $0x308] sm:$0xff]
        %v4654 = vld [vmem:[%s5 + $0x310] sm:$0xff]
        %v4655 = vld [vmem:[%s5 + $0x318] sm:$0xff]
        %v4656 = vld [vmem:[%s5 + $0x320] sm:$0xff]
        %v4657 = vld [vmem:[%s5 + $0x328] sm:$0xff]
        %v4658 = vld [vmem:[%s5 + $0x330] sm:$0xff]
        %v4659 = vld [vmem:[%s5 + $0x338] sm:$0xff]
        %v4660 = vld [vmem:[%s5 + $0x340] sm:$0xff]
        %v4661 = vld [vmem:[%s5 + $0x348] sm:$0xff]
        %v4662 = vld [vmem:[%s5 + $0x350] sm:$0xff]
        %v4663 = vld [vmem:[%s5 + $0x358] sm:$0xff]
        %v4664 = vld [vmem:[%s5 + $0x360] sm:$0xff]
        %v4665 = vld [vmem:[%s5 + $0x368] sm:$0xff]
        %v4666 = vld [vmem:[%s5 + $0x370] sm:$0xff]
        %v4667 = vld [vmem:[%s5 + $0x378] sm:$0xff]
        %v4668 = vld [vmem:[%s5 + $0x380] sm:$0xff]
        %v4669 = vld [vmem:[%s5 + $0x388] sm:$0xff]
        %v4670 = vld [vmem:[%s5 + $0x390] sm:$0xff]
        %v4671 = vld [vmem:[%s5 + $0x398] sm:$0xff]
        %v4672 = vld [vmem:[%s5 + $0x3a0] sm:$0xff]
        %v4673 = vld [vmem:[%s5 + $0x3a8] sm:$0xff]
        %v4674 = vld [vmem:[%s5 + $0x3b0] sm:$0xff]
        %v4675 = vld [vmem:[%s5 + $0x3b8] sm:$0xff]
        %v4676 = vld [vmem:[%s5 + $0x3c0] sm:$0xff]
        %v4677 = vld [vmem:[%s5 + $0x3c8] sm:$0xff]
        %v4678 = vld [vmem:[%s5 + $0x3d0] sm:$0xff]
        %v4679 = vld [vmem:[%s5 + $0x3d8] sm:$0xff]
        %v4680 = vld [vmem:[%s5 + $0x3e0] sm:$0xff]
        %v4681 = vld [vmem:[%s5 + $0x3e8] sm:$0xff]
        %v4682 = vld [vmem:[%s5 + $0x3f0] sm:$0xff]
        %v4683 = vld [vmem:[%s5 + $0x3f8] sm:$0xff]
        %v4684 = vld [vmem:[%s5 + $0x400] sm:$0xff]
        %v4685 = vld [vmem:[%s5 + $0x408] sm:$0xff]
        %v4686 = vld [vmem:[%s5 + $0x410] sm:$0xff]
        %v4687 = vld [vmem:[%s5 + $0x418] sm:$0xff]
        %v4688 = vld [vmem:[%s5 + $0x420] sm:$0xff]
        %v4689 = vld [vmem:[%s5 + $0x428] sm:$0xff]
        %v4690 = vld [vmem:[%s5 + $0x430] sm:$0xff]
        %v4691 = vld [vmem:[%s5 + $0x438] sm:$0xff]
        %v4692 = vld [vmem:[%s5 + $0x440] sm:$0xff]
        %v4693 = vld [vmem:[%s5 + $0x448] sm:$0xff]
        %v4694 = vld [vmem:[%s5 + $0x450] sm:$0xff]
        %v4695 = vld [vmem:[%s5 + $0x458] sm:$0xff]
        %v4696 = vld [vmem:[%s5 + $0x460] sm:$0xff]
        %v4697 = vld [vmem:[%s5 + $0x468] sm:$0xff]
        %v4698 = vld [vmem:[%s5 + $0x470] sm:$0xff]
        %v4699 = vld [vmem:[%s5 + $0x478] sm:$0xff]
        %v4700 = vld [vmem:[%s5 + $0x480] sm:$0xff]
        %v4701 = vld [vmem:[%s5 + $0x488] sm:$0xff]
        %v4702 = vld [vmem:[%s5 + $0x490] sm:$0xff]
        %v4703 = vld [vmem:[%s5 + $0x498] sm:$0xff]
        %v4704 = vld [vmem:[%s5 + $0x4a0] sm:$0xff]
        %v4705 = vld [vmem:[%s5 + $0x4a8] sm:$0xff]
        %v4706 = vld [vmem:[%s5 + $0x4b0] sm:$0xff]
        %v4707 = vld [vmem:[%s5 + $0x4b8] sm:$0xff]
        %v4708 = vld [vmem:[%s5 + $0x4c0] sm:$0xff]
        %v4709 = vld [vmem:[%s5 + $0x4c8] sm:$0xff]
        %v4710 = vld [vmem:[%s5 + $0x4d0] sm:$0xff]
        %v4711 = vld [vmem:[%s5 + $0x4d8] sm:$0xff]
        %v4712 = vld [vmem:[%s5 + $0x4e0] sm:$0xff]
        %v4713 = vld [vmem:[%s5 + $0x4e8] sm:$0xff]
        %v4714 = vld [vmem:[%s5 + $0x4f0] sm:$0xff]
        %v4715 = vld [vmem:[%s5 + $0x4f8] sm:$0xff]
        %v4716 = vld [vmem:[%s5 + $0x500] sm:$0xff]
        %v4717 = vld [vmem:[%s5 + $0x508] sm:$0xff]
        %v4718 = vld [vmem:[%s5 + $0x510] sm:$0xff]
        %v4719 = vld [vmem:[%s5 + $0x518] sm:$0xff]
        %v4720 = vld [vmem:[%s5 + $0x520] sm:$0xff]
        %v4721 = vld [vmem:[%s5 + $0x528] sm:$0xff]
        %v4722 = vld [vmem:[%s5 + $0x530] sm:$0xff]
        %v4723 = vld [vmem:[%s5 + $0x538] sm:$0xff]
        %v4724 = vld [vmem:[%s5 + $0x540] sm:$0xff]
        %v4725 = vld [vmem:[%s5 + $0x548] sm:$0xff]
        %v4726 = vld [vmem:[%s5 + $0x550] sm:$0xff]
        %v4727 = vld [vmem:[%s5 + $0x558] sm:$0xff]
        %v4728 = vld [vmem:[%s5 + $0x560] sm:$0xff]
        %v4729 = vld [vmem:[%s5 + $0x568] sm:$0xff]
        %v4730 = vld [vmem:[%s5 + $0x570] sm:$0xff]
        %v4731 = vld [vmem:[%s5 + $0x578] sm:$0xff]
        %v4732 = vld [vmem:[%s5 + $0x580] sm:$0xff]
        %v4733 = vld [vmem:[%s5 + $0x588] sm:$0xff]
        %v4734 = vld [vmem:[%s5 + $0x590] sm:$0xff]
        %v4735 = vld [vmem:[%s5 + $0x598] sm:$0xff]
        %v4736 = vld [vmem:[%s5 + $0x5a0] sm:$0xff]
        %v4737 = vld [vmem:[%s5 + $0x5a8] sm:$0xff]
        %v4738 = vld [vmem:[%s5 + $0x5b0] sm:$0xff]
        %v4739 = vld [vmem:[%s5 + $0x5b8] sm:$0xff]
        %v4740 = vld [vmem:[%s5 + $0x5c0] sm:$0xff]
        %v4741 = vld [vmem:[%s5 + $0x5c8] sm:$0xff]
        %v4742 = vld [vmem:[%s5 + $0x5d0] sm:$0xff]
        %v4743 = vld [vmem:[%s5 + $0x5d8] sm:$0xff]
        %v4744 = vld [vmem:[%s5 + $0x5e0] sm:$0xff]
        %v4745 = vld [vmem:[%s5 + $0x5e8] sm:$0xff]
        %v4746 = vld [vmem:[%s5 + $0x5f0] sm:$0xff]
        %v4747 = vld [vmem:[%s5 + $0x5f8] sm:$0xff]
        %v4748 = vld [vmem:[%s5 + $0x600] sm:$0xff]
        %v4749 = vld [vmem:[%s5 + $0x608] sm:$0xff]
        %v4750 = vld [vmem:[%s5 + $0x610] sm:$0xff]
        %v4751 = vld [vmem:[%s5 + $0x618] sm:$0xff]
        %v4752 = vld [vmem:[%s5 + $0x620] sm:$0xff]
        %v4753 = vld [vmem:[%s5 + $0x628] sm:$0xff]
        %v4754 = vld [vmem:[%s5 + $0x630] sm:$0xff]
        %v4755 = vld [vmem:[%s5 + $0x638] sm:$0xff]
        %v4756 = vld [vmem:[%s5 + $0x640] sm:$0xff]
        %v4757 = vld [vmem:[%s5 + $0x648] sm:$0xff]
        %v4758 = vld [vmem:[%s5 + $0x650] sm:$0xff]
        %v4759 = vld [vmem:[%s5 + $0x658] sm:$0xff]
        %v4760 = vld [vmem:[%s5 + $0x660] sm:$0xff]
        %v4761 = vld [vmem:[%s5 + $0x668] sm:$0xff]
        %v4762 = vld [vmem:[%s5 + $0x670] sm:$0xff]
        %v4763 = vld [vmem:[%s5 + $0x678] sm:$0xff]
        %v4764 = vld [vmem:[%s5 + $0x680] sm:$0xff]
        %v4765 = vld [vmem:[%s5 + $0x688] sm:$0xff]
        %v4766 = vld [vmem:[%s5 + $0x690] sm:$0xff]
        %v4767 = vld [vmem:[%s5 + $0x698] sm:$0xff]
        %v4768 = vld [vmem:[%s5 + $0x6a0] sm:$0xff]
        %v4769 = vld [vmem:[%s5 + $0x6a8] sm:$0xff]
        %v4770 = vld [vmem:[%s5 + $0x6b0] sm:$0xff]
        %v4771 = vld [vmem:[%s5 + $0x6b8] sm:$0xff]
        %v4772 = vld [vmem:[%s5 + $0x6c0] sm:$0xff]
        %v4773 = vld [vmem:[%s5 + $0x6c8] sm:$0xff]
        %v4774 = vld [vmem:[%s5 + $0x6d0] sm:$0xff]
        %v4775 = vld [vmem:[%s5 + $0x6d8] sm:$0xff]
        %v4776 = vld [vmem:[%s5 + $0x6e0] sm:$0xff]
        %v4777 = vld [vmem:[%s5 + $0x6e8] sm:$0xff]
        %v4778 = vld [vmem:[%s5 + $0x6f0] sm:$0xff]
        %v4779 = vld [vmem:[%s5 + $0x6f8] sm:$0xff]
        %v4780 = vld [vmem:[%s5 + $0x700] sm:$0xff]
        %v4781 = vld [vmem:[%s5 + $0x708] sm:$0xff]
        %v4782 = vld [vmem:[%s5 + $0x710] sm:$0xff]
        %v4783 = vld [vmem:[%s5 + $0x718] sm:$0xff]
        %v4784 = vld [vmem:[%s5 + $0x720] sm:$0xff]
        %v4785 = vld [vmem:[%s5 + $0x728] sm:$0xff]
        %v4786 = vld [vmem:[%s5 + $0x730] sm:$0xff]
        %v4787 = vld [vmem:[%s5 + $0x738] sm:$0xff]
        %v4788 = vld [vmem:[%s5 + $0x740] sm:$0xff]
        %v4789 = vld [vmem:[%s5 + $0x748] sm:$0xff]
        %v4790 = vld [vmem:[%s5 + $0x750] sm:$0xff]
        %v4791 = vld [vmem:[%s5 + $0x758] sm:$0xff]
        %v4792 = vld [vmem:[%s5 + $0x760] sm:$0xff]
        %v4793 = vld [vmem:[%s5 + $0x768] sm:$0xff]
        %v4794 = vld [vmem:[%s5 + $0x770] sm:$0xff]
        %v4795 = vld [vmem:[%s5 + $0x778] sm:$0xff]
        %v4796 = vld [vmem:[%s5 + $0x780] sm:$0xff]
        %v4797 = vld [vmem:[%s5 + $0x788] sm:$0xff]
        %v4798 = vld [vmem:[%s5 + $0x790] sm:$0xff]
        %v4799 = vld [vmem:[%s5 + $0x798] sm:$0xff]
        %v4800 = vld [vmem:[%s5 + $0x7a0] sm:$0xff]
        %v4801 = vld [vmem:[%s5 + $0x7a8] sm:$0xff]
        %v4802 = vld [vmem:[%s5 + $0x7b0] sm:$0xff]
        %v4803 = vld [vmem:[%s5 + $0x7b8] sm:$0xff]
        %v4804 = vld [vmem:[%s5 + $0x7c0] sm:$0xff]
        %v4805 = vld [vmem:[%s5 + $0x7c8] sm:$0xff]
        %v4806 = vld [vmem:[%s5 + $0x7d0] sm:$0xff]
        %v4807 = vld [vmem:[%s5 + $0x7d8] sm:$0xff]
        %v4808 = vld [vmem:[%s5 + $0x7e0] sm:$0xff]
        %v4809 = vld [vmem:[%s5 + $0x7e8] sm:$0xff]
        %v4810 = vld [vmem:[%s5 + $0x7f0] sm:$0xff]
        %v4811 = vld [vmem:[%s5 + $0x7f8] sm:$0xff]
        %4812 = vmatprep.subr.mxu0 %v4557
        %4813 = vmatpush1.msra.mxu0 %v4556
        %4814 = vmatprep.subr.mxu0 %v4559
        %4815 = vmatpush1.msra.mxu0 %v4558
        %4816 = vmatprep.subr.mxu0 %v4561
        %4817 = vmatpush1.msra.mxu0 %v4560
        %4818 = vmatprep.subr.mxu0 %v4563
        %4819 = vmatpush1.msra.mxu0 %v4562
        %4820 = vmatprep.subr.mxu0 %v4565
        %4821 = vmatpush1.msra.mxu0 %v4564
        %4822 = vmatprep.subr.mxu0 %v4567
        %4823 = vmatpush1.msra.mxu0 %v4566
        %4824 = vmatprep.subr.mxu0 %v4569
        %4825 = vmatpush1.msra.mxu0 %v4568
        %4826 = vmatprep.subr.mxu0 %v4571
        %4827 = vmatpush1.msra.mxu0 %v4570
        %4828 = vmatprep.subr.mxu0 %v4573
        %4829 = vmatpush1.msra.mxu0 %v4572
        %4830 = vmatprep.subr.mxu0 %v4575
        %4831 = vmatpush1.msra.mxu0 %v4574
        %4832 = vmatprep.subr.mxu0 %v4577
        %4833 = vmatpush1.msra.mxu0 %v4576
        %4834 = vmatprep.subr.mxu0 %v4579
        %4835 = vmatpush1.msra.mxu0 %v4578
        %4836 = vmatprep.subr.mxu0 %v4581
        %4837 = vmatpush1.msra.mxu0 %v4580
        %4838 = vmatprep.subr.mxu0 %v4583
        %4839 = vmatpush1.msra.mxu0 %v4582
        %4840 = vmatprep.subr.mxu0 %v4585
        %4841 = vmatpush1.msra.mxu0 %v4584
        %4842 = vmatprep.subr.mxu0 %v4587
        %4843 = vmatpush1.msra.mxu0 %v4586
        %4844 = vmatprep.subr.mxu0 %v4589
        %4845 = vmatpush1.msra.mxu0 %v4588
        %4846 = vmatprep.subr.mxu0 %v4591
        %4847 = vmatpush1.msra.mxu0 %v4590
        %4848 = vmatprep.subr.mxu0 %v4593
        %4849 = vmatpush1.msra.mxu0 %v4592
        %4850 = vmatprep.subr.mxu0 %v4595
        %4851 = vmatpush1.msra.mxu0 %v4594
        %4852 = vmatprep.subr.mxu0 %v4597
        %4853 = vmatpush1.msra.mxu0 %v4596
        %4854 = vmatprep.subr.mxu0 %v4599
        %4855 = vmatpush1.msra.mxu0 %v4598
        %4856 = vmatprep.subr.mxu0 %v4601
        %4857 = vmatpush1.msra.mxu0 %v4600
        %4858 = vmatprep.subr.mxu0 %v4603
        %4859 = vmatpush1.msra.mxu0 %v4602
        %4860 = vmatprep.subr.mxu0 %v4605
        %4861 = vmatpush1.msra.mxu0 %v4604
        %4862 = vmatprep.subr.mxu0 %v4607
        %4863 = vmatpush1.msra.mxu0 %v4606
        %4864 = vmatprep.subr.mxu0 %v4609
        %4865 = vmatpush1.msra.mxu0 %v4608
        %4866 = vmatprep.subr.mxu0 %v4611
        %4867 = vmatpush1.msra.mxu0 %v4610
        %4868 = vmatprep.subr.mxu0 %v4613
        %4869 = vmatpush1.msra.mxu0 %v4612
        %4870 = vmatprep.subr.mxu0 %v4615
        %4871 = vmatpush1.msra.mxu0 %v4614
        %4872 = vmatprep.subr.mxu0 %v4617
        %4873 = vmatpush1.msra.mxu0 %v4616
        %4874 = vmatprep.subr.mxu0 %v4619
        %4875 = vmatpush1.msra.mxu0 %v4618
        %4876 = vmatprep.mubr.f32.mxu0 %v4541
        %4877 = vmatmul.mubr.f32.gmra.mrb[0].mxu0 %v4540
        %v4878 = vpop.f32.mrb[0].mxu0
        %v4879 = vadd.f32 0.0, %v4878
        %v4880 = vpop.f32.mrb[0].mxu0
        %v4881 = vadd.f32 0.0, %v4880
        %4882 = vmatprep.mubr.f32.mxu0 %v4549
        %4883 = vmatmul.mubr.f32.gmra.mrb[0].mxu0 %v4548
        %v4884 = vpop.f32.mrb[0].mxu0
        %v4885 = vadd.f32 0.0, %v4884
        %v4886 = vpop.f32.mrb[0].mxu0
        %v4887 = vadd.f32 0.0, %v4886
        %4888 = vdwg.mxu0
        %4889 = vmatprep.subr.mxu0 %v4621
        %4890 = vmatpush1.msra.mxu0 %v4620
        %4891 = vmatprep.subr.mxu0 %v4623
        %4892 = vmatpush1.msra.mxu0 %v4622
        %4893 = vmatprep.subr.mxu0 %v4625
        %4894 = vmatpush1.msra.mxu0 %v4624
        %4895 = vmatprep.subr.mxu0 %v4627
        %4896 = vmatpush1.msra.mxu0 %v4626
        %4897 = vmatprep.subr.mxu0 %v4629
        %4898 = vmatpush1.msra.mxu0 %v4628
        %4899 = vmatprep.subr.mxu0 %v4631
        %4900 = vmatpush1.msra.mxu0 %v4630
        %4901 = vmatprep.subr.mxu0 %v4633
        %4902 = vmatpush1.msra.mxu0 %v4632
        %4903 = vmatprep.subr.mxu0 %v4635
        %4904 = vmatpush1.msra.mxu0 %v4634
        %4905 = vmatprep.subr.mxu0 %v4637
        %4906 = vmatpush1.msra.mxu0 %v4636
        %4907 = vmatprep.subr.mxu0 %v4639
        %4908 = vmatpush1.msra.mxu0 %v4638
        %4909 = vmatprep.subr.mxu0 %v4641
        %4910 = vmatpush1.msra.mxu0 %v4640
        %4911 = vmatprep.subr.mxu0 %v4643
        %4912 = vmatpush1.msra.mxu0 %v4642
        %4913 = vmatprep.subr.mxu0 %v4645
        %4914 = vmatpush1.msra.mxu0 %v4644
        %4915 = vmatprep.subr.mxu0 %v4647
        %4916 = vmatpush1.msra.mxu0 %v4646
        %4917 = vmatprep.subr.mxu0 %v4649
        %4918 = vmatpush1.msra.mxu0 %v4648
        %4919 = vmatprep.subr.mxu0 %v4651
        %4920 = vmatpush1.msra.mxu0 %v4650
        %4921 = vmatprep.subr.mxu0 %v4653
        %4922 = vmatpush1.msra.mxu0 %v4652
        %4923 = vmatprep.subr.mxu0 %v4655
        %4924 = vmatpush1.msra.mxu0 %v4654
        %4925 = vmatprep.subr.mxu0 %v4657
        %4926 = vmatpush1.msra.mxu0 %v4656
        %4927 = vmatprep.subr.mxu0 %v4659
        %4928 = vmatpush1.msra.mxu0 %v4658
        %4929 = vmatprep.subr.mxu0 %v4661
        %4930 = vmatpush1.msra.mxu0 %v4660
        %4931 = vmatprep.subr.mxu0 %v4663
        %4932 = vmatpush1.msra.mxu0 %v4662
        %4933 = vmatprep.subr.mxu0 %v4665
        %4934 = vmatpush1.msra.mxu0 %v4664
        %4935 = vmatprep.subr.mxu0 %v4667
        %4936 = vmatpush1.msra.mxu0 %v4666
        %4937 = vmatprep.subr.mxu0 %v4669
        %4938 = vmatpush1.msra.mxu0 %v4668
        %4939 = vmatprep.subr.mxu0 %v4671
        %4940 = vmatpush1.msra.mxu0 %v4670
        %4941 = vmatprep.subr.mxu0 %v4673
        %4942 = vmatpush1.msra.mxu0 %v4672
        %4943 = vmatprep.subr.mxu0 %v4675
        %4944 = vmatpush1.msra.mxu0 %v4674
        %4945 = vmatprep.subr.mxu0 %v4677
        %4946 = vmatpush1.msra.mxu0 %v4676
        %4947 = vmatprep.subr.mxu0 %v4679
        %4948 = vmatpush1.msra.mxu0 %v4678
        %4949 = vmatprep.subr.mxu0 %v4681
        %4950 = vmatpush1.msra.mxu0 %v4680
        %4951 = vmatprep.subr.mxu0 %v4683
        %4952 = vmatpush1.msra.mxu0 %v4682
        %4953 = vmatprep.mubr.f32.mxu0 %v4543
        %4954 = vmatmul.mubr.f32.gmra.mrb[0].mxu0 %v4542
        %v4955 = vpop.f32.mrb[0].mxu0
        %v4956 = vadd.f32 %v4879, %v4955
        %v4957 = vpop.f32.mrb[0].mxu0
        %v4958 = vadd.f32 %v4881, %v4957
        %4959 = vmatprep.mubr.f32.mxu0 %v4551
        %4960 = vmatmul.mubr.f32.gmra.mrb[0].mxu0 %v4550
        %v4961 = vpop.f32.mrb[0].mxu0
        %v4962 = vadd.f32 %v4885, %v4961
        %v4963 = vpop.f32.mrb[0].mxu0
        %v4964 = vadd.f32 %v4887, %v4963
        %4965 = vdwg.mxu0
        %4966 = vmatprep.subr.mxu0 %v4685
        %4967 = vmatpush1.msra.mxu0 %v4684
        %4968 = vmatprep.subr.mxu0 %v4687
        %4969 = vmatpush1.msra.mxu0 %v4686
        %4970 = vmatprep.subr.mxu0 %v4689
        %4971 = vmatpush1.msra.mxu0 %v4688
        %4972 = vmatprep.subr.mxu0 %v4691
        %4973 = vmatpush1.msra.mxu0 %v4690
        %4974 = vmatprep.subr.mxu0 %v4693
        %4975 = vmatpush1.msra.mxu0 %v4692
        %4976 = vmatprep.subr.mxu0 %v4695
        %4977 = vmatpush1.msra.mxu0 %v4694
        %4978 = vmatprep.subr.mxu0 %v4697
        %4979 = vmatpush1.msra.mxu0 %v4696
        %4980 = vmatprep.subr.mxu0 %v4699
        %4981 = vmatpush1.msra.mxu0 %v4698
        %4982 = vmatprep.subr.mxu0 %v4701
        %4983 = vmatpush1.msra.mxu0 %v4700
        %4984 = vmatprep.subr.mxu0 %v4703
        %4985 = vmatpush1.msra.mxu0 %v4702
        %4986 = vmatprep.subr.mxu0 %v4705
        %4987 = vmatpush1.msra.mxu0 %v4704
        %4988 = vmatprep.subr.mxu0 %v4707
        %4989 = vmatpush1.msra.mxu0 %v4706
        %4990 = vmatprep.subr.mxu0 %v4709
        %4991 = vmatpush1.msra.mxu0 %v4708
        %4992 = vmatprep.subr.mxu0 %v4711
        %4993 = vmatpush1.msra.mxu0 %v4710
        %4994 = vmatprep.subr.mxu0 %v4713
        %4995 = vmatpush1.msra.mxu0 %v4712
        %4996 = vmatprep.subr.mxu0 %v4715
        %4997 = vmatpush1.msra.mxu0 %v4714
        %4998 = vmatprep.subr.mxu0 %v4717
        %4999 = vmatpush1.msra.mxu0 %v4716
        %5000 = vmatprep.subr.mxu0 %v4719
        %5001 = vmatpush1.msra.mxu0 %v4718
        %5002 = vmatprep.subr.mxu0 %v4721
        %5003 = vmatpush1.msra.mxu0 %v4720
        %5004 = vmatprep.subr.mxu0 %v4723
        %5005 = vmatpush1.msra.mxu0 %v4722
        %5006 = vmatprep.subr.mxu0 %v4725
        %5007 = vmatpush1.msra.mxu0 %v4724
        %5008 = vmatprep.subr.mxu0 %v4727
        %5009 = vmatpush1.msra.mxu0 %v4726
        %5010 = vmatprep.subr.mxu0 %v4729
        %5011 = vmatpush1.msra.mxu0 %v4728
        %5012 = vmatprep.subr.mxu0 %v4731
        %5013 = vmatpush1.msra.mxu0 %v4730
        %5014 = vmatprep.subr.mxu0 %v4733
        %5015 = vmatpush1.msra.mxu0 %v4732
        %5016 = vmatprep.subr.mxu0 %v4735
        %5017 = vmatpush1.msra.mxu0 %v4734
        %5018 = vmatprep.subr.mxu0 %v4737
        %5019 = vmatpush1.msra.mxu0 %v4736
        %5020 = vmatprep.subr.mxu0 %v4739
        %5021 = vmatpush1.msra.mxu0 %v4738
        %5022 = vmatprep.subr.mxu0 %v4741
        %5023 = vmatpush1.msra.mxu0 %v4740
        %5024 = vmatprep.subr.mxu0 %v4743
        %5025 = vmatpush1.msra.mxu0 %v4742
        %5026 = vmatprep.subr.mxu0 %v4745
        %5027 = vmatpush1.msra.mxu0 %v4744
        %5028 = vmatprep.subr.mxu0 %v4747
        %5029 = vmatpush1.msra.mxu0 %v4746
        %5030 = vmatprep.mubr.f32.mxu0 %v4545
        %5031 = vmatmul.mubr.f32.gmra.mrb[0].mxu0 %v4544
        %v5032 = vpop.f32.mrb[0].mxu0
        %v5033 = vadd.f32 %v4956, %v5032
        %v5034 = vpop.f32.mrb[0].mxu0
        %v5035 = vadd.f32 %v4958, %v5034
        %5036 = vmatprep.mubr.f32.mxu0 %v4553
        %5037 = vmatmul.mubr.f32.gmra.mrb[0].mxu0 %v4552
        %v5038 = vpop.f32.mrb[0].mxu0
        %v5039 = vadd.f32 %v4962, %v5038
        %v5040 = vpop.f32.mrb[0].mxu0
        %v5041 = vadd.f32 %v4964, %v5040
        %5042 = vdwg.mxu0
        %5043 = vmatprep.subr.mxu0 %v4749
        %5044 = vmatpush1.msra.mxu0 %v4748
        %5045 = vmatprep.subr.mxu0 %v4751
        %5046 = vmatpush1.msra.mxu0 %v4750
        %5047 = vmatprep.subr.mxu0 %v4753
        %5048 = vmatpush1.msra.mxu0 %v4752
        %5049 = vmatprep.subr.mxu0 %v4755
        %5050 = vmatpush1.msra.mxu0 %v4754
        %5051 = vmatprep.subr.mxu0 %v4757
        %5052 = vmatpush1.msra.mxu0 %v4756
        %5053 = vmatprep.subr.mxu0 %v4759
        %5054 = vmatpush1.msra.mxu0 %v4758
        %5055 = vmatprep.subr.mxu0 %v4761
        %5056 = vmatpush1.msra.mxu0 %v4760
        %5057 = vmatprep.subr.mxu0 %v4763
        %5058 = vmatpush1.msra.mxu0 %v4762
        %5059 = vmatprep.subr.mxu0 %v4765
        %5060 = vmatpush1.msra.mxu0 %v4764
        %5061 = vmatprep.subr.mxu0 %v4767
        %5062 = vmatpush1.msra.mxu0 %v4766
        %5063 = vmatprep.subr.mxu0 %v4769
        %5064 = vmatpush1.msra.mxu0 %v4768
        %5065 = vmatprep.subr.mxu0 %v4771
        %5066 = vmatpush1.msra.mxu0 %v4770
        %5067 = vmatprep.subr.mxu0 %v4773
        %5068 = vmatpush1.msra.mxu0 %v4772
        %5069 = vmatprep.subr.mxu0 %v4775
        %5070 = vmatpush1.msra.mxu0 %v4774
        %5071 = vmatprep.subr.mxu0 %v4777
        %5072 = vmatpush1.msra.mxu0 %v4776
        %5073 = vmatprep.subr.mxu0 %v4779
        %5074 = vmatpush1.msra.mxu0 %v4778
        %5075 = vmatprep.subr.mxu0 %v4781
        %5076 = vmatpush1.msra.mxu0 %v4780
        %5077 = vmatprep.subr.mxu0 %v4783
        %5078 = vmatpush1.msra.mxu0 %v4782
        %5079 = vmatprep.subr.mxu0 %v4785
        %5080 = vmatpush1.msra.mxu0 %v4784
        %5081 = vmatprep.subr.mxu0 %v4787
        %5082 = vmatpush1.msra.mxu0 %v4786
        %5083 = vmatprep.subr.mxu0 %v4789
        %5084 = vmatpush1.msra.mxu0 %v4788
        %5085 = vmatprep.subr.mxu0 %v4791
        %5086 = vmatpush1.msra.mxu0 %v4790
        %5087 = vmatprep.subr.mxu0 %v4793
        %5088 = vmatpush1.msra.mxu0 %v4792
        %5089 = vmatprep.subr.mxu0 %v4795
        %5090 = vmatpush1.msra.mxu0 %v4794
        %5091 = vmatprep.subr.mxu0 %v4797
        %5092 = vmatpush1.msra.mxu0 %v4796
        %5093 = vmatprep.subr.mxu0 %v4799
        %5094 = vmatpush1.msra.mxu0 %v4798
        %5095 = vmatprep.subr.mxu0 %v4801
        %5096 = vmatpush1.msra.mxu0 %v4800
        %5097 = vmatprep.subr.mxu0 %v4803
        %5098 = vmatpush1.msra.mxu0 %v4802
        %5099 = vmatprep.subr.mxu0 %v4805
        %5100 = vmatpush1.msra.mxu0 %v4804
        %5101 = vmatprep.subr.mxu0 %v4807
        %5102 = vmatpush1.msra.mxu0 %v4806
        %5103 = vmatprep.subr.mxu0 %v4809
        %5104 = vmatpush1.msra.mxu0 %v4808
        %5105 = vmatprep.subr.mxu0 %v4811
        %5106 = vmatpush1.msra.mxu0 %v4810
        %5107 = vmatprep.mubr.f32.mxu0 %v4547
        %5108 = vmatmul.mubr.f32.gmra.mrb[0].mxu0 %v4546
        %v5109 = vpop.f32.mrb[0].mxu0
        %v5110 = vadd.f32 %v5033, %v5109
        %v5111 = vpop.f32.mrb[0].mxu0
        %v5112 = vadd.f32 %v5035, %v5111
        %5113 = vmatprep.mubr.f32.mxu0 %v4555
        %5114 = vmatmul.mubr.f32.gmra.mrb[0].mxu0 %v4554
        %v5115 = vpop.f32.mrb[0].mxu0
        %v5116 = vadd.f32 %v5039, %v5115
        %v5117 = vpop.f32.mrb[0].mxu0
        %v5118 = vadd.f32 %v5041, %v5117
        %5119 = vdwg.mxu0
        %5120 = vst [vmem:[#allocation5] sm:$0x3f] %v5110
        %5121 = vst [vmem:[#allocation5 + $0x8] sm:$0x3f] %v5112
        %vm5126 = vcmask 1041408
        %v5127 = vrot.slane %v5110, 6
        %v5128 = vrot.slane %v5116, 6
        %v5129 = vsel %vm5126, %v5127, %v5128
        %v5130 = vrot.slane %v5112, 6
        %v5131 = vrot.slane %v5118, 6
        %v5132 = vsel %vm5126, %v5130, %v5131
        %5135 = vst [vmem:[#allocation5 + $0x10] sm:$0x3f] %v5129
        %5136 = vst [vmem:[#allocation5 + $0x18] sm:$0x3f] %v5132
        %v5137 = vld [vmem:[#allocation5] sm:$0x3f]
        %v5138 = vld [vmem:[#allocation5 + $0x8] sm:$0x3f]
        %v5139 = vld [vmem:[#allocation5 + $0x10] sm:$0x3f]
        %v5140 = vld [vmem:[#allocation5 + $0x18] sm:$0x3f]
        %5141 = vst [vmem:[#allocation6] sm:$0x3f] %v5137
        %5142 = vst [vmem:[#allocation6 + $0x8] sm:$0x3f] %v5138
        %5143 = vst [vmem:[#allocation6 + $0x10] sm:$0x3f] %v5139
        %5144 = vst [vmem:[#allocation6 + $0x18] sm:$0x3f] %v5140
        %v5145 = vld [vmem:[#allocation5] sm:$0x3f]
        %v5146 = vld [vmem:[#allocation5 + $0x8] sm:$0x3f]
        %v5147 = vld [vmem:[#allocation5 + $0x10] sm:$0x3f]
        %v5148 = vld [vmem:[#allocation5 + $0x18] sm:$0x3f]
        %v5149 = vld [vmem:[#allocation5 + $0x20] sm:$0x3f]
        %v5155 = vrot.slane %v5145, 2
        %v5156 = vrot.slane %v5146, 2
        %v5157 = vrot.slane %v5147, 2
        %v5158 = vrot.slane %v5148, 2
        %v5159 = vrot.slane %v5149, 2
        %5160 = vrot.lane.b32.xlu0 %v5155, 127
        %v5161 = vpop.permute.xlu0 %5160
        %5162 = vrot.lane.b32.xlu0 %v5156, 127
        %v5163 = vpop.permute.xlu0 %5162
        %5164 = vrot.lane.b32.xlu0 %v5157, 127
        %v5165 = vpop.permute.xlu0 %5164
        %5166 = vrot.lane.b32.xlu0 %v5158, 127
        %v5167 = vpop.permute.xlu0 %5166
        %5168 = vrot.lane.b32.xlu0 %v5159, 127
        %v5169 = vpop.permute.xlu0 %5168
        %v5170 = vsel %vm568, %v5161, %v5163
        %v5171 = vsel %vm568, %v5163, %v5165
        %v5172 = vsel %vm568, %v5165, %v5167
        %v5173 = vsel %vm568, %v5167, %v5169
        %5178 = vst [vmem:[#allocation6] sm:$0xc0] %v5170
        %5179 = vst [vmem:[#allocation6 + $0x8] sm:$0xc0] %v5171
        %5180 = vst [vmem:[#allocation6 + $0x10] sm:$0xc0] %v5172
        %5181 = vst [vmem:[#allocation6 + $0x18] sm:$0xc0] %v5173
        %5182 = vst [vmem:[#allocation6 + $0x20] sm:$0xf] %v5170
        %5183 = vst [vmem:[#allocation6 + $0x28] sm:$0xf] %v5171
        %5184 = vst [vmem:[#allocation6 + $0x30] sm:$0xf] %v5172
        %5185 = vst [vmem:[#allocation6 + $0x38] sm:$0xf] %v5173
        %v5186 = vld [vmem:[#allocation5] sm:$0x3f]
        %v5187 = vld [vmem:[#allocation5 + $0x8] sm:$0x3f]
        %v5188 = vld [vmem:[#allocation5 + $0x10] sm:$0x3f]
        %v5189 = vld [vmem:[#allocation5 + $0x18] sm:$0x3f]
        %v5190 = vld [vmem:[#allocation5 + $0x20] sm:$0x3f]
        %v5196 = vrot.slane %v5186, 4
        %v5197 = vrot.slane %v5187, 4
        %v5198 = vrot.slane %v5188, 4
        %v5199 = vrot.slane %v5189, 4
        %v5200 = vrot.slane %v5190, 4
        %5201 = vrot.lane.b32.xlu0 %v5196, 126
        %v5202 = vpop.permute.xlu0 %5201
        %5203 = vrot.lane.b32.xlu0 %v5197, 126
        %v5204 = vpop.permute.xlu0 %5203
        %5205 = vrot.lane.b32.xlu0 %v5198, 126
        %v5206 = vpop.permute.xlu0 %5205
        %5207 = vrot.lane.b32.xlu0 %v5199, 126
        %v5208 = vpop.permute.xlu0 %5207
        %5209 = vrot.lane.b32.xlu0 %v5200, 126
        %v5210 = vpop.permute.xlu0 %5209
        %v5211 = vsel %vm694, %v5202, %v5204
        %v5212 = vsel %vm694, %v5204, %v5206
        %v5213 = vsel %vm694, %v5206, %v5208
        %v5214 = vsel %vm694, %v5208, %v5210
        %5219 = vst [vmem:[#allocation6 + $0x20] sm:$0xf0] %v5211
        %5220 = vst [vmem:[#allocation6 + $0x28] sm:$0xf0] %v5212
        %5221 = vst [vmem:[#allocation6 + $0x30] sm:$0xf0] %v5213
        %5222 = vst [vmem:[#allocation6 + $0x38] sm:$0xf0] %v5214
        %5223 = vst [vmem:[#allocation6 + $0x40] sm:$0x3] %v5211
        %5224 = vst [vmem:[#allocation6 + $0x48] sm:$0x3] %v5212
        %5225 = vst [vmem:[#allocation6 + $0x50] sm:$0x3] %v5213
        %5226 = vst [vmem:[#allocation6 + $0x58] sm:$0x3] %v5214
        %v5227 = vld [vmem:[#allocation5] sm:$0x3f]
        %v5228 = vld [vmem:[#allocation5 + $0x8] sm:$0x3f]
        %v5229 = vld [vmem:[#allocation5 + $0x10] sm:$0x3f]
        %v5230 = vld [vmem:[#allocation5 + $0x18] sm:$0x3f]
        %v5231 = vld [vmem:[#allocation5 + $0x20] sm:$0x3f]
        %v5237 = vrot.slane %v5227, 6
        %v5238 = vrot.slane %v5228, 6
        %v5239 = vrot.slane %v5229, 6
        %v5240 = vrot.slane %v5230, 6
        %v5241 = vrot.slane %v5231, 6
        %5242 = vrot.lane.b32.xlu0 %v5237, 125
        %v5243 = vpop.permute.xlu0 %5242
        %5244 = vrot.lane.b32.xlu0 %v5238, 125
        %v5245 = vpop.permute.xlu0 %5244
        %5246 = vrot.lane.b32.xlu0 %v5239, 125
        %v5247 = vpop.permute.xlu0 %5246
        %5248 = vrot.lane.b32.xlu0 %v5240, 125
        %v5249 = vpop.permute.xlu0 %5248
        %5250 = vrot.lane.b32.xlu0 %v5241, 125
        %v5251 = vpop.permute.xlu0 %5250
        %v5252 = vsel %vm836, %v5243, %v5245
        %v5253 = vsel %vm836, %v5245, %v5247
        %v5254 = vsel %vm836, %v5247, %v5249
        %v5255 = vsel %vm836, %v5249, %v5251
        %5260 = vst [vmem:[#allocation6 + $0x40] sm:$0xfc] %v5252
        %5261 = vst [vmem:[#allocation6 + $0x48] sm:$0xfc] %v5253
        %5262 = vst [vmem:[#allocation6 + $0x50] sm:$0xfc] %v5254
        %5263 = vst [vmem:[#allocation6 + $0x58] sm:$0xfc] %v5255
        %v5264 = vld [vmem:[#allocation5] sm:$0x3f]
        %v5265 = vld [vmem:[#allocation5 + $0x8] sm:$0x3f]
        %v5266 = vld [vmem:[#allocation5 + $0x10] sm:$0x3f]
        %v5267 = vld [vmem:[#allocation5 + $0x18] sm:$0x3f]
        %v5268 = vld [vmem:[#allocation5 + $0x20] sm:$0x3f]
        %5274 = vrot.lane.b32.xlu0 %v5264, 124
        %v5275 = vpop.permute.xlu0 %5274
        %5276 = vrot.lane.b32.xlu0 %v5265, 124
        %v5277 = vpop.permute.xlu0 %5276
        %5278 = vrot.lane.b32.xlu0 %v5266, 124
        %v5279 = vpop.permute.xlu0 %5278
        %5280 = vrot.lane.b32.xlu0 %v5267, 124
        %v5281 = vpop.permute.xlu0 %5280
        %5282 = vrot.lane.b32.xlu0 %v5268, 124
        %v5283 = vpop.permute.xlu0 %5282
        %v5284 = vsel %vm946, %v5275, %v5277
        %v5285 = vsel %vm946, %v5277, %v5279
        %v5286 = vsel %vm946, %v5279, %v5281
        %v5287 = vsel %vm946, %v5281, %v5283
        %5292 = vst [vmem:[#allocation6 + $0x60] sm:$0x3f] %v5284
        %5293 = vst [vmem:[#allocation6 + $0x68] sm:$0x3f] %v5285
        %5294 = vst [vmem:[#allocation6 + $0x70] sm:$0x3f] %v5286
        %5295 = vst [vmem:[#allocation6 + $0x78] sm:$0x3f] %v5287
        %v5296 = vld [vmem:[#allocation5] sm:$0x3f]
        %v5297 = vld [vmem:[#allocation5 + $0x8] sm:$0x3f]
        %v5298 = vld [vmem:[#allocation5 + $0x10] sm:$0x3f]
        %v5299 = vld [vmem:[#allocation5 + $0x18] sm:$0x3f]
        %v5300 = vld [vmem:[#allocation5 + $0x20] sm:$0x3f]
        %v5306 = vrot.slane %v5296, 2
        %v5307 = vrot.slane %v5297, 2
        %v5308 = vrot.slane %v5298, 2
        %v5309 = vrot.slane %v5299, 2
        %v5310 = vrot.slane %v5300, 2
        %5311 = vrot.lane.b32.xlu0 %v5306, 112
        %v5312 = vpop.permute.xlu0 %5311
        %5313 = vrot.lane.b32.xlu0 %v5307, 112
        %v5314 = vpop.permute.xlu0 %5313
        %5315 = vrot.lane.b32.xlu0 %v5308, 112
        %v5316 = vpop.permute.xlu0 %5315
        %5317 = vrot.lane.b32.xlu0 %v5309, 112
        %v5318 = vpop.permute.xlu0 %5317
        %5319 = vrot.lane.b32.xlu0 %v5310, 112
        %v5320 = vpop.permute.xlu0 %5319
        %vm5321 = vcmask 916480
        %v5322 = vsel %vm5321, %v5312, %v5314
        %v5323 = vsel %vm5321, %v5314, %v5316
        %v5324 = vsel %vm5321, %v5316, %v5318
        %v5325 = vsel %vm5321, %v5318, %v5320
        %5330 = vst [vmem:[#allocation6 + $0x60] sm:$0xc0] %v5322
        %5331 = vst [vmem:[#allocation6 + $0x68] sm:$0xc0] %v5323
        %5332 = vst [vmem:[#allocation6 + $0x70] sm:$0xc0] %v5324
        %5333 = vst [vmem:[#allocation6 + $0x78] sm:$0xc0] %v5325
        %5334 = vst [vmem:[#allocation6 + $0x80] sm:$0xf] %v5322
        %5335 = vst [vmem:[#allocation6 + $0x88] sm:$0xf] %v5323
        %5336 = vst [vmem:[#allocation6 + $0x90] sm:$0xf] %v5324
        %5337 = vst [vmem:[#allocation6 + $0x98] sm:$0xf] %v5325
        %v5338 = vld [vmem:[#allocation5] sm:$0x3f]
        %v5339 = vld [vmem:[#allocation5 + $0x8] sm:$0x3f]
        %v5340 = vld [vmem:[#allocation5 + $0x10] sm:$0x3f]
        %v5341 = vld [vmem:[#allocation5 + $0x18] sm:$0x3f]
        %v5342 = vld [vmem:[#allocation5 + $0x20] sm:$0x3f]
        %v5348 = vrot.slane %v5338, 4
        %v5349 = vrot.slane %v5339, 4
        %v5350 = vrot.slane %v5340, 4
        %v5351 = vrot.slane %v5341, 4
        %v5352 = vrot.slane %v5342, 4
        %5353 = vrot.lane.b32.xlu0 %v5348, 111
        %v5354 = vpop.permute.xlu0 %5353
        %5355 = vrot.lane.b32.xlu0 %v5349, 111
        %v5356 = vpop.permute.xlu0 %5355
        %5357 = vrot.lane.b32.xlu0 %v5350, 111
        %v5358 = vpop.permute.xlu0 %5357
        %5359 = vrot.lane.b32.xlu0 %v5351, 111
        %v5360 = vpop.permute.xlu0 %5359
        %5361 = vrot.lane.b32.xlu0 %v5352, 111
        %v5362 = vpop.permute.xlu0 %5361
        %vm5363 = vcmask 908288
        %v5364 = vsel %vm5363, %v5354, %v5356
        %v5365 = vsel %vm5363, %v5356, %v5358
        %v5366 = vsel %vm5363, %v5358, %v5360
        %v5367 = vsel %vm5363, %v5360, %v5362
        %5372 = vst [vmem:[#allocation6 + $0x80] sm:$0xf0] %v5364
        %5373 = vst [vmem:[#allocation6 + $0x88] sm:$0xf0] %v5365
        %5374 = vst [vmem:[#allocation6 + $0x90] sm:$0xf0] %v5366
        %5375 = vst [vmem:[#allocation6 + $0x98] sm:$0xf0] %v5367
        %5376 = vst [vmem:[#allocation6 + $0xa0] sm:$0x3] %v5364
        %5377 = vst [vmem:[#allocation6 + $0xa8] sm:$0x3] %v5365
        %5378 = vst [vmem:[#allocation6 + $0xb0] sm:$0x3] %v5366
        %5379 = vst [vmem:[#allocation6 + $0xb8] sm:$0x3] %v5367
        %v5380 = vld [vmem:[#allocation5] sm:$0x3f]
        %v5381 = vld [vmem:[#allocation5 + $0x8] sm:$0x3f]
        %v5382 = vld [vmem:[#allocation5 + $0x10] sm:$0x3f]
        %v5383 = vld [vmem:[#allocation5 + $0x18] sm:$0x3f]
        %v5384 = vld [vmem:[#allocation5 + $0x20] sm:$0x3f]
        %v5390 = vrot.slane %v5380, 6
        %v5391 = vrot.slane %v5381, 6
        %v5392 = vrot.slane %v5382, 6
        %v5393 = vrot.slane %v5383, 6
        %v5394 = vrot.slane %v5384, 6
        %5395 = vrot.lane.b32.xlu0 %v5390, 110
        %v5396 = vpop.permute.xlu0 %5395
        %5397 = vrot.lane.b32.xlu0 %v5391, 110
        %v5398 = vpop.permute.xlu0 %5397
        %5399 = vrot.lane.b32.xlu0 %v5392, 110
        %v5400 = vpop.permute.xlu0 %5399
        %5401 = vrot.lane.b32.xlu0 %v5393, 110
        %v5402 = vpop.permute.xlu0 %5401
        %5403 = vrot.lane.b32.xlu0 %v5394, 110
        %v5404 = vpop.permute.xlu0 %5403
        %vm5405 = vcmask 900096
        %v5406 = vsel %vm5405, %v5396, %v5398
        %v5407 = vsel %vm5405, %v5398, %v5400
        %v5408 = vsel %vm5405, %v5400, %v5402
        %v5409 = vsel %vm5405, %v5402, %v5404
        %5414 = vst [vmem:[#allocation6 + $0xa0] sm:$0xfc] %v5406
        %5415 = vst [vmem:[#allocation6 + $0xa8] sm:$0xfc] %v5407
        %5416 = vst [vmem:[#allocation6 + $0xb0] sm:$0xfc] %v5408
        %5417 = vst [vmem:[#allocation6 + $0xb8] sm:$0xfc] %v5409
        %v5418 = vld [vmem:[#allocation5] sm:$0x3f]
        %v5419 = vld [vmem:[#allocation5 + $0x8] sm:$0x3f]
        %v5420 = vld [vmem:[#allocation5 + $0x10] sm:$0x3f]
        %v5421 = vld [vmem:[#allocation5 + $0x18] sm:$0x3f]
        %v5422 = vld [vmem:[#allocation5 + $0x20] sm:$0x3f]
        %5428 = vrot.lane.b32.xlu0 %v5418, 109
        %v5429 = vpop.permute.xlu0 %5428
        %5430 = vrot.lane.b32.xlu0 %v5419, 109
        %v5431 = vpop.permute.xlu0 %5430
        %5432 = vrot.lane.b32.xlu0 %v5420, 109
        %v5433 = vpop.permute.xlu0 %5432
        %5434 = vrot.lane.b32.xlu0 %v5421, 109
        %v5435 = vpop.permute.xlu0 %5434
        %5436 = vrot.lane.b32.xlu0 %v5422, 109
        %v5437 = vpop.permute.xlu0 %5436
        %vm5438 = vcmask 891904
        %v5439 = vsel %vm5438, %v5429, %v5431
        %v5440 = vsel %vm5438, %v5431, %v5433
        %v5441 = vsel %vm5438, %v5433, %v5435
        %v5442 = vsel %vm5438, %v5435, %v5437
        %5447 = vst [vmem:[#allocation6 + $0xc0] sm:$0x3f] %v5439
        %5448 = vst [vmem:[#allocation6 + $0xc8] sm:$0x3f] %v5440
        %5449 = vst [vmem:[#allocation6 + $0xd0] sm:$0x3f] %v5441
        %5450 = vst [vmem:[#allocation6 + $0xd8] sm:$0x3f] %v5442
        %v5451 = vld [vmem:[#allocation5] sm:$0x3f]
        %v5452 = vld [vmem:[#allocation5 + $0x8] sm:$0x3f]
        %v5453 = vld [vmem:[#allocation5 + $0x10] sm:$0x3f]
        %v5454 = vld [vmem:[#allocation5 + $0x18] sm:$0x3f]
        %v5455 = vld [vmem:[#allocation5 + $0x20] sm:$0x3f]
        %v5461 = vrot.slane %v5451, 2
        %v5462 = vrot.slane %v5452, 2
        %v5463 = vrot.slane %v5453, 2
        %v5464 = vrot.slane %v5454, 2
        %v5465 = vrot.slane %v5455, 2
        %5466 = vrot.lane.b32.xlu0 %v5461, 108
        %v5467 = vpop.permute.xlu0 %5466
        %5468 = vrot.lane.b32.xlu0 %v5462, 108
        %v5469 = vpop.permute.xlu0 %5468
        %5470 = vrot.lane.b32.xlu0 %v5463, 108
        %v5471 = vpop.permute.xlu0 %5470
        %5472 = vrot.lane.b32.xlu0 %v5464, 108
        %v5473 = vpop.permute.xlu0 %5472
        %5474 = vrot.lane.b32.xlu0 %v5465, 108
        %v5475 = vpop.permute.xlu0 %5474
        %vm5476 = vcmask 883712
        %v5477 = vsel %vm5476, %v5467, %v5469
        %v5478 = vsel %vm5476, %v5469, %v5471
        %v5479 = vsel %vm5476, %v5471, %v5473
        %v5480 = vsel %vm5476, %v5473, %v5475
        %5485 = vst [vmem:[#allocation6 + $0xc0] sm:$0xc0] %v5477
        %5486 = vst [vmem:[#allocation6 + $0xc8] sm:$0xc0] %v5478
        %5487 = vst [vmem:[#allocation6 + $0xd0] sm:$0xc0] %v5479
        %5488 = vst [vmem:[#allocation6 + $0xd8] sm:$0xc0] %v5480
        %5489 = vst [vmem:[#allocation6 + $0xe0] sm:$0xf] %v5477
        %5490 = vst [vmem:[#allocation6 + $0xe8] sm:$0xf] %v5478
        %5491 = vst [vmem:[#allocation6 + $0xf0] sm:$0xf] %v5479
        %5492 = vst [vmem:[#allocation6 + $0xf8] sm:$0xf] %v5480
        %v5493 = vld [vmem:[#allocation5] sm:$0x3f]
        %v5494 = vld [vmem:[#allocation5 + $0x8] sm:$0x3f]
        %v5495 = vld [vmem:[#allocation5 + $0x10] sm:$0x3f]
        %v5496 = vld [vmem:[#allocation5 + $0x18] sm:$0x3f]
        %v5497 = vld [vmem:[#allocation5 + $0x20] sm:$0x3f]
        %v5503 = vrot.slane %v5493, 4
        %v5504 = vrot.slane %v5494, 4
        %v5505 = vrot.slane %v5495, 4
        %v5506 = vrot.slane %v5496, 4
        %v5507 = vrot.slane %v5497, 4
        %5508 = vrot.lane.b32.xlu0 %v5503, 96
        %v5509 = vpop.permute.xlu0 %5508
        %5510 = vrot.lane.b32.xlu0 %v5504, 96
        %v5511 = vpop.permute.xlu0 %5510
        %5512 = vrot.lane.b32.xlu0 %v5505, 96
        %v5513 = vpop.permute.xlu0 %5512
        %5514 = vrot.lane.b32.xlu0 %v5506, 96
        %v5515 = vpop.permute.xlu0 %5514
        %5516 = vrot.lane.b32.xlu0 %v5507, 96
        %v5517 = vpop.permute.xlu0 %5516
        %v5518 = vsel %vm1072, %v5509, %v5511
        %v5519 = vsel %vm1072, %v5511, %v5513
        %v5520 = vsel %vm1072, %v5513, %v5515
        %v5521 = vsel %vm1072, %v5515, %v5517
        %5526 = vst [vmem:[#allocation6 + $0xe0] sm:$0xf0] %v5518
        %5527 = vst [vmem:[#allocation6 + $0xe8] sm:$0xf0] %v5519
        %5528 = vst [vmem:[#allocation6 + $0xf0] sm:$0xf0] %v5520
        %5529 = vst [vmem:[#allocation6 + $0xf8] sm:$0xf0] %v5521
        %5530 = vst [vmem:[#allocation6 + $0x100] sm:$0x3] %v5518
        %5531 = vst [vmem:[#allocation6 + $0x108] sm:$0x3] %v5519
        %5532 = vst [vmem:[#allocation6 + $0x110] sm:$0x3] %v5520
        %5533 = vst [vmem:[#allocation6 + $0x118] sm:$0x3] %v5521
        %v5534 = vld [vmem:[#allocation5] sm:$0x3f]
        %v5535 = vld [vmem:[#allocation5 + $0x8] sm:$0x3f]
        %v5536 = vld [vmem:[#allocation5 + $0x10] sm:$0x3f]
        %v5537 = vld [vmem:[#allocation5 + $0x18] sm:$0x3f]
        %v5538 = vld [vmem:[#allocation5 + $0x20] sm:$0x3f]
        %v5544 = vrot.slane %v5534, 6
        %v5545 = vrot.slane %v5535, 6
        %v5546 = vrot.slane %v5536, 6
        %v5547 = vrot.slane %v5537, 6
        %v5548 = vrot.slane %v5538, 6
        %5549 = vrot.lane.b32.xlu0 %v5544, 95
        %v5550 = vpop.permute.xlu0 %5549
        %5551 = vrot.lane.b32.xlu0 %v5545, 95
        %v5552 = vpop.permute.xlu0 %5551
        %5553 = vrot.lane.b32.xlu0 %v5546, 95
        %v5554 = vpop.permute.xlu0 %5553
        %5555 = vrot.lane.b32.xlu0 %v5547, 95
        %v5556 = vpop.permute.xlu0 %5555
        %5557 = vrot.lane.b32.xlu0 %v5548, 95
        %v5558 = vpop.permute.xlu0 %5557
        %v5559 = vsel %vm1214, %v5550, %v5552
        %v5560 = vsel %vm1214, %v5552, %v5554
        %v5561 = vsel %vm1214, %v5554, %v5556
        %v5562 = vsel %vm1214, %v5556, %v5558
        %5567 = vst [vmem:[#allocation6 + $0x100] sm:$0xfc] %v5559
        %5568 = vst [vmem:[#allocation6 + $0x108] sm:$0xfc] %v5560
        %5569 = vst [vmem:[#allocation6 + $0x110] sm:$0xfc] %v5561
        %5570 = vst [vmem:[#allocation6 + $0x118] sm:$0xfc] %v5562
        %v5571 = vld [vmem:[#allocation5] sm:$0x3f]
        %v5572 = vld [vmem:[#allocation5 + $0x8] sm:$0x3f]
        %v5573 = vld [vmem:[#allocation5 + $0x10] sm:$0x3f]
        %v5574 = vld [vmem:[#allocation5 + $0x18] sm:$0x3f]
        %v5575 = vld [vmem:[#allocation5 + $0x20] sm:$0x3f]
        %5581 = vrot.lane.b32.xlu0 %v5571, 94
        %v5582 = vpop.permute.xlu0 %5581
        %5583 = vrot.lane.b32.xlu0 %v5572, 94
        %v5584 = vpop.permute.xlu0 %5583
        %5585 = vrot.lane.b32.xlu0 %v5573, 94
        %v5586 = vpop.permute.xlu0 %5585
        %5587 = vrot.lane.b32.xlu0 %v5574, 94
        %v5588 = vpop.permute.xlu0 %5587
        %5589 = vrot.lane.b32.xlu0 %v5575, 94
        %v5590 = vpop.permute.xlu0 %5589
        %v5591 = vsel %vm1340, %v5582, %v5584
        %v5592 = vsel %vm1340, %v5584, %v5586
        %v5593 = vsel %vm1340, %v5586, %v5588
        %v5594 = vsel %vm1340, %v5588, %v5590
        %5599 = vst [vmem:[#allocation6 + $0x120] sm:$0x3f] %v5591
        %5600 = vst [vmem:[#allocation6 + $0x128] sm:$0x3f] %v5592
        %5601 = vst [vmem:[#allocation6 + $0x130] sm:$0x3f] %v5593
        %5602 = vst [vmem:[#allocation6 + $0x138] sm:$0x3f] %v5594
        %v5603 = vld [vmem:[#allocation5] sm:$0x3f]
        %v5604 = vld [vmem:[#allocation5 + $0x8] sm:$0x3f]
        %v5605 = vld [vmem:[#allocation5 + $0x10] sm:$0x3f]
        %v5606 = vld [vmem:[#allocation5 + $0x18] sm:$0x3f]
        %v5607 = vld [vmem:[#allocation5 + $0x20] sm:$0x3f]
        %v5613 = vrot.slane %v5603, 2
        %v5614 = vrot.slane %v5604, 2
        %v5615 = vrot.slane %v5605, 2
        %v5616 = vrot.slane %v5606, 2
        %v5617 = vrot.slane %v5607, 2
        %5618 = vrot.lane.b32.xlu0 %v5613, 93
        %v5619 = vpop.permute.xlu0 %5618
        %5620 = vrot.lane.b32.xlu0 %v5614, 93
        %v5621 = vpop.permute.xlu0 %5620
        %5622 = vrot.lane.b32.xlu0 %v5615, 93
        %v5623 = vpop.permute.xlu0 %5622
        %5624 = vrot.lane.b32.xlu0 %v5616, 93
        %v5625 = vpop.permute.xlu0 %5624
        %5626 = vrot.lane.b32.xlu0 %v5617, 93
        %v5627 = vpop.permute.xlu0 %5626
        %v5628 = vsel %vm1449, %v5619, %v5621
        %v5629 = vsel %vm1449, %v5621, %v5623
        %v5630 = vsel %vm1449, %v5623, %v5625
        %v5631 = vsel %vm1449, %v5625, %v5627
        %5636 = vst [vmem:[#allocation6 + $0x120] sm:$0xc0] %v5628
        %5637 = vst [vmem:[#allocation6 + $0x128] sm:$0xc0] %v5629
        %5638 = vst [vmem:[#allocation6 + $0x130] sm:$0xc0] %v5630
        %5639 = vst [vmem:[#allocation6 + $0x138] sm:$0xc0] %v5631
        %5640 = vst [vmem:[#allocation6 + $0x140] sm:$0xf] %v5628
        %5641 = vst [vmem:[#allocation6 + $0x148] sm:$0xf] %v5629
        %5642 = vst [vmem:[#allocation6 + $0x150] sm:$0xf] %v5630
        %5643 = vst [vmem:[#allocation6 + $0x158] sm:$0xf] %v5631
        %v5644 = vld [vmem:[#allocation5] sm:$0x3f]
        %v5645 = vld [vmem:[#allocation5 + $0x8] sm:$0x3f]
        %v5646 = vld [vmem:[#allocation5 + $0x10] sm:$0x3f]
        %v5647 = vld [vmem:[#allocation5 + $0x18] sm:$0x3f]
        %v5648 = vld [vmem:[#allocation5 + $0x20] sm:$0x3f]
        %v5654 = vrot.slane %v5644, 4
        %v5655 = vrot.slane %v5645, 4
        %v5656 = vrot.slane %v5646, 4
        %v5657 = vrot.slane %v5647, 4
        %v5658 = vrot.slane %v5648, 4
        %5659 = vrot.lane.b32.xlu0 %v5654, 92
        %v5660 = vpop.permute.xlu0 %5659
        %5661 = vrot.lane.b32.xlu0 %v5655, 92
        %v5662 = vpop.permute.xlu0 %5661
        %5663 = vrot.lane.b32.xlu0 %v5656, 92
        %v5664 = vpop.permute.xlu0 %5663
        %5665 = vrot.lane.b32.xlu0 %v5657, 92
        %v5666 = vpop.permute.xlu0 %5665
        %5667 = vrot.lane.b32.xlu0 %v5658, 92
        %v5668 = vpop.permute.xlu0 %5667
        %v5669 = vsel %vm1575, %v5660, %v5662
        %v5670 = vsel %vm1575, %v5662, %v5664
        %v5671 = vsel %vm1575, %v5664, %v5666
        %v5672 = vsel %vm1575, %v5666, %v5668
        %5677 = vst [vmem:[#allocation6 + $0x140] sm:$0xf0] %v5669
        %5678 = vst [vmem:[#allocation6 + $0x148] sm:$0xf0] %v5670
        %5679 = vst [vmem:[#allocation6 + $0x150] sm:$0xf0] %v5671
        %5680 = vst [vmem:[#allocation6 + $0x158] sm:$0xf0] %v5672
        %5681 = vst [vmem:[#allocation6 + $0x160] sm:$0x3] %v5669
        %5682 = vst [vmem:[#allocation6 + $0x168] sm:$0x3] %v5670
        %5683 = vst [vmem:[#allocation6 + $0x170] sm:$0x3] %v5671
        %5684 = vst [vmem:[#allocation6 + $0x178] sm:$0x3] %v5672
        %v5685 = vld [vmem:[#allocation5] sm:$0x3f]
        %v5686 = vld [vmem:[#allocation5 + $0x8] sm:$0x3f]
        %v5687 = vld [vmem:[#allocation5 + $0x10] sm:$0x3f]
        %v5688 = vld [vmem:[#allocation5 + $0x18] sm:$0x3f]
        %v5689 = vld [vmem:[#allocation5 + $0x20] sm:$0x3f]
        %v5695 = vrot.slane %v5685, 6
        %v5696 = vrot.slane %v5686, 6
        %v5697 = vrot.slane %v5687, 6
        %v5698 = vrot.slane %v5688, 6
        %v5699 = vrot.slane %v5689, 6
        %5700 = vrot.lane.b32.xlu0 %v5695, 80
        %v5701 = vpop.permute.xlu0 %5700
        %5702 = vrot.lane.b32.xlu0 %v5696, 80
        %v5703 = vpop.permute.xlu0 %5702
        %5704 = vrot.lane.b32.xlu0 %v5697, 80
        %v5705 = vpop.permute.xlu0 %5704
        %5706 = vrot.lane.b32.xlu0 %v5698, 80
        %v5707 = vpop.permute.xlu0 %5706
        %5708 = vrot.lane.b32.xlu0 %v5699, 80
        %v5709 = vpop.permute.xlu0 %5708
        %vm5710 = vcmask 654336
        %v5711 = vsel %vm5710, %v5701, %v5703
        %v5712 = vsel %vm5710, %v5703, %v5705
        %v5713 = vsel %vm5710, %v5705, %v5707
        %v5714 = vsel %vm5710, %v5707, %v5709
        %5719 = vst [vmem:[#allocation6 + $0x160] sm:$0xfc] %v5711
        %5720 = vst [vmem:[#allocation6 + $0x168] sm:$0xfc] %v5712
        %5721 = vst [vmem:[#allocation6 + $0x170] sm:$0xfc] %v5713
        %5722 = vst [vmem:[#allocation6 + $0x178] sm:$0xfc] %v5714
        %v5723 = vld [vmem:[#allocation5] sm:$0x3f]
        %v5724 = vld [vmem:[#allocation5 + $0x8] sm:$0x3f]
        %v5725 = vld [vmem:[#allocation5 + $0x10] sm:$0x3f]
        %v5726 = vld [vmem:[#allocation5 + $0x18] sm:$0x3f]
        %v5727 = vld [vmem:[#allocation5 + $0x20] sm:$0x3f]
        %5733 = vrot.lane.b32.xlu0 %v5723, 79
        %v5734 = vpop.permute.xlu0 %5733
        %5735 = vrot.lane.b32.xlu0 %v5724, 79
        %v5736 = vpop.permute.xlu0 %5735
        %5737 = vrot.lane.b32.xlu0 %v5725, 79
        %v5738 = vpop.permute.xlu0 %5737
        %5739 = vrot.lane.b32.xlu0 %v5726, 79
        %v5740 = vpop.permute.xlu0 %5739
        %5741 = vrot.lane.b32.xlu0 %v5727, 79
        %v5742 = vpop.permute.xlu0 %5741
        %vm5743 = vcmask 646144
        %v5744 = vsel %vm5743, %v5734, %v5736
        %v5745 = vsel %vm5743, %v5736, %v5738
        %v5746 = vsel %vm5743, %v5738, %v5740
        %v5747 = vsel %vm5743, %v5740, %v5742
        %5752 = vst [vmem:[#allocation6 + $0x180] sm:$0x3f] %v5744
        %5753 = vst [vmem:[#allocation6 + $0x188] sm:$0x3f] %v5745
        %5754 = vst [vmem:[#allocation6 + $0x190] sm:$0x3f] %v5746
        %5755 = vst [vmem:[#allocation6 + $0x198] sm:$0x3f] %v5747
        %v5756 = vld [vmem:[#allocation5] sm:$0x3f]
        %v5757 = vld [vmem:[#allocation5 + $0x8] sm:$0x3f]
        %v5758 = vld [vmem:[#allocation5 + $0x10] sm:$0x3f]
        %v5759 = vld [vmem:[#allocation5 + $0x18] sm:$0x3f]
        %v5760 = vld [vmem:[#allocation5 + $0x20] sm:$0x3f]
        %v5766 = vrot.slane %v5756, 2
        %v5767 = vrot.slane %v5757, 2
        %v5768 = vrot.slane %v5758, 2
        %v5769 = vrot.slane %v5759, 2
        %v5770 = vrot.slane %v5760, 2
        %5771 = vrot.lane.b32.xlu0 %v5766, 78
        %v5772 = vpop.permute.xlu0 %5771
        %5773 = vrot.lane.b32.xlu0 %v5767, 78
        %v5774 = vpop.permute.xlu0 %5773
        %5775 = vrot.lane.b32.xlu0 %v5768, 78
        %v5776 = vpop.permute.xlu0 %5775
        %5777 = vrot.lane.b32.xlu0 %v5769, 78
        %v5778 = vpop.permute.xlu0 %5777
        %5779 = vrot.lane.b32.xlu0 %v5770, 78
        %v5780 = vpop.permute.xlu0 %5779
        %vm5781 = vcmask 637952
        %v5782 = vsel %vm5781, %v5772, %v5774
        %v5783 = vsel %vm5781, %v5774, %v5776
        %v5784 = vsel %vm5781, %v5776, %v5778
        %v5785 = vsel %vm5781, %v5778, %v5780
        %5790 = vst [vmem:[#allocation6 + $0x180] sm:$0xc0] %v5782
        %5791 = vst [vmem:[#allocation6 + $0x188] sm:$0xc0] %v5783
        %5792 = vst [vmem:[#allocation6 + $0x190] sm:$0xc0] %v5784
        %5793 = vst [vmem:[#allocation6 + $0x198] sm:$0xc0] %v5785
        %5794 = vst [vmem:[#allocation6 + $0x1a0] sm:$0xf] %v5782
        %5795 = vst [vmem:[#allocation6 + $0x1a8] sm:$0xf] %v5783
        %5796 = vst [vmem:[#allocation6 + $0x1b0] sm:$0xf] %v5784
        %5797 = vst [vmem:[#allocation6 + $0x1b8] sm:$0xf] %v5785
        %v5798 = vld [vmem:[#allocation5] sm:$0x3f]
        %v5799 = vld [vmem:[#allocation5 + $0x8] sm:$0x3f]
        %v5800 = vld [vmem:[#allocation5 + $0x10] sm:$0x3f]
        %v5801 = vld [vmem:[#allocation5 + $0x18] sm:$0x3f]
        %v5802 = vld [vmem:[#allocation5 + $0x20] sm:$0x3f]
        %v5808 = vrot.slane %v5798, 4
        %v5809 = vrot.slane %v5799, 4
        %v5810 = vrot.slane %v5800, 4
        %v5811 = vrot.slane %v5801, 4
        %v5812 = vrot.slane %v5802, 4
        %5813 = vrot.lane.b32.xlu0 %v5808, 77
        %v5814 = vpop.permute.xlu0 %5813
        %5815 = vrot.lane.b32.xlu0 %v5809, 77
        %v5816 = vpop.permute.xlu0 %5815
        %5817 = vrot.lane.b32.xlu0 %v5810, 77
        %v5818 = vpop.permute.xlu0 %5817
        %5819 = vrot.lane.b32.xlu0 %v5811, 77
        %v5820 = vpop.permute.xlu0 %5819
        %5821 = vrot.lane.b32.xlu0 %v5812, 77
        %v5822 = vpop.permute.xlu0 %5821
        %vm5823 = vcmask 629760
        %v5824 = vsel %vm5823, %v5814, %v5816
        %v5825 = vsel %vm5823, %v5816, %v5818
        %v5826 = vsel %vm5823, %v5818, %v5820
        %v5827 = vsel %vm5823, %v5820, %v5822
        %5832 = vst [vmem:[#allocation6 + $0x1a0] sm:$0xf0] %v5824
        %5833 = vst [vmem:[#allocation6 + $0x1a8] sm:$0xf0] %v5825
        %5834 = vst [vmem:[#allocation6 + $0x1b0] sm:$0xf0] %v5826
        %5835 = vst [vmem:[#allocation6 + $0x1b8] sm:$0xf0] %v5827
        %5836 = vst [vmem:[#allocation6 + $0x1c0] sm:$0x3] %v5824
        %5837 = vst [vmem:[#allocation6 + $0x1c8] sm:$0x3] %v5825
        %5838 = vst [vmem:[#allocation6 + $0x1d0] sm:$0x3] %v5826
        %5839 = vst [vmem:[#allocation6 + $0x1d8] sm:$0x3] %v5827
        %v5840 = vld [vmem:[#allocation5] sm:$0x3f]
        %v5841 = vld [vmem:[#allocation5 + $0x8] sm:$0x3f]
        %v5842 = vld [vmem:[#allocation5 + $0x10] sm:$0x3f]
        %v5843 = vld [vmem:[#allocation5 + $0x18] sm:$0x3f]
        %v5844 = vld [vmem:[#allocation5 + $0x20] sm:$0x3f]
        %v5850 = vrot.slane %v5840, 6
        %v5851 = vrot.slane %v5841, 6
        %v5852 = vrot.slane %v5842, 6
        %v5853 = vrot.slane %v5843, 6
        %v5854 = vrot.slane %v5844, 6
        %5855 = vrot.lane.b32.xlu0 %v5850, 76
        %v5856 = vpop.permute.xlu0 %5855
        %5857 = vrot.lane.b32.xlu0 %v5851, 76
        %v5858 = vpop.permute.xlu0 %5857
        %5859 = vrot.lane.b32.xlu0 %v5852, 76
        %v5860 = vpop.permute.xlu0 %5859
        %5861 = vrot.lane.b32.xlu0 %v5853, 76
        %v5862 = vpop.permute.xlu0 %5861
        %5863 = vrot.lane.b32.xlu0 %v5854, 76
        %v5864 = vpop.permute.xlu0 %5863
        %vm5865 = vcmask 621568
        %v5866 = vsel %vm5865, %v5856, %v5858
        %v5867 = vsel %vm5865, %v5858, %v5860
        %v5868 = vsel %vm5865, %v5860, %v5862
        %v5869 = vsel %vm5865, %v5862, %v5864
        %5874 = vst [vmem:[#allocation6 + $0x1c0] sm:$0xfc] %v5866
        %5875 = vst [vmem:[#allocation6 + $0x1c8] sm:$0xfc] %v5867
        %5876 = vst [vmem:[#allocation6 + $0x1d0] sm:$0xfc] %v5868
        %5877 = vst [vmem:[#allocation6 + $0x1d8] sm:$0xfc] %v5869
        %v5878 = vld [vmem:[#allocation5] sm:$0x3f]
        %v5879 = vld [vmem:[#allocation5 + $0x8] sm:$0x3f]
        %v5880 = vld [vmem:[#allocation5 + $0x10] sm:$0x3f]
        %v5881 = vld [vmem:[#allocation5 + $0x18] sm:$0x3f]
        %v5882 = vld [vmem:[#allocation5 + $0x20] sm:$0x3f]
        %5888 = vrot.lane.b32.xlu0 %v5878, 64
        %v5889 = vpop.permute.xlu0 %5888
        %5890 = vrot.lane.b32.xlu0 %v5879, 64
        %v5891 = vpop.permute.xlu0 %5890
        %5892 = vrot.lane.b32.xlu0 %v5880, 64
        %v5893 = vpop.permute.xlu0 %5892
        %5894 = vrot.lane.b32.xlu0 %v5881, 64
        %v5895 = vpop.permute.xlu0 %5894
        %5896 = vrot.lane.b32.xlu0 %v5882, 64
        %v5897 = vpop.permute.xlu0 %5896
        %v5898 = vsel %vm1701, %v5889, %v5891
        %v5899 = vsel %vm1701, %v5891, %v5893
        %v5900 = vsel %vm1701, %v5893, %v5895
        %v5901 = vsel %vm1701, %v5895, %v5897
        %5906 = vst [vmem:[#allocation6 + $0x1e0] sm:$0x3f] %v5898
        %5907 = vst [vmem:[#allocation6 + $0x1e8] sm:$0x3f] %v5899
        %5908 = vst [vmem:[#allocation6 + $0x1f0] sm:$0x3f] %v5900
        %5909 = vst [vmem:[#allocation6 + $0x1f8] sm:$0x3f] %v5901
        %v5910 = vld [vmem:[#allocation5] sm:$0x3f]
        %v5911 = vld [vmem:[#allocation5 + $0x8] sm:$0x3f]
        %v5912 = vld [vmem:[#allocation5 + $0x10] sm:$0x3f]
        %v5913 = vld [vmem:[#allocation5 + $0x18] sm:$0x3f]
        %v5914 = vld [vmem:[#allocation5 + $0x20] sm:$0x3f]
        %v5920 = vrot.slane %v5910, 2
        %v5921 = vrot.slane %v5911, 2
        %v5922 = vrot.slane %v5912, 2
        %v5923 = vrot.slane %v5913, 2
        %v5924 = vrot.slane %v5914, 2
        %5925 = vrot.lane.b32.xlu0 %v5920, 63
        %v5926 = vpop.permute.xlu0 %5925
        %5927 = vrot.lane.b32.xlu0 %v5921, 63
        %v5928 = vpop.permute.xlu0 %5927
        %5929 = vrot.lane.b32.xlu0 %v5922, 63
        %v5930 = vpop.permute.xlu0 %5929
        %5931 = vrot.lane.b32.xlu0 %v5923, 63
        %v5932 = vpop.permute.xlu0 %5931
        %5933 = vrot.lane.b32.xlu0 %v5924, 63
        %v5934 = vpop.permute.xlu0 %5933
        %v5935 = vsel %vm1843, %v5926, %v5928
        %v5936 = vsel %vm1843, %v5928, %v5930
        %v5937 = vsel %vm1843, %v5930, %v5932
        %v5938 = vsel %vm1843, %v5932, %v5934
        %5943 = vst [vmem:[#allocation6 + $0x1e0] sm:$0xc0] %v5935
        %5944 = vst [vmem:[#allocation6 + $0x1e8] sm:$0xc0] %v5936
        %5945 = vst [vmem:[#allocation6 + $0x1f0] sm:$0xc0] %v5937
        %5946 = vst [vmem:[#allocation6 + $0x1f8] sm:$0xc0] %v5938
        %5947 = vst [vmem:[#allocation6 + $0x200] sm:$0xf] %v5935
        %5948 = vst [vmem:[#allocation6 + $0x208] sm:$0xf] %v5936
        %5949 = vst [vmem:[#allocation6 + $0x210] sm:$0xf] %v5937
        %5950 = vst [vmem:[#allocation6 + $0x218] sm:$0xf] %v5938
        %v5951 = vld [vmem:[#allocation5] sm:$0x3f]
        %v5952 = vld [vmem:[#allocation5 + $0x8] sm:$0x3f]
        %v5953 = vld [vmem:[#allocation5 + $0x10] sm:$0x3f]
        %v5954 = vld [vmem:[#allocation5 + $0x18] sm:$0x3f]
        %v5955 = vld [vmem:[#allocation5 + $0x20] sm:$0x3f]
        %v5961 = vrot.slane %v5951, 4
        %v5962 = vrot.slane %v5952, 4
        %v5963 = vrot.slane %v5953, 4
        %v5964 = vrot.slane %v5954, 4
        %v5965 = vrot.slane %v5955, 4
        %5966 = vrot.lane.b32.xlu0 %v5961, 62
        %v5967 = vpop.permute.xlu0 %5966
        %5968 = vrot.lane.b32.xlu0 %v5962, 62
        %v5969 = vpop.permute.xlu0 %5968
        %5970 = vrot.lane.b32.xlu0 %v5963, 62
        %v5971 = vpop.permute.xlu0 %5970
        %5972 = vrot.lane.b32.xlu0 %v5964, 62
        %v5973 = vpop.permute.xlu0 %5972
        %5974 = vrot.lane.b32.xlu0 %v5965, 62
        %v5975 = vpop.permute.xlu0 %5974
        %v5976 = vsel %vm1953, %v5967, %v5969
        %v5977 = vsel %vm1953, %v5969, %v5971
        %v5978 = vsel %vm1953, %v5971, %v5973
        %v5979 = vsel %vm1953, %v5973, %v5975
        %5984 = vst [vmem:[#allocation6 + $0x200] sm:$0xf0] %v5976
        %5985 = vst [vmem:[#allocation6 + $0x208] sm:$0xf0] %v5977
        %5986 = vst [vmem:[#allocation6 + $0x210] sm:$0xf0] %v5978
        %5987 = vst [vmem:[#allocation6 + $0x218] sm:$0xf0] %v5979
        %5988 = vst [vmem:[#allocation6 + $0x220] sm:$0x3] %v5976
        %5989 = vst [vmem:[#allocation6 + $0x228] sm:$0x3] %v5977
        %5990 = vst [vmem:[#allocation6 + $0x230] sm:$0x3] %v5978
        %5991 = vst [vmem:[#allocation6 + $0x238] sm:$0x3] %v5979
        %v5992 = vld [vmem:[#allocation5] sm:$0x3f]
        %v5993 = vld [vmem:[#allocation5 + $0x8] sm:$0x3f]
        %v5994 = vld [vmem:[#allocation5 + $0x10] sm:$0x3f]
        %v5995 = vld [vmem:[#allocation5 + $0x18] sm:$0x3f]
        %v5996 = vld [vmem:[#allocation5 + $0x20] sm:$0x3f]
        %v6002 = vrot.slane %v5992, 6
        %v6003 = vrot.slane %v5993, 6
        %v6004 = vrot.slane %v5994, 6
        %v6005 = vrot.slane %v5995, 6
        %v6006 = vrot.slane %v5996, 6
        %6007 = vrot.lane.b32.xlu0 %v6002, 61
        %v6008 = vpop.permute.xlu0 %6007
        %6009 = vrot.lane.b32.xlu0 %v6003, 61
        %v6010 = vpop.permute.xlu0 %6009
        %6011 = vrot.lane.b32.xlu0 %v6004, 61
        %v6012 = vpop.permute.xlu0 %6011
        %6013 = vrot.lane.b32.xlu0 %v6005, 61
        %v6014 = vpop.permute.xlu0 %6013
        %6015 = vrot.lane.b32.xlu0 %v6006, 61
        %v6016 = vpop.permute.xlu0 %6015
        %v6017 = vsel %vm2079, %v6008, %v6010
        %v6018 = vsel %vm2079, %v6010, %v6012
        %v6019 = vsel %vm2079, %v6012, %v6014
        %v6020 = vsel %vm2079, %v6014, %v6016
        %6025 = vst [vmem:[#allocation6 + $0x220] sm:$0xfc] %v6017
        %6026 = vst [vmem:[#allocation6 + $0x228] sm:$0xfc] %v6018
        %6027 = vst [vmem:[#allocation6 + $0x230] sm:$0xfc] %v6019
        %6028 = vst [vmem:[#allocation6 + $0x238] sm:$0xfc] %v6020
        %v6029 = vld [vmem:[#allocation5] sm:$0x3f]
        %v6030 = vld [vmem:[#allocation5 + $0x8] sm:$0x3f]
        %v6031 = vld [vmem:[#allocation5 + $0x10] sm:$0x3f]
        %v6032 = vld [vmem:[#allocation5 + $0x18] sm:$0x3f]
        %v6033 = vld [vmem:[#allocation5 + $0x20] sm:$0x3f]
        %6039 = vrot.lane.b32.xlu0 %v6029, 60
        %v6040 = vpop.permute.xlu0 %6039
        %6041 = vrot.lane.b32.xlu0 %v6030, 60
        %v6042 = vpop.permute.xlu0 %6041
        %6043 = vrot.lane.b32.xlu0 %v6031, 60
        %v6044 = vpop.permute.xlu0 %6043
        %6045 = vrot.lane.b32.xlu0 %v6032, 60
        %v6046 = vpop.permute.xlu0 %6045
        %6047 = vrot.lane.b32.xlu0 %v6033, 60
        %v6048 = vpop.permute.xlu0 %6047
        %v6049 = vsel %vm2221, %v6040, %v6042
        %v6050 = vsel %vm2221, %v6042, %v6044
        %v6051 = vsel %vm2221, %v6044, %v6046
        %v6052 = vsel %vm2221, %v6046, %v6048
        %6057 = vst [vmem:[#allocation6 + $0x240] sm:$0x3f] %v6049
        %6058 = vst [vmem:[#allocation6 + $0x248] sm:$0x3f] %v6050
        %6059 = vst [vmem:[#allocation6 + $0x250] sm:$0x3f] %v6051
        %6060 = vst [vmem:[#allocation6 + $0x258] sm:$0x3f] %v6052
        %v6061 = vld [vmem:[%s3] sm:$0xff]
        %v6062 = vld [vmem:[%s3 + $0x8] sm:$0xff]
        %v6063 = vld [vmem:[%s3 + $0x10] sm:$0xff]
        %v6064 = vld [vmem:[%s3 + $0x18] sm:$0xff]
        %v6065 = vld [vmem:[#allocation6] sm:$0xff]
        %v6066 = vld [vmem:[#allocation6 + $0x8] sm:$0xff]
        %v6067 = vld [vmem:[#allocation6 + $0x10] sm:$0xff]
        %v6068 = vld [vmem:[#allocation6 + $0x18] sm:$0xff]
        %v6069 = vld [vmem:[#allocation6 + $0x20] sm:$0xff]
        %v6070 = vld [vmem:[#allocation6 + $0x28] sm:$0xff]
        %v6071 = vld [vmem:[#allocation6 + $0x30] sm:$0xff]
        %v6072 = vld [vmem:[#allocation6 + $0x38] sm:$0xff]
        %v6073 = vld [vmem:[#allocation6 + $0x40] sm:$0xff]
        %v6074 = vld [vmem:[#allocation6 + $0x48] sm:$0xff]
        %v6075 = vld [vmem:[#allocation6 + $0x50] sm:$0xff]
        %v6076 = vld [vmem:[#allocation6 + $0x58] sm:$0xff]
        %v6077 = vld [vmem:[#allocation6 + $0x60] sm:$0xff]
        %v6078 = vld [vmem:[#allocation6 + $0x68] sm:$0xff]
        %v6079 = vld [vmem:[#allocation6 + $0x70] sm:$0xff]
        %v6080 = vld [vmem:[#allocation6 + $0x78] sm:$0xff]
        %v6081 = vld [vmem:[#allocation6 + $0x80] sm:$0xff]
        %v6082 = vld [vmem:[#allocation6 + $0x88] sm:$0xff]
        %v6083 = vld [vmem:[#allocation6 + $0x90] sm:$0xff]
        %v6084 = vld [vmem:[#allocation6 + $0x98] sm:$0xff]
        %v6085 = vld [vmem:[#allocation6 + $0xa0] sm:$0xff]
        %v6086 = vld [vmem:[#allocation6 + $0xa8] sm:$0xff]
        %v6087 = vld [vmem:[#allocation6 + $0xb0] sm:$0xff]
        %v6088 = vld [vmem:[#allocation6 + $0xb8] sm:$0xff]
        %v6089 = vld [vmem:[#allocation6 + $0xc0] sm:$0xff]
        %v6090 = vld [vmem:[#allocation6 + $0xc8] sm:$0xff]
        %v6091 = vld [vmem:[#allocation6 + $0xd0] sm:$0xff]
        %v6092 = vld [vmem:[#allocation6 + $0xd8] sm:$0xff]
        %v6093 = vld [vmem:[#allocation6 + $0xe0] sm:$0xff]
        %v6094 = vld [vmem:[#allocation6 + $0xe8] sm:$0xff]
        %v6095 = vld [vmem:[#allocation6 + $0xf0] sm:$0xff]
        %v6096 = vld [vmem:[#allocation6 + $0xf8] sm:$0xff]
        %v6097 = vld [vmem:[#allocation6 + $0x100] sm:$0xff]
        %v6098 = vld [vmem:[#allocation6 + $0x108] sm:$0xff]
        %v6099 = vld [vmem:[#allocation6 + $0x110] sm:$0xff]
        %v6100 = vld [vmem:[#allocation6 + $0x118] sm:$0xff]
        %v6101 = vld [vmem:[#allocation6 + $0x120] sm:$0xff]
        %v6102 = vld [vmem:[#allocation6 + $0x128] sm:$0xff]
        %v6103 = vld [vmem:[#allocation6 + $0x130] sm:$0xff]
        %v6104 = vld [vmem:[#allocation6 + $0x138] sm:$0xff]
        %v6105 = vld [vmem:[#allocation6 + $0x140] sm:$0xff]
        %v6106 = vld [vmem:[#allocation6 + $0x148] sm:$0xff]
        %v6107 = vld [vmem:[#allocation6 + $0x150] sm:$0xff]
        %v6108 = vld [vmem:[#allocation6 + $0x158] sm:$0xff]
        %v6109 = vld [vmem:[#allocation6 + $0x160] sm:$0xff]
        %v6110 = vld [vmem:[#allocation6 + $0x168] sm:$0xff]
        %v6111 = vld [vmem:[#allocation6 + $0x170] sm:$0xff]
        %v6112 = vld [vmem:[#allocation6 + $0x178] sm:$0xff]
        %v6113 = vld [vmem:[#allocation6 + $0x180] sm:$0xff]
        %v6114 = vld [vmem:[#allocation6 + $0x188] sm:$0xff]
        %v6115 = vld [vmem:[#allocation6 + $0x190] sm:$0xff]
        %v6116 = vld [vmem:[#allocation6 + $0x198] sm:$0xff]
        %v6117 = vld [vmem:[#allocation6 + $0x1a0] sm:$0xff]
        %v6118 = vld [vmem:[#allocation6 + $0x1a8] sm:$0xff]
        %v6119 = vld [vmem:[#allocation6 + $0x1b0] sm:$0xff]
        %v6120 = vld [vmem:[#allocation6 + $0x1b8] sm:$0xff]
        %v6121 = vld [vmem:[#allocation6 + $0x1c0] sm:$0xff]
        %v6122 = vld [vmem:[#allocation6 + $0x1c8] sm:$0xff]
        %v6123 = vld [vmem:[#allocation6 + $0x1d0] sm:$0xff]
        %v6124 = vld [vmem:[#allocation6 + $0x1d8] sm:$0xff]
        %v6125 = vld [vmem:[#allocation6 + $0x1e0] sm:$0xff]
        %v6126 = vld [vmem:[#allocation6 + $0x1e8] sm:$0xff]
        %v6127 = vld [vmem:[#allocation6 + $0x1f0] sm:$0xff]
        %v6128 = vld [vmem:[#allocation6 + $0x1f8] sm:$0xff]
        %v6129 = vld [vmem:[#allocation6 + $0x200] sm:$0xff]
        %v6130 = vld [vmem:[#allocation6 + $0x208] sm:$0xff]
        %v6131 = vld [vmem:[#allocation6 + $0x210] sm:$0xff]
        %v6132 = vld [vmem:[#allocation6 + $0x218] sm:$0xff]
        %v6133 = vld [vmem:[#allocation6 + $0x220] sm:$0xff]
        %v6134 = vld [vmem:[#allocation6 + $0x228] sm:$0xff]
        %v6135 = vld [vmem:[#allocation6 + $0x230] sm:$0xff]
        %v6136 = vld [vmem:[#allocation6 + $0x238] sm:$0xff]
        %v6137 = vld [vmem:[#allocation6 + $0x240] sm:$0x3f]
        %v6138 = vld [vmem:[#allocation6 + $0x248] sm:$0x3f]
        %v6139 = vld [vmem:[#allocation6 + $0x250] sm:$0x3f]
        %v6140 = vld [vmem:[#allocation6 + $0x258] sm:$0x3f]
        %v6141 = vld [vmem:[%s4] sm:$0xff]
        %v6142 = vld [vmem:[%s4 + $0x8] sm:$0xff]
        %6144 = vset.pattern.permute.xlu0 0
        %6145 = vperm.xlu0 %6144, %v6141
        %v6146 = vpop.permute.xlu0 %6145
        %6149 = vset.pattern.permute.xlu0 0
        %6150 = vperm.xlu0 %6149, %v6142
        %v6151 = vpop.permute.xlu0 %6150
        %vm6153 = vcmask 179200
        %v6155 = vsel %vm6153, %v6062, 0
        %v6158 = vsel %vm6153, %v6064, 0
        %vm6160 = vcmask 1045504
        %v6162 = vsel %vm6160, %v6137, 0
        %v6165 = vsel %vm6160, %v6138, 0
        %v6168 = vsel %vm6160, %v6139, 0
        %v6171 = vsel %vm6160, %v6140, 0
        %6173 = vmatprep.subr.mxu0 %v6066
        %6174 = vmatpush1.msra.mxu0 %v6065
        %6175 = vmatprep.subr.mxu0 %v6070
        %6176 = vmatpush1.msra.mxu0 %v6069
        %6177 = vmatprep.subr.mxu0 %v6074
        %6178 = vmatpush1.msra.mxu0 %v6073
        %6179 = vmatprep.subr.mxu0 %v6078
        %6180 = vmatpush1.msra.mxu0 %v6077
        %6181 = vmatprep.subr.mxu0 %v6082
        %6182 = vmatpush1.msra.mxu0 %v6081
        %6183 = vmatprep.subr.mxu0 %v6086
        %6184 = vmatpush1.msra.mxu0 %v6085
        %6185 = vmatprep.subr.mxu0 %v6090
        %6186 = vmatpush1.msra.mxu0 %v6089
        %6187 = vmatprep.subr.mxu0 %v6094
        %6188 = vmatpush1.msra.mxu0 %v6093
        %6189 = vmatprep.subr.mxu0 %v6098
        %6190 = vmatpush1.msra.mxu0 %v6097
        %6191 = vmatprep.subr.mxu0 %v6102
        %6192 = vmatpush1.msra.mxu0 %v6101
        %6193 = vmatprep.subr.mxu0 %v6106
        %6194 = vmatpush1.msra.mxu0 %v6105
        %6195 = vmatprep.subr.mxu0 %v6110
        %6196 = vmatpush1.msra.mxu0 %v6109
        %6197 = vmatprep.subr.mxu0 %v6114
        %6198 = vmatpush1.msra.mxu0 %v6113
        %6199 = vmatprep.subr.mxu0 %v6118
        %6200 = vmatpush1.msra.mxu0 %v6117
        %6201 = vmatprep.subr.mxu0 %v6122
        %6202 = vmatpush1.msra.mxu0 %v6121
        %6203 = vmatprep.subr.mxu0 %v6126
        %6204 = vmatpush1.msra.mxu0 %v6125
        %6205 = vmatprep.subr.mxu0 %v6130
        %6206 = vmatpush1.msra.mxu0 %v6129
        %6207 = vmatprep.subr.mxu0 %v6134
        %6208 = vmatpush1.msra.mxu0 %v6133
        %6209 = vmatprep.subr.mxu0 %v6165
        %6210 = vmatpush1.msra.mxu0 %v6162
        %6211 = vmatprep.subr.mxu0 0.0
        %6212 = vmatpush1.msra.mxu0 0.0
        %6213 = vmatprep.subr.mxu0 0.0
        %6214 = vmatpush1.msra.mxu0 0.0
        %6215 = vmatprep.subr.mxu0 0.0
        %6216 = vmatpush1.msra.mxu0 0.0
        %6217 = vmatprep.subr.mxu0 0.0
        %6218 = vmatpush1.msra.mxu0 0.0
        %6219 = vmatprep.subr.mxu0 0.0
        %6220 = vmatpush1.msra.mxu0 0.0
        %6221 = vmatprep.subr.mxu0 0.0
        %6222 = vmatpush1.msra.mxu0 0.0
        %6223 = vmatprep.subr.mxu0 0.0
        %6224 = vmatpush1.msra.mxu0 0.0
        %6225 = vmatprep.subr.mxu0 0.0
        %6226 = vmatpush1.msra.mxu0 0.0
        %6227 = vmatprep.subr.mxu0 0.0
        %6228 = vmatpush1.msra.mxu0 0.0
        %6229 = vmatprep.subr.mxu0 0.0
        %6230 = vmatpush1.msra.mxu0 0.0
        %6231 = vmatprep.subr.mxu0 0.0
        %6232 = vmatpush1.msra.mxu0 0.0
        %6233 = vmatprep.subr.mxu0 0.0
        %6234 = vmatpush1.msra.mxu0 0.0
        %6235 = vmatprep.subr.mxu0 0.0
        %6236 = vmatpush1.msra.mxu0 0.0
        %6237 = vmatprep.mubr.f32.mxu0 %v6155
        %6238 = vmatmul.mubr.f32.gmra.mrb[0].mxu0 %v6061
        %v6239 = vpop.f32.mrb[0].mxu0
        %v6240 = vadd.f32 %v6146, %v6239
        %v6241 = vpop.f32.mrb[0].mxu0
        %v6242 = vadd.f32 %v6146, %v6241
        %6243 = vmatprep.mubr.f32.mxu0 %v6158
        %6244 = vmatmul.mubr.f32.gmra.mrb[0].mxu0 %v6063
        %v6245 = vpop.f32.mrb[0].mxu0
        %v6246 = vadd.f32 %v6151, %v6245
        %v6247 = vpop.f32.mrb[0].mxu0
        %v6248 = vadd.f32 %v6151, %v6247
        %6249 = vdwg.mxu0
        %6250 = vmatprep.subr.mxu0 %v6068
        %6251 = vmatpush1.msra.mxu0 %v6067
        %6252 = vmatprep.subr.mxu0 %v6072
        %6253 = vmatpush1.msra.mxu0 %v6071
        %6254 = vmatprep.subr.mxu0 %v6076
        %6255 = vmatpush1.msra.mxu0 %v6075
        %6256 = vmatprep.subr.mxu0 %v6080
        %6257 = vmatpush1.msra.mxu0 %v6079
        %6258 = vmatprep.subr.mxu0 %v6084
        %6259 = vmatpush1.msra.mxu0 %v6083
        %6260 = vmatprep.subr.mxu0 %v6088
        %6261 = vmatpush1.msra.mxu0 %v6087
        %6262 = vmatprep.subr.mxu0 %v6092
        %6263 = vmatpush1.msra.mxu0 %v6091
        %6264 = vmatprep.subr.mxu0 %v6096
        %6265 = vmatpush1.msra.mxu0 %v6095
        %6266 = vmatprep.subr.mxu0 %v6100
        %6267 = vmatpush1.msra.mxu0 %v6099
        %6268 = vmatprep.subr.mxu0 %v6104
        %6269 = vmatpush1.msra.mxu0 %v6103
        %6270 = vmatprep.subr.mxu0 %v6108
        %6271 = vmatpush1.msra.mxu0 %v6107
        %6272 = vmatprep.subr.mxu0 %v6112
        %6273 = vmatpush1.msra.mxu0 %v6111
        %6274 = vmatprep.subr.mxu0 %v6116
        %6275 = vmatpush1.msra.mxu0 %v6115
        %6276 = vmatprep.subr.mxu0 %v6120
        %6277 = vmatpush1.msra.mxu0 %v6119
        %6278 = vmatprep.subr.mxu0 %v6124
        %6279 = vmatpush1.msra.mxu0 %v6123
        %6280 = vmatprep.subr.mxu0 %v6128
        %6281 = vmatpush1.msra.mxu0 %v6127
        %6282 = vmatprep.subr.mxu0 %v6132
        %6283 = vmatpush1.msra.mxu0 %v6131
        %6284 = vmatprep.subr.mxu0 %v6136
        %6285 = vmatpush1.msra.mxu0 %v6135
        %6286 = vmatprep.subr.mxu0 %v6171
        %6287 = vmatpush1.msra.mxu0 %v6168
        %6288 = vmatprep.subr.mxu0 0.0
        %6289 = vmatpush1.msra.mxu0 0.0
        %6290 = vmatprep.subr.mxu0 0.0
        %6291 = vmatpush1.msra.mxu0 0.0
        %6292 = vmatprep.subr.mxu0 0.0
        %6293 = vmatpush1.msra.mxu0 0.0
        %6294 = vmatprep.subr.mxu0 0.0
        %6295 = vmatpush1.msra.mxu0 0.0
        %6296 = vmatprep.subr.mxu0 0.0
        %6297 = vmatpush1.msra.mxu0 0.0
        %6298 = vmatprep.subr.mxu0 0.0
        %6299 = vmatpush1.msra.mxu0 0.0
        %6300 = vmatprep.subr.mxu0 0.0
        %6301 = vmatpush1.msra.mxu0 0.0
        %6302 = vmatprep.subr.mxu0 0.0
        %6303 = vmatpush1.msra.mxu0 0.0
        %6304 = vmatprep.subr.mxu0 0.0
        %6305 = vmatpush1.msra.mxu0 0.0
        %6306 = vmatprep.subr.mxu0 0.0
        %6307 = vmatpush1.msra.mxu0 0.0
        %6308 = vmatprep.subr.mxu0 0.0
        %6309 = vmatpush1.msra.mxu0 0.0
        %6310 = vmatprep.subr.mxu0 0.0
        %6311 = vmatpush1.msra.mxu0 0.0
        %6312 = vmatprep.subr.mxu0 0.0
        %6313 = vmatpush1.msra.mxu0 0.0
        %6314 = vmatprep.mubr.f32.mxu0 %v6155
        %6315 = vmatmul.mubr.f32.gmra.mrb[0].mxu0 %v6061
        %v6316 = vpop.f32.mrb[0].mxu0
        %v6317 = vadd.f32 %v6146, %v6316
        %v6318 = vpop.f32.mrb[0].mxu0
        %v6319 = vadd.f32 %v6146, %v6318
        %6320 = vmatprep.mubr.f32.mxu0 %v6158
        %6321 = vmatmul.mubr.f32.gmra.mrb[0].mxu0 %v6063
        %v6322 = vpop.f32.mrb[0].mxu0
        %v6323 = vadd.f32 %v6151, %v6322
        %v6324 = vpop.f32.mrb[0].mxu0
        %v6325 = vadd.f32 %v6151, %v6324
        %6326 = vdwg.mxu0
        %v6327 = vmax.f32 %v6240, 0.0
        %v6328 = vmax.f32 %v6242, 0.0
        %v6329 = vmax.f32 %v6317, 0.0
        %v6330 = vmax.f32 %v6319, 0.0
        %v6331 = vmax.f32 %v6246, 0.0
        %v6332 = vmax.f32 %v6248, 0.0
        %v6333 = vmax.f32 %v6323, 0.0
        %v6334 = vmax.f32 %v6325, 0.0
        %6335 = vst [vmem:[#allocation7] sm:$0xff] %v6327
        %6336 = vst [vmem:[#allocation7 + $0x8] sm:$0xff] %v6328
        %6337 = vst [vmem:[#allocation7 + $0x10] sm:$0xff] %v6329
        %6338 = vst [vmem:[#allocation7 + $0x18] sm:$0xff] %v6330
        %6339 = vst [vmem:[#allocation7 + $0x28] sm:$0xff] %v6331
        %6340 = vst [vmem:[#allocation7 + $0x30] sm:$0xff] %v6332
        %6341 = vst [vmem:[#allocation7 + $0x38] sm:$0xff] %v6333
        %6342 = vst [vmem:[#allocation7 + $0x40] sm:$0xff] %v6334
        %v6343 = vld [vmem:[#allocation7] sm:$0xff]
        %v6344 = vld [vmem:[#allocation7 + $0x8] sm:$0xff]
        %v6345 = vld [vmem:[#allocation7 + $0x28] sm:$0xff]
        %v6346 = vld [vmem:[#allocation7 + $0x30] sm:$0xff]
        %v6347 = vld [vmem:[#allocation7 + $0x10] sm:$0xff]
        %v6348 = vld [vmem:[#allocation7 + $0x38] sm:$0xff]
        %6355 = vrot.lane.b32.xlu0 %v6343, 127
        %v6356 = vpop.permute.xlu0 %6355
        %6357 = vrot.lane.b32.xlu0 %v6344, 127
        %v6358 = vpop.permute.xlu0 %6357
        %6359 = vrot.lane.b32.xlu0 %v6347, 127
        %v6360 = vpop.permute.xlu0 %6359
        %6361 = vrot.lane.b32.xlu0 %v6345, 127
        %v6362 = vpop.permute.xlu0 %6361
        %6363 = vrot.lane.b32.xlu0 %v6346, 127
        %v6364 = vpop.permute.xlu0 %6363
        %6365 = vrot.lane.b32.xlu0 %v6348, 127
        %v6366 = vpop.permute.xlu0 %6365
        %v6367 = vsel %vm568, %v6356, %v6358
        %v6368 = vsel %vm568, %v6358, %v6360
        %v6369 = vsel %vm568, %v6362, %v6364
        %v6370 = vsel %vm568, %v6364, %v6366
        %v6375 = vmax.f32 %v6343, %v6367
        %v6376 = vmax.f32 %v6344, %v6368
        %v6377 = vmax.f32 %v6345, %v6369
        %v6378 = vmax.f32 %v6346, %v6370
        %v6381 = vmax.f32 %v6347, %v6360
        %v6382 = vmax.f32 %v6348, %v6366
        %6389 = vrot.lane.b32.xlu0 %v6375, 112
        %v6390 = vpop.permute.xlu0 %6389
        %6391 = vrot.lane.b32.xlu0 %v6376, 112
        %v6392 = vpop.permute.xlu0 %6391
        %6393 = vrot.lane.b32.xlu0 %v6381, 112
        %v6394 = vpop.permute.xlu0 %6393
        %6395 = vrot.lane.b32.xlu0 %v6377, 112
        %v6396 = vpop.permute.xlu0 %6395
        %6397 = vrot.lane.b32.xlu0 %v6378, 112
        %v6398 = vpop.permute.xlu0 %6397
        %6399 = vrot.lane.b32.xlu0 %v6382, 112
        %v6400 = vpop.permute.xlu0 %6399
        %v6401 = vsel %vm5321, %v6390, %v6392
        %v6402 = vsel %vm5321, %v6392, %v6394
        %v6403 = vsel %vm5321, %v6396, %v6398
        %v6404 = vsel %vm5321, %v6398, %v6400
        %v6409 = vmax.f32 %v6375, %v6401
        %v6410 = vmax.f32 %v6376, %v6402
        %v6411 = vmax.f32 %v6377, %v6403
        %v6412 = vmax.f32 %v6378, %v6404
        %6413 = vst [vmem:[#allocation8] sm:$0xff] %v6409
        %6414 = vst [vmem:[#allocation8 + $0x8] sm:$0xff] %v6410
        %6415 = vst [vmem:[#allocation8 + $0x10] sm:$0xff] %v6411
        %6416 = vst [vmem:[#allocation8 + $0x18] sm:$0xff] %v6412
        %v6417 = vld [vmem:[#allocation7 + $0x10] sm:$0xff]
        %v6418 = vld [vmem:[#allocation7 + $0x18] sm:$0xff]
        %v6419 = vld [vmem:[#allocation7 + $0x38] sm:$0xff]
        %v6420 = vld [vmem:[#allocation7 + $0x40] sm:$0xff]
        %v6421 = vld [vmem:[#allocation7 + $0x10] sm:$0xff]
        %v6422 = vld [vmem:[#allocation7 + $0x18] sm:$0xff]
        %v6423 = vld [vmem:[#allocation7 + $0x20] sm:$0xff]
        %v6424 = vld [vmem:[#allocation7 + $0x38] sm:$0xff]
        %v6425 = vld [vmem:[#allocation7 + $0x40] sm:$0xff]
        %v6426 = vld [vmem:[#allocation7 + $0x48] sm:$0xff]
        %6433 = vrot.lane.b32.xlu0 %v6421, 127
        %v6434 = vpop.permute.xlu0 %6433
        %6435 = vrot.lane.b32.xlu0 %v6422, 127
        %v6436 = vpop.permute.xlu0 %6435
        %6437 = vrot.lane.b32.xlu0 %v6423, 127
        %v6438 = vpop.permute.xlu0 %6437
        %6439 = vrot.lane.b32.xlu0 %v6424, 127
        %v6440 = vpop.permute.xlu0 %6439
        %6441 = vrot.lane.b32.xlu0 %v6425, 127
        %v6442 = vpop.permute.xlu0 %6441
        %6443 = vrot.lane.b32.xlu0 %v6426, 127
        %v6444 = vpop.permute.xlu0 %6443
        %v6445 = vsel %vm568, %v6434, %v6436
        %v6446 = vsel %vm568, %v6436, %v6438
        %v6447 = vsel %vm568, %v6440, %v6442
        %v6448 = vsel %vm568, %v6442, %v6444
        %v6453 = vmax.f32 %v6417, %v6445
        %v6454 = vmax.f32 %v6418, %v6446
        %v6455 = vmax.f32 %v6419, %v6447
        %v6456 = vmax.f32 %v6420, %v6448
        %v6459 = vmax.f32 %v6421, %v6445
        %v6460 = vmax.f32 %v6422, %v6446
        %v6461 = vmax.f32 %v6423, %v6438
        %v6462 = vmax.f32 %v6424, %v6447
        %v6463 = vmax.f32 %v6425, %v6448
        %v6464 = vmax.f32 %v6426, %v6444
        %6471 = vrot.lane.b32.xlu0 %v6459, 112
        %v6472 = vpop.permute.xlu0 %6471
        %6473 = vrot.lane.b32.xlu0 %v6460, 112
        %v6474 = vpop.permute.xlu0 %6473
        %6475 = vrot.lane.b32.xlu0 %v6461, 112
        %v6476 = vpop.permute.xlu0 %6475
        %6477 = vrot.lane.b32.xlu0 %v6462, 112
        %v6478 = vpop.permute.xlu0 %6477
        %6479 = vrot.lane.b32.xlu0 %v6463, 112
        %v6480 = vpop.permute.xlu0 %6479
        %6481 = vrot.lane.b32.xlu0 %v6464, 112
        %v6482 = vpop.permute.xlu0 %6481
        %v6483 = vsel %vm5321, %v6472, %v6474
        %v6484 = vsel %vm5321, %v6474, %v6476
        %v6485 = vsel %vm5321, %v6478, %v6480
        %v6486 = vsel %vm5321, %v6480, %v6482
        %v6491 = vmax.f32 %v6453, %v6483
        %v6492 = vmax.f32 %v6454, %v6484
        %v6493 = vmax.f32 %v6455, %v6485
        %v6494 = vmax.f32 %v6456, %v6486
        %6495 = vst [vmem:[#allocation8 + $0x20] sm:$0xff] %v6491
        %6496 = vst [vmem:[#allocation8 + $0x28] sm:$0xff] %v6492
        %6497 = vst [vmem:[#allocation8 + $0x30] sm:$0xff] %v6493
        %6498 = vst [vmem:[#allocation8 + $0x38] sm:$0xff] %v6494
        %v6499 = vld [vmem:[#allocation8] sm:$0xff]
        %v6500 = vld [vmem:[#allocation8 + $0x8] sm:$0xff]
        %v6501 = vld [vmem:[#allocation8 + $0x10] sm:$0xff]
        %v6502 = vld [vmem:[#allocation8 + $0x18] sm:$0xff]
        %v6503 = vld [vmem:[#allocation8 + $0x20] sm:$0xff]
        %v6504 = vld [vmem:[#allocation8 + $0x28] sm:$0xff]
        %v6505 = vld [vmem:[#allocation8 + $0x30] sm:$0xff]
        %v6506 = vld [vmem:[#allocation8 + $0x38] sm:$0xff]
        %v6507 = vld [vmem:[%s6] sm:$0xff]
        %v6508 = vld [vmem:[%s6 + $0x8] sm:$0xff]
        %v6509 = vld [vmem:[%s6 + $0x10] sm:$0xff]
        %v6510 = vld [vmem:[%s6 + $0x18] sm:$0xff]
        %v6511 = vld [vmem:[%s6 + $0x20] sm:$0xff]
        %v6512 = vld [vmem:[%s6 + $0x28] sm:$0xff]
        %v6513 = vld [vmem:[%s6 + $0x30] sm:$0xff]
        %v6514 = vld [vmem:[%s6 + $0x38] sm:$0xff]
        %v6515 = vld [vmem:[%s6 + $0x40] sm:$0xff]
        %v6516 = vld [vmem:[%s6 + $0x48] sm:$0xff]
        %v6517 = vld [vmem:[%s6 + $0x50] sm:$0xff]
        %v6518 = vld [vmem:[%s6 + $0x58] sm:$0xff]
        %v6519 = vld [vmem:[%s6 + $0x60] sm:$0xff]
        %v6520 = vld [vmem:[%s6 + $0x68] sm:$0xff]
        %v6521 = vld [vmem:[%s6 + $0x70] sm:$0xff]
        %v6522 = vld [vmem:[%s6 + $0x78] sm:$0xff]
        %v6523 = vld [vmem:[%s6 + $0x80] sm:$0xff]
        %v6524 = vld [vmem:[%s6 + $0x88] sm:$0xff]
        %v6525 = vld [vmem:[%s6 + $0x90] sm:$0xff]
        %v6526 = vld [vmem:[%s6 + $0x98] sm:$0xff]
        %v6527 = vld [vmem:[%s6 + $0xa0] sm:$0xff]
        %v6528 = vld [vmem:[%s6 + $0xa8] sm:$0xff]
        %v6529 = vld [vmem:[%s6 + $0xb0] sm:$0xff]
        %v6530 = vld [vmem:[%s6 + $0xb8] sm:$0xff]
        %v6531 = vld [vmem:[%s6 + $0xc0] sm:$0xff]
        %v6532 = vld [vmem:[%s6 + $0xc8] sm:$0xff]
        %v6533 = vld [vmem:[%s6 + $0xd0] sm:$0xff]
        %v6534 = vld [vmem:[%s6 + $0xd8] sm:$0xff]
        %v6535 = vld [vmem:[%s6 + $0xe0] sm:$0xff]
        %v6536 = vld [vmem:[%s6 + $0xe8] sm:$0xff]
        %v6537 = vld [vmem:[%s6 + $0xf0] sm:$0xff]
        %v6538 = vld [vmem:[%s6 + $0xf8] sm:$0xff]
        %6539 = vmatprep.subr.mxu0 0.0
        %6540 = vmatpush1.msra.mxu0 %v6507
        %6541 = vmatprep.subr.mxu0 0.0
        %6542 = vmatpush1.msra.mxu0 %v6508
        %6543 = vmatprep.subr.mxu0 0.0
        %6544 = vmatpush1.msra.mxu0 %v6509
        %6545 = vmatprep.subr.mxu0 0.0
        %6546 = vmatpush1.msra.mxu0 %v6510
        %6547 = vmatprep.subr.mxu0 0.0
        %6548 = vmatpush1.msra.mxu0 %v6511
        %6549 = vmatprep.subr.mxu0 0.0
        %6550 = vmatpush1.msra.mxu0 %v6512
        %6551 = vmatprep.subr.mxu0 0.0
        %6552 = vmatpush1.msra.mxu0 %v6513
        %6553 = vmatprep.subr.mxu0 0.0
        %6554 = vmatpush1.msra.mxu0 %v6514
        %6555 = vmatprep.subr.mxu0 0.0
        %6556 = vmatpush1.msra.mxu0 %v6515
        %6557 = vmatprep.subr.mxu0 0.0
        %6558 = vmatpush1.msra.mxu0 %v6516
        %6559 = vmatprep.subr.mxu0 0.0
        %6560 = vmatpush1.msra.mxu0 %v6517
        %6561 = vmatprep.subr.mxu0 0.0
        %6562 = vmatpush1.msra.mxu0 %v6518
        %6563 = vmatprep.subr.mxu0 0.0
        %6564 = vmatpush1.msra.mxu0 %v6519
        %6565 = vmatprep.subr.mxu0 0.0
        %6566 = vmatpush1.msra.mxu0 %v6520
        %6567 = vmatprep.subr.mxu0 0.0
        %6568 = vmatpush1.msra.mxu0 %v6521
        %6569 = vmatprep.subr.mxu0 0.0
        %6570 = vmatpush1.msra.mxu0 %v6522
        %6571 = vmatprep.subr.mxu0 0.0
        %6572 = vmatpush1.msra.mxu0 %v6523
        %6573 = vmatprep.subr.mxu0 0.0
        %6574 = vmatpush1.msra.mxu0 %v6524
        %6575 = vmatprep.subr.mxu0 0.0
        %6576 = vmatpush1.msra.mxu0 %v6525
        %6577 = vmatprep.subr.mxu0 0.0
        %6578 = vmatpush1.msra.mxu0 %v6526
        %6579 = vmatprep.subr.mxu0 0.0
        %6580 = vmatpush1.msra.mxu0 %v6527
        %6581 = vmatprep.subr.mxu0 0.0
        %6582 = vmatpush1.msra.mxu0 %v6528
        %6583 = vmatprep.subr.mxu0 0.0
        %6584 = vmatpush1.msra.mxu0 %v6529
        %6585 = vmatprep.subr.mxu0 0.0
        %6586 = vmatpush1.msra.mxu0 %v6530
        %6587 = vmatprep.subr.mxu0 0.0
        %6588 = vmatpush1.msra.mxu0 %v6531
        %6589 = vmatprep.subr.mxu0 0.0
        %6590 = vmatpush1.msra.mxu0 %v6532
        %6591 = vmatprep.subr.mxu0 0.0
        %6592 = vmatpush1.msra.mxu0 %v6533
        %6593 = vmatprep.subr.mxu0 0.0
        %6594 = vmatpush1.msra.mxu0 %v6534
        %6595 = vmatprep.subr.mxu0 0.0
        %6596 = vmatpush1.msra.mxu0 %v6535
        %6597 = vmatprep.subr.mxu0 0.0
        %6598 = vmatpush1.msra.mxu0 %v6536
        %6599 = vmatprep.subr.mxu0 0.0
        %6600 = vmatpush1.msra.mxu0 %v6537
        %6601 = vmatprep.subr.mxu0 0.0
        %6602 = vmatpush1.msra.mxu0 %v6538
        %6603 = vmatprep.mubr.f32.mxu0 %v6500
        %6604 = vmatmul.mubr.f32.gmra.mrb[0].mxu0 %v6499
        %v6605 = vpop.f32.mrb[0].mxu0
        %v6606 = vadd.f32 0.0, %v6605
        %v6607 = vpop.f32.mrb[0].mxu0
        %6608 = vmatprep.mubr.f32.mxu0 %v6502
        %6609 = vmatmul.mubr.f32.gmra.mrb[0].mxu0 %v6501
        %v6610 = vpop.f32.mrb[0].mxu0
        %v6611 = vadd.f32 0.0, %v6610
        %v6612 = vpop.f32.mrb[0].mxu0
        %6613 = vmatprep.mubr.f32.mxu0 %v6504
        %6614 = vmatmul.mubr.f32.gmra.mrb[0].mxu0 %v6503
        %v6615 = vpop.f32.mrb[0].mxu0
        %v6616 = vadd.f32 0.0, %v6615
        %v6617 = vpop.f32.mrb[0].mxu0
        %6618 = vmatprep.mubr.f32.mxu0 %v6506
        %6619 = vmatmul.mubr.f32.gmra.mrb[0].mxu0 %v6505
        %v6620 = vpop.f32.mrb[0].mxu0
        %v6621 = vadd.f32 0.0, %v6620
        %v6622 = vpop.f32.mrb[0].mxu0
        %6623 = vdwg.mxu0
        %vm6624 = vcmask 516096
        %6625 = vst.msk [vmem:[#allocation9] sm:$0x1] %vm6624, %v6606
        %v6628 = vunpack.c.l.s4 1983009808
        %v6629 = vunpack.c.0.s8 %v6628
        %v6630 = vlaneseq
        %v6631 = vshrl.u32 %v6630, 7
        %v6632 = vsub.s32 %v6629, %v6631
        %v6633 = vrot.slane %v6606, %v6632
        %v6634 = vrot.slane %v6633, 7
        %v6635 = vrot.slane %v6634, 2
        %6636 = vrot.lane.b32.xlu0 %v6635, 64
        %v6637 = vpop.permute.xlu0 %6636
        %vm6639 = vcmask 1040896
        %6640 = vst.msk [vmem:[#allocation9] sm:$0x1] %vm6639, %v6637
        %v6641 = vcombine.high %v6633, %v6633
        %6643 = vst.msk [vmem:[#allocation9 + $0x2] sm:$0x1] %vm6624, %v6641
        %v6644 = vrot.slane %v6641, 7
        %v6645 = vrot.slane %v6644, 2
        %6646 = vrot.lane.b32.xlu0 %v6645, 64
        %v6647 = vpop.permute.xlu0 %6646
        %6649 = vst.msk [vmem:[#allocation9 + $0x2] sm:$0x1] %vm6639, %v6647
        %v6650 = vcombine.high %v6606, %v6606
        %v6652 = vunpack.c.l.s4 1983009808
        %v6653 = vunpack.c.0.s8 %v6652
        %v6654 = vlaneseq
        %v6655 = vshrl.u32 %v6654, 7
        %v6656 = vsub.s32 %v6653, %v6655
        %v6657 = vrot.slane %v6650, %v6656
        %6659 = vst.msk [vmem:[#allocation9 + $0x4] sm:$0x1] %vm6624, %v6657
        %v6660 = vrot.slane %v6657, 7
        %v6661 = vrot.slane %v6660, 2
        %6662 = vrot.lane.b32.xlu0 %v6661, 64
        %v6663 = vpop.permute.xlu0 %6662
        %6665 = vst.msk [vmem:[#allocation9 + $0x4] sm:$0x1] %vm6639, %v6663
        %v6666 = vcombine.high %v6657, %v6657
        %6668 = vst.msk [vmem:[#allocation9 + $0x6] sm:$0x1] %vm6624, %v6666
        %v6669 = vrot.slane %v6666, 7
        %v6670 = vrot.slane %v6669, 2
        %6671 = vrot.lane.b32.xlu0 %v6670, 64
        %v6672 = vpop.permute.xlu0 %6671
        %6674 = vst.msk [vmem:[#allocation9 + $0x6] sm:$0x1] %vm6639, %v6672
        %6675 = vst.msk [vmem:[#allocation9 + $0x8] sm:$0x1] %vm6624, %v6611
        %v6678 = vunpack.c.l.s4 1983009808
        %v6679 = vunpack.c.0.s8 %v6678
        %v6680 = vlaneseq
        %v6681 = vshrl.u32 %v6680, 7
        %v6682 = vsub.s32 %v6679, %v6681
        %v6683 = vrot.slane %v6611, %v6682
        %v6684 = vrot.slane %v6683, 7
        %v6685 = vrot.slane %v6684, 2
        %6686 = vrot.lane.b32.xlu0 %v6685, 64
        %v6687 = vpop.permute.xlu0 %6686
        %6689 = vst.msk [vmem:[#allocation9 + $0x8] sm:$0x1] %vm6639, %v6687
        %v6690 = vcombine.high %v6683, %v6683
        %6692 = vst.msk [vmem:[#allocation9 + $0xa] sm:$0x1] %vm6624, %v6690
        %v6693 = vrot.slane %v6690, 7
        %v6694 = vrot.slane %v6693, 2
        %6695 = vrot.lane.b32.xlu0 %v6694, 64
        %v6696 = vpop.permute.xlu0 %6695
        %6698 = vst.msk [vmem:[#allocation9 + $0xa] sm:$0x1] %vm6639, %v6696
        %v6699 = vcombine.high %v6611, %v6611
        %v6701 = vunpack.c.l.s4 1983009808
        %v6702 = vunpack.c.0.s8 %v6701
        %v6703 = vlaneseq
        %v6704 = vshrl.u32 %v6703, 7
        %v6705 = vsub.s32 %v6702, %v6704
        %v6706 = vrot.slane %v6699, %v6705
        %6708 = vst.msk [vmem:[#allocation9 + $0xc] sm:$0x1] %vm6624, %v6706
        %v6709 = vrot.slane %v6706, 7
        %v6710 = vrot.slane %v6709, 2
        %6711 = vrot.lane.b32.xlu0 %v6710, 64
        %v6712 = vpop.permute.xlu0 %6711
        %6714 = vst.msk [vmem:[#allocation9 + $0xc] sm:$0x1] %vm6639, %v6712
        %v6715 = vcombine.high %v6706, %v6706
        %6717 = vst.msk [vmem:[#allocation9 + $0xe] sm:$0x1] %vm6624, %v6715
        %v6718 = vrot.slane %v6715, 7
        %v6719 = vrot.slane %v6718, 2
        %6720 = vrot.lane.b32.xlu0 %v6719, 64
        %v6721 = vpop.permute.xlu0 %6720
        %6723 = vst.msk [vmem:[#allocation9 + $0xe] sm:$0x1] %vm6639, %v6721
        %6724 = vst.msk [vmem:[#allocation9 + $0x1] sm:$0x1] %vm6624, %v6616
        %v6727 = vunpack.c.l.s4 1983009808
        %v6728 = vunpack.c.0.s8 %v6727
        %v6729 = vlaneseq
        %v6730 = vshrl.u32 %v6729, 7
        %v6731 = vsub.s32 %v6728, %v6730
        %v6732 = vrot.slane %v6616, %v6731
        %v6733 = vrot.slane %v6732, 7
        %v6734 = vrot.slane %v6733, 2
        %6735 = vrot.lane.b32.xlu0 %v6734, 64
        %v6736 = vpop.permute.xlu0 %6735
        %6738 = vst.msk [vmem:[#allocation9 + $0x1] sm:$0x1] %vm6639, %v6736
        %v6739 = vcombine.high %v6732, %v6732
        %6741 = vst.msk [vmem:[#allocation9 + $0x3] sm:$0x1] %vm6624, %v6739
        %v6742 = vrot.slane %v6739, 7
        %v6743 = vrot.slane %v6742, 2
        %6744 = vrot.lane.b32.xlu0 %v6743, 64
        %v6745 = vpop.permute.xlu0 %6744
        %6747 = vst.msk [vmem:[#allocation9 + $0x3] sm:$0x1] %vm6639, %v6745
        %v6748 = vcombine.high %v6616, %v6616
        %v6750 = vunpack.c.l.s4 1983009808
        %v6751 = vunpack.c.0.s8 %v6750
        %v6752 = vlaneseq
        %v6753 = vshrl.u32 %v6752, 7
        %v6754 = vsub.s32 %v6751, %v6753
        %v6755 = vrot.slane %v6748, %v6754
        %6757 = vst.msk [vmem:[#allocation9 + $0x5] sm:$0x1] %vm6624, %v6755
        %v6758 = vrot.slane %v6755, 7
        %v6759 = vrot.slane %v6758, 2
        %6760 = vrot.lane.b32.xlu0 %v6759, 64
        %v6761 = vpop.permute.xlu0 %6760
        %6763 = vst.msk [vmem:[#allocation9 + $0x5] sm:$0x1] %vm6639, %v6761
        %v6764 = vcombine.high %v6755, %v6755
        %6766 = vst.msk [vmem:[#allocation9 + $0x7] sm:$0x1] %vm6624, %v6764
        %v6767 = vrot.slane %v6764, 7
        %v6768 = vrot.slane %v6767, 2
        %6769 = vrot.lane.b32.xlu0 %v6768, 64
        %v6770 = vpop.permute.xlu0 %6769
        %6772 = vst.msk [vmem:[#allocation9 + $0x7] sm:$0x1] %vm6639, %v6770
        %6773 = vst.msk [vmem:[#allocation9 + $0x9] sm:$0x1] %vm6624, %v6621
        %v6776 = vunpack.c.l.s4 1983009808
        %v6777 = vunpack.c.0.s8 %v6776
        %v6778 = vlaneseq
        %v6779 = vshrl.u32 %v6778, 7
        %v6780 = vsub.s32 %v6777, %v6779
        %v6781 = vrot.slane %v6621, %v6780
        %v6782 = vrot.slane %v6781, 7
        %v6783 = vrot.slane %v6782, 2
        %6784 = vrot.lane.b32.xlu0 %v6783, 64
        %v6785 = vpop.permute.xlu0 %6784
        %6787 = vst.msk [vmem:[#allocation9 + $0x9] sm:$0x1] %vm6639, %v6785
        %v6788 = vcombine.high %v6781, %v6781
        %6790 = vst.msk [vmem:[#allocation9 + $0xb] sm:$0x1] %vm6624, %v6788
        %v6791 = vrot.slane %v6788, 7
        %v6792 = vrot.slane %v6791, 2
        %6793 = vrot.lane.b32.xlu0 %v6792, 64
        %v6794 = vpop.permute.xlu0 %6793
        %6796 = vst.msk [vmem:[#allocation9 + $0xb] sm:$0x1] %vm6639, %v6794
        %v6797 = vcombine.high %v6621, %v6621
        %v6799 = vunpack.c.l.s4 1983009808
        %v6800 = vunpack.c.0.s8 %v6799
        %v6801 = vlaneseq
        %v6802 = vshrl.u32 %v6801, 7
        %v6803 = vsub.s32 %v6800, %v6802
        %v6804 = vrot.slane %v6797, %v6803
        %6806 = vst.msk [vmem:[#allocation9 + $0xd] sm:$0x1] %vm6624, %v6804
        %v6807 = vrot.slane %v6804, 7
        %v6808 = vrot.slane %v6807, 2
        %6809 = vrot.lane.b32.xlu0 %v6808, 64
        %v6810 = vpop.permute.xlu0 %6809
        %6812 = vst.msk [vmem:[#allocation9 + $0xd] sm:$0x1] %vm6639, %v6810
        %v6813 = vcombine.high %v6804, %v6804
        %6815 = vst.msk [vmem:[#allocation9 + $0xf] sm:$0x1] %vm6624, %v6813
        %v6816 = vrot.slane %v6813, 7
        %v6817 = vrot.slane %v6816, 2
        %6818 = vrot.lane.b32.xlu0 %v6817, 64
        %v6819 = vpop.permute.xlu0 %6818
        %6821 = vst.msk [vmem:[#allocation9 + $0xf] sm:$0x1] %vm6639, %v6819
        %v6822 = vld [vmem:[#allocation9] sm:$0xff]
        %v6823 = vld [vmem:[#allocation9 + $0x8] sm:$0xff]
        %v6824 = vld [vmem:[%s7] sm:$0xff]
        %v6825 = vld [vmem:[%s7 + $0x8] sm:$0xff]
        %v6826 = vld [vmem:[%s7 + $0x10] sm:$0xff]
        %v6827 = vld [vmem:[%s7 + $0x18] sm:$0xff]
        %v6828 = vld [vmem:[%s7 + $0x20] sm:$0xff]
        %v6829 = vld [vmem:[%s7 + $0x28] sm:$0xff]
        %v6830 = vld [vmem:[%s7 + $0x30] sm:$0xff]
        %v6831 = vld [vmem:[%s7 + $0x38] sm:$0xff]
        %v6832 = vld [vmem:[%s7 + $0x40] sm:$0xff]
        %v6833 = vld [vmem:[%s7 + $0x48] sm:$0xff]
        %v6834 = vld [vmem:[%s7 + $0x50] sm:$0xff]
        %v6835 = vld [vmem:[%s7 + $0x58] sm:$0xff]
        %v6836 = vld [vmem:[%s7 + $0x60] sm:$0xff]
        %v6837 = vld [vmem:[%s7 + $0x68] sm:$0xff]
        %v6838 = vld [vmem:[%s7 + $0x70] sm:$0xff]
        %v6839 = vld [vmem:[%s7 + $0x78] sm:$0xff]
        %v6840 = vld [vmem:[%s7 + $0x80] sm:$0xff]
        %v6841 = vld [vmem:[%s7 + $0x88] sm:$0xff]
        %v6842 = vld [vmem:[%s7 + $0x90] sm:$0xff]
        %v6843 = vld [vmem:[%s7 + $0x98] sm:$0xff]
        %v6844 = vld [vmem:[%s7 + $0xa0] sm:$0xff]
        %v6845 = vld [vmem:[%s7 + $0xa8] sm:$0xff]
        %v6846 = vld [vmem:[%s7 + $0xb0] sm:$0xff]
        %v6847 = vld [vmem:[%s7 + $0xb8] sm:$0xff]
        %v6848 = vld [vmem:[%s7 + $0xc0] sm:$0xff]
        %v6849 = vld [vmem:[%s7 + $0xc8] sm:$0xff]
        %v6850 = vld [vmem:[%s7 + $0xd0] sm:$0xff]
        %v6851 = vld [vmem:[%s7 + $0xd8] sm:$0xff]
        %v6852 = vld [vmem:[%s7 + $0xe0] sm:$0xff]
        %v6853 = vld [vmem:[%s7 + $0xe8] sm:$0xff]
        %v6854 = vld [vmem:[%s7 + $0xf0] sm:$0xff]
        %v6855 = vld [vmem:[%s7 + $0xf8] sm:$0xff]
        %v6856 = vld [vmem:[%s7 + $0x100] sm:$0xff]
        %v6857 = vld [vmem:[%s7 + $0x108] sm:$0xff]
        %v6858 = vld [vmem:[%s7 + $0x110] sm:$0xff]
        %v6859 = vld [vmem:[%s7 + $0x118] sm:$0xff]
        %v6860 = vld [vmem:[%s7 + $0x120] sm:$0xff]
        %v6861 = vld [vmem:[%s7 + $0x128] sm:$0xff]
        %v6862 = vld [vmem:[%s7 + $0x130] sm:$0xff]
        %v6863 = vld [vmem:[%s7 + $0x138] sm:$0xff]
        %v6864 = vld [vmem:[%s7 + $0x140] sm:$0xff]
        %v6865 = vld [vmem:[%s7 + $0x148] sm:$0xff]
        %v6866 = vld [vmem:[%s7 + $0x150] sm:$0xff]
        %v6867 = vld [vmem:[%s7 + $0x158] sm:$0xff]
        %v6868 = vld [vmem:[%s7 + $0x160] sm:$0xff]
        %v6869 = vld [vmem:[%s7 + $0x168] sm:$0xff]
        %v6870 = vld [vmem:[%s7 + $0x170] sm:$0xff]
        %v6871 = vld [vmem:[%s7 + $0x178] sm:$0xff]
        %v6872 = vld [vmem:[%s7 + $0x180] sm:$0xff]
        %v6873 = vld [vmem:[%s7 + $0x188] sm:$0xff]
        %v6874 = vld [vmem:[%s7 + $0x190] sm:$0xff]
        %v6875 = vld [vmem:[%s7 + $0x198] sm:$0xff]
        %v6876 = vld [vmem:[%s7 + $0x1a0] sm:$0xff]
        %v6877 = vld [vmem:[%s7 + $0x1a8] sm:$0xff]
        %v6878 = vld [vmem:[%s7 + $0x1b0] sm:$0xff]
        %v6879 = vld [vmem:[%s7 + $0x1b8] sm:$0xff]
        %v6880 = vld [vmem:[%s7 + $0x1c0] sm:$0xff]
        %v6881 = vld [vmem:[%s7 + $0x1c8] sm:$0xff]
        %v6882 = vld [vmem:[%s7 + $0x1d0] sm:$0xff]
        %v6883 = vld [vmem:[%s7 + $0x1d8] sm:$0xff]
        %v6884 = vld [vmem:[%s7 + $0x1e0] sm:$0xff]
        %v6885 = vld [vmem:[%s7 + $0x1e8] sm:$0xff]
        %v6886 = vld [vmem:[%s7 + $0x1f0] sm:$0xff]
        %v6887 = vld [vmem:[%s7 + $0x1f8] sm:$0xff]
        %v6888 = vld [vmem:[%s7 + $0x200] sm:$0xff]
        %v6889 = vld [vmem:[%s7 + $0x208] sm:$0xff]
        %v6890 = vld [vmem:[%s7 + $0x210] sm:$0xff]
        %v6891 = vld [vmem:[%s7 + $0x218] sm:$0xff]
        %v6892 = vld [vmem:[%s7 + $0x220] sm:$0xff]
        %v6893 = vld [vmem:[%s7 + $0x228] sm:$0xff]
        %v6894 = vld [vmem:[%s7 + $0x230] sm:$0xff]
        %v6895 = vld [vmem:[%s7 + $0x238] sm:$0xff]
        %v6896 = vld [vmem:[%s7 + $0x240] sm:$0xff]
        %v6897 = vld [vmem:[%s7 + $0x248] sm:$0xff]
        %v6898 = vld [vmem:[%s7 + $0x250] sm:$0xff]
        %v6899 = vld [vmem:[%s7 + $0x258] sm:$0xff]
        %v6900 = vld [vmem:[%s7 + $0x260] sm:$0xff]
        %v6901 = vld [vmem:[%s7 + $0x268] sm:$0xff]
        %v6902 = vld [vmem:[%s7 + $0x270] sm:$0xff]
        %v6903 = vld [vmem:[%s7 + $0x278] sm:$0xff]
        %v6904 = vld [vmem:[%s7 + $0x280] sm:$0xff]
        %v6905 = vld [vmem:[%s7 + $0x288] sm:$0xff]
        %v6906 = vld [vmem:[%s7 + $0x290] sm:$0xff]
        %v6907 = vld [vmem:[%s7 + $0x298] sm:$0xff]
        %v6908 = vld [vmem:[%s7 + $0x2a0] sm:$0xff]
        %v6909 = vld [vmem:[%s7 + $0x2a8] sm:$0xff]
        %v6910 = vld [vmem:[%s7 + $0x2b0] sm:$0xff]
        %v6911 = vld [vmem:[%s7 + $0x2b8] sm:$0xff]
        %v6912 = vld [vmem:[%s7 + $0x2c0] sm:$0xff]
        %v6913 = vld [vmem:[%s7 + $0x2c8] sm:$0xff]
        %v6914 = vld [vmem:[%s7 + $0x2d0] sm:$0xff]
        %v6915 = vld [vmem:[%s7 + $0x2d8] sm:$0xff]
        %v6916 = vld [vmem:[%s7 + $0x2e0] sm:$0xff]
        %v6917 = vld [vmem:[%s7 + $0x2e8] sm:$0xff]
        %v6918 = vld [vmem:[%s7 + $0x2f0] sm:$0xff]
        %v6919 = vld [vmem:[%s7 + $0x2f8] sm:$0xff]
        %v6920 = vld [vmem:[%s7 + $0x300] sm:$0xff]
        %v6921 = vld [vmem:[%s7 + $0x308] sm:$0xff]
        %v6922 = vld [vmem:[%s7 + $0x310] sm:$0xff]
        %v6923 = vld [vmem:[%s7 + $0x318] sm:$0xff]
        %v6924 = vld [vmem:[%s7 + $0x320] sm:$0xff]
        %v6925 = vld [vmem:[%s7 + $0x328] sm:$0xff]
        %v6926 = vld [vmem:[%s7 + $0x330] sm:$0xff]
        %v6927 = vld [vmem:[%s7 + $0x338] sm:$0xff]
        %v6928 = vld [vmem:[%s7 + $0x340] sm:$0xff]
        %v6929 = vld [vmem:[%s7 + $0x348] sm:$0xff]
        %v6930 = vld [vmem:[%s7 + $0x350] sm:$0xff]
        %v6931 = vld [vmem:[%s7 + $0x358] sm:$0xff]
        %v6932 = vld [vmem:[%s7 + $0x360] sm:$0xff]
        %v6933 = vld [vmem:[%s7 + $0x368] sm:$0xff]
        %v6934 = vld [vmem:[%s7 + $0x370] sm:$0xff]
        %v6935 = vld [vmem:[%s7 + $0x378] sm:$0xff]
        %v6936 = vld [vmem:[%s7 + $0x380] sm:$0xff]
        %v6937 = vld [vmem:[%s7 + $0x388] sm:$0xff]
        %v6938 = vld [vmem:[%s7 + $0x390] sm:$0xff]
        %v6939 = vld [vmem:[%s7 + $0x398] sm:$0xff]
        %v6940 = vld [vmem:[%s7 + $0x3a0] sm:$0xff]
        %v6941 = vld [vmem:[%s7 + $0x3a8] sm:$0xff]
        %v6942 = vld [vmem:[%s7 + $0x3b0] sm:$0xff]
        %v6943 = vld [vmem:[%s7 + $0x3b8] sm:$0xff]
        %v6944 = vld [vmem:[%s7 + $0x3c0] sm:$0xff]
        %v6945 = vld [vmem:[%s7 + $0x3c8] sm:$0xff]
        %v6946 = vld [vmem:[%s7 + $0x3d0] sm:$0xff]
        %v6947 = vld [vmem:[%s7 + $0x3d8] sm:$0xff]
        %v6948 = vld [vmem:[%s7 + $0x3e0] sm:$0xff]
        %v6949 = vld [vmem:[%s7 + $0x3e8] sm:$0xff]
        %v6950 = vld [vmem:[%s7 + $0x3f0] sm:$0xff]
        %v6951 = vld [vmem:[%s7 + $0x3f8] sm:$0xff]
        %v6952 = vld [vmem:[%s8] sm:$0x1]
        %v6954 = vlaneseq
        %v6955 = vshrl.u32 %v6954, 7
        %v6956 = vsub.s32 0, %v6955
        %v6957 = vrot.slane %v6952, %v6956
        %v6961 = vcombine.high %v6822, %v6822
        %v6963 = vunpack.c.l.s4 1983009808
        %v6964 = vunpack.c.0.s8 %v6963
        %v6965 = vlaneseq
        %v6966 = vshrl.u32 %v6965, 7
        %v6967 = vsub.s32 %v6964, %v6966
        %v6968 = vrot.slane %v6822, %v6967
        %v6970 = vunpack.c.l.s4 1983009808
        %v6971 = vunpack.c.0.s8 %v6970
        %v6972 = vlaneseq
        %v6973 = vshrl.u32 %v6972, 7
        %v6974 = vsub.s32 %v6971, %v6973
        %v6975 = vrot.slane %v6961, %v6974
        %v6976 = vcombine.high %v6968, %v6968
        %v6977 = vcombine.high %v6975, %v6975
        %v6978 = vcombine.high %v6823, %v6823
        %v6980 = vunpack.c.l.s4 1983009808
        %v6981 = vunpack.c.0.s8 %v6980
        %v6982 = vlaneseq
        %v6983 = vshrl.u32 %v6982, 7
        %v6984 = vsub.s32 %v6981, %v6983
        %v6985 = vrot.slane %v6823, %v6984
        %v6987 = vunpack.c.l.s4 1983009808
        %v6988 = vunpack.c.0.s8 %v6987
        %v6989 = vlaneseq
        %v6990 = vshrl.u32 %v6989, 7
        %v6991 = vsub.s32 %v6988, %v6990
        %v6992 = vrot.slane %v6978, %v6991
        %v6993 = vcombine.high %v6985, %v6985
        %v6994 = vcombine.high %v6992, %v6992
        %7003 = vmatprep.subr.mxu0 0.0
        %7004 = vmatpush1.msra.mxu0 %v6824
        %7005 = vmatprep.subr.mxu0 0.0
        %7006 = vmatpush1.msra.mxu0 %v6825
        %7007 = vmatprep.subr.mxu0 0.0
        %7008 = vmatpush1.msra.mxu0 %v6826
        %7009 = vmatprep.subr.mxu0 0.0
        %7010 = vmatpush1.msra.mxu0 %v6827
        %7011 = vmatprep.subr.mxu0 0.0
        %7012 = vmatpush1.msra.mxu0 %v6828
        %7013 = vmatprep.subr.mxu0 0.0
        %7014 = vmatpush1.msra.mxu0 %v6829
        %7015 = vmatprep.subr.mxu0 0.0
        %7016 = vmatpush1.msra.mxu0 %v6830
        %7017 = vmatprep.subr.mxu0 0.0
        %7018 = vmatpush1.msra.mxu0 %v6831
        %7019 = vmatprep.subr.mxu0 0.0
        %7020 = vmatpush1.msra.mxu0 %v6832
        %7021 = vmatprep.subr.mxu0 0.0
        %7022 = vmatpush1.msra.mxu0 %v6833
        %7023 = vmatprep.subr.mxu0 0.0
        %7024 = vmatpush1.msra.mxu0 %v6834
        %7025 = vmatprep.subr.mxu0 0.0
        %7026 = vmatpush1.msra.mxu0 %v6835
        %7027 = vmatprep.subr.mxu0 0.0
        %7028 = vmatpush1.msra.mxu0 %v6836
        %7029 = vmatprep.subr.mxu0 0.0
        %7030 = vmatpush1.msra.mxu0 %v6837
        %7031 = vmatprep.subr.mxu0 0.0
        %7032 = vmatpush1.msra.mxu0 %v6838
        %7033 = vmatprep.subr.mxu0 0.0
        %7034 = vmatpush1.msra.mxu0 %v6839
        %7035 = vmatprep.subr.mxu0 0.0
        %7036 = vmatpush1.msra.mxu0 %v6840
        %7037 = vmatprep.subr.mxu0 0.0
        %7038 = vmatpush1.msra.mxu0 %v6841
        %7039 = vmatprep.subr.mxu0 0.0
        %7040 = vmatpush1.msra.mxu0 %v6842
        %7041 = vmatprep.subr.mxu0 0.0
        %7042 = vmatpush1.msra.mxu0 %v6843
        %7043 = vmatprep.subr.mxu0 0.0
        %7044 = vmatpush1.msra.mxu0 %v6844
        %7045 = vmatprep.subr.mxu0 0.0
        %7046 = vmatpush1.msra.mxu0 %v6845
        %7047 = vmatprep.subr.mxu0 0.0
        %7048 = vmatpush1.msra.mxu0 %v6846
        %7049 = vmatprep.subr.mxu0 0.0
        %7050 = vmatpush1.msra.mxu0 %v6847
        %7051 = vmatprep.subr.mxu0 0.0
        %7052 = vmatpush1.msra.mxu0 %v6848
        %7053 = vmatprep.subr.mxu0 0.0
        %7054 = vmatpush1.msra.mxu0 %v6849
        %7055 = vmatprep.subr.mxu0 0.0
        %7056 = vmatpush1.msra.mxu0 %v6850
        %7057 = vmatprep.subr.mxu0 0.0
        %7058 = vmatpush1.msra.mxu0 %v6851
        %7059 = vmatprep.subr.mxu0 0.0
        %7060 = vmatpush1.msra.mxu0 %v6852
        %7061 = vmatprep.subr.mxu0 0.0
        %7062 = vmatpush1.msra.mxu0 %v6853
        %7063 = vmatprep.subr.mxu0 0.0
        %7064 = vmatpush1.msra.mxu0 %v6854
        %7065 = vmatprep.subr.mxu0 0.0
        %7066 = vmatpush1.msra.mxu0 %v6855
        %7067 = vmatprep.mubr.f32.mxu0 %v6976
        %7068 = vmatmul.mubr.f32.gmra.mrb[0].mxu0 %v6968
        %v7069 = vpop.f32.mrb[0].mxu0
        %v7070 = vadd.f32 %v6957, %v7069
        %v7071 = vpop.f32.mrb[0].mxu0
        %7072 = vdwg.mxu0
        %7073 = vmatprep.subr.mxu0 0.0
        %7074 = vmatpush1.msra.mxu0 %v6856
        %7075 = vmatprep.subr.mxu0 0.0
        %7076 = vmatpush1.msra.mxu0 %v6857
        %7077 = vmatprep.subr.mxu0 0.0
        %7078 = vmatpush1.msra.mxu0 %v6858
        %7079 = vmatprep.subr.mxu0 0.0
        %7080 = vmatpush1.msra.mxu0 %v6859
        %7081 = vmatprep.subr.mxu0 0.0
        %7082 = vmatpush1.msra.mxu0 %v6860
        %7083 = vmatprep.subr.mxu0 0.0
        %7084 = vmatpush1.msra.mxu0 %v6861
        %7085 = vmatprep.subr.mxu0 0.0
        %7086 = vmatpush1.msra.mxu0 %v6862
        %7087 = vmatprep.subr.mxu0 0.0
        %7088 = vmatpush1.msra.mxu0 %v6863
        %7089 = vmatprep.subr.mxu0 0.0
        %7090 = vmatpush1.msra.mxu0 %v6864
        %7091 = vmatprep.subr.mxu0 0.0
        %7092 = vmatpush1.msra.mxu0 %v6865
        %7093 = vmatprep.subr.mxu0 0.0
        %7094 = vmatpush1.msra.mxu0 %v6866
        %7095 = vmatprep.subr.mxu0 0.0
        %7096 = vmatpush1.msra.mxu0 %v6867
        %7097 = vmatprep.subr.mxu0 0.0
        %7098 = vmatpush1.msra.mxu0 %v6868
        %7099 = vmatprep.subr.mxu0 0.0
        %7100 = vmatpush1.msra.mxu0 %v6869
        %7101 = vmatprep.subr.mxu0 0.0
        %7102 = vmatpush1.msra.mxu0 %v6870
        %7103 = vmatprep.subr.mxu0 0.0
        %7104 = vmatpush1.msra.mxu0 %v6871
        %7105 = vmatprep.subr.mxu0 0.0
        %7106 = vmatpush1.msra.mxu0 %v6872
        %7107 = vmatprep.subr.mxu0 0.0
        %7108 = vmatpush1.msra.mxu0 %v6873
        %7109 = vmatprep.subr.mxu0 0.0
        %7110 = vmatpush1.msra.mxu0 %v6874
        %7111 = vmatprep.subr.mxu0 0.0
        %7112 = vmatpush1.msra.mxu0 %v6875
        %7113 = vmatprep.subr.mxu0 0.0
        %7114 = vmatpush1.msra.mxu0 %v6876
        %7115 = vmatprep.subr.mxu0 0.0
        %7116 = vmatpush1.msra.mxu0 %v6877
        %7117 = vmatprep.subr.mxu0 0.0
        %7118 = vmatpush1.msra.mxu0 %v6878
        %7119 = vmatprep.subr.mxu0 0.0
        %7120 = vmatpush1.msra.mxu0 %v6879
        %7121 = vmatprep.subr.mxu0 0.0
        %7122 = vmatpush1.msra.mxu0 %v6880
        %7123 = vmatprep.subr.mxu0 0.0
        %7124 = vmatpush1.msra.mxu0 %v6881
        %7125 = vmatprep.subr.mxu0 0.0
        %7126 = vmatpush1.msra.mxu0 %v6882
        %7127 = vmatprep.subr.mxu0 0.0
        %7128 = vmatpush1.msra.mxu0 %v6883
        %7129 = vmatprep.subr.mxu0 0.0
        %7130 = vmatpush1.msra.mxu0 %v6884
        %7131 = vmatprep.subr.mxu0 0.0
        %7132 = vmatpush1.msra.mxu0 %v6885
        %7133 = vmatprep.subr.mxu0 0.0
        %7134 = vmatpush1.msra.mxu0 %v6886
        %7135 = vmatprep.subr.mxu0 0.0
        %7136 = vmatpush1.msra.mxu0 %v6887
        %7137 = vmatprep.mubr.f32.mxu0 %v6977
        %7138 = vmatmul.mubr.f32.gmra.mrb[0].mxu0 %v6975
        %v7139 = vpop.f32.mrb[0].mxu0
        %v7140 = vadd.f32 %v7070, %v7139
        %v7141 = vpop.f32.mrb[0].mxu0
        %7142 = vdwg.mxu0
        %7143 = vmatprep.subr.mxu0 0.0
        %7144 = vmatpush1.msra.mxu0 %v6888
        %7145 = vmatprep.subr.mxu0 0.0
        %7146 = vmatpush1.msra.mxu0 %v6889
        %7147 = vmatprep.subr.mxu0 0.0
        %7148 = vmatpush1.msra.mxu0 %v6890
        %7149 = vmatprep.subr.mxu0 0.0
        %7150 = vmatpush1.msra.mxu0 %v6891
        %7151 = vmatprep.subr.mxu0 0.0
        %7152 = vmatpush1.msra.mxu0 %v6892
        %7153 = vmatprep.subr.mxu0 0.0
        %7154 = vmatpush1.msra.mxu0 %v6893
        %7155 = vmatprep.subr.mxu0 0.0
        %7156 = vmatpush1.msra.mxu0 %v6894
        %7157 = vmatprep.subr.mxu0 0.0
        %7158 = vmatpush1.msra.mxu0 %v6895
        %7159 = vmatprep.subr.mxu0 0.0
        %7160 = vmatpush1.msra.mxu0 %v6896
        %7161 = vmatprep.subr.mxu0 0.0
        %7162 = vmatpush1.msra.mxu0 %v6897
        %7163 = vmatprep.subr.mxu0 0.0
        %7164 = vmatpush1.msra.mxu0 %v6898
        %7165 = vmatprep.subr.mxu0 0.0
        %7166 = vmatpush1.msra.mxu0 %v6899
        %7167 = vmatprep.subr.mxu0 0.0
        %7168 = vmatpush1.msra.mxu0 %v6900
        %7169 = vmatprep.subr.mxu0 0.0
        %7170 = vmatpush1.msra.mxu0 %v6901
        %7171 = vmatprep.subr.mxu0 0.0
        %7172 = vmatpush1.msra.mxu0 %v6902
        %7173 = vmatprep.subr.mxu0 0.0
        %7174 = vmatpush1.msra.mxu0 %v6903
        %7175 = vmatprep.subr.mxu0 0.0
        %7176 = vmatpush1.msra.mxu0 %v6904
        %7177 = vmatprep.subr.mxu0 0.0
        %7178 = vmatpush1.msra.mxu0 %v6905
        %7179 = vmatprep.subr.mxu0 0.0
        %7180 = vmatpush1.msra.mxu0 %v6906
        %7181 = vmatprep.subr.mxu0 0.0
        %7182 = vmatpush1.msra.mxu0 %v6907
        %7183 = vmatprep.subr.mxu0 0.0
        %7184 = vmatpush1.msra.mxu0 %v6908
        %7185 = vmatprep.subr.mxu0 0.0
        %7186 = vmatpush1.msra.mxu0 %v6909
        %7187 = vmatprep.subr.mxu0 0.0
        %7188 = vmatpush1.msra.mxu0 %v6910
        %7189 = vmatprep.subr.mxu0 0.0
        %7190 = vmatpush1.msra.mxu0 %v6911
        %7191 = vmatprep.subr.mxu0 0.0
        %7192 = vmatpush1.msra.mxu0 %v6912
        %7193 = vmatprep.subr.mxu0 0.0
        %7194 = vmatpush1.msra.mxu0 %v6913
        %7195 = vmatprep.subr.mxu0 0.0
        %7196 = vmatpush1.msra.mxu0 %v6914
        %7197 = vmatprep.subr.mxu0 0.0
        %7198 = vmatpush1.msra.mxu0 %v6915
        %7199 = vmatprep.subr.mxu0 0.0
        %7200 = vmatpush1.msra.mxu0 %v6916
        %7201 = vmatprep.subr.mxu0 0.0
        %7202 = vmatpush1.msra.mxu0 %v6917
        %7203 = vmatprep.subr.mxu0 0.0
        %7204 = vmatpush1.msra.mxu0 %v6918
        %7205 = vmatprep.subr.mxu0 0.0
        %7206 = vmatpush1.msra.mxu0 %v6919
        %7207 = vmatprep.mubr.f32.mxu0 %v6993
        %7208 = vmatmul.mubr.f32.gmra.mrb[0].mxu0 %v6985
        %v7209 = vpop.f32.mrb[0].mxu0
        %v7210 = vadd.f32 %v7140, %v7209
        %v7211 = vpop.f32.mrb[0].mxu0
        %7212 = vdwg.mxu0
        %7213 = vmatprep.subr.mxu0 0.0
        %7214 = vmatpush1.msra.mxu0 %v6920
        %7215 = vmatprep.subr.mxu0 0.0
        %7216 = vmatpush1.msra.mxu0 %v6921
        %7217 = vmatprep.subr.mxu0 0.0
        %7218 = vmatpush1.msra.mxu0 %v6922
        %7219 = vmatprep.subr.mxu0 0.0
        %7220 = vmatpush1.msra.mxu0 %v6923
        %7221 = vmatprep.subr.mxu0 0.0
        %7222 = vmatpush1.msra.mxu0 %v6924
        %7223 = vmatprep.subr.mxu0 0.0
        %7224 = vmatpush1.msra.mxu0 %v6925
        %7225 = vmatprep.subr.mxu0 0.0
        %7226 = vmatpush1.msra.mxu0 %v6926
        %7227 = vmatprep.subr.mxu0 0.0
        %7228 = vmatpush1.msra.mxu0 %v6927
        %7229 = vmatprep.subr.mxu0 0.0
        %7230 = vmatpush1.msra.mxu0 %v6928
        %7231 = vmatprep.subr.mxu0 0.0
        %7232 = vmatpush1.msra.mxu0 %v6929
        %7233 = vmatprep.subr.mxu0 0.0
        %7234 = vmatpush1.msra.mxu0 %v6930
        %7235 = vmatprep.subr.mxu0 0.0
        %7236 = vmatpush1.msra.mxu0 %v6931
        %7237 = vmatprep.subr.mxu0 0.0
        %7238 = vmatpush1.msra.mxu0 %v6932
        %7239 = vmatprep.subr.mxu0 0.0
        %7240 = vmatpush1.msra.mxu0 %v6933
        %7241 = vmatprep.subr.mxu0 0.0
        %7242 = vmatpush1.msra.mxu0 %v6934
        %7243 = vmatprep.subr.mxu0 0.0
        %7244 = vmatpush1.msra.mxu0 %v6935
        %7245 = vmatprep.subr.mxu0 0.0
        %7246 = vmatpush1.msra.mxu0 %v6936
        %7247 = vmatprep.subr.mxu0 0.0
        %7248 = vmatpush1.msra.mxu0 %v6937
        %7249 = vmatprep.subr.mxu0 0.0
        %7250 = vmatpush1.msra.mxu0 %v6938
        %7251 = vmatprep.subr.mxu0 0.0
        %7252 = vmatpush1.msra.mxu0 %v6939
        %7253 = vmatprep.subr.mxu0 0.0
        %7254 = vmatpush1.msra.mxu0 %v6940
        %7255 = vmatprep.subr.mxu0 0.0
        %7256 = vmatpush1.msra.mxu0 %v6941
        %7257 = vmatprep.subr.mxu0 0.0
        %7258 = vmatpush1.msra.mxu0 %v6942
        %7259 = vmatprep.subr.mxu0 0.0
        %7260 = vmatpush1.msra.mxu0 %v6943
        %7261 = vmatprep.subr.mxu0 0.0
        %7262 = vmatpush1.msra.mxu0 %v6944
        %7263 = vmatprep.subr.mxu0 0.0
        %7264 = vmatpush1.msra.mxu0 %v6945
        %7265 = vmatprep.subr.mxu0 0.0
        %7266 = vmatpush1.msra.mxu0 %v6946
        %7267 = vmatprep.subr.mxu0 0.0
        %7268 = vmatpush1.msra.mxu0 %v6947
        %7269 = vmatprep.subr.mxu0 0.0
        %7270 = vmatpush1.msra.mxu0 %v6948
        %7271 = vmatprep.subr.mxu0 0.0
        %7272 = vmatpush1.msra.mxu0 %v6949
        %7273 = vmatprep.subr.mxu0 0.0
        %7274 = vmatpush1.msra.mxu0 %v6950
        %7275 = vmatprep.subr.mxu0 0.0
        %7276 = vmatpush1.msra.mxu0 %v6951
        %7277 = vmatprep.mubr.f32.mxu0 %v6994
        %7278 = vmatmul.mubr.f32.gmra.mrb[0].mxu0 %v6992
        %v7279 = vpop.f32.mrb[0].mxu0
        %v7280 = vadd.f32 %v7210, %v7279
        %v7281 = vpop.f32.mrb[0].mxu0
        %7282 = vdwg.mxu0
        %v7283 = vmax.f32 %v7280, 0.0
        %v7284 = vld [vmem:[%s9] sm:$0xff]
        %v7285 = vld [vmem:[%s9 + $0x8] sm:$0xff]
        %v7286 = vld [vmem:[%s9 + $0x10] sm:$0xff]
        %v7287 = vld [vmem:[%s9 + $0x18] sm:$0xff]
        %v7288 = vld [vmem:[%s9 + $0x20] sm:$0xff]
        %v7289 = vld [vmem:[%s9 + $0x28] sm:$0xff]
        %v7290 = vld [vmem:[%s9 + $0x30] sm:$0xff]
        %v7291 = vld [vmem:[%s9 + $0x38] sm:$0xff]
        %v7292 = vld [vmem:[%s9 + $0x40] sm:$0xff]
        %v7293 = vld [vmem:[%s9 + $0x48] sm:$0xff]
        %v7294 = vld [vmem:[%s9 + $0x50] sm:$0xff]
        %v7295 = vld [vmem:[%s9 + $0x58] sm:$0xff]
        %v7296 = vld [vmem:[%s9 + $0x60] sm:$0xff]
        %v7297 = vld [vmem:[%s9 + $0x68] sm:$0xff]
        %v7298 = vld [vmem:[%s9 + $0x70] sm:$0xff]
        %v7299 = vld [vmem:[%s10] sm:$0x1]
        %v7301 = vlaneseq
        %v7302 = vshrl.u32 %v7301, 7
        %v7303 = vsub.s32 0, %v7302
        %v7304 = vrot.slane %v7299, %v7303
        %vm7306 = vcmask 982016
        %v7308 = vsel %vm7306, %v7283, 0
        %7310 = vmatprep.subr.mxu0 0.0
        %7311 = vmatpush1.msra.mxu0 %v7284
        %7312 = vmatprep.subr.mxu0 0.0
        %7313 = vmatpush1.msra.mxu0 %v7285
        %7314 = vmatprep.subr.mxu0 0.0
        %7315 = vmatpush1.msra.mxu0 %v7286
        %7316 = vmatprep.subr.mxu0 0.0
        %7317 = vmatpush1.msra.mxu0 %v7287
        %7318 = vmatprep.subr.mxu0 0.0
        %7319 = vmatpush1.msra.mxu0 %v7288
        %7320 = vmatprep.subr.mxu0 0.0
        %7321 = vmatpush1.msra.mxu0 %v7289
        %7322 = vmatprep.subr.mxu0 0.0
        %7323 = vmatpush1.msra.mxu0 %v7290
        %7324 = vmatprep.subr.mxu0 0.0
        %7325 = vmatpush1.msra.mxu0 %v7291
        %7326 = vmatprep.subr.mxu0 0.0
        %7327 = vmatpush1.msra.mxu0 %v7292
        %7328 = vmatprep.subr.mxu0 0.0
        %7329 = vmatpush1.msra.mxu0 %v7293
        %7330 = vmatprep.subr.mxu0 0.0
        %7331 = vmatpush1.msra.mxu0 %v7294
        %7332 = vmatprep.subr.mxu0 0.0
        %7333 = vmatpush1.msra.mxu0 %v7295
        %7334 = vmatprep.subr.mxu0 0.0
        %7335 = vmatpush1.msra.mxu0 %v7296
        %7336 = vmatprep.subr.mxu0 0.0
        %7337 = vmatpush1.msra.mxu0 %v7297
        %7338 = vmatprep.subr.mxu0 0.0
        %7339 = vmatpush1.msra.mxu0 %v7298
        %7340 = vmatprep.subr.mxu0 0.0
        %7341 = vmatpush1.msra.mxu0 0.0
        %7342 = vmatprep.subr.mxu0 0.0
        %7343 = vmatpush1.msra.mxu0 0.0
        %7344 = vmatprep.subr.mxu0 0.0
        %7345 = vmatpush1.msra.mxu0 0.0
        %7346 = vmatprep.subr.mxu0 0.0
        %7347 = vmatpush1.msra.mxu0 0.0
        %7348 = vmatprep.subr.mxu0 0.0
        %7349 = vmatpush1.msra.mxu0 0.0
        %7350 = vmatprep.subr.mxu0 0.0
        %7351 = vmatpush1.msra.mxu0 0.0
        %7352 = vmatprep.subr.mxu0 0.0
        %7353 = vmatpush1.msra.mxu0 0.0
        %7354 = vmatprep.subr.mxu0 0.0
        %7355 = vmatpush1.msra.mxu0 0.0
        %7356 = vmatprep.subr.mxu0 0.0
        %7357 = vmatpush1.msra.mxu0 0.0
        %7358 = vmatprep.subr.mxu0 0.0
        %7359 = vmatpush1.msra.mxu0 0.0
        %7360 = vmatprep.subr.mxu0 0.0
        %7361 = vmatpush1.msra.mxu0 0.0
        %7362 = vmatprep.subr.mxu0 0.0
        %7363 = vmatpush1.msra.mxu0 0.0
        %7364 = vmatprep.subr.mxu0 0.0
        %7365 = vmatpush1.msra.mxu0 0.0
        %7366 = vmatprep.subr.mxu0 0.0
        %7367 = vmatpush1.msra.mxu0 0.0
        %7368 = vmatprep.subr.mxu0 0.0
        %7369 = vmatpush1.msra.mxu0 0.0
        %7370 = vmatprep.subr.mxu0 0.0
        %7371 = vmatpush1.msra.mxu0 0.0
        %7372 = vmatprep.subr.mxu0 0.0
        %7373 = vmatpush1.msra.mxu0 0.0
        %7374 = vmatprep.mubr.f32.mxu0 0.0
        %7375 = vmatmul.mubr.f32.gmra.mrb[0].mxu0 %v7308
        %v7376 = vpop.f32.mrb[0].mxu0
        %v7377 = vadd.f32 %v7304, %v7376
        %v7378 = vpop.f32.mrb[0].mxu0
        %7379 = vdwg.mxu0
        %v7380 = vmax.f32 %v7377, 0.0
        %v7381 = vld [vmem:[%s11] sm:$0xff]
        %v7382 = vld [vmem:[%s11 + $0x8] sm:$0xff]
        %v7383 = vld [vmem:[%s11 + $0x10] sm:$0xff]
        %v7384 = vld [vmem:[%s11 + $0x18] sm:$0xff]
        %v7385 = vld [vmem:[%s11 + $0x20] sm:$0xff]
        %v7386 = vld [vmem:[%s11 + $0x28] sm:$0xff]
        %v7387 = vld [vmem:[%s11 + $0x30] sm:$0xff]
        %v7388 = vld [vmem:[%s11 + $0x38] sm:$0xff]
        %v7389 = vld [vmem:[%s11 + $0x40] sm:$0xff]
        %v7390 = vld [vmem:[%s11 + $0x48] sm:$0xff]
        %v7391 = vld [vmem:[%s11 + $0x50] sm:$0xf]
        %v7392 = vld [vmem:[%s12] sm:$0x1]
        %v7394 = vlaneseq
        %v7395 = vshrl.u32 %v7394, 7
        %v7396 = vsub.s32 0, %v7395
        %v7397 = vrot.slane %v7392, %v7396
        %vm7399 = vcmask 687104
        %v7401 = vsel %vm7399, %v7380, 0
        %vm7403 = vcmask 1043456
        %v7405 = vsel %vm7403, %v7391, 0
        %7407 = vmatprep.subr.mxu0 0.0
        %7408 = vmatpush1.msra.mxu0 %v7381
        %7409 = vmatprep.subr.mxu0 0.0
        %7410 = vmatpush1.msra.mxu0 %v7382
        %7411 = vmatprep.subr.mxu0 0.0
        %7412 = vmatpush1.msra.mxu0 %v7383
        %7413 = vmatprep.subr.mxu0 0.0
        %7414 = vmatpush1.msra.mxu0 %v7384
        %7415 = vmatprep.subr.mxu0 0.0
        %7416 = vmatpush1.msra.mxu0 %v7385
        %7417 = vmatprep.subr.mxu0 0.0
        %7418 = vmatpush1.msra.mxu0 %v7386
        %7419 = vmatprep.subr.mxu0 0.0
        %7420 = vmatpush1.msra.mxu0 %v7387
        %7421 = vmatprep.subr.mxu0 0.0
        %7422 = vmatpush1.msra.mxu0 %v7388
        %7423 = vmatprep.subr.mxu0 0.0
        %7424 = vmatpush1.msra.mxu0 %v7389
        %7425 = vmatprep.subr.mxu0 0.0
        %7426 = vmatpush1.msra.mxu0 %v7390
        %7427 = vmatprep.subr.mxu0 0.0
        %7428 = vmatpush1.msra.mxu0 %v7405
        %7429 = vmatprep.subr.mxu0 0.0
        %7430 = vmatpush1.msra.mxu0 0.0
        %7431 = vmatprep.subr.mxu0 0.0
        %7432 = vmatpush1.msra.mxu0 0.0
        %7433 = vmatprep.subr.mxu0 0.0
        %7434 = vmatpush1.msra.mxu0 0.0
        %7435 = vmatprep.subr.mxu0 0.0
        %7436 = vmatpush1.msra.mxu0 0.0
        %7437 = vmatprep.subr.mxu0 0.0
        %7438 = vmatpush1.msra.mxu0 0.0
        %7439 = vmatprep.subr.mxu0 0.0
        %7440 = vmatpush1.msra.mxu0 0.0
        %7441 = vmatprep.subr.mxu0 0.0
        %7442 = vmatpush1.msra.mxu0 0.0
        %7443 = vmatprep.subr.mxu0 0.0
        %7444 = vmatpush1.msra.mxu0 0.0
        %7445 = vmatprep.subr.mxu0 0.0
        %7446 = vmatpush1.msra.mxu0 0.0
        %7447 = vmatprep.subr.mxu0 0.0
        %7448 = vmatpush1.msra.mxu0 0.0
        %7449 = vmatprep.subr.mxu0 0.0
        %7450 = vmatpush1.msra.mxu0 0.0
        %7451 = vmatprep.subr.mxu0 0.0
        %7452 = vmatpush1.msra.mxu0 0.0
        %7453 = vmatprep.subr.mxu0 0.0
        %7454 = vmatpush1.msra.mxu0 0.0
        %7455 = vmatprep.subr.mxu0 0.0
        %7456 = vmatpush1.msra.mxu0 0.0
        %7457 = vmatprep.subr.mxu0 0.0
        %7458 = vmatpush1.msra.mxu0 0.0
        %7459 = vmatprep.subr.mxu0 0.0
        %7460 = vmatpush1.msra.mxu0 0.0
        %7461 = vmatprep.subr.mxu0 0.0
        %7462 = vmatpush1.msra.mxu0 0.0
        %7463 = vmatprep.subr.mxu0 0.0
        %7464 = vmatpush1.msra.mxu0 0.0
        %7465 = vmatprep.subr.mxu0 0.0
        %7466 = vmatpush1.msra.mxu0 0.0
        %7467 = vmatprep.subr.mxu0 0.0
        %7468 = vmatpush1.msra.mxu0 0.0
        %7469 = vmatprep.subr.mxu0 0.0
        %7470 = vmatpush1.msra.mxu0 0.0
        %7471 = vmatprep.mubr.f32.mxu0 0.0
        %7472 = vmatmul.mubr.f32.gmra.mrb[0].mxu0 %v7401
        %v7473 = vpop.f32.mrb[0].mxu0
        %v7474 = vadd.f32 %v7397, %v7473
        %v7475 = vpop.f32.mrb[0].mxu0
        %7476 = vdwg.mxu0
        %vm7477 = vcmask 74752
        %7478 = vst.msk [vmem:[%s433] sm:$0x3] %vm7477, %v7474
        %s7479 = sand.u32 %s313, 1
        %s7480 = scalar_lea.sflag [#allocation11], %s7479
        %s7481 = sand.u32 %s313, 1
        %s7482 = smul.addr %s7481, 2
        %s7483 = scalar_lea.vmem [#allocation10], %s7482
        // Predicated region
        $region73: #{lenet_forward.1} parent=71 // pred_check
          %p7484 = pneg %p323
        $region74: #{lenet_forward.1} parent=71 // pred_check_branch
          %7486 = sbr.rel (%p7484) target = $region76
        $region75: #{lenet_forward.1} parent=71 // pred_region
          %s7488 = ssub.s32 32, 32
          %7489 = vsyncadd %s7480, %s7488
          %s7490 = smul.addr %s27, 32
          %s7491 = scalar_lea.hbm %s13, %s7490
          %s7493 = sshll.u32 %s7483, 4
          %s7494 = int_to_ptr.vmem [resolvable:$true] %s7493
          %7496 = dma.vmem_to_hbm [thread:$0]  %s7494, 32, %s7491, %s7480
        $region76: #{lenet_forward.1} parent=71 // pred_fallthru
          _
      $region72: #{lenet_forward.1} parent=5 // pred_fallthru
        _
      %p7497 = scmp.le.s32.totalorder 2, %s22
      // Predicated region
      $region77: #{lenet_forward.1} parent=5 // pred_check
        %p7498 = pneg %p7497
      $region78: #{lenet_forward.1} parent=5 // pred_check_branch
        %7500 = sbr.rel (%p7498) target = $region80
      $region79: #{lenet_forward.1} parent=5 // pred_region
        %s7501 = ssub.s32 %s22, 2
        // Predicated region
        $region81: #{lenet_forward.1} parent=79 // pred_check
          %p7502 = pneg %p329
        $region82: #{lenet_forward.1} parent=79 // pred_check_branch
          %7504 = sbr.rel (%p7502) target = $region84
        $region83: #{lenet_forward.1} parent=79 // pred_region
          %s7505 = sand.u32 %s314, 1
          %s7506 = scalar_lea.sflag [#allocation11], %s7505
          %s7507 = sand.u32 %s314, 1
          %s7508 = smul.addr %s7507, 2
          %s7509 = scalar_lea.vmem [#allocation10], %s7508
          %7510 = dma.done %s7506, 32
        $region84: #{lenet_forward.1} parent=79 // pred_fallthru
          _
      $region80: #{lenet_forward.1} parent=5 // pred_fallthru
        _
    $region6: #{lenet_forward.1} parent=1 // loop_footer
      %s26 = sadd.s32 1, %s22
    $region7: #{lenet_forward.1} parent=1 // loop_footer_branch
      %21 = sbr.rel target = $region3
    $region8: #{lenet_forward.1} parent=1 // loop_exit
      _
    %7511 = vsyncpa [#allocation11], 1
    %s7512 = scalar_lea.sflag [#allocation11], 1
    %7513 = vsyncpa %s7512, 1

</llo_original>
